<compile_context>
chip_gen: v7x
topology: tpu7x:2x2x1
jax: 0.10.0
libtpu: 0.0.40
codegen_flags: <defaults>
</compile_context>

<pallas_src>
import functools

import jax
import jax.numpy as jnp
import numpy as np
from jax.experimental import pallas as pl
from jax.experimental.pallas import tpu as pltpu

EPS = 1e-5  # torch BatchNorm1d default eps


def _fm_deep_total(s2_ref, rhs_ref, emb_dim):
    """Shared math for one batch tile.  Returns (TB, 1) f32 pre-bias logits."""
    s2 = s2_ref[...]                                   # (TB, F*E) bf16
    s2f = s2.astype(jnp.float32)                       # f32 VPU math (v5e-safe)

    # Single fused MXU pass: cols [0, E) = per-emb-dim field sums (FM 2nd order),
    # col E = deep MLP collapsed to one column (already summed over its units).
    p = jnp.dot(s2, rhs_ref[...], preferred_element_type=jnp.float32)   # (TB, E+1)
    sum_fields = p[:, :emb_dim]                                         # (TB, E)
    deep_lin = p[:, emb_dim:emb_dim + 1]                                # (TB, 1)

    # FM 2nd order = 0.5 * [ sum_e (sum_f s)^2  -  rowsum(s^2) ]   (f32 accum).
    pooled_sq = 0.5 * jnp.sum(sum_fields * sum_fields, axis=1, keepdims=True)
    neg_half_sq = -0.5 * jnp.sum(s2f * s2f, axis=1, keepdims=True)
    return neg_half_sq + pooled_sq + deep_lin                           # (TB, 1)


def _deepfm_kernel_lane(s2_ref, bias_ref, rhs_ref, out_ref, *, emb_dim):
    """Lane-dense variant: bias/out are (TB//128, 128) f32 tiles."""
    total = _fm_deep_total(s2_ref, rhs_ref, emb_dim)
    # Sublane column -> lane-dense tile (relayout work has slack here); the store
    # becomes an unmasked full-lane vst instead of TB/8 masked partial stores.
    out_ref[...] = total.reshape(out_ref.shape) + bias_ref[...]


def _deepfm_kernel_col(s2_ref, bias_ref, rhs_ref, out_ref, *, emb_dim):
    """Column-layout fallback: bias/out are (TB, 1) f32 (masked stores)."""
    out_ref[...] = _fm_deep_total(s2_ref, rhs_ref, emb_dim) + bias_ref[...]


def _pick_tb(n_lane, tb_max):
    """Rows per grid step.

    Constraints: multiple of 1024 (so the lane-dense (tb//128, 128) out/bias
    blocks keep a sublane dim that is a multiple of 8), or the whole (128-padded)
    batch for tiny batches; >= 2 grid steps (>= 4 preferred) so the 'parallel'
    axis shards across v7x's two TensorCores and the stream double-buffers;
    capped at tb_max (~2.6 MiB of bf16 stream per step at 8192)."""
    if n_lane >= 4096:
        steps = max(4, pl.cdiv(n_lane, tb_max))
        return max(1024, min(tb_max, (n_lane // steps) // 1024 * 1024))
    if n_lane >= 2048:
        return 1024
    return n_lane


def deepfm_forward(s2, bias_row, rhs, *, tb_max=8192):
    """Batch-tiled DeepFM logits.

    s2       : (N, F*E)   bf16  Xv-scaled second-order embeddings (also deep input)
    bias_row : (N,)       f32   torch bias + folded deep constant + FM 1st-order rowsum
    rhs      : (F*E, E+1) bf16  [field-pooling one-hot | collapsed deep column]
    returns  : (N,) f32 logits
    """
    n, d = s2.shape
    width = rhs.shape[1]
    emb_dim = width - 1

    n_lane = pl.cdiv(n, 128) * 128
    n_groups = n_lane // 128
    tb = _pick_tb(n_lane, tb_max)
    # == cdiv(n_lane, tb); the last s2 block may be ragged (never padded in HBM,
    # the spurious rows are dropped on store / sliced off below).
    n_steps = pl.cdiv(n, tb)

    # Bias is tiny: pad + lay it out lane-dense in the glue, all in f32.
    bias2d = jnp.pad(bias_row.astype(jnp.float32),
                     (0, n_lane - n)).reshape(n_groups, 128)

    compiler_params = pltpu.CompilerParams(
        dimension_semantics=("parallel",),            # shard batch over TCs (v7x)
        # double-buffered bf16 stream + f32 cast/square temporaries; stays under
        # v7x's 64 MiB physical VMEM while giving v5e/v6e headroom at tb=8192.
        vmem_limit_bytes=(48 if tb > 2048 else 32) * 1024 * 1024,
    )

    def run(kernel, io_block, io_shape, bias_arr):
        return pl.pallas_call(
            functools.partial(kernel, emb_dim=emb_dim),
            out_shape=jax.ShapeDtypeStruct(io_shape, jnp.float32),
            grid=(n_steps,),
            in_specs=[
                pl.BlockSpec((tb, d), lambda i: (i, 0)),       # s2 stream (bf16)
                pl.BlockSpec(io_block, lambda i: (i, 0)),      # per-row bias (f32)
                pl.BlockSpec((d, width), lambda i: (0, 0)),    # VMEM-resident RHS
            ],
            out_specs=pl.BlockSpec(io_block, lambda i: (i, 0)),
            compiler_params=compiler_params,
        )(s2, bias_arr, rhs)

    try:
        out2d = run(_deepfm_kernel_lane, (tb // 128, 128), (n_groups, 128), bias2d)
        return jax.block_until_ready(out2d.reshape(-1)[:n])
    except Exception:
        # TODO(synk): the lane-dense store needs an in-kernel (TB,1)->(TB//128,128)
        # relayout; if this Mosaic build rejects it, fall back to the proven masked
        # column store (costs only ~1% of streamed HBM bytes on this kernel).
        out = run(_deepfm_kernel_col, (tb, 1), (n_lane, 1),
                  bias2d.reshape(n_lane, 1))
        return jax.block_until_ready(out[:n, 0])


if __name__ == "__main__":
    key = jax.random.PRNGKey(0)
    N = 2000                   # exercises 2 grid steps + a ragged (unpadded) s2 block
    E = 4                      # embedding_size
    n_dense, n_sparse = 13, 27
    F = n_dense + n_sparse     # field_size = 40
    feature_sizes = [1] * n_dense + [11 + i for i in range(n_sparse)]
    H1, H2 = 32, 32            # hidden_dims
    D_in = F * E               # 160

    keys = jax.random.split(key, 20)

    # ---- inputs: Xi (dense values / sparse indices), Xv scaling factors
    xi_dense = jax.random.normal(keys[0], (N, n_dense, 1), jnp.float32)
    xi_sparse_idx = jnp.stack(
        [jax.random.randint(jax.random.fold_in(keys[1], i), (N,), 0,
                            feature_sizes[n_dense + i])
         for i in range(n_sparse)], axis=1)                 # (N, 27) int32
    xv = jax.random.normal(keys[2], (N, F), jnp.float32)

    # ---- embedding parameters & Xv-scaled per-field embeddings (XLA glue)
    def make_embedding_params(k):
        kd_w, kd_b, ks = jax.random.split(k, 3)
        w_dense = jax.random.normal(kd_w, (n_dense, E), jnp.float32) * 0.1
        b_dense = jax.random.normal(kd_b, (n_dense, E), jnp.float32) * 0.1
        tables = [jax.random.normal(jax.random.fold_in(ks, i),
                                    (feature_sizes[n_dense + i], E), jnp.float32) * 0.1
                  for i in range(n_sparse)]
        return w_dense, b_dense, tables

    def scaled_embeddings(params):
        # exactly the torch per-field loop: emb(Xi_i) scaled per-row by Xv[:, i]
        w_dense, b_dense, tables = params
        dense = xi_dense * w_dense[None] + b_dense[None]                 # (N,13,E)
        sparse = jnp.stack([tables[i][xi_sparse_idx[:, i]]
                            for i in range(n_sparse)], axis=1)           # (N,27,E)
        emb = jnp.concatenate([dense, sparse], axis=1)                   # (N,F,E)
        return (emb * xv[:, :, None]).reshape(N, D_in)                   # (N,F*E)

    # TODO(synk): the per-field gather stays in XLA glue; fusing it in-kernel
    # (VMEM-resident tables + index operands) is the next HBM-traffic win.
    s1 = scaled_embeddings(make_embedding_params(keys[3]))   # FM 1st-order embeddings
    s2 = scaled_embeddings(make_embedding_params(keys[4]))   # FM 2nd-order / deep input

    # FM first order only contributes rowsum(s1): fold it into the per-row bias in
    # f32.  (In a jitted production pipeline this sum fuses into the embedding
    # glue, so the (N,160) s1 matrix never reaches HBM or the kernel.)
    s1_rowsum = jnp.sum(s1, axis=1)                          # (N,) f32

    # ---- deep MLP parameters (Linear + eval-mode BatchNorm1d)
    w1 = jax.random.normal(keys[5], (D_in, H1), jnp.float32) * 0.05
    b1 = jax.random.normal(keys[6], (H1,), jnp.float32) * 0.05
    g1 = 1.0 + 0.1 * jax.random.normal(keys[7], (H1,), jnp.float32)
    be1 = 0.1 * jax.random.normal(keys[8], (H1,), jnp.float32)
    rm1 = 0.1 * jax.random.normal(keys[9], (H1,), jnp.float32)
    rv1 = 1.0 + 0.1 * jnp.abs(jax.random.normal(keys[10], (H1,), jnp.float32))

    w2 = jax.random.normal(keys[11], (H1, H2), jnp.float32) * 0.05
    b2 = jax.random.normal(keys[12], (H2,), jnp.float32) * 0.05
    g2 = 1.0 + 0.1 * jax.random.normal(keys[13], (H2,), jnp.float32)
    be2 = 0.1 * jax.random.normal(keys[14], (H2,), jnp.float32)
    rm2 = 0.1 * jax.random.normal(keys[15], (H2,), jnp.float32)
    rv2 = 1.0 + 0.1 * jnp.abs(jax.random.normal(keys[16], (H2,), jnp.float32))

    # ---- fold BN(eval) + biases into the linears, then collapse the (affine)
    #      deep path to a single column + scalar (done once, in f64 numpy)
    f64 = lambda a: np.asarray(a, dtype=np.float64)
    w1d, b1d, w2d, b2d = f64(w1), f64(b1), f64(w2), f64(b2)
    k1 = f64(g1) / np.sqrt(f64(rv1) + EPS)
    k2 = f64(g2) / np.sqrt(f64(rv2) + EPS)
    w1f, b1f = w1d * k1[None, :], (b1d - f64(rm1)) * k1 + f64(be1)
    w2f, b2f = w2d * k2[None, :], (b2d - f64(rm2)) * k2 + f64(be2)
    w_eff = w1f @ (w2f @ np.ones((H2,), np.float64))          # (D_in,)
    deep_c = float((b1f @ w2f).sum() + b2f.sum())             # scalar

    # field-pooling one-hot (col e sums field entries of emb dim e) fused with w_eff
    pool = (np.arange(D_in)[:, None] % E == np.arange(E)[None, :]).astype(np.float64)
    rhs64 = np.concatenate([pool, w_eff[:, None]], axis=1)    # (D_in, E+1)

    # TODO(synk): torch draws a fresh randn bias each forward; fixed for determinism.
    bias = jax.random.normal(keys[17], (N,), jnp.float32)
    bias_row = bias + jnp.float32(deep_c) + s1_rowsum          # (N,) f32

    # ---- bf16 streamed operand (f32 accumulation / elementwise in-kernel).
    # TODO(synk): optional int8 (v5e/v6e) / fp8 (v7x) quantization of s2 would
    # halve HBM bytes again but is accuracy-gated by the FM-2nd-order subtraction.
    s2_bf = s2.astype(jnp.bfloat16)
    rhs_bf = jnp.asarray(rhs64, dtype=jnp.bfloat16)

    out = jax.block_until_ready(deepfm_forward(s2_bf, bias_row, rhs_bf))
    out = np.asarray(out)

    # ---- check A: algebraic collapse equals the original module forward (f64)
    s1d, s2d = f64(s1), f64(s2)
    first = s1d.sum(1)
    sf = s2d.reshape(N, F, E).sum(1)
    ss = (s2d.reshape(N, F, E) ** 2).sum(1)
    second = 0.5 * (sf * sf - ss)
    h = s2d @ w1d + b1d
    h = (h - f64(rm1)) / np.sqrt(f64(rv1) + EPS) * f64(g1) + f64(be1)
    h = h @ w2d + b2d
    h = (h - f64(rm2)) / np.sqrt(f64(rv2) + EPS) * f64(g2) + f64(be2)
    ref_module = first + second.sum(1) + h.sum(1) + f64(bias)

    def collapsed(s2_, rhs_, bias_plus_first):
        p = s2_ @ rhs_
        return (-0.5 * (s2_ ** 2).sum(1) + 0.5 * (p[:, :E] ** 2).sum(1)
                + p[:, E] + bias_plus_first)

    ref_fast = collapsed(s2d, rhs64, f64(bias) + deep_c + s1d.sum(1))
    np.testing.assert_allclose(ref_fast, ref_module, rtol=1e-6, atol=1e-6)

    # ---- check B: the kernel matches the collapsed math on its actual operands
    ref_kernel = collapsed(f64(s2_bf.astype(jnp.float32)),
                           f64(rhs_bf.astype(jnp.float32)),
                           f64(bias_row))
    np.testing.assert_allclose(out, ref_kernel, rtol=2e-3, atol=2e-3)

    print("KERNEL_OK")
</pallas_src>

<mosaic_0001>
module attributes {stable_mosaic.version = 11 : i64} {
  func.func @_deepfm_kernel_lane(%arg0: i32, %arg1: memref<1024x160xbf16, #tpu.memory_space<vmem>>, %arg2: memref<8x128xf32, #tpu.memory_space<vmem>>, %arg3: memref<160x5xbf16, #tpu.memory_space<vmem>>, %arg4: memref<8x128xf32, #tpu.memory_space<vmem>>) attributes {dimension_semantics = [#tpu.dimension_semantics<parallel>], iteration_bounds = array<i64: 2>, scalar_prefetch = 0 : i64, scratch_operands = 0 : i64, tpu.core_type = #tpu.core_type<tc>, window_params = [{transform_indices = @transform_0, window_bounds = array<i64: 1024, 160>}, {transform_indices = @transform_1, window_bounds = array<i64: 8, 128>}, {pipeline_mode = #tpu.pipeline_mode<synchronous>, transform_indices = @transform_2, window_bounds = array<i64: 160, 5>}, {transform_indices = @transform_3, window_bounds = array<i64: 8, 128>}]} {
    %c0 = arith.constant 0 : index
    %c0_0 = arith.constant 0 : index
    %0 = vector.load %arg1[%c0, %c0_0] : memref<1024x160xbf16, #tpu.memory_space<vmem>>, vector<1024x160xbf16>
    %1 = arith.extf %0 : vector<1024x160xbf16> to vector<1024x160xf32>
    %c0_1 = arith.constant 0 : index
    %c0_2 = arith.constant 0 : index
    %2 = vector.load %arg3[%c0_1, %c0_2] : memref<160x5xbf16, #tpu.memory_space<vmem>>, vector<160x5xbf16>
    %cst = arith.constant dense<0.000000e+00> : vector<1024x5xf32>
    %3 = tpu.matmul %0, %2, %cst {dimension_numbers = #tpu.dot_dimension_numbers<[1], [0], [0], [1], [0, 0, 1, 1], [], []>} : vector<1024x160xbf16>, vector<160x5xbf16>, vector<1024x5xf32> -> vector<1024x5xf32>
    %4 = vector.extract_strided_slice %3 {offsets = [0, 0], sizes = [1024, 4], strides = [1, 1]} : vector<1024x5xf32> to vector<1024x4xf32>
    %5 = vector.extract_strided_slice %3 {offsets = [0, 4], sizes = [1024, 1], strides = [1, 1]} : vector<1024x5xf32> to vector<1024x1xf32>
    %6 = arith.mulf %4, %4 : vector<1024x4xf32>
    %cst_3 = arith.constant dense<0.000000e+00> : vector<1024xf32>
    %7 = vector.multi_reduction <add>, %6, %cst_3 [1] : vector<1024x4xf32> to vector<1024xf32>
    %8 = vector.shape_cast %7 : vector<1024xf32> to vector<1024x1xf32>
    %cst_4 = arith.constant 5.000000e-01 : f32
    %9 = vector.broadcast %cst_4 : f32 to vector<1024x1xf32>
    %10 = arith.mulf %9, %8 : vector<1024x1xf32>
    %11 = arith.mulf %1, %1 : vector<1024x160xf32>
    %cst_5 = arith.constant dense<0.000000e+00> : vector<1024xf32>
    %12 = vector.multi_reduction <add>, %11, %cst_5 [1] : vector<1024x160xf32> to vector<1024xf32>
    %13 = vector.shape_cast %12 : vector<1024xf32> to vector<1024x1xf32>
    %cst_6 = arith.constant -5.000000e-01 : f32
    %14 = vector.broadcast %cst_6 : f32 to vector<1024x1xf32>
    %15 = arith.mulf %14, %13 : vector<1024x1xf32>
    %16 = arith.addf %15, %10 : vector<1024x1xf32>
    %17 = arith.addf %16, %5 : vector<1024x1xf32>
    %18 = vector.shape_cast %17 : vector<1024x1xf32> to vector<8x128xf32>
    %c0_7 = arith.constant 0 : index
    %c0_8 = arith.constant 0 : index
    %19 = vector.load %arg2[%c0_7, %c0_8] : memref<8x128xf32, #tpu.memory_space<vmem>>, vector<8x128xf32>
    %20 = arith.addf %18, %19 : vector<8x128xf32>
    %c0_9 = arith.constant 0 : index
    %c0_10 = arith.constant 0 : index
    %21 = vector.load %arg4[%c0_9, %c0_10] : memref<8x128xf32, #tpu.memory_space<vmem>>, vector<8x128xf32>
    tpu.vector_store %arg4[%c0_9, %c0_10], %20 {strides = array<i32>} : memref<8x128xf32, #tpu.memory_space<vmem>>, vector<8x128xf32>,
    return
  }
  func.func @transform_0(%arg0: i32) -> (i32, i32) {
    %c0_i32 = arith.constant 0 : i32
    %c0_i32_0 = arith.constant 0 : i32
    return %arg0, %c0_i32 : i32, i32
  }
  func.func @transform_1(%arg0: i32) -> (i32, i32) {
    %c0_i32 = arith.constant 0 : i32
    %c0_i32_0 = arith.constant 0 : i32
    return %arg0, %c0_i32 : i32, i32
  }
  func.func @transform_2(%arg0: i32) -> (i32, i32) {
    %c0_i32 = arith.constant 0 : i32
    %c0_i32_0 = arith.constant 0 : i32
    %c0_i32_1 = arith.constant 0 : i32
    return %c0_i32, %c0_i32_0 : i32, i32
  }
  func.func @transform_3(%arg0: i32) -> (i32, i32) {
    %c0_i32 = arith.constant 0 : i32
    %c0_i32_0 = arith.constant 0 : i32
    return %arg0, %c0_i32 : i32, i32
  }
}

module attributes {stable_mosaic.version = 11 : i64} {
  func.func @_deepfm_kernel_col(%arg0: i32, %arg1: memref<1024x160xbf16, #tpu.memory_space<vmem>>, %arg2: memref<1024x1xf32, #tpu.memory_space<vmem>>, %arg3: memref<160x5xbf16, #tpu.memory_space<vmem>>, %arg4: memref<1024x1xf32, #tpu.memory_space<vmem>>) attributes {dimension_semantics = [#tpu.dimension_semantics<parallel>], iteration_bounds = array<i64: 2>, scalar_prefetch = 0 : i64, scratch_operands = 0 : i64, tpu.core_type = #tpu.core_type<tc>, window_params = [{transform_indices = @transform_0, window_bounds = array<i64: 1024, 160>}, {transform_indices = @transform_1, window_bounds = array<i64: 1024, 1>}, {pipeline_mode = #tpu.pipeline_mode<synchronous>, transform_indices = @transform_2, window_bounds = array<i64: 160, 5>}, {transform_indices = @transform_3, window_bounds = array<i64: 1024, 1>}]} {
    %c0 = arith.constant 0 : index
    %c0_0 = arith.constant 0 : index
    %0 = vector.load %arg1[%c0, %c0_0] : memref<1024x160xbf16, #tpu.memory_space<vmem>>, vector<1024x160xbf16>
    %1 = arith.extf %0 : vector<1024x160xbf16> to vector<1024x160xf32>
    %c0_1 = arith.constant 0 : index
    %c0_2 = arith.constant 0 : index
    %2 = vector.load %arg3[%c0_1, %c0_2] : memref<160x5xbf16, #tpu.memory_space<vmem>>, vector<160x5xbf16>
    %cst = arith.constant dense<0.000000e+00> : vector<1024x5xf32>
    %3 = tpu.matmul %0, %2, %cst {dimension_numbers = #tpu.dot_dimension_numbers<[1], [0], [0], [1], [0, 0, 1, 1], [], []>} : vector<1024x160xbf16>, vector<160x5xbf16>, vector<1024x5xf32> -> vector<1024x5xf32>
    %4 = vector.extract_strided_slice %3 {offsets = [0, 0], sizes = [1024, 4], strides = [1, 1]} : vector<1024x5xf32> to vector<1024x4xf32>
    %5 = vector.extract_strided_slice %3 {offsets = [0, 4], sizes = [1024, 1], strides = [1, 1]} : vector<1024x5xf32> to vector<1024x1xf32>
    %6 = arith.mulf %4, %4 : vector<1024x4xf32>
    %cst_3 = arith.constant dense<0.000000e+00> : vector<1024xf32>
    %7 = vector.multi_reduction <add>, %6, %cst_3 [1] : vector<1024x4xf32> to vector<1024xf32>
    %8 = vector.shape_cast %7 : vector<1024xf32> to vector<1024x1xf32>
    %cst_4 = arith.constant 5.000000e-01 : f32
    %9 = vector.broadcast %cst_4 : f32 to vector<1024x1xf32>
    %10 = arith.mulf %9, %8 : vector<1024x1xf32>
    %11 = arith.mulf %1, %1 : vector<1024x160xf32>
    %cst_5 = arith.constant dense<0.000000e+00> : vector<1024xf32>
    %12 = vector.multi_reduction <add>, %11, %cst_5 [1] : vector<1024x160xf32> to vector<1024xf32>
    %13 = vector.shape_cast %12 : vector<1024xf32> to vector<1024x1xf32>
    %cst_6 = arith.constant -5.000000e-01 : f32
    %14 = vector.broadcast %cst_6 : f32 to vector<1024x1xf32>
    %15 = arith.mulf %14, %13 : vector<1024x1xf32>
    %16 = arith.addf %15, %10 : vector<1024x1xf32>
    %17 = arith.addf %16, %5 : vector<1024x1xf32>
    %c0_7 = arith.constant 0 : index
    %c0_8 = arith.constant 0 : index
    %18 = vector.load %arg2[%c0_7, %c0_8] : memref<1024x1xf32, #tpu.memory_space<vmem>>, vector<1024x1xf32>
    %19 = arith.addf %17, %18 : vector<1024x1xf32>
    %c0_9 = arith.constant 0 : index
    %c0_10 = arith.constant 0 : index
    %20 = vector.load %arg4[%c0_9, %c0_10] : memref<1024x1xf32, #tpu.memory_space<vmem>>, vector<1024x1xf32>
    tpu.vector_store %arg4[%c0_9, %c0_10], %19 {strides = array<i32>} : memref<1024x1xf32, #tpu.memory_space<vmem>>, vector<1024x1xf32>,
    return
  }
  func.func @transform_0(%arg0: i32) -> (i32, i32) {
    %c0_i32 = arith.constant 0 : i32
    %c0_i32_0 = arith.constant 0 : i32
    return %arg0, %c0_i32 : i32, i32
  }
  func.func @transform_1(%arg0: i32) -> (i32, i32) {
    %c0_i32 = arith.constant 0 : i32
    %c0_i32_0 = arith.constant 0 : i32
    return %arg0, %c0_i32 : i32, i32
  }
  func.func @transform_2(%arg0: i32) -> (i32, i32) {
    %c0_i32 = arith.constant 0 : i32
    %c0_i32_0 = arith.constant 0 : i32
    %c0_i32_1 = arith.constant 0 : i32
    return %c0_i32, %c0_i32_0 : i32, i32
  }
  func.func @transform_3(%arg0: i32) -> (i32, i32) {
    %c0_i32 = arith.constant 0 : i32
    %c0_i32_0 = arith.constant 0 : i32
    return %arg0, %c0_i32 : i32, i32
  }
}

</mosaic_0001>

<llo_original>
// kernel: tpu_custom_call.1
$region0: #{tpu_custom_call.1}
  #allocation0 [shape = 'u32[]', space=smem, size = 0x4, offset = 0x4, fixed_abs, tag = 'smem constant byte address 0x4 - core index']
  #allocation1 [shape = 'u32[144,128]{1,0:T(1,128)}', space=vmem, size = 0x12000, scoped, tag = 'internal scratch']
  %s0 = inlined_call_operand.vmem [shape: bf16[2000,160], index: 0, kind: input, shape index: {}]
  %s1 = inlined_call_operand.vmem [shape: f32[16,128], index: 1, kind: input, shape index: {}]
  %s2 = inlined_call_operand.vmem [shape: bf16[160,5], index: 2, kind: input, shape index: {}]
  %s3 = inlined_call_operand.hbm [shape: f32[16,128], index: 3, kind: output, shape index: {}]
  %s4 = sld [smem:[#allocation0]]
  $region45: #{tpu_custom_call.1} parent=0
    _
  %s6 = ssub.s32 1, %s4
  %s7 = scalar_select 0, %s6, %s4
  $region1: #{tpu_custom_call.1} parent=0
    #allocation2 [shape = 'u8[8192]{0}', space=vmem, size = 0x2000, scoped, tag = 'output window, operand 0']
    #allocation3 [shape = 's32[2]{0}', space=sflag, size = 0x8, scoped, tag = 'scoped memory for tpu_custom_call.1']
    %8 = vsyncpa [#allocation3], 0
    %s9 = scalar_lea.sflag [#allocation3], 1
    %10 = vsyncpa %s9, 0
    loop: start=0, step=1, limit=4
    $region2: #{tpu_custom_call.1} parent=1 // loop_pre_header
      _
    $region3: #{tpu_custom_call.1} parent=1 // loop_header
      %s12 = sphi 0, %s16
      %p13 = scmp.ge.s32.totalorder %s12, 4
      %s22 = sphi 0, %s24
      %s25 = sphi 0, %s22
      %s26 = sphi 0, %s25
      %s42 = sphi 0, %s26
      %s48 = sphi 0, %s50
      %s51 = sphi 0, %s48
      %s52 = sphi 0, %s51
      %s68 = sphi 0, %s52
      %s72 = sphi 0, %s72
      %s74 = sphi 0, %s72
      %s75 = sphi 0, %s74
      %s89 = sphi 0, %s75
      %s95 = sphi 0, %s97
      %s98 = sphi 0, %s95
      %s99 = sphi 0, %s98
      %s115 = sphi 0, %s99
    $region4: #{tpu_custom_call.1} parent=1 // loop_header_branch
      %15 = sbr.rel (%p13) target = $region8
    $region5: #{tpu_custom_call.1} parent=1 // loop_body
      %s17 = ssub.s32 %s12, 1
      %s18 = ssub.s32 %s12, 2
      %s19 = sadd.s32 %s12, 1
      %s20 = ssub.s32 %s12, %s19
      %p21 = scmp.eq.s32.totalorder %s20, 0
      %s23 = sadd.s32 %s22, 1
      %s24 = scalar_select %p21, %s22, %s23
      %p27 = pneg %p21
      %p28 = scmp.eq.s32.totalorder %s12, 1
      %p29 = por %p27, %p28
      %p30 = scmp.ne.s32.totalorder %s22, %s25
      %p31 = scmp.eq.s32.totalorder %s12, 0
      %p32 = por %p30, %p31
      %p33 = scmp.ne.s32.totalorder %s22, %s25
      %p34 = scmp.eq.s32.totalorder %s17, 1
      %p35 = por %p33, %p34
      %p36 = scmp.ne.s32.totalorder %s25, %s26
      %p37 = scmp.eq.s32.totalorder %s17, 0
      %p38 = por %p36, %p37
      %p39 = scmp.ne.s32.totalorder %s25, %s26
      %p40 = scmp.eq.s32.totalorder %s18, 1
      %p41 = por %p39, %p40
      %p43 = scmp.ne.s32.totalorder %s26, %s42
      %p44 = scmp.eq.s32.totalorder %s18, 0
      %p45 = por %p43, %p44
      %s46 = ssub.s32 %s12, %s19
      %p47 = scmp.eq.s32.totalorder %s46, 0
      %s49 = sadd.s32 %s48, 1
      %s50 = scalar_select %p47, %s48, %s49
      %p53 = pneg %p47
      %p54 = scmp.eq.s32.totalorder %s12, 1
      %p55 = por %p53, %p54
      %p56 = scmp.ne.s32.totalorder %s48, %s51
      %p57 = scmp.eq.s32.totalorder %s12, 0
      %p58 = por %p56, %p57
      %p59 = scmp.ne.s32.totalorder %s48, %s51
      %p60 = scmp.eq.s32.totalorder %s17, 1
      %p61 = por %p59, %p60
      %p62 = scmp.ne.s32.totalorder %s51, %s52
      %p63 = scmp.eq.s32.totalorder %s17, 0
      %p64 = por %p62, %p63
      %p65 = scmp.ne.s32.totalorder %s51, %s52
      %p66 = scmp.eq.s32.totalorder %s18, 1
      %p67 = por %p65, %p66
      %p69 = scmp.ne.s32.totalorder %s52, %s68
      %p70 = scmp.eq.s32.totalorder %s18, 0
      %p71 = por %p69, %p70
      %s73 = sadd.s32 %s72, 1
      %p76 = scmp.eq.s32.totalorder %s12, 1
      %p77 = scmp.ne.s32.totalorder %s72, %s74
      %p78 = scmp.eq.s32.totalorder %s12, 0
      %p79 = por %p77, %p78
      %p80 = scmp.ne.s32.totalorder %s72, %s74
      %p81 = scmp.eq.s32.totalorder %s17, 1
      %p82 = por %p80, %p81
      %p83 = scmp.ne.s32.totalorder %s74, %s75
      %p84 = scmp.eq.s32.totalorder %s17, 0
      %p85 = por %p83, %p84
      %p86 = scmp.ne.s32.totalorder %s74, %s75
      %p87 = scmp.eq.s32.totalorder %s18, 1
      %p88 = por %p86, %p87
      %p90 = scmp.ne.s32.totalorder %s75, %s89
      %p91 = scmp.eq.s32.totalorder %s18, 0
      %p92 = por %p90, %p91
      %s93 = ssub.s32 %s12, %s19
      %p94 = scmp.eq.s32.totalorder %s93, 0
      %s96 = sadd.s32 %s95, 1
      %s97 = scalar_select %p94, %s95, %s96
      %p100 = pneg %p94
      %p101 = scmp.eq.s32.totalorder %s12, 1
      %p102 = por %p100, %p101
      %p103 = scmp.ne.s32.totalorder %s95, %s98
      %p104 = scmp.eq.s32.totalorder %s12, 0
      %p105 = por %p103, %p104
      %p106 = scmp.ne.s32.totalorder %s95, %s98
      %p107 = scmp.eq.s32.totalorder %s17, 1
      %p108 = por %p106, %p107
      %p109 = scmp.ne.s32.totalorder %s98, %s99
      %p110 = scmp.eq.s32.totalorder %s17, 0
      %p111 = por %p109, %p110
      %p112 = scmp.ne.s32.totalorder %s98, %s99
      %p113 = scmp.eq.s32.totalorder %s18, 1
      %p114 = por %p112, %p113
      %p116 = scmp.ne.s32.totalorder %s99, %s115
      %p117 = scmp.eq.s32.totalorder %s18, 0
      %p118 = por %p116, %p117
      %p119 = scmp.le.s32.totalorder 1, %s12
      %p120 = scmp.lt.s32.totalorder %s12, 3
      %p121 = pnand %p119, %p120
      %p122 = pneg %p121
      // Predicated region
      $region9: #{tpu_custom_call.1} parent=5 // pred_check
        _
      $region10: #{tpu_custom_call.1} parent=5 // pred_check_branch
        %124 = sbr.rel (%p121) target = $region12
      $region11: #{tpu_custom_call.1} parent=5 // pred_region
        %s125 = ssub.s32 %s12, 1
        // Predicated region
        $region13: #{tpu_custom_call.1} parent=11 // pred_check
          %p126 = pneg %p85
        $region14: #{tpu_custom_call.1} parent=11 // pred_check_branch
          %128 = sbr.rel (%p126) target = $region16
        $region15: #{tpu_custom_call.1} parent=11 // pred_region
          _
        $region16: #{tpu_custom_call.1} parent=11 // pred_fallthru
          _
      $region12: #{tpu_custom_call.1} parent=5 // pred_fallthru
        _
      %p129 = scmp.lt.s32.totalorder %s12, 2
      // Predicated region
      $region17: #{tpu_custom_call.1} parent=5 // pred_check
        %p130 = pneg %p129
      $region18: #{tpu_custom_call.1} parent=5 // pred_check_branch
        %132 = sbr.rel (%p130) target = $region20
      $region19: #{tpu_custom_call.1} parent=5 // pred_region
        // Predicated region
        $region21: #{tpu_custom_call.1} parent=19 // pred_check
          %p133 = pneg %p32
        $region22: #{tpu_custom_call.1} parent=19 // pred_check_branch
          %135 = sbr.rel (%p133) target = $region24
        $region23: #{tpu_custom_call.1} parent=19 // pred_region
          %s136 = smul.u32 128, %s12
          %s137 = ssub.s32 250, %s136
          %p138 = scmp.lt.s32.totalorder %s137, 128
          %s139 = scalar_select %p138, %s137, 128
          %s140 = smul.u32 64, %s139
          %s141 = smul.u32 %s140, 2
          %p142 = scmp.lt.s32.totalorder %s136, 249
          %s143 = scalar_select %p142, %s136, 249
          %s144 = smul.addr %s143, 2
          %s145 = smul.addr %s144, 4
          %s146 = scalar_lea.vmem %s0, %s145
          %s147 = smul.u32 128, %s12
          %s148 = ssub.s32 250, %s147
          %p149 = scmp.lt.s32.totalorder %s148, 128
          %s150 = scalar_select %p149, %s148, 128
          %s151 = smul.u32 64, %s150
          %s152 = smul.u32 %s151, 2
        $region24: #{tpu_custom_call.1} parent=19 // pred_fallthru
          _
        // Predicated region
        $region25: #{tpu_custom_call.1} parent=19 // pred_check
          %p153 = pneg %p58
        $region26: #{tpu_custom_call.1} parent=19 // pred_check_branch
          %155 = sbr.rel (%p153) target = $region28
        $region27: #{tpu_custom_call.1} parent=19 // pred_region
          %p156 = scmp.lt.s32.totalorder %s12, 1
          %s157 = scalar_select %p156, %s12, 1
          %s158 = smul.addr %s157, 8
          %s159 = scalar_lea.vmem %s1, %s158
        $region28: #{tpu_custom_call.1} parent=19 // pred_fallthru
          _
      $region20: #{tpu_custom_call.1} parent=5 // pred_fallthru
        _
      %p160 = scmp.le.s32.totalorder 1, %s12
      %p161 = scmp.lt.s32.totalorder %s12, 3
      %p162 = pnand %p160, %p161
      %p163 = pneg %p162
      // Predicated region
      $region29: #{tpu_custom_call.1} parent=5 // pred_check
        _
      $region30: #{tpu_custom_call.1} parent=5 // pred_check_branch
        %165 = sbr.rel (%p162) target = $region32
      $region31: #{tpu_custom_call.1} parent=5 // pred_region
        %s166 = ssub.s32 %s12, 1
        %s167 = smul.u32 128, %s17
        %s168 = ssub.s32 250, %s167
        %p169 = scmp.lt.s32.totalorder %s168, 128
        %s170 = scalar_select %p169, %s168, 128
        %s171 = smul.u32 64, %s170
        %s172 = smul.u32 %s171, 2
        %p173 = scmp.lt.s32.totalorder %s167, 249
        %s174 = scalar_select %p173, %s167, 249
        %s175 = smul.addr %s174, 2
        %s176 = smul.addr %s175, 4
        %s177 = scalar_lea.vmem %s0, %s176
        %p178 = pneg %p38
        %p179 = pneg %p35
        %p180 = scmp.lt.s32.totalorder %s17, 1
        %s181 = scalar_select %p180, %s17, 1
        %s182 = smul.addr %s181, 8
        %s183 = scalar_lea.vmem %s1, %s182
        %p184 = pneg %p64
        %p185 = pneg %p61
        %p186 = pneg %p85
        %p187 = pneg %p82
        %p188 = pneg %p111
        %p189 = pneg %p108
        %s190 = sand.u32 %s98, 1
        %s191 = scalar_lea.sflag [#allocation3], %s190
        %s192 = sand.u32 %s98, 1
        %s193 = smul.addr %s192, 8
        %s194 = scalar_lea.vmem [#allocation2], %s193
        %s195 = smul.u32 128, %s17
        %s196 = ssub.s32 250, %s195
        %p197 = scmp.lt.s32.totalorder %s196, 128
        %s198 = scalar_select %p197, %s196, 128
        %s199 = smul.u32 64, %s198
        %s200 = smul.u32 %s199, 2
        %p201 = scmp.lt.s32.totalorder %s195, 249
        %s202 = scalar_select %p201, %s195, 249
        %s203 = smul.addr %s202, 2
        %s204 = smul.addr %s203, 4
        %s205 = scalar_lea.vmem %s0, %s204
        %s206 = smul.u32 128, %s17
        %s207 = ssub.s32 250, %s206
        %p208 = scmp.lt.s32.totalorder %s207, 128
        %s209 = scalar_select %p208, %s207, 128
        %s210 = smul.u32 64, %s209
        %s211 = smul.u32 %s210, 2
        %p212 = scmp.lt.s32.totalorder %s17, 1
        %s213 = scalar_select %p212, %s17, 1
        %s214 = smul.addr %s213, 8
        %s215 = scalar_lea.vmem %s1, %s214
        %v217 = vld [vmem:[%s205] sm:$0xff]
        %v218 = vld [vmem:[%s205 + $0x8] sm:$0xff]
        %v219 = vld [vmem:[%s205 + $0x10] sm:$0xff]
        %v220 = vld [vmem:[%s205 + $0x18] sm:$0xff]
        %v221 = vld [vmem:[%s205 + $0x20] sm:$0xff]
        %v222 = vld [vmem:[%s205 + $0x28] sm:$0xff]
        %v223 = vld [vmem:[%s205 + $0x30] sm:$0xff]
        %v224 = vld [vmem:[%s205 + $0x38] sm:$0xff]
        %v225 = vld [vmem:[%s205 + $0x40] sm:$0xff]
        %v226 = vld [vmem:[%s205 + $0x48] sm:$0xff]
        %v227 = vld [vmem:[%s205 + $0x50] sm:$0xff]
        %v228 = vld [vmem:[%s205 + $0x58] sm:$0xff]
        %v229 = vld [vmem:[%s205 + $0x60] sm:$0xff]
        %v230 = vld [vmem:[%s205 + $0x68] sm:$0xff]
        %v231 = vld [vmem:[%s205 + $0x70] sm:$0xff]
        %v232 = vld [vmem:[%s205 + $0x78] sm:$0xff]
        %v233 = vld [vmem:[%s205 + $0x80] sm:$0xff]
        %v234 = vld [vmem:[%s205 + $0x88] sm:$0xff]
        %v235 = vld [vmem:[%s205 + $0x90] sm:$0xff]
        %v236 = vld [vmem:[%s205 + $0x98] sm:$0xff]
        %v237 = vld [vmem:[%s205 + $0xa0] sm:$0xff]
        %v238 = vld [vmem:[%s205 + $0xa8] sm:$0xff]
        %v239 = vld [vmem:[%s205 + $0xb0] sm:$0xff]
        %v240 = vld [vmem:[%s205 + $0xb8] sm:$0xff]
        %v241 = vld [vmem:[%s205 + $0xc0] sm:$0xff]
        %v242 = vld [vmem:[%s205 + $0xc8] sm:$0xff]
        %v243 = vld [vmem:[%s205 + $0xd0] sm:$0xff]
        %v244 = vld [vmem:[%s205 + $0xd8] sm:$0xff]
        %v245 = vld [vmem:[%s205 + $0xe0] sm:$0xff]
        %v246 = vld [vmem:[%s205 + $0xe8] sm:$0xff]
        %v247 = vld [vmem:[%s205 + $0xf0] sm:$0xff]
        %v248 = vld [vmem:[%s205 + $0xf8] sm:$0xff]
        %v249 = vld [vmem:[%s205 + $0x100] sm:$0xff]
        %v250 = vld [vmem:[%s205 + $0x108] sm:$0xff]
        %v251 = vld [vmem:[%s205 + $0x110] sm:$0xff]
        %v252 = vld [vmem:[%s205 + $0x118] sm:$0xff]
        %v253 = vld [vmem:[%s205 + $0x120] sm:$0xff]
        %v254 = vld [vmem:[%s205 + $0x128] sm:$0xff]
        %v255 = vld [vmem:[%s205 + $0x130] sm:$0xff]
        %v256 = vld [vmem:[%s205 + $0x138] sm:$0xff]
        %v257 = vld [vmem:[%s205 + $0x140] sm:$0xff]
        %v258 = vld [vmem:[%s205 + $0x148] sm:$0xff]
        %v259 = vld [vmem:[%s205 + $0x150] sm:$0xff]
        %v260 = vld [vmem:[%s205 + $0x158] sm:$0xff]
        %v261 = vld [vmem:[%s205 + $0x160] sm:$0xff]
        %v262 = vld [vmem:[%s205 + $0x168] sm:$0xff]
        %v263 = vld [vmem:[%s205 + $0x170] sm:$0xff]
        %v264 = vld [vmem:[%s205 + $0x178] sm:$0xff]
        %v265 = vld [vmem:[%s205 + $0x180] sm:$0xff]
        %v266 = vld [vmem:[%s205 + $0x188] sm:$0xff]
        %v267 = vld [vmem:[%s205 + $0x190] sm:$0xff]
        %v268 = vld [vmem:[%s205 + $0x198] sm:$0xff]
        %v269 = vld [vmem:[%s205 + $0x1a0] sm:$0xff]
        %v270 = vld [vmem:[%s205 + $0x1a8] sm:$0xff]
        %v271 = vld [vmem:[%s205 + $0x1b0] sm:$0xff]
        %v272 = vld [vmem:[%s205 + $0x1b8] sm:$0xff]
        %v273 = vld [vmem:[%s205 + $0x1c0] sm:$0xff]
        %v274 = vld [vmem:[%s205 + $0x1c8] sm:$0xff]
        %v275 = vld [vmem:[%s205 + $0x1d0] sm:$0xff]
        %v276 = vld [vmem:[%s205 + $0x1d8] sm:$0xff]
        %v277 = vld [vmem:[%s205 + $0x1e0] sm:$0xff]
        %v278 = vld [vmem:[%s205 + $0x1e8] sm:$0xff]
        %v279 = vld [vmem:[%s205 + $0x1f0] sm:$0xff]
        %v280 = vld [vmem:[%s205 + $0x1f8] sm:$0xff]
        %v281 = vld [vmem:[%s205 + $0x200] sm:$0xff]
        %v282 = vld [vmem:[%s205 + $0x208] sm:$0xff]
        %v283 = vld [vmem:[%s205 + $0x210] sm:$0xff]
        %v284 = vld [vmem:[%s205 + $0x218] sm:$0xff]
        %v285 = vld [vmem:[%s205 + $0x220] sm:$0xff]
        %v286 = vld [vmem:[%s205 + $0x228] sm:$0xff]
        %v287 = vld [vmem:[%s205 + $0x230] sm:$0xff]
        %v288 = vld [vmem:[%s205 + $0x238] sm:$0xff]
        %v289 = vld [vmem:[%s205 + $0x240] sm:$0xff]
        %v290 = vld [vmem:[%s205 + $0x248] sm:$0xff]
        %v291 = vld [vmem:[%s205 + $0x250] sm:$0xff]
        %v292 = vld [vmem:[%s205 + $0x258] sm:$0xff]
        %v293 = vld [vmem:[%s205 + $0x260] sm:$0xff]
        %v294 = vld [vmem:[%s205 + $0x268] sm:$0xff]
        %v295 = vld [vmem:[%s205 + $0x270] sm:$0xff]
        %v296 = vld [vmem:[%s205 + $0x278] sm:$0xff]
        %v297 = vld [vmem:[%s205 + $0x280] sm:$0xff]
        %v298 = vld [vmem:[%s205 + $0x288] sm:$0xff]
        %v299 = vld [vmem:[%s205 + $0x290] sm:$0xff]
        %v300 = vld [vmem:[%s205 + $0x298] sm:$0xff]
        %v301 = vld [vmem:[%s205 + $0x2a0] sm:$0xff]
        %v302 = vld [vmem:[%s205 + $0x2a8] sm:$0xff]
        %v303 = vld [vmem:[%s205 + $0x2b0] sm:$0xff]
        %v304 = vld [vmem:[%s205 + $0x2b8] sm:$0xff]
        %v305 = vld [vmem:[%s205 + $0x2c0] sm:$0xff]
        %v306 = vld [vmem:[%s205 + $0x2c8] sm:$0xff]
        %v307 = vld [vmem:[%s205 + $0x2d0] sm:$0xff]
        %v308 = vld [vmem:[%s205 + $0x2d8] sm:$0xff]
        %v309 = vld [vmem:[%s205 + $0x2e0] sm:$0xff]
        %v310 = vld [vmem:[%s205 + $0x2e8] sm:$0xff]
        %v311 = vld [vmem:[%s205 + $0x2f0] sm:$0xff]
        %v312 = vld [vmem:[%s205 + $0x2f8] sm:$0xff]
        %v313 = vld [vmem:[%s205 + $0x300] sm:$0xff]
        %v314 = vld [vmem:[%s205 + $0x308] sm:$0xff]
        %v315 = vld [vmem:[%s205 + $0x310] sm:$0xff]
        %v316 = vld [vmem:[%s205 + $0x318] sm:$0xff]
        %v317 = vld [vmem:[%s205 + $0x320] sm:$0xff]
        %v318 = vld [vmem:[%s205 + $0x328] sm:$0xff]
        %v319 = vld [vmem:[%s205 + $0x330] sm:$0xff]
        %v320 = vld [vmem:[%s205 + $0x338] sm:$0xff]
        %v321 = vld [vmem:[%s205 + $0x340] sm:$0xff]
        %v322 = vld [vmem:[%s205 + $0x348] sm:$0xff]
        %v323 = vld [vmem:[%s205 + $0x350] sm:$0xff]
        %v324 = vld [vmem:[%s205 + $0x358] sm:$0xff]
        %v325 = vld [vmem:[%s205 + $0x360] sm:$0xff]
        %v326 = vld [vmem:[%s205 + $0x368] sm:$0xff]
        %v327 = vld [vmem:[%s205 + $0x370] sm:$0xff]
        %v328 = vld [vmem:[%s205 + $0x378] sm:$0xff]
        %v329 = vld [vmem:[%s205 + $0x380] sm:$0xff]
        %v330 = vld [vmem:[%s205 + $0x388] sm:$0xff]
        %v331 = vld [vmem:[%s205 + $0x390] sm:$0xff]
        %v332 = vld [vmem:[%s205 + $0x398] sm:$0xff]
        %v333 = vld [vmem:[%s205 + $0x3a0] sm:$0xff]
        %v334 = vld [vmem:[%s205 + $0x3a8] sm:$0xff]
        %v335 = vld [vmem:[%s205 + $0x3b0] sm:$0xff]
        %v336 = vld [vmem:[%s205 + $0x3b8] sm:$0xff]
        %v337 = vld [vmem:[%s205 + $0x3c0] sm:$0xff]
        %v338 = vld [vmem:[%s205 + $0x3c8] sm:$0xff]
        %v339 = vld [vmem:[%s205 + $0x3d0] sm:$0xff]
        %v340 = vld [vmem:[%s205 + $0x3d8] sm:$0xff]
        %v341 = vld [vmem:[%s205 + $0x3e0] sm:$0xff]
        %v342 = vld [vmem:[%s205 + $0x3e8] sm:$0xff]
        %v343 = vld [vmem:[%s205 + $0x3f0] sm:$0xff]
        %v344 = vld [vmem:[%s205 + $0x3f8] sm:$0xff]
        %v345 = vunpack.c.l.bf16 %v217
        %v346 = vunpack.c.h.bf16 %v217
        %v347 = vunpack.c.l.bf16 %v218
        %v348 = vunpack.c.h.bf16 %v218
        %v349 = vunpack.c.l.bf16 %v219
        %v350 = vunpack.c.h.bf16 %v219
        %v351 = vunpack.c.l.bf16 %v220
        %v352 = vunpack.c.h.bf16 %v220
        %v353 = vunpack.c.l.bf16 %v221
        %v354 = vunpack.c.h.bf16 %v221
        %v355 = vunpack.c.l.bf16 %v222
        %v356 = vunpack.c.h.bf16 %v222
        %v357 = vunpack.c.l.bf16 %v223
        %v358 = vunpack.c.h.bf16 %v223
        %v359 = vunpack.c.l.bf16 %v224
        %v360 = vunpack.c.h.bf16 %v224
        %v361 = vunpack.c.l.bf16 %v225
        %v362 = vunpack.c.h.bf16 %v225
        %v363 = vunpack.c.l.bf16 %v226
        %v364 = vunpack.c.h.bf16 %v226
        %v365 = vunpack.c.l.bf16 %v227
        %v366 = vunpack.c.h.bf16 %v227
        %v367 = vunpack.c.l.bf16 %v228
        %v368 = vunpack.c.h.bf16 %v228
        %v369 = vunpack.c.l.bf16 %v229
        %v370 = vunpack.c.h.bf16 %v229
        %v371 = vunpack.c.l.bf16 %v230
        %v372 = vunpack.c.h.bf16 %v230
        %v373 = vunpack.c.l.bf16 %v231
        %v374 = vunpack.c.h.bf16 %v231
        %v375 = vunpack.c.l.bf16 %v232
        %v376 = vunpack.c.h.bf16 %v232
        %v377 = vunpack.c.l.bf16 %v233
        %v378 = vunpack.c.h.bf16 %v233
        %v379 = vunpack.c.l.bf16 %v234
        %v380 = vunpack.c.h.bf16 %v234
        %v381 = vunpack.c.l.bf16 %v235
        %v382 = vunpack.c.h.bf16 %v235
        %v383 = vunpack.c.l.bf16 %v236
        %v384 = vunpack.c.h.bf16 %v236
        %v385 = vunpack.c.l.bf16 %v237
        %v386 = vunpack.c.h.bf16 %v237
        %v387 = vunpack.c.l.bf16 %v238
        %v388 = vunpack.c.h.bf16 %v238
        %v389 = vunpack.c.l.bf16 %v239
        %v390 = vunpack.c.h.bf16 %v239
        %v391 = vunpack.c.l.bf16 %v240
        %v392 = vunpack.c.h.bf16 %v240
        %v393 = vunpack.c.l.bf16 %v241
        %v394 = vunpack.c.h.bf16 %v241
        %v395 = vunpack.c.l.bf16 %v242
        %v396 = vunpack.c.h.bf16 %v242
        %v397 = vunpack.c.l.bf16 %v243
        %v398 = vunpack.c.h.bf16 %v243
        %v399 = vunpack.c.l.bf16 %v244
        %v400 = vunpack.c.h.bf16 %v244
        %v401 = vunpack.c.l.bf16 %v245
        %v402 = vunpack.c.h.bf16 %v245
        %v403 = vunpack.c.l.bf16 %v246
        %v404 = vunpack.c.h.bf16 %v246
        %v405 = vunpack.c.l.bf16 %v247
        %v406 = vunpack.c.h.bf16 %v247
        %v407 = vunpack.c.l.bf16 %v248
        %v408 = vunpack.c.h.bf16 %v248
        %v409 = vunpack.c.l.bf16 %v249
        %v410 = vunpack.c.h.bf16 %v249
        %v411 = vunpack.c.l.bf16 %v250
        %v412 = vunpack.c.h.bf16 %v250
        %v413 = vunpack.c.l.bf16 %v251
        %v414 = vunpack.c.h.bf16 %v251
        %v415 = vunpack.c.l.bf16 %v252
        %v416 = vunpack.c.h.bf16 %v252
        %v417 = vunpack.c.l.bf16 %v253
        %v418 = vunpack.c.h.bf16 %v253
        %v419 = vunpack.c.l.bf16 %v254
        %v420 = vunpack.c.h.bf16 %v254
        %v421 = vunpack.c.l.bf16 %v255
        %v422 = vunpack.c.h.bf16 %v255
        %v423 = vunpack.c.l.bf16 %v256
        %v424 = vunpack.c.h.bf16 %v256
        %v425 = vunpack.c.l.bf16 %v257
        %v426 = vunpack.c.h.bf16 %v257
        %v427 = vunpack.c.l.bf16 %v258
        %v428 = vunpack.c.h.bf16 %v258
        %v429 = vunpack.c.l.bf16 %v259
        %v430 = vunpack.c.h.bf16 %v259
        %v431 = vunpack.c.l.bf16 %v260
        %v432 = vunpack.c.h.bf16 %v260
        %v433 = vunpack.c.l.bf16 %v261
        %v434 = vunpack.c.h.bf16 %v261
        %v435 = vunpack.c.l.bf16 %v262
        %v436 = vunpack.c.h.bf16 %v262
        %v437 = vunpack.c.l.bf16 %v263
        %v438 = vunpack.c.h.bf16 %v263
        %v439 = vunpack.c.l.bf16 %v264
        %v440 = vunpack.c.h.bf16 %v264
        %v441 = vunpack.c.l.bf16 %v265
        %v442 = vunpack.c.h.bf16 %v265
        %v443 = vunpack.c.l.bf16 %v266
        %v444 = vunpack.c.h.bf16 %v266
        %v445 = vunpack.c.l.bf16 %v267
        %v446 = vunpack.c.h.bf16 %v267
        %v447 = vunpack.c.l.bf16 %v268
        %v448 = vunpack.c.h.bf16 %v268
        %v449 = vunpack.c.l.bf16 %v269
        %v450 = vunpack.c.h.bf16 %v269
        %v451 = vunpack.c.l.bf16 %v270
        %v452 = vunpack.c.h.bf16 %v270
        %v453 = vunpack.c.l.bf16 %v271
        %v454 = vunpack.c.h.bf16 %v271
        %v455 = vunpack.c.l.bf16 %v272
        %v456 = vunpack.c.h.bf16 %v272
        %v457 = vunpack.c.l.bf16 %v273
        %v458 = vunpack.c.h.bf16 %v273
        %v459 = vunpack.c.l.bf16 %v274
        %v460 = vunpack.c.h.bf16 %v274
        %v461 = vunpack.c.l.bf16 %v275
        %v462 = vunpack.c.h.bf16 %v275
        %v463 = vunpack.c.l.bf16 %v276
        %v464 = vunpack.c.h.bf16 %v276
        %v465 = vunpack.c.l.bf16 %v277
        %v466 = vunpack.c.h.bf16 %v277
        %v467 = vunpack.c.l.bf16 %v278
        %v468 = vunpack.c.h.bf16 %v278
        %v469 = vunpack.c.l.bf16 %v279
        %v470 = vunpack.c.h.bf16 %v279
        %v471 = vunpack.c.l.bf16 %v280
        %v472 = vunpack.c.h.bf16 %v280
        %v473 = vunpack.c.l.bf16 %v281
        %v474 = vunpack.c.h.bf16 %v281
        %v475 = vunpack.c.l.bf16 %v282
        %v476 = vunpack.c.h.bf16 %v282
        %v477 = vunpack.c.l.bf16 %v283
        %v478 = vunpack.c.h.bf16 %v283
        %v479 = vunpack.c.l.bf16 %v284
        %v480 = vunpack.c.h.bf16 %v284
        %v481 = vunpack.c.l.bf16 %v285
        %v482 = vunpack.c.h.bf16 %v285
        %v483 = vunpack.c.l.bf16 %v286
        %v484 = vunpack.c.h.bf16 %v286
        %v485 = vunpack.c.l.bf16 %v287
        %v486 = vunpack.c.h.bf16 %v287
        %v487 = vunpack.c.l.bf16 %v288
        %v488 = vunpack.c.h.bf16 %v288
        %v489 = vunpack.c.l.bf16 %v289
        %v490 = vunpack.c.h.bf16 %v289
        %v491 = vunpack.c.l.bf16 %v290
        %v492 = vunpack.c.h.bf16 %v290
        %v493 = vunpack.c.l.bf16 %v291
        %v494 = vunpack.c.h.bf16 %v291
        %v495 = vunpack.c.l.bf16 %v292
        %v496 = vunpack.c.h.bf16 %v292
        %v497 = vunpack.c.l.bf16 %v293
        %v498 = vunpack.c.h.bf16 %v293
        %v499 = vunpack.c.l.bf16 %v294
        %v500 = vunpack.c.h.bf16 %v294
        %v501 = vunpack.c.l.bf16 %v295
        %v502 = vunpack.c.h.bf16 %v295
        %v503 = vunpack.c.l.bf16 %v296
        %v504 = vunpack.c.h.bf16 %v296
        %v505 = vunpack.c.l.bf16 %v297
        %v506 = vunpack.c.h.bf16 %v297
        %v507 = vunpack.c.l.bf16 %v298
        %v508 = vunpack.c.h.bf16 %v298
        %v509 = vunpack.c.l.bf16 %v299
        %v510 = vunpack.c.h.bf16 %v299
        %v511 = vunpack.c.l.bf16 %v300
        %v512 = vunpack.c.h.bf16 %v300
        %v513 = vunpack.c.l.bf16 %v301
        %v514 = vunpack.c.h.bf16 %v301
        %v515 = vunpack.c.l.bf16 %v302
        %v516 = vunpack.c.h.bf16 %v302
        %v517 = vunpack.c.l.bf16 %v303
        %v518 = vunpack.c.h.bf16 %v303
        %v519 = vunpack.c.l.bf16 %v304
        %v520 = vunpack.c.h.bf16 %v304
        %v521 = vunpack.c.l.bf16 %v305
        %v522 = vunpack.c.h.bf16 %v305
        %v523 = vunpack.c.l.bf16 %v306
        %v524 = vunpack.c.h.bf16 %v306
        %v525 = vunpack.c.l.bf16 %v307
        %v526 = vunpack.c.h.bf16 %v307
        %v527 = vunpack.c.l.bf16 %v308
        %v528 = vunpack.c.h.bf16 %v308
        %v529 = vunpack.c.l.bf16 %v309
        %v530 = vunpack.c.h.bf16 %v309
        %v531 = vunpack.c.l.bf16 %v310
        %v532 = vunpack.c.h.bf16 %v310
        %v533 = vunpack.c.l.bf16 %v311
        %v534 = vunpack.c.h.bf16 %v311
        %v535 = vunpack.c.l.bf16 %v312
        %v536 = vunpack.c.h.bf16 %v312
        %v537 = vunpack.c.l.bf16 %v313
        %v538 = vunpack.c.h.bf16 %v313
        %v539 = vunpack.c.l.bf16 %v314
        %v540 = vunpack.c.h.bf16 %v314
        %v541 = vunpack.c.l.bf16 %v315
        %v542 = vunpack.c.h.bf16 %v315
        %v543 = vunpack.c.l.bf16 %v316
        %v544 = vunpack.c.h.bf16 %v316
        %v545 = vunpack.c.l.bf16 %v317
        %v546 = vunpack.c.h.bf16 %v317
        %v547 = vunpack.c.l.bf16 %v318
        %v548 = vunpack.c.h.bf16 %v318
        %v549 = vunpack.c.l.bf16 %v319
        %v550 = vunpack.c.h.bf16 %v319
        %v551 = vunpack.c.l.bf16 %v320
        %v552 = vunpack.c.h.bf16 %v320
        %v553 = vunpack.c.l.bf16 %v321
        %v554 = vunpack.c.h.bf16 %v321
        %v555 = vunpack.c.l.bf16 %v322
        %v556 = vunpack.c.h.bf16 %v322
        %v557 = vunpack.c.l.bf16 %v323
        %v558 = vunpack.c.h.bf16 %v323
        %v559 = vunpack.c.l.bf16 %v324
        %v560 = vunpack.c.h.bf16 %v324
        %v561 = vunpack.c.l.bf16 %v325
        %v562 = vunpack.c.h.bf16 %v325
        %v563 = vunpack.c.l.bf16 %v326
        %v564 = vunpack.c.h.bf16 %v326
        %v565 = vunpack.c.l.bf16 %v327
        %v566 = vunpack.c.h.bf16 %v327
        %v567 = vunpack.c.l.bf16 %v328
        %v568 = vunpack.c.h.bf16 %v328
        %v569 = vunpack.c.l.bf16 %v329
        %v570 = vunpack.c.h.bf16 %v329
        %v571 = vunpack.c.l.bf16 %v330
        %v572 = vunpack.c.h.bf16 %v330
        %v573 = vunpack.c.l.bf16 %v331
        %v574 = vunpack.c.h.bf16 %v331
        %v575 = vunpack.c.l.bf16 %v332
        %v576 = vunpack.c.h.bf16 %v332
        %v577 = vunpack.c.l.bf16 %v333
        %v578 = vunpack.c.h.bf16 %v333
        %v579 = vunpack.c.l.bf16 %v334
        %v580 = vunpack.c.h.bf16 %v334
        %v581 = vunpack.c.l.bf16 %v335
        %v582 = vunpack.c.h.bf16 %v335
        %v583 = vunpack.c.l.bf16 %v336
        %v584 = vunpack.c.h.bf16 %v336
        %v585 = vunpack.c.l.bf16 %v337
        %v586 = vunpack.c.h.bf16 %v337
        %v587 = vunpack.c.l.bf16 %v338
        %v588 = vunpack.c.h.bf16 %v338
        %v589 = vunpack.c.l.bf16 %v339
        %v590 = vunpack.c.h.bf16 %v339
        %v591 = vunpack.c.l.bf16 %v340
        %v592 = vunpack.c.h.bf16 %v340
        %v593 = vunpack.c.l.bf16 %v341
        %v594 = vunpack.c.h.bf16 %v341
        %v595 = vunpack.c.l.bf16 %v342
        %v596 = vunpack.c.h.bf16 %v342
        %v597 = vunpack.c.l.bf16 %v343
        %v598 = vunpack.c.h.bf16 %v343
        %v599 = vunpack.c.l.bf16 %v344
        %v600 = vunpack.c.h.bf16 %v344
        %v601 = vld [vmem:[%s2] sm:$0xf]
        %v602 = vld [vmem:[%s2 + $0x4] sm:$0xf]
        %v603 = vld [vmem:[%s2 + $0x8] sm:$0xf]
        %v604 = vld [vmem:[%s2 + $0xc] sm:$0xf]
        %v605 = vld [vmem:[%s2 + $0x10] sm:$0xf]
        %v606 = vld [vmem:[%s2 + $0x14] sm:$0xf]
        %v607 = vld [vmem:[%s2 + $0x18] sm:$0xf]
        %v608 = vld [vmem:[%s2 + $0x1c] sm:$0xf]
        %v609 = vld [vmem:[%s2 + $0x20] sm:$0xf]
        %v610 = vld [vmem:[%s2 + $0x24] sm:$0xf]
        %v611 = vld [vmem:[%s2 + $0x28] sm:$0xf]
        %v612 = vld [vmem:[%s2 + $0x2c] sm:$0xf]
        %v613 = vld [vmem:[%s2 + $0x30] sm:$0xf]
        %v614 = vld [vmem:[%s2 + $0x34] sm:$0xf]
        %v615 = vld [vmem:[%s2 + $0x38] sm:$0xf]
        %v616 = vld [vmem:[%s2 + $0x3c] sm:$0xf]
        %v617 = vld [vmem:[%s2 + $0x40] sm:$0xf]
        %v618 = vld [vmem:[%s2 + $0x44] sm:$0xf]
        %v619 = vld [vmem:[%s2 + $0x48] sm:$0xf]
        %v620 = vld [vmem:[%s2 + $0x4c] sm:$0xf]
        %v749 = vunpack.c.l.b16 %v217
        %v750 = vunpack.c.h.b16 %v217
        %v751 = vunpack.c.l.b16 %v218
        %v752 = vunpack.c.h.b16 %v218
        %v753 = vunpack.c.l.b16 %v219
        %v754 = vunpack.c.h.b16 %v219
        %v755 = vunpack.c.l.b16 %v220
        %v756 = vunpack.c.h.b16 %v220
        %v757 = vunpack.c.l.b16 %v221
        %v758 = vunpack.c.h.b16 %v221
        %v759 = vunpack.c.l.b16 %v222
        %v760 = vunpack.c.h.b16 %v222
        %v761 = vunpack.c.l.b16 %v223
        %v762 = vunpack.c.h.b16 %v223
        %v763 = vunpack.c.l.b16 %v224
        %v764 = vunpack.c.h.b16 %v224
        %v765 = vunpack.c.l.b16 %v225
        %v766 = vunpack.c.h.b16 %v225
        %v767 = vunpack.c.l.b16 %v226
        %v768 = vunpack.c.h.b16 %v226
        %v769 = vunpack.c.l.b16 %v227
        %v770 = vunpack.c.h.b16 %v227
        %v771 = vunpack.c.l.b16 %v228
        %v772 = vunpack.c.h.b16 %v228
        %v773 = vunpack.c.l.b16 %v229
        %v774 = vunpack.c.h.b16 %v229
        %v775 = vunpack.c.l.b16 %v230
        %v776 = vunpack.c.h.b16 %v230
        %v777 = vunpack.c.l.b16 %v231
        %v778 = vunpack.c.h.b16 %v231
        %v779 = vunpack.c.l.b16 %v232
        %v780 = vunpack.c.h.b16 %v232
        %v781 = vunpack.c.l.b16 %v233
        %v782 = vunpack.c.h.b16 %v233
        %v783 = vunpack.c.l.b16 %v234
        %v784 = vunpack.c.h.b16 %v234
        %v785 = vunpack.c.l.b16 %v235
        %v786 = vunpack.c.h.b16 %v235
        %v787 = vunpack.c.l.b16 %v236
        %v788 = vunpack.c.h.b16 %v236
        %v789 = vunpack.c.l.b16 %v237
        %v790 = vunpack.c.h.b16 %v237
        %v791 = vunpack.c.l.b16 %v238
        %v792 = vunpack.c.h.b16 %v238
        %v793 = vunpack.c.l.b16 %v239
        %v794 = vunpack.c.h.b16 %v239
        %v795 = vunpack.c.l.b16 %v240
        %v796 = vunpack.c.h.b16 %v240
        %v797 = vunpack.c.l.b16 %v241
        %v798 = vunpack.c.h.b16 %v241
        %v799 = vunpack.c.l.b16 %v242
        %v800 = vunpack.c.h.b16 %v242
        %v801 = vunpack.c.l.b16 %v243
        %v802 = vunpack.c.h.b16 %v243
        %v803 = vunpack.c.l.b16 %v244
        %v804 = vunpack.c.h.b16 %v244
        %v805 = vunpack.c.l.b16 %v245
        %v806 = vunpack.c.h.b16 %v245
        %v807 = vunpack.c.l.b16 %v246
        %v808 = vunpack.c.h.b16 %v246
        %v809 = vunpack.c.l.b16 %v247
        %v810 = vunpack.c.h.b16 %v247
        %v811 = vunpack.c.l.b16 %v248
        %v812 = vunpack.c.h.b16 %v248
        %v813 = vunpack.c.l.b16 %v249
        %v814 = vunpack.c.h.b16 %v249
        %v815 = vunpack.c.l.b16 %v250
        %v816 = vunpack.c.h.b16 %v250
        %v817 = vunpack.c.l.b16 %v251
        %v818 = vunpack.c.h.b16 %v251
        %v819 = vunpack.c.l.b16 %v252
        %v820 = vunpack.c.h.b16 %v252
        %v821 = vunpack.c.l.b16 %v253
        %v822 = vunpack.c.h.b16 %v253
        %v823 = vunpack.c.l.b16 %v254
        %v824 = vunpack.c.h.b16 %v254
        %v825 = vunpack.c.l.b16 %v255
        %v826 = vunpack.c.h.b16 %v255
        %v827 = vunpack.c.l.b16 %v256
        %v828 = vunpack.c.h.b16 %v256
        %v829 = vunpack.c.l.b16 %v257
        %v830 = vunpack.c.h.b16 %v257
        %v831 = vunpack.c.l.b16 %v258
        %v832 = vunpack.c.h.b16 %v258
        %v833 = vunpack.c.l.b16 %v259
        %v834 = vunpack.c.h.b16 %v259
        %v835 = vunpack.c.l.b16 %v260
        %v836 = vunpack.c.h.b16 %v260
        %v837 = vunpack.c.l.b16 %v261
        %v838 = vunpack.c.h.b16 %v261
        %v839 = vunpack.c.l.b16 %v262
        %v840 = vunpack.c.h.b16 %v262
        %v841 = vunpack.c.l.b16 %v263
        %v842 = vunpack.c.h.b16 %v263
        %v843 = vunpack.c.l.b16 %v264
        %v844 = vunpack.c.h.b16 %v264
        %v845 = vunpack.c.l.b16 %v265
        %v846 = vunpack.c.h.b16 %v265
        %v847 = vunpack.c.l.b16 %v266
        %v848 = vunpack.c.h.b16 %v266
        %v849 = vunpack.c.l.b16 %v267
        %v850 = vunpack.c.h.b16 %v267
        %v851 = vunpack.c.l.b16 %v268
        %v852 = vunpack.c.h.b16 %v268
        %v853 = vunpack.c.l.b16 %v269
        %v854 = vunpack.c.h.b16 %v269
        %v855 = vunpack.c.l.b16 %v270
        %v856 = vunpack.c.h.b16 %v270
        %v857 = vunpack.c.l.b16 %v271
        %v858 = vunpack.c.h.b16 %v271
        %v859 = vunpack.c.l.b16 %v272
        %v860 = vunpack.c.h.b16 %v272
        %v861 = vunpack.c.l.b16 %v273
        %v862 = vunpack.c.h.b16 %v273
        %v863 = vunpack.c.l.b16 %v274
        %v864 = vunpack.c.h.b16 %v274
        %v865 = vunpack.c.l.b16 %v275
        %v866 = vunpack.c.h.b16 %v275
        %v867 = vunpack.c.l.b16 %v276
        %v868 = vunpack.c.h.b16 %v276
        %v869 = vunpack.c.l.b16 %v277
        %v870 = vunpack.c.h.b16 %v277
        %v871 = vunpack.c.l.b16 %v278
        %v872 = vunpack.c.h.b16 %v278
        %v873 = vunpack.c.l.b16 %v279
        %v874 = vunpack.c.h.b16 %v279
        %v875 = vunpack.c.l.b16 %v280
        %v876 = vunpack.c.h.b16 %v280
        %v877 = vunpack.c.l.b16 %v281
        %v878 = vunpack.c.h.b16 %v281
        %v879 = vunpack.c.l.b16 %v282
        %v880 = vunpack.c.h.b16 %v282
        %v881 = vunpack.c.l.b16 %v283
        %v882 = vunpack.c.h.b16 %v283
        %v883 = vunpack.c.l.b16 %v284
        %v884 = vunpack.c.h.b16 %v284
        %v885 = vunpack.c.l.b16 %v285
        %v886 = vunpack.c.h.b16 %v285
        %v887 = vunpack.c.l.b16 %v286
        %v888 = vunpack.c.h.b16 %v286
        %v889 = vunpack.c.l.b16 %v287
        %v890 = vunpack.c.h.b16 %v287
        %v891 = vunpack.c.l.b16 %v288
        %v892 = vunpack.c.h.b16 %v288
        %v893 = vunpack.c.l.b16 %v289
        %v894 = vunpack.c.h.b16 %v289
        %v895 = vunpack.c.l.b16 %v290
        %v896 = vunpack.c.h.b16 %v290
        %v897 = vunpack.c.l.b16 %v291
        %v898 = vunpack.c.h.b16 %v291
        %v899 = vunpack.c.l.b16 %v292
        %v900 = vunpack.c.h.b16 %v292
        %v901 = vunpack.c.l.b16 %v293
        %v902 = vunpack.c.h.b16 %v293
        %v903 = vunpack.c.l.b16 %v294
        %v904 = vunpack.c.h.b16 %v294
        %v905 = vunpack.c.l.b16 %v295
        %v906 = vunpack.c.h.b16 %v295
        %v907 = vunpack.c.l.b16 %v296
        %v908 = vunpack.c.h.b16 %v296
        %v909 = vunpack.c.l.b16 %v297
        %v910 = vunpack.c.h.b16 %v297
        %v911 = vunpack.c.l.b16 %v298
        %v912 = vunpack.c.h.b16 %v298
        %v913 = vunpack.c.l.b16 %v299
        %v914 = vunpack.c.h.b16 %v299
        %v915 = vunpack.c.l.b16 %v300
        %v916 = vunpack.c.h.b16 %v300
        %v917 = vunpack.c.l.b16 %v301
        %v918 = vunpack.c.h.b16 %v301
        %v919 = vunpack.c.l.b16 %v302
        %v920 = vunpack.c.h.b16 %v302
        %v921 = vunpack.c.l.b16 %v303
        %v922 = vunpack.c.h.b16 %v303
        %v923 = vunpack.c.l.b16 %v304
        %v924 = vunpack.c.h.b16 %v304
        %v925 = vunpack.c.l.b16 %v305
        %v926 = vunpack.c.h.b16 %v305
        %v927 = vunpack.c.l.b16 %v306
        %v928 = vunpack.c.h.b16 %v306
        %v929 = vunpack.c.l.b16 %v307
        %v930 = vunpack.c.h.b16 %v307
        %v931 = vunpack.c.l.b16 %v308
        %v932 = vunpack.c.h.b16 %v308
        %v933 = vunpack.c.l.b16 %v309
        %v934 = vunpack.c.h.b16 %v309
        %v935 = vunpack.c.l.b16 %v310
        %v936 = vunpack.c.h.b16 %v310
        %v937 = vunpack.c.l.b16 %v311
        %v938 = vunpack.c.h.b16 %v311
        %v939 = vunpack.c.l.b16 %v312
        %v940 = vunpack.c.h.b16 %v312
        %v941 = vunpack.c.l.b16 %v313
        %v942 = vunpack.c.h.b16 %v313
        %v943 = vunpack.c.l.b16 %v314
        %v944 = vunpack.c.h.b16 %v314
        %v945 = vunpack.c.l.b16 %v315
        %v946 = vunpack.c.h.b16 %v315
        %v947 = vunpack.c.l.b16 %v316
        %v948 = vunpack.c.h.b16 %v316
        %v949 = vunpack.c.l.b16 %v317
        %v950 = vunpack.c.h.b16 %v317
        %v951 = vunpack.c.l.b16 %v318
        %v952 = vunpack.c.h.b16 %v318
        %v953 = vunpack.c.l.b16 %v319
        %v954 = vunpack.c.h.b16 %v319
        %v955 = vunpack.c.l.b16 %v320
        %v956 = vunpack.c.h.b16 %v320
        %v957 = vunpack.c.l.b16 %v321
        %v958 = vunpack.c.h.b16 %v321
        %v959 = vunpack.c.l.b16 %v322
        %v960 = vunpack.c.h.b16 %v322
        %v961 = vunpack.c.l.b16 %v323
        %v962 = vunpack.c.h.b16 %v323
        %v963 = vunpack.c.l.b16 %v324
        %v964 = vunpack.c.h.b16 %v324
        %v965 = vunpack.c.l.b16 %v325
        %v966 = vunpack.c.h.b16 %v325
        %v967 = vunpack.c.l.b16 %v326
        %v968 = vunpack.c.h.b16 %v326
        %v969 = vunpack.c.l.b16 %v327
        %v970 = vunpack.c.h.b16 %v327
        %v971 = vunpack.c.l.b16 %v328
        %v972 = vunpack.c.h.b16 %v328
        %v973 = vunpack.c.l.b16 %v329
        %v974 = vunpack.c.h.b16 %v329
        %v975 = vunpack.c.l.b16 %v330
        %v976 = vunpack.c.h.b16 %v330
        %v977 = vunpack.c.l.b16 %v331
        %v978 = vunpack.c.h.b16 %v331
        %v979 = vunpack.c.l.b16 %v332
        %v980 = vunpack.c.h.b16 %v332
        %v981 = vunpack.c.l.b16 %v333
        %v982 = vunpack.c.h.b16 %v333
        %v983 = vunpack.c.l.b16 %v334
        %v984 = vunpack.c.h.b16 %v334
        %v985 = vunpack.c.l.b16 %v335
        %v986 = vunpack.c.h.b16 %v335
        %v987 = vunpack.c.l.b16 %v336
        %v988 = vunpack.c.h.b16 %v336
        %v989 = vunpack.c.l.b16 %v337
        %v990 = vunpack.c.h.b16 %v337
        %v991 = vunpack.c.l.b16 %v338
        %v992 = vunpack.c.h.b16 %v338
        %v993 = vunpack.c.l.b16 %v339
        %v994 = vunpack.c.h.b16 %v339
        %v995 = vunpack.c.l.b16 %v340
        %v996 = vunpack.c.h.b16 %v340
        %v997 = vunpack.c.l.b16 %v341
        %v998 = vunpack.c.h.b16 %v341
        %v999 = vunpack.c.l.b16 %v342
        %v1000 = vunpack.c.h.b16 %v342
        %v1001 = vunpack.c.l.b16 %v343
        %v1002 = vunpack.c.h.b16 %v343
        %v1003 = vunpack.c.l.b16 %v344
        %v1004 = vunpack.c.h.b16 %v344
        %v1005 = vpack.c.b16 %v751, %v749
        %v1006 = vpack.c.b16 %v752, %v750
        %v1007 = vpack.c.b16 %v755, %v753
        %v1008 = vpack.c.b16 %v756, %v754
        %v1009 = vpack.c.b16 %v759, %v757
        %v1010 = vpack.c.b16 %v760, %v758
        %v1011 = vpack.c.b16 %v763, %v761
        %v1012 = vpack.c.b16 %v764, %v762
        %v1013 = vpack.c.b16 %v767, %v765
        %v1014 = vpack.c.b16 %v768, %v766
        %v1015 = vpack.c.b16 %v771, %v769
        %v1016 = vpack.c.b16 %v772, %v770
        %v1017 = vpack.c.b16 %v775, %v773
        %v1018 = vpack.c.b16 %v776, %v774
        %v1019 = vpack.c.b16 %v779, %v777
        %v1020 = vpack.c.b16 %v780, %v778
        %v1021 = vpack.c.b16 %v783, %v781
        %v1022 = vpack.c.b16 %v784, %v782
        %v1023 = vpack.c.b16 %v787, %v785
        %v1024 = vpack.c.b16 %v788, %v786
        %v1025 = vpack.c.b16 %v791, %v789
        %v1026 = vpack.c.b16 %v792, %v790
        %v1027 = vpack.c.b16 %v795, %v793
        %v1028 = vpack.c.b16 %v796, %v794
        %v1029 = vpack.c.b16 %v799, %v797
        %v1030 = vpack.c.b16 %v800, %v798
        %v1031 = vpack.c.b16 %v803, %v801
        %v1032 = vpack.c.b16 %v804, %v802
        %v1033 = vpack.c.b16 %v807, %v805
        %v1034 = vpack.c.b16 %v808, %v806
        %v1035 = vpack.c.b16 %v811, %v809
        %v1036 = vpack.c.b16 %v812, %v810
        %v1037 = vpack.c.b16 %v815, %v813
        %v1038 = vpack.c.b16 %v816, %v814
        %v1039 = vpack.c.b16 %v819, %v817
        %v1040 = vpack.c.b16 %v820, %v818
        %v1041 = vpack.c.b16 %v823, %v821
        %v1042 = vpack.c.b16 %v824, %v822
        %v1043 = vpack.c.b16 %v827, %v825
        %v1044 = vpack.c.b16 %v828, %v826
        %v1045 = vpack.c.b16 %v831, %v829
        %v1046 = vpack.c.b16 %v832, %v830
        %v1047 = vpack.c.b16 %v835, %v833
        %v1048 = vpack.c.b16 %v836, %v834
        %v1049 = vpack.c.b16 %v839, %v837
        %v1050 = vpack.c.b16 %v840, %v838
        %v1051 = vpack.c.b16 %v843, %v841
        %v1052 = vpack.c.b16 %v844, %v842
        %v1053 = vpack.c.b16 %v847, %v845
        %v1054 = vpack.c.b16 %v848, %v846
        %v1055 = vpack.c.b16 %v851, %v849
        %v1056 = vpack.c.b16 %v852, %v850
        %v1057 = vpack.c.b16 %v855, %v853
        %v1058 = vpack.c.b16 %v856, %v854
        %v1059 = vpack.c.b16 %v859, %v857
        %v1060 = vpack.c.b16 %v860, %v858
        %v1061 = vpack.c.b16 %v863, %v861
        %v1062 = vpack.c.b16 %v864, %v862
        %v1063 = vpack.c.b16 %v867, %v865
        %v1064 = vpack.c.b16 %v868, %v866
        %v1065 = vpack.c.b16 %v871, %v869
        %v1066 = vpack.c.b16 %v872, %v870
        %v1067 = vpack.c.b16 %v875, %v873
        %v1068 = vpack.c.b16 %v876, %v874
        %v1069 = vpack.c.b16 %v879, %v877
        %v1070 = vpack.c.b16 %v880, %v878
        %v1071 = vpack.c.b16 %v883, %v881
        %v1072 = vpack.c.b16 %v884, %v882
        %v1073 = vpack.c.b16 %v887, %v885
        %v1074 = vpack.c.b16 %v888, %v886
        %v1075 = vpack.c.b16 %v891, %v889
        %v1076 = vpack.c.b16 %v892, %v890
        %v1077 = vpack.c.b16 %v895, %v893
        %v1078 = vpack.c.b16 %v896, %v894
        %v1079 = vpack.c.b16 %v899, %v897
        %v1080 = vpack.c.b16 %v900, %v898
        %v1081 = vpack.c.b16 %v903, %v901
        %v1082 = vpack.c.b16 %v904, %v902
        %v1083 = vpack.c.b16 %v907, %v905
        %v1084 = vpack.c.b16 %v908, %v906
        %v1085 = vpack.c.b16 %v911, %v909
        %v1086 = vpack.c.b16 %v912, %v910
        %v1087 = vpack.c.b16 %v915, %v913
        %v1088 = vpack.c.b16 %v916, %v914
        %v1089 = vpack.c.b16 %v919, %v917
        %v1090 = vpack.c.b16 %v920, %v918
        %v1091 = vpack.c.b16 %v923, %v921
        %v1092 = vpack.c.b16 %v924, %v922
        %v1093 = vpack.c.b16 %v927, %v925
        %v1094 = vpack.c.b16 %v928, %v926
        %v1095 = vpack.c.b16 %v931, %v929
        %v1096 = vpack.c.b16 %v932, %v930
        %v1097 = vpack.c.b16 %v935, %v933
        %v1098 = vpack.c.b16 %v936, %v934
        %v1099 = vpack.c.b16 %v939, %v937
        %v1100 = vpack.c.b16 %v940, %v938
        %v1101 = vpack.c.b16 %v943, %v941
        %v1102 = vpack.c.b16 %v944, %v942
        %v1103 = vpack.c.b16 %v947, %v945
        %v1104 = vpack.c.b16 %v948, %v946
        %v1105 = vpack.c.b16 %v951, %v949
        %v1106 = vpack.c.b16 %v952, %v950
        %v1107 = vpack.c.b16 %v955, %v953
        %v1108 = vpack.c.b16 %v956, %v954
        %v1109 = vpack.c.b16 %v959, %v957
        %v1110 = vpack.c.b16 %v960, %v958
        %v1111 = vpack.c.b16 %v963, %v961
        %v1112 = vpack.c.b16 %v964, %v962
        %v1113 = vpack.c.b16 %v967, %v965
        %v1114 = vpack.c.b16 %v968, %v966
        %v1115 = vpack.c.b16 %v971, %v969
        %v1116 = vpack.c.b16 %v972, %v970
        %v1117 = vpack.c.b16 %v975, %v973
        %v1118 = vpack.c.b16 %v976, %v974
        %v1119 = vpack.c.b16 %v979, %v977
        %v1120 = vpack.c.b16 %v980, %v978
        %v1121 = vpack.c.b16 %v983, %v981
        %v1122 = vpack.c.b16 %v984, %v982
        %v1123 = vpack.c.b16 %v987, %v985
        %v1124 = vpack.c.b16 %v988, %v986
        %v1125 = vpack.c.b16 %v991, %v989
        %v1126 = vpack.c.b16 %v992, %v990
        %v1127 = vpack.c.b16 %v995, %v993
        %v1128 = vpack.c.b16 %v996, %v994
        %v1129 = vpack.c.b16 %v999, %v997
        %v1130 = vpack.c.b16 %v1000, %v998
        %v1131 = vpack.c.b16 %v1003, %v1001
        %v1132 = vpack.c.b16 %v1004, %v1002
        %v1217 = vunpack.c.l.b16 %v601
        %v1218 = vunpack.c.l.b16 %v602
        %v1219 = vunpack.c.l.b16 %v603
        %v1220 = vunpack.c.l.b16 %v604
        %v1221 = vunpack.c.l.b16 %v605
        %v1222 = vunpack.c.l.b16 %v606
        %v1223 = vunpack.c.l.b16 %v607
        %v1224 = vunpack.c.l.b16 %v608
        %v1225 = vunpack.c.l.b16 %v609
        %v1226 = vunpack.c.l.b16 %v610
        %v1227 = vunpack.c.l.b16 %v611
        %v1228 = vunpack.c.l.b16 %v612
        %v1229 = vunpack.c.l.b16 %v613
        %v1230 = vunpack.c.l.b16 %v614
        %v1231 = vunpack.c.l.b16 %v615
        %v1232 = vunpack.c.l.b16 %v616
        %v1233 = vunpack.c.l.b16 %v617
        %v1234 = vunpack.c.l.b16 %v618
        %v1235 = vunpack.c.l.b16 %v619
        %v1236 = vunpack.c.l.b16 %v620
        %v1237 = vpack.c.b16 %v1218, %v1217
        %v1238 = vpack.c.b16 %v1220, %v1219
        %v1239 = vpack.c.b16 %v1222, %v1221
        %v1240 = vpack.c.b16 %v1224, %v1223
        %v1241 = vpack.c.b16 %v1226, %v1225
        %v1242 = vpack.c.b16 %v1228, %v1227
        %v1243 = vpack.c.b16 %v1230, %v1229
        %v1244 = vpack.c.b16 %v1232, %v1231
        %v1245 = vpack.c.b16 %v1234, %v1233
        %v1246 = vpack.c.b16 %v1236, %v1235
        %vm1257 = vcmask 261120
        %v1259 = vsel %vm1257, %v1006, 0
        %v1262 = vsel %vm1257, %v1008, 0
        %v1265 = vsel %vm1257, %v1010, 0
        %v1268 = vsel %vm1257, %v1012, 0
        %v1271 = vsel %vm1257, %v1014, 0
        %v1274 = vsel %vm1257, %v1016, 0
        %v1277 = vsel %vm1257, %v1018, 0
        %v1280 = vsel %vm1257, %v1020, 0
        %v1283 = vsel %vm1257, %v1022, 0
        %v1286 = vsel %vm1257, %v1024, 0
        %v1289 = vsel %vm1257, %v1026, 0
        %v1292 = vsel %vm1257, %v1028, 0
        %v1295 = vsel %vm1257, %v1030, 0
        %v1298 = vsel %vm1257, %v1032, 0
        %v1301 = vsel %vm1257, %v1034, 0
        %v1304 = vsel %vm1257, %v1036, 0
        %v1307 = vsel %vm1257, %v1038, 0
        %v1310 = vsel %vm1257, %v1040, 0
        %v1313 = vsel %vm1257, %v1042, 0
        %v1316 = vsel %vm1257, %v1044, 0
        %v1319 = vsel %vm1257, %v1046, 0
        %v1322 = vsel %vm1257, %v1048, 0
        %v1325 = vsel %vm1257, %v1050, 0
        %v1328 = vsel %vm1257, %v1052, 0
        %v1331 = vsel %vm1257, %v1054, 0
        %v1334 = vsel %vm1257, %v1056, 0
        %v1337 = vsel %vm1257, %v1058, 0
        %v1340 = vsel %vm1257, %v1060, 0
        %v1343 = vsel %vm1257, %v1062, 0
        %v1346 = vsel %vm1257, %v1064, 0
        %v1349 = vsel %vm1257, %v1066, 0
        %v1352 = vsel %vm1257, %v1068, 0
        %v1355 = vsel %vm1257, %v1070, 0
        %v1358 = vsel %vm1257, %v1072, 0
        %v1361 = vsel %vm1257, %v1074, 0
        %v1364 = vsel %vm1257, %v1076, 0
        %v1367 = vsel %vm1257, %v1078, 0
        %v1370 = vsel %vm1257, %v1080, 0
        %v1373 = vsel %vm1257, %v1082, 0
        %v1376 = vsel %vm1257, %v1084, 0
        %v1379 = vsel %vm1257, %v1086, 0
        %v1382 = vsel %vm1257, %v1088, 0
        %v1385 = vsel %vm1257, %v1090, 0
        %v1388 = vsel %vm1257, %v1092, 0
        %v1391 = vsel %vm1257, %v1094, 0
        %v1394 = vsel %vm1257, %v1096, 0
        %v1397 = vsel %vm1257, %v1098, 0
        %v1400 = vsel %vm1257, %v1100, 0
        %v1403 = vsel %vm1257, %v1102, 0
        %v1406 = vsel %vm1257, %v1104, 0
        %v1409 = vsel %vm1257, %v1106, 0
        %v1412 = vsel %vm1257, %v1108, 0
        %v1415 = vsel %vm1257, %v1110, 0
        %v1418 = vsel %vm1257, %v1112, 0
        %v1421 = vsel %vm1257, %v1114, 0
        %v1424 = vsel %vm1257, %v1116, 0
        %v1427 = vsel %vm1257, %v1118, 0
        %v1430 = vsel %vm1257, %v1120, 0
        %v1433 = vsel %vm1257, %v1122, 0
        %v1436 = vsel %vm1257, %v1124, 0
        %v1439 = vsel %vm1257, %v1126, 0
        %v1442 = vsel %vm1257, %v1128, 0
        %v1445 = vsel %vm1257, %v1130, 0
        %v1448 = vsel %vm1257, %v1132, 0
        %1450 = vmatprep.subr.bf16.mxu0 0
        %1451 = vmatpush1.bf16.msra.mxu0 %v1237
        %1452 = vmatprep.subr.bf16.mxu0 0
        %1453 = vmatpush1.bf16.msra.mxu0 %v1238
        %1454 = vmatprep.subr.bf16.mxu0 0
        %1455 = vmatpush1.bf16.msra.mxu0 %v1239
        %1456 = vmatprep.subr.bf16.mxu0 0
        %1457 = vmatpush1.bf16.msra.mxu0 %v1240
        %1458 = vmatprep.subr.bf16.mxu0 0
        %1459 = vmatpush1.bf16.msra.mxu0 %v1241
        %1460 = vmatprep.subr.bf16.mxu0 0
        %1461 = vmatpush1.bf16.msra.mxu0 %v1242
        %1462 = vmatprep.subr.bf16.mxu0 0
        %1463 = vmatpush1.bf16.msra.mxu0 %v1243
        %1464 = vmatprep.subr.bf16.mxu0 0
        %1465 = vmatpush1.bf16.msra.mxu0 %v1244
        %1466 = vmatprep.subr.bf16.mxu0 0
        %1467 = vmatpush1.bf16.msra.mxu0 %v1245
        %1468 = vmatprep.subr.bf16.mxu0 0
        %1469 = vmatpush1.bf16.msra.mxu0 %v1246
        %1470 = vmatprep.subr.bf16.mxu0 0
        %1471 = vmatpush1.bf16.msra.mxu0 0
        %1472 = vmatprep.subr.bf16.mxu0 0
        %1473 = vmatpush1.bf16.msra.mxu0 0
        %1474 = vmatprep.subr.bf16.mxu0 0
        %1475 = vmatpush1.bf16.msra.mxu0 0
        %1476 = vmatprep.subr.bf16.mxu0 0
        %1477 = vmatpush1.bf16.msra.mxu0 0
        %1478 = vmatprep.subr.bf16.mxu0 0
        %1479 = vmatpush1.bf16.msra.mxu0 0
        %1480 = vmatprep.subr.bf16.mxu0 0
        %1481 = vmatpush1.bf16.msra.mxu0 0
        %1482 = vmatprep.mubr.bf16.mxu0 %v1259
        %1483 = vmatmul.mubr.bf16.gmra.mrb[0].mxu0 %v1005
        %v1484 = vpop.f32.mrb[0].mxu0
        %v1485 = vadd.f32 0.0, %v1484
        %v1486 = vpop.f32.mrb[0].mxu0
        %v1487 = vpop.f32.mrb[0].mxu0
        %v1488 = vadd.f32 0.0, %v1487
        %v1489 = vpop.f32.mrb[0].mxu0
        %1490 = vmatprep.mubr.bf16.mxu0 %v1262
        %1491 = vmatmul.mubr.bf16.gmra.mrb[0].mxu0 %v1007
        %v1492 = vpop.f32.mrb[0].mxu0
        %v1493 = vadd.f32 0.0, %v1492
        %v1494 = vpop.f32.mrb[0].mxu0
        %v1495 = vpop.f32.mrb[0].mxu0
        %v1496 = vadd.f32 0.0, %v1495
        %v1497 = vpop.f32.mrb[0].mxu0
        %1498 = vmatprep.mubr.bf16.mxu0 %v1265
        %1499 = vmatmul.mubr.bf16.gmra.mrb[0].mxu0 %v1009
        %v1500 = vpop.f32.mrb[0].mxu0
        %v1501 = vadd.f32 0.0, %v1500
        %v1502 = vpop.f32.mrb[0].mxu0
        %v1503 = vpop.f32.mrb[0].mxu0
        %v1504 = vadd.f32 0.0, %v1503
        %v1505 = vpop.f32.mrb[0].mxu0
        %1506 = vmatprep.mubr.bf16.mxu0 %v1268
        %1507 = vmatmul.mubr.bf16.gmra.mrb[0].mxu0 %v1011
        %v1508 = vpop.f32.mrb[0].mxu0
        %v1509 = vadd.f32 0.0, %v1508
        %v1510 = vpop.f32.mrb[0].mxu0
        %v1511 = vpop.f32.mrb[0].mxu0
        %v1512 = vadd.f32 0.0, %v1511
        %v1513 = vpop.f32.mrb[0].mxu0
        %1514 = vmatprep.mubr.bf16.mxu0 %v1271
        %1515 = vmatmul.mubr.bf16.gmra.mrb[0].mxu0 %v1013
        %v1516 = vpop.f32.mrb[0].mxu0
        %v1517 = vadd.f32 0.0, %v1516
        %v1518 = vpop.f32.mrb[0].mxu0
        %v1519 = vpop.f32.mrb[0].mxu0
        %v1520 = vadd.f32 0.0, %v1519
        %v1521 = vpop.f32.mrb[0].mxu0
        %1522 = vmatprep.mubr.bf16.mxu0 %v1274
        %1523 = vmatmul.mubr.bf16.gmra.mrb[0].mxu0 %v1015
        %v1524 = vpop.f32.mrb[0].mxu0
        %v1525 = vadd.f32 0.0, %v1524
        %v1526 = vpop.f32.mrb[0].mxu0
        %v1527 = vpop.f32.mrb[0].mxu0
        %v1528 = vadd.f32 0.0, %v1527
        %v1529 = vpop.f32.mrb[0].mxu0
        %1530 = vmatprep.mubr.bf16.mxu0 %v1277
        %1531 = vmatmul.mubr.bf16.gmra.mrb[0].mxu0 %v1017
        %v1532 = vpop.f32.mrb[0].mxu0
        %v1533 = vadd.f32 0.0, %v1532
        %v1534 = vpop.f32.mrb[0].mxu0
        %v1535 = vpop.f32.mrb[0].mxu0
        %v1536 = vadd.f32 0.0, %v1535
        %v1537 = vpop.f32.mrb[0].mxu0
        %1538 = vmatprep.mubr.bf16.mxu0 %v1280
        %1539 = vmatmul.mubr.bf16.gmra.mrb[0].mxu0 %v1019
        %v1540 = vpop.f32.mrb[0].mxu0
        %v1541 = vadd.f32 0.0, %v1540
        %v1542 = vpop.f32.mrb[0].mxu0
        %v1543 = vpop.f32.mrb[0].mxu0
        %v1544 = vadd.f32 0.0, %v1543
        %v1545 = vpop.f32.mrb[0].mxu0
        %1546 = vmatprep.mubr.bf16.mxu0 %v1283
        %1547 = vmatmul.mubr.bf16.gmra.mrb[0].mxu0 %v1021
        %v1548 = vpop.f32.mrb[0].mxu0
        %v1549 = vadd.f32 0.0, %v1548
        %v1550 = vpop.f32.mrb[0].mxu0
        %v1551 = vpop.f32.mrb[0].mxu0
        %v1552 = vadd.f32 0.0, %v1551
        %v1553 = vpop.f32.mrb[0].mxu0
        %1554 = vmatprep.mubr.bf16.mxu0 %v1286
        %1555 = vmatmul.mubr.bf16.gmra.mrb[0].mxu0 %v1023
        %v1556 = vpop.f32.mrb[0].mxu0
        %v1557 = vadd.f32 0.0, %v1556
        %v1558 = vpop.f32.mrb[0].mxu0
        %v1559 = vpop.f32.mrb[0].mxu0
        %v1560 = vadd.f32 0.0, %v1559
        %v1561 = vpop.f32.mrb[0].mxu0
        %1562 = vmatprep.mubr.bf16.mxu0 %v1289
        %1563 = vmatmul.mubr.bf16.gmra.mrb[0].mxu0 %v1025
        %v1564 = vpop.f32.mrb[0].mxu0
        %v1565 = vadd.f32 0.0, %v1564
        %v1566 = vpop.f32.mrb[0].mxu0
        %v1567 = vpop.f32.mrb[0].mxu0
        %v1568 = vadd.f32 0.0, %v1567
        %v1569 = vpop.f32.mrb[0].mxu0
        %1570 = vmatprep.mubr.bf16.mxu0 %v1292
        %1571 = vmatmul.mubr.bf16.gmra.mrb[0].mxu0 %v1027
        %v1572 = vpop.f32.mrb[0].mxu0
        %v1573 = vadd.f32 0.0, %v1572
        %v1574 = vpop.f32.mrb[0].mxu0
        %v1575 = vpop.f32.mrb[0].mxu0
        %v1576 = vadd.f32 0.0, %v1575
        %v1577 = vpop.f32.mrb[0].mxu0
        %1578 = vmatprep.mubr.bf16.mxu0 %v1295
        %1579 = vmatmul.mubr.bf16.gmra.mrb[0].mxu0 %v1029
        %v1580 = vpop.f32.mrb[0].mxu0
        %v1581 = vadd.f32 0.0, %v1580
        %v1582 = vpop.f32.mrb[0].mxu0
        %v1583 = vpop.f32.mrb[0].mxu0
        %v1584 = vadd.f32 0.0, %v1583
        %v1585 = vpop.f32.mrb[0].mxu0
        %1586 = vmatprep.mubr.bf16.mxu0 %v1298
        %1587 = vmatmul.mubr.bf16.gmra.mrb[0].mxu0 %v1031
        %v1588 = vpop.f32.mrb[0].mxu0
        %v1589 = vadd.f32 0.0, %v1588
        %v1590 = vpop.f32.mrb[0].mxu0
        %v1591 = vpop.f32.mrb[0].mxu0
        %v1592 = vadd.f32 0.0, %v1591
        %v1593 = vpop.f32.mrb[0].mxu0
        %1594 = vmatprep.mubr.bf16.mxu0 %v1301
        %1595 = vmatmul.mubr.bf16.gmra.mrb[0].mxu0 %v1033
        %v1596 = vpop.f32.mrb[0].mxu0
        %v1597 = vadd.f32 0.0, %v1596
        %v1598 = vpop.f32.mrb[0].mxu0
        %v1599 = vpop.f32.mrb[0].mxu0
        %v1600 = vadd.f32 0.0, %v1599
        %v1601 = vpop.f32.mrb[0].mxu0
        %1602 = vmatprep.mubr.bf16.mxu0 %v1304
        %1603 = vmatmul.mubr.bf16.gmra.mrb[0].mxu0 %v1035
        %v1604 = vpop.f32.mrb[0].mxu0
        %v1605 = vadd.f32 0.0, %v1604
        %v1606 = vpop.f32.mrb[0].mxu0
        %v1607 = vpop.f32.mrb[0].mxu0
        %v1608 = vadd.f32 0.0, %v1607
        %v1609 = vpop.f32.mrb[0].mxu0
        %1610 = vmatprep.mubr.bf16.mxu0 %v1307
        %1611 = vmatmul.mubr.bf16.gmra.mrb[0].mxu0 %v1037
        %v1612 = vpop.f32.mrb[0].mxu0
        %v1613 = vadd.f32 0.0, %v1612
        %v1614 = vpop.f32.mrb[0].mxu0
        %v1615 = vpop.f32.mrb[0].mxu0
        %v1616 = vadd.f32 0.0, %v1615
        %v1617 = vpop.f32.mrb[0].mxu0
        %1618 = vmatprep.mubr.bf16.mxu0 %v1310
        %1619 = vmatmul.mubr.bf16.gmra.mrb[0].mxu0 %v1039
        %v1620 = vpop.f32.mrb[0].mxu0
        %v1621 = vadd.f32 0.0, %v1620
        %v1622 = vpop.f32.mrb[0].mxu0
        %v1623 = vpop.f32.mrb[0].mxu0
        %v1624 = vadd.f32 0.0, %v1623
        %v1625 = vpop.f32.mrb[0].mxu0
        %1626 = vmatprep.mubr.bf16.mxu0 %v1313
        %1627 = vmatmul.mubr.bf16.gmra.mrb[0].mxu0 %v1041
        %v1628 = vpop.f32.mrb[0].mxu0
        %v1629 = vadd.f32 0.0, %v1628
        %v1630 = vpop.f32.mrb[0].mxu0
        %v1631 = vpop.f32.mrb[0].mxu0
        %v1632 = vadd.f32 0.0, %v1631
        %v1633 = vpop.f32.mrb[0].mxu0
        %1634 = vmatprep.mubr.bf16.mxu0 %v1316
        %1635 = vmatmul.mubr.bf16.gmra.mrb[0].mxu0 %v1043
        %v1636 = vpop.f32.mrb[0].mxu0
        %v1637 = vadd.f32 0.0, %v1636
        %v1638 = vpop.f32.mrb[0].mxu0
        %v1639 = vpop.f32.mrb[0].mxu0
        %v1640 = vadd.f32 0.0, %v1639
        %v1641 = vpop.f32.mrb[0].mxu0
        %1642 = vmatprep.mubr.bf16.mxu0 %v1319
        %1643 = vmatmul.mubr.bf16.gmra.mrb[0].mxu0 %v1045
        %v1644 = vpop.f32.mrb[0].mxu0
        %v1645 = vadd.f32 0.0, %v1644
        %v1646 = vpop.f32.mrb[0].mxu0
        %v1647 = vpop.f32.mrb[0].mxu0
        %v1648 = vadd.f32 0.0, %v1647
        %v1649 = vpop.f32.mrb[0].mxu0
        %1650 = vmatprep.mubr.bf16.mxu0 %v1322
        %1651 = vmatmul.mubr.bf16.gmra.mrb[0].mxu0 %v1047
        %v1652 = vpop.f32.mrb[0].mxu0
        %v1653 = vadd.f32 0.0, %v1652
        %v1654 = vpop.f32.mrb[0].mxu0
        %v1655 = vpop.f32.mrb[0].mxu0
        %v1656 = vadd.f32 0.0, %v1655
        %v1657 = vpop.f32.mrb[0].mxu0
        %1658 = vmatprep.mubr.bf16.mxu0 %v1325
        %1659 = vmatmul.mubr.bf16.gmra.mrb[0].mxu0 %v1049
        %v1660 = vpop.f32.mrb[0].mxu0
        %v1661 = vadd.f32 0.0, %v1660
        %v1662 = vpop.f32.mrb[0].mxu0
        %v1663 = vpop.f32.mrb[0].mxu0
        %v1664 = vadd.f32 0.0, %v1663
        %v1665 = vpop.f32.mrb[0].mxu0
        %1666 = vmatprep.mubr.bf16.mxu0 %v1328
        %1667 = vmatmul.mubr.bf16.gmra.mrb[0].mxu0 %v1051
        %v1668 = vpop.f32.mrb[0].mxu0
        %v1669 = vadd.f32 0.0, %v1668
        %v1670 = vpop.f32.mrb[0].mxu0
        %v1671 = vpop.f32.mrb[0].mxu0
        %v1672 = vadd.f32 0.0, %v1671
        %v1673 = vpop.f32.mrb[0].mxu0
        %1674 = vmatprep.mubr.bf16.mxu0 %v1331
        %1675 = vmatmul.mubr.bf16.gmra.mrb[0].mxu0 %v1053
        %v1676 = vpop.f32.mrb[0].mxu0
        %v1677 = vadd.f32 0.0, %v1676
        %v1678 = vpop.f32.mrb[0].mxu0
        %v1679 = vpop.f32.mrb[0].mxu0
        %v1680 = vadd.f32 0.0, %v1679
        %v1681 = vpop.f32.mrb[0].mxu0
        %1682 = vmatprep.mubr.bf16.mxu0 %v1334
        %1683 = vmatmul.mubr.bf16.gmra.mrb[0].mxu0 %v1055
        %v1684 = vpop.f32.mrb[0].mxu0
        %v1685 = vadd.f32 0.0, %v1684
        %v1686 = vpop.f32.mrb[0].mxu0
        %v1687 = vpop.f32.mrb[0].mxu0
        %v1688 = vadd.f32 0.0, %v1687
        %v1689 = vpop.f32.mrb[0].mxu0
        %1690 = vmatprep.mubr.bf16.mxu0 %v1337
        %1691 = vmatmul.mubr.bf16.gmra.mrb[0].mxu0 %v1057
        %v1692 = vpop.f32.mrb[0].mxu0
        %v1693 = vadd.f32 0.0, %v1692
        %v1694 = vpop.f32.mrb[0].mxu0
        %v1695 = vpop.f32.mrb[0].mxu0
        %v1696 = vadd.f32 0.0, %v1695
        %v1697 = vpop.f32.mrb[0].mxu0
        %1698 = vmatprep.mubr.bf16.mxu0 %v1340
        %1699 = vmatmul.mubr.bf16.gmra.mrb[0].mxu0 %v1059
        %v1700 = vpop.f32.mrb[0].mxu0
        %v1701 = vadd.f32 0.0, %v1700
        %v1702 = vpop.f32.mrb[0].mxu0
        %v1703 = vpop.f32.mrb[0].mxu0
        %v1704 = vadd.f32 0.0, %v1703
        %v1705 = vpop.f32.mrb[0].mxu0
        %1706 = vmatprep.mubr.bf16.mxu0 %v1343
        %1707 = vmatmul.mubr.bf16.gmra.mrb[0].mxu0 %v1061
        %v1708 = vpop.f32.mrb[0].mxu0
        %v1709 = vadd.f32 0.0, %v1708
        %v1710 = vpop.f32.mrb[0].mxu0
        %v1711 = vpop.f32.mrb[0].mxu0
        %v1712 = vadd.f32 0.0, %v1711
        %v1713 = vpop.f32.mrb[0].mxu0
        %1714 = vmatprep.mubr.bf16.mxu0 %v1346
        %1715 = vmatmul.mubr.bf16.gmra.mrb[0].mxu0 %v1063
        %v1716 = vpop.f32.mrb[0].mxu0
        %v1717 = vadd.f32 0.0, %v1716
        %v1718 = vpop.f32.mrb[0].mxu0
        %v1719 = vpop.f32.mrb[0].mxu0
        %v1720 = vadd.f32 0.0, %v1719
        %v1721 = vpop.f32.mrb[0].mxu0
        %1722 = vmatprep.mubr.bf16.mxu0 %v1349
        %1723 = vmatmul.mubr.bf16.gmra.mrb[0].mxu0 %v1065
        %v1724 = vpop.f32.mrb[0].mxu0
        %v1725 = vadd.f32 0.0, %v1724
        %v1726 = vpop.f32.mrb[0].mxu0
        %v1727 = vpop.f32.mrb[0].mxu0
        %v1728 = vadd.f32 0.0, %v1727
        %v1729 = vpop.f32.mrb[0].mxu0
        %1730 = vmatprep.mubr.bf16.mxu0 %v1352
        %1731 = vmatmul.mubr.bf16.gmra.mrb[0].mxu0 %v1067
        %v1732 = vpop.f32.mrb[0].mxu0
        %v1733 = vadd.f32 0.0, %v1732
        %v1734 = vpop.f32.mrb[0].mxu0
        %v1735 = vpop.f32.mrb[0].mxu0
        %v1736 = vadd.f32 0.0, %v1735
        %v1737 = vpop.f32.mrb[0].mxu0
        %1738 = vmatprep.mubr.bf16.mxu0 %v1355
        %1739 = vmatmul.mubr.bf16.gmra.mrb[0].mxu0 %v1069
        %v1740 = vpop.f32.mrb[0].mxu0
        %v1741 = vadd.f32 0.0, %v1740
        %v1742 = vpop.f32.mrb[0].mxu0
        %v1743 = vpop.f32.mrb[0].mxu0
        %v1744 = vadd.f32 0.0, %v1743
        %v1745 = vpop.f32.mrb[0].mxu0
        %1746 = vmatprep.mubr.bf16.mxu0 %v1358
        %1747 = vmatmul.mubr.bf16.gmra.mrb[0].mxu0 %v1071
        %v1748 = vpop.f32.mrb[0].mxu0
        %v1749 = vadd.f32 0.0, %v1748
        %v1750 = vpop.f32.mrb[0].mxu0
        %v1751 = vpop.f32.mrb[0].mxu0
        %v1752 = vadd.f32 0.0, %v1751
        %v1753 = vpop.f32.mrb[0].mxu0
        %1754 = vmatprep.mubr.bf16.mxu0 %v1361
        %1755 = vmatmul.mubr.bf16.gmra.mrb[0].mxu0 %v1073
        %v1756 = vpop.f32.mrb[0].mxu0
        %v1757 = vadd.f32 0.0, %v1756
        %v1758 = vpop.f32.mrb[0].mxu0
        %v1759 = vpop.f32.mrb[0].mxu0
        %v1760 = vadd.f32 0.0, %v1759
        %v1761 = vpop.f32.mrb[0].mxu0
        %1762 = vmatprep.mubr.bf16.mxu0 %v1364
        %1763 = vmatmul.mubr.bf16.gmra.mrb[0].mxu0 %v1075
        %v1764 = vpop.f32.mrb[0].mxu0
        %v1765 = vadd.f32 0.0, %v1764
        %v1766 = vpop.f32.mrb[0].mxu0
        %v1767 = vpop.f32.mrb[0].mxu0
        %v1768 = vadd.f32 0.0, %v1767
        %v1769 = vpop.f32.mrb[0].mxu0
        %1770 = vmatprep.mubr.bf16.mxu0 %v1367
        %1771 = vmatmul.mubr.bf16.gmra.mrb[0].mxu0 %v1077
        %v1772 = vpop.f32.mrb[0].mxu0
        %v1773 = vadd.f32 0.0, %v1772
        %v1774 = vpop.f32.mrb[0].mxu0
        %v1775 = vpop.f32.mrb[0].mxu0
        %v1776 = vadd.f32 0.0, %v1775
        %v1777 = vpop.f32.mrb[0].mxu0
        %1778 = vmatprep.mubr.bf16.mxu0 %v1370
        %1779 = vmatmul.mubr.bf16.gmra.mrb[0].mxu0 %v1079
        %v1780 = vpop.f32.mrb[0].mxu0
        %v1781 = vadd.f32 0.0, %v1780
        %v1782 = vpop.f32.mrb[0].mxu0
        %v1783 = vpop.f32.mrb[0].mxu0
        %v1784 = vadd.f32 0.0, %v1783
        %v1785 = vpop.f32.mrb[0].mxu0
        %1786 = vmatprep.mubr.bf16.mxu0 %v1373
        %1787 = vmatmul.mubr.bf16.gmra.mrb[0].mxu0 %v1081
        %v1788 = vpop.f32.mrb[0].mxu0
        %v1789 = vadd.f32 0.0, %v1788
        %v1790 = vpop.f32.mrb[0].mxu0
        %v1791 = vpop.f32.mrb[0].mxu0
        %v1792 = vadd.f32 0.0, %v1791
        %v1793 = vpop.f32.mrb[0].mxu0
        %1794 = vmatprep.mubr.bf16.mxu0 %v1376
        %1795 = vmatmul.mubr.bf16.gmra.mrb[0].mxu0 %v1083
        %v1796 = vpop.f32.mrb[0].mxu0
        %v1797 = vadd.f32 0.0, %v1796
        %v1798 = vpop.f32.mrb[0].mxu0
        %v1799 = vpop.f32.mrb[0].mxu0
        %v1800 = vadd.f32 0.0, %v1799
        %v1801 = vpop.f32.mrb[0].mxu0
        %1802 = vmatprep.mubr.bf16.mxu0 %v1379
        %1803 = vmatmul.mubr.bf16.gmra.mrb[0].mxu0 %v1085
        %v1804 = vpop.f32.mrb[0].mxu0
        %v1805 = vadd.f32 0.0, %v1804
        %v1806 = vpop.f32.mrb[0].mxu0
        %v1807 = vpop.f32.mrb[0].mxu0
        %v1808 = vadd.f32 0.0, %v1807
        %v1809 = vpop.f32.mrb[0].mxu0
        %1810 = vmatprep.mubr.bf16.mxu0 %v1382
        %1811 = vmatmul.mubr.bf16.gmra.mrb[0].mxu0 %v1087
        %v1812 = vpop.f32.mrb[0].mxu0
        %v1813 = vadd.f32 0.0, %v1812
        %v1814 = vpop.f32.mrb[0].mxu0
        %v1815 = vpop.f32.mrb[0].mxu0
        %v1816 = vadd.f32 0.0, %v1815
        %v1817 = vpop.f32.mrb[0].mxu0
        %1818 = vmatprep.mubr.bf16.mxu0 %v1385
        %1819 = vmatmul.mubr.bf16.gmra.mrb[0].mxu0 %v1089
        %v1820 = vpop.f32.mrb[0].mxu0
        %v1821 = vadd.f32 0.0, %v1820
        %v1822 = vpop.f32.mrb[0].mxu0
        %v1823 = vpop.f32.mrb[0].mxu0
        %v1824 = vadd.f32 0.0, %v1823
        %v1825 = vpop.f32.mrb[0].mxu0
        %1826 = vmatprep.mubr.bf16.mxu0 %v1388
        %1827 = vmatmul.mubr.bf16.gmra.mrb[0].mxu0 %v1091
        %v1828 = vpop.f32.mrb[0].mxu0
        %v1829 = vadd.f32 0.0, %v1828
        %v1830 = vpop.f32.mrb[0].mxu0
        %v1831 = vpop.f32.mrb[0].mxu0
        %v1832 = vadd.f32 0.0, %v1831
        %v1833 = vpop.f32.mrb[0].mxu0
        %1834 = vmatprep.mubr.bf16.mxu0 %v1391
        %1835 = vmatmul.mubr.bf16.gmra.mrb[0].mxu0 %v1093
        %v1836 = vpop.f32.mrb[0].mxu0
        %v1837 = vadd.f32 0.0, %v1836
        %v1838 = vpop.f32.mrb[0].mxu0
        %v1839 = vpop.f32.mrb[0].mxu0
        %v1840 = vadd.f32 0.0, %v1839
        %v1841 = vpop.f32.mrb[0].mxu0
        %1842 = vmatprep.mubr.bf16.mxu0 %v1394
        %1843 = vmatmul.mubr.bf16.gmra.mrb[0].mxu0 %v1095
        %v1844 = vpop.f32.mrb[0].mxu0
        %v1845 = vadd.f32 0.0, %v1844
        %v1846 = vpop.f32.mrb[0].mxu0
        %v1847 = vpop.f32.mrb[0].mxu0
        %v1848 = vadd.f32 0.0, %v1847
        %v1849 = vpop.f32.mrb[0].mxu0
        %1850 = vmatprep.mubr.bf16.mxu0 %v1397
        %1851 = vmatmul.mubr.bf16.gmra.mrb[0].mxu0 %v1097
        %v1852 = vpop.f32.mrb[0].mxu0
        %v1853 = vadd.f32 0.0, %v1852
        %v1854 = vpop.f32.mrb[0].mxu0
        %v1855 = vpop.f32.mrb[0].mxu0
        %v1856 = vadd.f32 0.0, %v1855
        %v1857 = vpop.f32.mrb[0].mxu0
        %1858 = vmatprep.mubr.bf16.mxu0 %v1400
        %1859 = vmatmul.mubr.bf16.gmra.mrb[0].mxu0 %v1099
        %v1860 = vpop.f32.mrb[0].mxu0
        %v1861 = vadd.f32 0.0, %v1860
        %v1862 = vpop.f32.mrb[0].mxu0
        %v1863 = vpop.f32.mrb[0].mxu0
        %v1864 = vadd.f32 0.0, %v1863
        %v1865 = vpop.f32.mrb[0].mxu0
        %1866 = vmatprep.mubr.bf16.mxu0 %v1403
        %1867 = vmatmul.mubr.bf16.gmra.mrb[0].mxu0 %v1101
        %v1868 = vpop.f32.mrb[0].mxu0
        %v1869 = vadd.f32 0.0, %v1868
        %v1870 = vpop.f32.mrb[0].mxu0
        %v1871 = vpop.f32.mrb[0].mxu0
        %v1872 = vadd.f32 0.0, %v1871
        %v1873 = vpop.f32.mrb[0].mxu0
        %1874 = vmatprep.mubr.bf16.mxu0 %v1406
        %1875 = vmatmul.mubr.bf16.gmra.mrb[0].mxu0 %v1103
        %v1876 = vpop.f32.mrb[0].mxu0
        %v1877 = vadd.f32 0.0, %v1876
        %v1878 = vpop.f32.mrb[0].mxu0
        %v1879 = vpop.f32.mrb[0].mxu0
        %v1880 = vadd.f32 0.0, %v1879
        %v1881 = vpop.f32.mrb[0].mxu0
        %1882 = vmatprep.mubr.bf16.mxu0 %v1409
        %1883 = vmatmul.mubr.bf16.gmra.mrb[0].mxu0 %v1105
        %v1884 = vpop.f32.mrb[0].mxu0
        %v1885 = vadd.f32 0.0, %v1884
        %v1886 = vpop.f32.mrb[0].mxu0
        %v1887 = vpop.f32.mrb[0].mxu0
        %v1888 = vadd.f32 0.0, %v1887
        %v1889 = vpop.f32.mrb[0].mxu0
        %1890 = vmatprep.mubr.bf16.mxu0 %v1412
        %1891 = vmatmul.mubr.bf16.gmra.mrb[0].mxu0 %v1107
        %v1892 = vpop.f32.mrb[0].mxu0
        %v1893 = vadd.f32 0.0, %v1892
        %v1894 = vpop.f32.mrb[0].mxu0
        %v1895 = vpop.f32.mrb[0].mxu0
        %v1896 = vadd.f32 0.0, %v1895
        %v1897 = vpop.f32.mrb[0].mxu0
        %1898 = vmatprep.mubr.bf16.mxu0 %v1415
        %1899 = vmatmul.mubr.bf16.gmra.mrb[0].mxu0 %v1109
        %v1900 = vpop.f32.mrb[0].mxu0
        %v1901 = vadd.f32 0.0, %v1900
        %v1902 = vpop.f32.mrb[0].mxu0
        %v1903 = vpop.f32.mrb[0].mxu0
        %v1904 = vadd.f32 0.0, %v1903
        %v1905 = vpop.f32.mrb[0].mxu0
        %1906 = vmatprep.mubr.bf16.mxu0 %v1418
        %1907 = vmatmul.mubr.bf16.gmra.mrb[0].mxu0 %v1111
        %v1908 = vpop.f32.mrb[0].mxu0
        %v1909 = vadd.f32 0.0, %v1908
        %v1910 = vpop.f32.mrb[0].mxu0
        %v1911 = vpop.f32.mrb[0].mxu0
        %v1912 = vadd.f32 0.0, %v1911
        %v1913 = vpop.f32.mrb[0].mxu0
        %1914 = vmatprep.mubr.bf16.mxu0 %v1421
        %1915 = vmatmul.mubr.bf16.gmra.mrb[0].mxu0 %v1113
        %v1916 = vpop.f32.mrb[0].mxu0
        %v1917 = vadd.f32 0.0, %v1916
        %v1918 = vpop.f32.mrb[0].mxu0
        %v1919 = vpop.f32.mrb[0].mxu0
        %v1920 = vadd.f32 0.0, %v1919
        %v1921 = vpop.f32.mrb[0].mxu0
        %1922 = vmatprep.mubr.bf16.mxu0 %v1424
        %1923 = vmatmul.mubr.bf16.gmra.mrb[0].mxu0 %v1115
        %v1924 = vpop.f32.mrb[0].mxu0
        %v1925 = vadd.f32 0.0, %v1924
        %v1926 = vpop.f32.mrb[0].mxu0
        %v1927 = vpop.f32.mrb[0].mxu0
        %v1928 = vadd.f32 0.0, %v1927
        %v1929 = vpop.f32.mrb[0].mxu0
        %1930 = vmatprep.mubr.bf16.mxu0 %v1427
        %1931 = vmatmul.mubr.bf16.gmra.mrb[0].mxu0 %v1117
        %v1932 = vpop.f32.mrb[0].mxu0
        %v1933 = vadd.f32 0.0, %v1932
        %v1934 = vpop.f32.mrb[0].mxu0
        %v1935 = vpop.f32.mrb[0].mxu0
        %v1936 = vadd.f32 0.0, %v1935
        %v1937 = vpop.f32.mrb[0].mxu0
        %1938 = vmatprep.mubr.bf16.mxu0 %v1430
        %1939 = vmatmul.mubr.bf16.gmra.mrb[0].mxu0 %v1119
        %v1940 = vpop.f32.mrb[0].mxu0
        %v1941 = vadd.f32 0.0, %v1940
        %v1942 = vpop.f32.mrb[0].mxu0
        %v1943 = vpop.f32.mrb[0].mxu0
        %v1944 = vadd.f32 0.0, %v1943
        %v1945 = vpop.f32.mrb[0].mxu0
        %1946 = vmatprep.mubr.bf16.mxu0 %v1433
        %1947 = vmatmul.mubr.bf16.gmra.mrb[0].mxu0 %v1121
        %v1948 = vpop.f32.mrb[0].mxu0
        %v1949 = vadd.f32 0.0, %v1948
        %v1950 = vpop.f32.mrb[0].mxu0
        %v1951 = vpop.f32.mrb[0].mxu0
        %v1952 = vadd.f32 0.0, %v1951
        %v1953 = vpop.f32.mrb[0].mxu0
        %1954 = vmatprep.mubr.bf16.mxu0 %v1436
        %1955 = vmatmul.mubr.bf16.gmra.mrb[0].mxu0 %v1123
        %v1956 = vpop.f32.mrb[0].mxu0
        %v1957 = vadd.f32 0.0, %v1956
        %v1958 = vpop.f32.mrb[0].mxu0
        %v1959 = vpop.f32.mrb[0].mxu0
        %v1960 = vadd.f32 0.0, %v1959
        %v1961 = vpop.f32.mrb[0].mxu0
        %1962 = vmatprep.mubr.bf16.mxu0 %v1439
        %1963 = vmatmul.mubr.bf16.gmra.mrb[0].mxu0 %v1125
        %v1964 = vpop.f32.mrb[0].mxu0
        %v1965 = vadd.f32 0.0, %v1964
        %v1966 = vpop.f32.mrb[0].mxu0
        %v1967 = vpop.f32.mrb[0].mxu0
        %v1968 = vadd.f32 0.0, %v1967
        %v1969 = vpop.f32.mrb[0].mxu0
        %1970 = vmatprep.mubr.bf16.mxu0 %v1442
        %1971 = vmatmul.mubr.bf16.gmra.mrb[0].mxu0 %v1127
        %v1972 = vpop.f32.mrb[0].mxu0
        %v1973 = vadd.f32 0.0, %v1972
        %v1974 = vpop.f32.mrb[0].mxu0
        %v1975 = vpop.f32.mrb[0].mxu0
        %v1976 = vadd.f32 0.0, %v1975
        %v1977 = vpop.f32.mrb[0].mxu0
        %1978 = vmatprep.mubr.bf16.mxu0 %v1445
        %1979 = vmatmul.mubr.bf16.gmra.mrb[0].mxu0 %v1129
        %v1980 = vpop.f32.mrb[0].mxu0
        %v1981 = vadd.f32 0.0, %v1980
        %v1982 = vpop.f32.mrb[0].mxu0
        %v1983 = vpop.f32.mrb[0].mxu0
        %v1984 = vadd.f32 0.0, %v1983
        %v1985 = vpop.f32.mrb[0].mxu0
        %1986 = vmatprep.mubr.bf16.mxu0 %v1448
        %1987 = vmatmul.mubr.bf16.gmra.mrb[0].mxu0 %v1131
        %v1988 = vpop.f32.mrb[0].mxu0
        %v1989 = vadd.f32 0.0, %v1988
        %v1990 = vpop.f32.mrb[0].mxu0
        %v1991 = vpop.f32.mrb[0].mxu0
        %v1992 = vadd.f32 0.0, %v1991
        %v1993 = vpop.f32.mrb[0].mxu0
        %1994 = vdwg.mxu0
        %v1995 = vmul.f32 %v1485, %v1485
        %v1996 = vmul.f32 %v1488, %v1488
        %v1997 = vmul.f32 %v1493, %v1493
        %v1998 = vmul.f32 %v1496, %v1496
        %v1999 = vmul.f32 %v1501, %v1501
        %v2000 = vmul.f32 %v1504, %v1504
        %v2001 = vmul.f32 %v1509, %v1509
        %v2002 = vmul.f32 %v1512, %v1512
        %v2003 = vmul.f32 %v1517, %v1517
        %v2004 = vmul.f32 %v1520, %v1520
        %v2005 = vmul.f32 %v1525, %v1525
        %v2006 = vmul.f32 %v1528, %v1528
        %v2007 = vmul.f32 %v1533, %v1533
        %v2008 = vmul.f32 %v1536, %v1536
        %v2009 = vmul.f32 %v1541, %v1541
        %v2010 = vmul.f32 %v1544, %v1544
        %v2011 = vmul.f32 %v1549, %v1549
        %v2012 = vmul.f32 %v1552, %v1552
        %v2013 = vmul.f32 %v1557, %v1557
        %v2014 = vmul.f32 %v1560, %v1560
        %v2015 = vmul.f32 %v1565, %v1565
        %v2016 = vmul.f32 %v1568, %v1568
        %v2017 = vmul.f32 %v1573, %v1573
        %v2018 = vmul.f32 %v1576, %v1576
        %v2019 = vmul.f32 %v1581, %v1581
        %v2020 = vmul.f32 %v1584, %v1584
        %v2021 = vmul.f32 %v1589, %v1589
        %v2022 = vmul.f32 %v1592, %v1592
        %v2023 = vmul.f32 %v1597, %v1597
        %v2024 = vmul.f32 %v1600, %v1600
        %v2025 = vmul.f32 %v1605, %v1605
        %v2026 = vmul.f32 %v1608, %v1608
        %v2027 = vmul.f32 %v1613, %v1613
        %v2028 = vmul.f32 %v1616, %v1616
        %v2029 = vmul.f32 %v1621, %v1621
        %v2030 = vmul.f32 %v1624, %v1624
        %v2031 = vmul.f32 %v1629, %v1629
        %v2032 = vmul.f32 %v1632, %v1632
        %v2033 = vmul.f32 %v1637, %v1637
        %v2034 = vmul.f32 %v1640, %v1640
        %v2035 = vmul.f32 %v1645, %v1645
        %v2036 = vmul.f32 %v1648, %v1648
        %v2037 = vmul.f32 %v1653, %v1653
        %v2038 = vmul.f32 %v1656, %v1656
        %v2039 = vmul.f32 %v1661, %v1661
        %v2040 = vmul.f32 %v1664, %v1664
        %v2041 = vmul.f32 %v1669, %v1669
        %v2042 = vmul.f32 %v1672, %v1672
        %v2043 = vmul.f32 %v1677, %v1677
        %v2044 = vmul.f32 %v1680, %v1680
        %v2045 = vmul.f32 %v1685, %v1685
        %v2046 = vmul.f32 %v1688, %v1688
        %v2047 = vmul.f32 %v1693, %v1693
        %v2048 = vmul.f32 %v1696, %v1696
        %v2049 = vmul.f32 %v1701, %v1701
        %v2050 = vmul.f32 %v1704, %v1704
        %v2051 = vmul.f32 %v1709, %v1709
        %v2052 = vmul.f32 %v1712, %v1712
        %v2053 = vmul.f32 %v1717, %v1717
        %v2054 = vmul.f32 %v1720, %v1720
        %v2055 = vmul.f32 %v1725, %v1725
        %v2056 = vmul.f32 %v1728, %v1728
        %v2057 = vmul.f32 %v1733, %v1733
        %v2058 = vmul.f32 %v1736, %v1736
        %v2059 = vmul.f32 %v1741, %v1741
        %v2060 = vmul.f32 %v1744, %v1744
        %v2061 = vmul.f32 %v1749, %v1749
        %v2062 = vmul.f32 %v1752, %v1752
        %v2063 = vmul.f32 %v1757, %v1757
        %v2064 = vmul.f32 %v1760, %v1760
        %v2065 = vmul.f32 %v1765, %v1765
        %v2066 = vmul.f32 %v1768, %v1768
        %v2067 = vmul.f32 %v1773, %v1773
        %v2068 = vmul.f32 %v1776, %v1776
        %v2069 = vmul.f32 %v1781, %v1781
        %v2070 = vmul.f32 %v1784, %v1784
        %v2071 = vmul.f32 %v1789, %v1789
        %v2072 = vmul.f32 %v1792, %v1792
        %v2073 = vmul.f32 %v1797, %v1797
        %v2074 = vmul.f32 %v1800, %v1800
        %v2075 = vmul.f32 %v1805, %v1805
        %v2076 = vmul.f32 %v1808, %v1808
        %v2077 = vmul.f32 %v1813, %v1813
        %v2078 = vmul.f32 %v1816, %v1816
        %v2079 = vmul.f32 %v1821, %v1821
        %v2080 = vmul.f32 %v1824, %v1824
        %v2081 = vmul.f32 %v1829, %v1829
        %v2082 = vmul.f32 %v1832, %v1832
        %v2083 = vmul.f32 %v1837, %v1837
        %v2084 = vmul.f32 %v1840, %v1840
        %v2085 = vmul.f32 %v1845, %v1845
        %v2086 = vmul.f32 %v1848, %v1848
        %v2087 = vmul.f32 %v1853, %v1853
        %v2088 = vmul.f32 %v1856, %v1856
        %v2089 = vmul.f32 %v1861, %v1861
        %v2090 = vmul.f32 %v1864, %v1864
        %v2091 = vmul.f32 %v1869, %v1869
        %v2092 = vmul.f32 %v1872, %v1872
        %v2093 = vmul.f32 %v1877, %v1877
        %v2094 = vmul.f32 %v1880, %v1880
        %v2095 = vmul.f32 %v1885, %v1885
        %v2096 = vmul.f32 %v1888, %v1888
        %v2097 = vmul.f32 %v1893, %v1893
        %v2098 = vmul.f32 %v1896, %v1896
        %v2099 = vmul.f32 %v1901, %v1901
        %v2100 = vmul.f32 %v1904, %v1904
        %v2101 = vmul.f32 %v1909, %v1909
        %v2102 = vmul.f32 %v1912, %v1912
        %v2103 = vmul.f32 %v1917, %v1917
        %v2104 = vmul.f32 %v1920, %v1920
        %v2105 = vmul.f32 %v1925, %v1925
        %v2106 = vmul.f32 %v1928, %v1928
        %v2107 = vmul.f32 %v1933, %v1933
        %v2108 = vmul.f32 %v1936, %v1936
        %v2109 = vmul.f32 %v1941, %v1941
        %v2110 = vmul.f32 %v1944, %v1944
        %v2111 = vmul.f32 %v1949, %v1949
        %v2112 = vmul.f32 %v1952, %v1952
        %v2113 = vmul.f32 %v1957, %v1957
        %v2114 = vmul.f32 %v1960, %v1960
        %v2115 = vmul.f32 %v1965, %v1965
        %v2116 = vmul.f32 %v1968, %v1968
        %v2117 = vmul.f32 %v1973, %v1973
        %v2118 = vmul.f32 %v1976, %v1976
        %v2119 = vmul.f32 %v1981, %v1981
        %v2120 = vmul.f32 %v1984, %v1984
        %v2121 = vmul.f32 %v1989, %v1989
        %v2122 = vmul.f32 %v1992, %v1992
        %vm2123 = vcmask 31744
        %v2124 = vsel %vm2123, %v1995, 0.0
        %2125 = vadd.xlane.f32.xlu0 %v2124
        %v2126 = vpop.xlane.xlu0 %2125
        %v2127 = vsel %vm2123, %v1996, 0.0
        %2128 = vadd.xlane.f32.xlu0 %v2127
        %v2129 = vpop.xlane.xlu0 %2128
        %v2130 = vsel %vm2123, %v1997, 0.0
        %2131 = vadd.xlane.f32.xlu0 %v2130
        %v2132 = vpop.xlane.xlu0 %2131
        %v2133 = vsel %vm2123, %v1998, 0.0
        %2134 = vadd.xlane.f32.xlu0 %v2133
        %v2135 = vpop.xlane.xlu0 %2134
        %v2136 = vsel %vm2123, %v1999, 0.0
        %2137 = vadd.xlane.f32.xlu0 %v2136
        %v2138 = vpop.xlane.xlu0 %2137
        %v2139 = vsel %vm2123, %v2000, 0.0
        %2140 = vadd.xlane.f32.xlu0 %v2139
        %v2141 = vpop.xlane.xlu0 %2140
        %v2142 = vsel %vm2123, %v2001, 0.0
        %2143 = vadd.xlane.f32.xlu0 %v2142
        %v2144 = vpop.xlane.xlu0 %2143
        %v2145 = vsel %vm2123, %v2002, 0.0
        %2146 = vadd.xlane.f32.xlu0 %v2145
        %v2147 = vpop.xlane.xlu0 %2146
        %v2148 = vsel %vm2123, %v2003, 0.0
        %2149 = vadd.xlane.f32.xlu0 %v2148
        %v2150 = vpop.xlane.xlu0 %2149
        %v2151 = vsel %vm2123, %v2004, 0.0
        %2152 = vadd.xlane.f32.xlu0 %v2151
        %v2153 = vpop.xlane.xlu0 %2152
        %v2154 = vsel %vm2123, %v2005, 0.0
        %2155 = vadd.xlane.f32.xlu0 %v2154
        %v2156 = vpop.xlane.xlu0 %2155
        %v2157 = vsel %vm2123, %v2006, 0.0
        %2158 = vadd.xlane.f32.xlu0 %v2157
        %v2159 = vpop.xlane.xlu0 %2158
        %v2160 = vsel %vm2123, %v2007, 0.0
        %2161 = vadd.xlane.f32.xlu0 %v2160
        %v2162 = vpop.xlane.xlu0 %2161
        %v2163 = vsel %vm2123, %v2008, 0.0
        %2164 = vadd.xlane.f32.xlu0 %v2163
        %v2165 = vpop.xlane.xlu0 %2164
        %v2166 = vsel %vm2123, %v2009, 0.0
        %2167 = vadd.xlane.f32.xlu0 %v2166
        %v2168 = vpop.xlane.xlu0 %2167
        %v2169 = vsel %vm2123, %v2010, 0.0
        %2170 = vadd.xlane.f32.xlu0 %v2169
        %v2171 = vpop.xlane.xlu0 %2170
        %v2172 = vsel %vm2123, %v2011, 0.0
        %2173 = vadd.xlane.f32.xlu0 %v2172
        %v2174 = vpop.xlane.xlu0 %2173
        %v2175 = vsel %vm2123, %v2012, 0.0
        %2176 = vadd.xlane.f32.xlu0 %v2175
        %v2177 = vpop.xlane.xlu0 %2176
        %v2178 = vsel %vm2123, %v2013, 0.0
        %2179 = vadd.xlane.f32.xlu0 %v2178
        %v2180 = vpop.xlane.xlu0 %2179
        %v2181 = vsel %vm2123, %v2014, 0.0
        %2182 = vadd.xlane.f32.xlu0 %v2181
        %v2183 = vpop.xlane.xlu0 %2182
        %v2184 = vsel %vm2123, %v2015, 0.0
        %2185 = vadd.xlane.f32.xlu0 %v2184
        %v2186 = vpop.xlane.xlu0 %2185
        %v2187 = vsel %vm2123, %v2016, 0.0
        %2188 = vadd.xlane.f32.xlu0 %v2187
        %v2189 = vpop.xlane.xlu0 %2188
        %v2190 = vsel %vm2123, %v2017, 0.0
        %2191 = vadd.xlane.f32.xlu0 %v2190
        %v2192 = vpop.xlane.xlu0 %2191
        %v2193 = vsel %vm2123, %v2018, 0.0
        %2194 = vadd.xlane.f32.xlu0 %v2193
        %v2195 = vpop.xlane.xlu0 %2194
        %v2196 = vsel %vm2123, %v2019, 0.0
        %2197 = vadd.xlane.f32.xlu0 %v2196
        %v2198 = vpop.xlane.xlu0 %2197
        %v2199 = vsel %vm2123, %v2020, 0.0
        %2200 = vadd.xlane.f32.xlu0 %v2199
        %v2201 = vpop.xlane.xlu0 %2200
        %v2202 = vsel %vm2123, %v2021, 0.0
        %2203 = vadd.xlane.f32.xlu0 %v2202
        %v2204 = vpop.xlane.xlu0 %2203
        %v2205 = vsel %vm2123, %v2022, 0.0
        %2206 = vadd.xlane.f32.xlu0 %v2205
        %v2207 = vpop.xlane.xlu0 %2206
        %v2208 = vsel %vm2123, %v2023, 0.0
        %2209 = vadd.xlane.f32.xlu0 %v2208
        %v2210 = vpop.xlane.xlu0 %2209
        %v2211 = vsel %vm2123, %v2024, 0.0
        %2212 = vadd.xlane.f32.xlu0 %v2211
        %v2213 = vpop.xlane.xlu0 %2212
        %v2214 = vsel %vm2123, %v2025, 0.0
        %2215 = vadd.xlane.f32.xlu0 %v2214
        %v2216 = vpop.xlane.xlu0 %2215
        %v2217 = vsel %vm2123, %v2026, 0.0
        %2218 = vadd.xlane.f32.xlu0 %v2217
        %v2219 = vpop.xlane.xlu0 %2218
        %v2220 = vsel %vm2123, %v2027, 0.0
        %2221 = vadd.xlane.f32.xlu0 %v2220
        %v2222 = vpop.xlane.xlu0 %2221
        %v2223 = vsel %vm2123, %v2028, 0.0
        %2224 = vadd.xlane.f32.xlu0 %v2223
        %v2225 = vpop.xlane.xlu0 %2224
        %v2226 = vsel %vm2123, %v2029, 0.0
        %2227 = vadd.xlane.f32.xlu0 %v2226
        %v2228 = vpop.xlane.xlu0 %2227
        %v2229 = vsel %vm2123, %v2030, 0.0
        %2230 = vadd.xlane.f32.xlu0 %v2229
        %v2231 = vpop.xlane.xlu0 %2230
        %v2232 = vsel %vm2123, %v2031, 0.0
        %2233 = vadd.xlane.f32.xlu0 %v2232
        %v2234 = vpop.xlane.xlu0 %2233
        %v2235 = vsel %vm2123, %v2032, 0.0
        %2236 = vadd.xlane.f32.xlu0 %v2235
        %v2237 = vpop.xlane.xlu0 %2236
        %v2238 = vsel %vm2123, %v2033, 0.0
        %2239 = vadd.xlane.f32.xlu0 %v2238
        %v2240 = vpop.xlane.xlu0 %2239
        %v2241 = vsel %vm2123, %v2034, 0.0
        %2242 = vadd.xlane.f32.xlu0 %v2241
        %v2243 = vpop.xlane.xlu0 %2242
        %v2244 = vsel %vm2123, %v2035, 0.0
        %2245 = vadd.xlane.f32.xlu0 %v2244
        %v2246 = vpop.xlane.xlu0 %2245
        %v2247 = vsel %vm2123, %v2036, 0.0
        %2248 = vadd.xlane.f32.xlu0 %v2247
        %v2249 = vpop.xlane.xlu0 %2248
        %v2250 = vsel %vm2123, %v2037, 0.0
        %2251 = vadd.xlane.f32.xlu0 %v2250
        %v2252 = vpop.xlane.xlu0 %2251
        %v2253 = vsel %vm2123, %v2038, 0.0
        %2254 = vadd.xlane.f32.xlu0 %v2253
        %v2255 = vpop.xlane.xlu0 %2254
        %v2256 = vsel %vm2123, %v2039, 0.0
        %2257 = vadd.xlane.f32.xlu0 %v2256
        %v2258 = vpop.xlane.xlu0 %2257
        %v2259 = vsel %vm2123, %v2040, 0.0
        %2260 = vadd.xlane.f32.xlu0 %v2259
        %v2261 = vpop.xlane.xlu0 %2260
        %v2262 = vsel %vm2123, %v2041, 0.0
        %2263 = vadd.xlane.f32.xlu0 %v2262
        %v2264 = vpop.xlane.xlu0 %2263
        %v2265 = vsel %vm2123, %v2042, 0.0
        %2266 = vadd.xlane.f32.xlu0 %v2265
        %v2267 = vpop.xlane.xlu0 %2266
        %v2268 = vsel %vm2123, %v2043, 0.0
        %2269 = vadd.xlane.f32.xlu0 %v2268
        %v2270 = vpop.xlane.xlu0 %2269
        %v2271 = vsel %vm2123, %v2044, 0.0
        %2272 = vadd.xlane.f32.xlu0 %v2271
        %v2273 = vpop.xlane.xlu0 %2272
        %v2274 = vsel %vm2123, %v2045, 0.0
        %2275 = vadd.xlane.f32.xlu0 %v2274
        %v2276 = vpop.xlane.xlu0 %2275
        %v2277 = vsel %vm2123, %v2046, 0.0
        %2278 = vadd.xlane.f32.xlu0 %v2277
        %v2279 = vpop.xlane.xlu0 %2278
        %v2280 = vsel %vm2123, %v2047, 0.0
        %2281 = vadd.xlane.f32.xlu0 %v2280
        %v2282 = vpop.xlane.xlu0 %2281
        %v2283 = vsel %vm2123, %v2048, 0.0
        %2284 = vadd.xlane.f32.xlu0 %v2283
        %v2285 = vpop.xlane.xlu0 %2284
        %v2286 = vsel %vm2123, %v2049, 0.0
        %2287 = vadd.xlane.f32.xlu0 %v2286
        %v2288 = vpop.xlane.xlu0 %2287
        %v2289 = vsel %vm2123, %v2050, 0.0
        %2290 = vadd.xlane.f32.xlu0 %v2289
        %v2291 = vpop.xlane.xlu0 %2290
        %v2292 = vsel %vm2123, %v2051, 0.0
        %2293 = vadd.xlane.f32.xlu0 %v2292
        %v2294 = vpop.xlane.xlu0 %2293
        %v2295 = vsel %vm2123, %v2052, 0.0
        %2296 = vadd.xlane.f32.xlu0 %v2295
        %v2297 = vpop.xlane.xlu0 %2296
        %v2298 = vsel %vm2123, %v2053, 0.0
        %2299 = vadd.xlane.f32.xlu0 %v2298
        %v2300 = vpop.xlane.xlu0 %2299
        %v2301 = vsel %vm2123, %v2054, 0.0
        %2302 = vadd.xlane.f32.xlu0 %v2301
        %v2303 = vpop.xlane.xlu0 %2302
        %v2304 = vsel %vm2123, %v2055, 0.0
        %2305 = vadd.xlane.f32.xlu0 %v2304
        %v2306 = vpop.xlane.xlu0 %2305
        %v2307 = vsel %vm2123, %v2056, 0.0
        %2308 = vadd.xlane.f32.xlu0 %v2307
        %v2309 = vpop.xlane.xlu0 %2308
        %v2310 = vsel %vm2123, %v2057, 0.0
        %2311 = vadd.xlane.f32.xlu0 %v2310
        %v2312 = vpop.xlane.xlu0 %2311
        %v2313 = vsel %vm2123, %v2058, 0.0
        %2314 = vadd.xlane.f32.xlu0 %v2313
        %v2315 = vpop.xlane.xlu0 %2314
        %v2316 = vsel %vm2123, %v2059, 0.0
        %2317 = vadd.xlane.f32.xlu0 %v2316
        %v2318 = vpop.xlane.xlu0 %2317
        %v2319 = vsel %vm2123, %v2060, 0.0
        %2320 = vadd.xlane.f32.xlu0 %v2319
        %v2321 = vpop.xlane.xlu0 %2320
        %v2322 = vsel %vm2123, %v2061, 0.0
        %2323 = vadd.xlane.f32.xlu0 %v2322
        %v2324 = vpop.xlane.xlu0 %2323
        %v2325 = vsel %vm2123, %v2062, 0.0
        %2326 = vadd.xlane.f32.xlu0 %v2325
        %v2327 = vpop.xlane.xlu0 %2326
        %v2328 = vsel %vm2123, %v2063, 0.0
        %2329 = vadd.xlane.f32.xlu0 %v2328
        %v2330 = vpop.xlane.xlu0 %2329
        %v2331 = vsel %vm2123, %v2064, 0.0
        %2332 = vadd.xlane.f32.xlu0 %v2331
        %v2333 = vpop.xlane.xlu0 %2332
        %v2334 = vsel %vm2123, %v2065, 0.0
        %2335 = vadd.xlane.f32.xlu0 %v2334
        %v2336 = vpop.xlane.xlu0 %2335
        %v2337 = vsel %vm2123, %v2066, 0.0
        %2338 = vadd.xlane.f32.xlu0 %v2337
        %v2339 = vpop.xlane.xlu0 %2338
        %v2340 = vsel %vm2123, %v2067, 0.0
        %2341 = vadd.xlane.f32.xlu0 %v2340
        %v2342 = vpop.xlane.xlu0 %2341
        %v2343 = vsel %vm2123, %v2068, 0.0
        %2344 = vadd.xlane.f32.xlu0 %v2343
        %v2345 = vpop.xlane.xlu0 %2344
        %v2346 = vsel %vm2123, %v2069, 0.0
        %2347 = vadd.xlane.f32.xlu0 %v2346
        %v2348 = vpop.xlane.xlu0 %2347
        %v2349 = vsel %vm2123, %v2070, 0.0
        %2350 = vadd.xlane.f32.xlu0 %v2349
        %v2351 = vpop.xlane.xlu0 %2350
        %v2352 = vsel %vm2123, %v2071, 0.0
        %2353 = vadd.xlane.f32.xlu0 %v2352
        %v2354 = vpop.xlane.xlu0 %2353
        %v2355 = vsel %vm2123, %v2072, 0.0
        %2356 = vadd.xlane.f32.xlu0 %v2355
        %v2357 = vpop.xlane.xlu0 %2356
        %v2358 = vsel %vm2123, %v2073, 0.0
        %2359 = vadd.xlane.f32.xlu0 %v2358
        %v2360 = vpop.xlane.xlu0 %2359
        %v2361 = vsel %vm2123, %v2074, 0.0
        %2362 = vadd.xlane.f32.xlu0 %v2361
        %v2363 = vpop.xlane.xlu0 %2362
        %v2364 = vsel %vm2123, %v2075, 0.0
        %2365 = vadd.xlane.f32.xlu0 %v2364
        %v2366 = vpop.xlane.xlu0 %2365
        %v2367 = vsel %vm2123, %v2076, 0.0
        %2368 = vadd.xlane.f32.xlu0 %v2367
        %v2369 = vpop.xlane.xlu0 %2368
        %v2370 = vsel %vm2123, %v2077, 0.0
        %2371 = vadd.xlane.f32.xlu0 %v2370
        %v2372 = vpop.xlane.xlu0 %2371
        %v2373 = vsel %vm2123, %v2078, 0.0
        %2374 = vadd.xlane.f32.xlu0 %v2373
        %v2375 = vpop.xlane.xlu0 %2374
        %v2376 = vsel %vm2123, %v2079, 0.0
        %2377 = vadd.xlane.f32.xlu0 %v2376
        %v2378 = vpop.xlane.xlu0 %2377
        %v2379 = vsel %vm2123, %v2080, 0.0
        %2380 = vadd.xlane.f32.xlu0 %v2379
        %v2381 = vpop.xlane.xlu0 %2380
        %v2382 = vsel %vm2123, %v2081, 0.0
        %2383 = vadd.xlane.f32.xlu0 %v2382
        %v2384 = vpop.xlane.xlu0 %2383
        %v2385 = vsel %vm2123, %v2082, 0.0
        %2386 = vadd.xlane.f32.xlu0 %v2385
        %v2387 = vpop.xlane.xlu0 %2386
        %v2388 = vsel %vm2123, %v2083, 0.0
        %2389 = vadd.xlane.f32.xlu0 %v2388
        %v2390 = vpop.xlane.xlu0 %2389
        %v2391 = vsel %vm2123, %v2084, 0.0
        %2392 = vadd.xlane.f32.xlu0 %v2391
        %v2393 = vpop.xlane.xlu0 %2392
        %v2394 = vsel %vm2123, %v2085, 0.0
        %2395 = vadd.xlane.f32.xlu0 %v2394
        %v2396 = vpop.xlane.xlu0 %2395
        %v2397 = vsel %vm2123, %v2086, 0.0
        %2398 = vadd.xlane.f32.xlu0 %v2397
        %v2399 = vpop.xlane.xlu0 %2398
        %v2400 = vsel %vm2123, %v2087, 0.0
        %2401 = vadd.xlane.f32.xlu0 %v2400
        %v2402 = vpop.xlane.xlu0 %2401
        %v2403 = vsel %vm2123, %v2088, 0.0
        %2404 = vadd.xlane.f32.xlu0 %v2403
        %v2405 = vpop.xlane.xlu0 %2404
        %v2406 = vsel %vm2123, %v2089, 0.0
        %2407 = vadd.xlane.f32.xlu0 %v2406
        %v2408 = vpop.xlane.xlu0 %2407
        %v2409 = vsel %vm2123, %v2090, 0.0
        %2410 = vadd.xlane.f32.xlu0 %v2409
        %v2411 = vpop.xlane.xlu0 %2410
        %v2412 = vsel %vm2123, %v2091, 0.0
        %2413 = vadd.xlane.f32.xlu0 %v2412
        %v2414 = vpop.xlane.xlu0 %2413
        %v2415 = vsel %vm2123, %v2092, 0.0
        %2416 = vadd.xlane.f32.xlu0 %v2415
        %v2417 = vpop.xlane.xlu0 %2416
        %v2418 = vsel %vm2123, %v2093, 0.0
        %2419 = vadd.xlane.f32.xlu0 %v2418
        %v2420 = vpop.xlane.xlu0 %2419
        %v2421 = vsel %vm2123, %v2094, 0.0
        %2422 = vadd.xlane.f32.xlu0 %v2421
        %v2423 = vpop.xlane.xlu0 %2422
        %v2424 = vsel %vm2123, %v2095, 0.0
        %2425 = vadd.xlane.f32.xlu0 %v2424
        %v2426 = vpop.xlane.xlu0 %2425
        %v2427 = vsel %vm2123, %v2096, 0.0
        %2428 = vadd.xlane.f32.xlu0 %v2427
        %v2429 = vpop.xlane.xlu0 %2428
        %v2430 = vsel %vm2123, %v2097, 0.0
        %2431 = vadd.xlane.f32.xlu0 %v2430
        %v2432 = vpop.xlane.xlu0 %2431
        %v2433 = vsel %vm2123, %v2098, 0.0
        %2434 = vadd.xlane.f32.xlu0 %v2433
        %v2435 = vpop.xlane.xlu0 %2434
        %v2436 = vsel %vm2123, %v2099, 0.0
        %2437 = vadd.xlane.f32.xlu0 %v2436
        %v2438 = vpop.xlane.xlu0 %2437
        %v2439 = vsel %vm2123, %v2100, 0.0
        %2440 = vadd.xlane.f32.xlu0 %v2439
        %v2441 = vpop.xlane.xlu0 %2440
        %v2442 = vsel %vm2123, %v2101, 0.0
        %2443 = vadd.xlane.f32.xlu0 %v2442
        %v2444 = vpop.xlane.xlu0 %2443
        %v2445 = vsel %vm2123, %v2102, 0.0
        %2446 = vadd.xlane.f32.xlu0 %v2445
        %v2447 = vpop.xlane.xlu0 %2446
        %v2448 = vsel %vm2123, %v2103, 0.0
        %2449 = vadd.xlane.f32.xlu0 %v2448
        %v2450 = vpop.xlane.xlu0 %2449
        %v2451 = vsel %vm2123, %v2104, 0.0
        %2452 = vadd.xlane.f32.xlu0 %v2451
        %v2453 = vpop.xlane.xlu0 %2452
        %v2454 = vsel %vm2123, %v2105, 0.0
        %2455 = vadd.xlane.f32.xlu0 %v2454
        %v2456 = vpop.xlane.xlu0 %2455
        %v2457 = vsel %vm2123, %v2106, 0.0
        %2458 = vadd.xlane.f32.xlu0 %v2457
        %v2459 = vpop.xlane.xlu0 %2458
        %v2460 = vsel %vm2123, %v2107, 0.0
        %2461 = vadd.xlane.f32.xlu0 %v2460
        %v2462 = vpop.xlane.xlu0 %2461
        %v2463 = vsel %vm2123, %v2108, 0.0
        %2464 = vadd.xlane.f32.xlu0 %v2463
        %v2465 = vpop.xlane.xlu0 %2464
        %v2466 = vsel %vm2123, %v2109, 0.0
        %2467 = vadd.xlane.f32.xlu0 %v2466
        %v2468 = vpop.xlane.xlu0 %2467
        %v2469 = vsel %vm2123, %v2110, 0.0
        %2470 = vadd.xlane.f32.xlu0 %v2469
        %v2471 = vpop.xlane.xlu0 %2470
        %v2472 = vsel %vm2123, %v2111, 0.0
        %2473 = vadd.xlane.f32.xlu0 %v2472
        %v2474 = vpop.xlane.xlu0 %2473
        %v2475 = vsel %vm2123, %v2112, 0.0
        %2476 = vadd.xlane.f32.xlu0 %v2475
        %v2477 = vpop.xlane.xlu0 %2476
        %v2478 = vsel %vm2123, %v2113, 0.0
        %2479 = vadd.xlane.f32.xlu0 %v2478
        %v2480 = vpop.xlane.xlu0 %2479
        %v2481 = vsel %vm2123, %v2114, 0.0
        %2482 = vadd.xlane.f32.xlu0 %v2481
        %v2483 = vpop.xlane.xlu0 %2482
        %v2484 = vsel %vm2123, %v2115, 0.0
        %2485 = vadd.xlane.f32.xlu0 %v2484
        %v2486 = vpop.xlane.xlu0 %2485
        %v2487 = vsel %vm2123, %v2116, 0.0
        %2488 = vadd.xlane.f32.xlu0 %v2487
        %v2489 = vpop.xlane.xlu0 %2488
        %v2490 = vsel %vm2123, %v2117, 0.0
        %2491 = vadd.xlane.f32.xlu0 %v2490
        %v2492 = vpop.xlane.xlu0 %2491
        %v2493 = vsel %vm2123, %v2118, 0.0
        %2494 = vadd.xlane.f32.xlu0 %v2493
        %v2495 = vpop.xlane.xlu0 %2494
        %v2496 = vsel %vm2123, %v2119, 0.0
        %2497 = vadd.xlane.f32.xlu0 %v2496
        %v2498 = vpop.xlane.xlu0 %2497
        %v2499 = vsel %vm2123, %v2120, 0.0
        %2500 = vadd.xlane.f32.xlu0 %v2499
        %v2501 = vpop.xlane.xlu0 %2500
        %v2502 = vsel %vm2123, %v2121, 0.0
        %2503 = vadd.xlane.f32.xlu0 %v2502
        %v2504 = vpop.xlane.xlu0 %2503
        %v2505 = vsel %vm2123, %v2122, 0.0
        %2506 = vadd.xlane.f32.xlu0 %v2505
        %v2507 = vpop.xlane.xlu0 %2506
        %v2508 = vmul.f32 %v2126, 0.5
        %v2509 = vmul.f32 %v2129, 0.5
        %v2510 = vmul.f32 %v2132, 0.5
        %v2511 = vmul.f32 %v2135, 0.5
        %v2512 = vmul.f32 %v2138, 0.5
        %v2513 = vmul.f32 %v2141, 0.5
        %v2514 = vmul.f32 %v2144, 0.5
        %v2515 = vmul.f32 %v2147, 0.5
        %v2516 = vmul.f32 %v2150, 0.5
        %v2517 = vmul.f32 %v2153, 0.5
        %v2518 = vmul.f32 %v2156, 0.5
        %v2519 = vmul.f32 %v2159, 0.5
        %v2520 = vmul.f32 %v2162, 0.5
        %v2521 = vmul.f32 %v2165, 0.5
        %v2522 = vmul.f32 %v2168, 0.5
        %v2523 = vmul.f32 %v2171, 0.5
        %v2524 = vmul.f32 %v2174, 0.5
        %v2525 = vmul.f32 %v2177, 0.5
        %v2526 = vmul.f32 %v2180, 0.5
        %v2527 = vmul.f32 %v2183, 0.5
        %v2528 = vmul.f32 %v2186, 0.5
        %v2529 = vmul.f32 %v2189, 0.5
        %v2530 = vmul.f32 %v2192, 0.5
        %v2531 = vmul.f32 %v2195, 0.5
        %v2532 = vmul.f32 %v2198, 0.5
        %v2533 = vmul.f32 %v2201, 0.5
        %v2534 = vmul.f32 %v2204, 0.5
        %v2535 = vmul.f32 %v2207, 0.5
        %v2536 = vmul.f32 %v2210, 0.5
        %v2537 = vmul.f32 %v2213, 0.5
        %v2538 = vmul.f32 %v2216, 0.5
        %v2539 = vmul.f32 %v2219, 0.5
        %v2540 = vmul.f32 %v2222, 0.5
        %v2541 = vmul.f32 %v2225, 0.5
        %v2542 = vmul.f32 %v2228, 0.5
        %v2543 = vmul.f32 %v2231, 0.5
        %v2544 = vmul.f32 %v2234, 0.5
        %v2545 = vmul.f32 %v2237, 0.5
        %v2546 = vmul.f32 %v2240, 0.5
        %v2547 = vmul.f32 %v2243, 0.5
        %v2548 = vmul.f32 %v2246, 0.5
        %v2549 = vmul.f32 %v2249, 0.5
        %v2550 = vmul.f32 %v2252, 0.5
        %v2551 = vmul.f32 %v2255, 0.5
        %v2552 = vmul.f32 %v2258, 0.5
        %v2553 = vmul.f32 %v2261, 0.5
        %v2554 = vmul.f32 %v2264, 0.5
        %v2555 = vmul.f32 %v2267, 0.5
        %v2556 = vmul.f32 %v2270, 0.5
        %v2557 = vmul.f32 %v2273, 0.5
        %v2558 = vmul.f32 %v2276, 0.5
        %v2559 = vmul.f32 %v2279, 0.5
        %v2560 = vmul.f32 %v2282, 0.5
        %v2561 = vmul.f32 %v2285, 0.5
        %v2562 = vmul.f32 %v2288, 0.5
        %v2563 = vmul.f32 %v2291, 0.5
        %v2564 = vmul.f32 %v2294, 0.5
        %v2565 = vmul.f32 %v2297, 0.5
        %v2566 = vmul.f32 %v2300, 0.5
        %v2567 = vmul.f32 %v2303, 0.5
        %v2568 = vmul.f32 %v2306, 0.5
        %v2569 = vmul.f32 %v2309, 0.5
        %v2570 = vmul.f32 %v2312, 0.5
        %v2571 = vmul.f32 %v2315, 0.5
        %v2572 = vmul.f32 %v2318, 0.5
        %v2573 = vmul.f32 %v2321, 0.5
        %v2574 = vmul.f32 %v2324, 0.5
        %v2575 = vmul.f32 %v2327, 0.5
        %v2576 = vmul.f32 %v2330, 0.5
        %v2577 = vmul.f32 %v2333, 0.5
        %v2578 = vmul.f32 %v2336, 0.5
        %v2579 = vmul.f32 %v2339, 0.5
        %v2580 = vmul.f32 %v2342, 0.5
        %v2581 = vmul.f32 %v2345, 0.5
        %v2582 = vmul.f32 %v2348, 0.5
        %v2583 = vmul.f32 %v2351, 0.5
        %v2584 = vmul.f32 %v2354, 0.5
        %v2585 = vmul.f32 %v2357, 0.5
        %v2586 = vmul.f32 %v2360, 0.5
        %v2587 = vmul.f32 %v2363, 0.5
        %v2588 = vmul.f32 %v2366, 0.5
        %v2589 = vmul.f32 %v2369, 0.5
        %v2590 = vmul.f32 %v2372, 0.5
        %v2591 = vmul.f32 %v2375, 0.5
        %v2592 = vmul.f32 %v2378, 0.5
        %v2593 = vmul.f32 %v2381, 0.5
        %v2594 = vmul.f32 %v2384, 0.5
        %v2595 = vmul.f32 %v2387, 0.5
        %v2596 = vmul.f32 %v2390, 0.5
        %v2597 = vmul.f32 %v2393, 0.5
        %v2598 = vmul.f32 %v2396, 0.5
        %v2599 = vmul.f32 %v2399, 0.5
        %v2600 = vmul.f32 %v2402, 0.5
        %v2601 = vmul.f32 %v2405, 0.5
        %v2602 = vmul.f32 %v2408, 0.5
        %v2603 = vmul.f32 %v2411, 0.5
        %v2604 = vmul.f32 %v2414, 0.5
        %v2605 = vmul.f32 %v2417, 0.5
        %v2606 = vmul.f32 %v2420, 0.5
        %v2607 = vmul.f32 %v2423, 0.5
        %v2608 = vmul.f32 %v2426, 0.5
        %v2609 = vmul.f32 %v2429, 0.5
        %v2610 = vmul.f32 %v2432, 0.5
        %v2611 = vmul.f32 %v2435, 0.5
        %v2612 = vmul.f32 %v2438, 0.5
        %v2613 = vmul.f32 %v2441, 0.5
        %v2614 = vmul.f32 %v2444, 0.5
        %v2615 = vmul.f32 %v2447, 0.5
        %v2616 = vmul.f32 %v2450, 0.5
        %v2617 = vmul.f32 %v2453, 0.5
        %v2618 = vmul.f32 %v2456, 0.5
        %v2619 = vmul.f32 %v2459, 0.5
        %v2620 = vmul.f32 %v2462, 0.5
        %v2621 = vmul.f32 %v2465, 0.5
        %v2622 = vmul.f32 %v2468, 0.5
        %v2623 = vmul.f32 %v2471, 0.5
        %v2624 = vmul.f32 %v2474, 0.5
        %v2625 = vmul.f32 %v2477, 0.5
        %v2626 = vmul.f32 %v2480, 0.5
        %v2627 = vmul.f32 %v2483, 0.5
        %v2628 = vmul.f32 %v2486, 0.5
        %v2629 = vmul.f32 %v2489, 0.5
        %v2630 = vmul.f32 %v2492, 0.5
        %v2631 = vmul.f32 %v2495, 0.5
        %v2632 = vmul.f32 %v2498, 0.5
        %v2633 = vmul.f32 %v2501, 0.5
        %v2634 = vmul.f32 %v2504, 0.5
        %v2635 = vmul.f32 %v2507, 0.5
        %v2636 = vmul.f32 %v345, %v345
        %v2637 = vmul.f32 %v346, %v346
        %v2638 = vmul.f32 %v347, %v347
        %v2639 = vmul.f32 %v348, %v348
        %v2640 = vmul.f32 %v349, %v349
        %v2641 = vmul.f32 %v350, %v350
        %v2642 = vmul.f32 %v351, %v351
        %v2643 = vmul.f32 %v352, %v352
        %v2644 = vmul.f32 %v353, %v353
        %v2645 = vmul.f32 %v354, %v354
        %v2646 = vmul.f32 %v355, %v355
        %v2647 = vmul.f32 %v356, %v356
        %v2648 = vmul.f32 %v357, %v357
        %v2649 = vmul.f32 %v358, %v358
        %v2650 = vmul.f32 %v359, %v359
        %v2651 = vmul.f32 %v360, %v360
        %v2652 = vmul.f32 %v361, %v361
        %v2653 = vmul.f32 %v362, %v362
        %v2654 = vmul.f32 %v363, %v363
        %v2655 = vmul.f32 %v364, %v364
        %v2656 = vmul.f32 %v365, %v365
        %v2657 = vmul.f32 %v366, %v366
        %v2658 = vmul.f32 %v367, %v367
        %v2659 = vmul.f32 %v368, %v368
        %v2660 = vmul.f32 %v369, %v369
        %v2661 = vmul.f32 %v370, %v370
        %v2662 = vmul.f32 %v371, %v371
        %v2663 = vmul.f32 %v372, %v372
        %v2664 = vmul.f32 %v373, %v373
        %v2665 = vmul.f32 %v374, %v374
        %v2666 = vmul.f32 %v375, %v375
        %v2667 = vmul.f32 %v376, %v376
        %v2668 = vmul.f32 %v377, %v377
        %v2669 = vmul.f32 %v378, %v378
        %v2670 = vmul.f32 %v379, %v379
        %v2671 = vmul.f32 %v380, %v380
        %v2672 = vmul.f32 %v381, %v381
        %v2673 = vmul.f32 %v382, %v382
        %v2674 = vmul.f32 %v383, %v383
        %v2675 = vmul.f32 %v384, %v384
        %v2676 = vmul.f32 %v385, %v385
        %v2677 = vmul.f32 %v386, %v386
        %v2678 = vmul.f32 %v387, %v387
        %v2679 = vmul.f32 %v388, %v388
        %v2680 = vmul.f32 %v389, %v389
        %v2681 = vmul.f32 %v390, %v390
        %v2682 = vmul.f32 %v391, %v391
        %v2683 = vmul.f32 %v392, %v392
        %v2684 = vmul.f32 %v393, %v393
        %v2685 = vmul.f32 %v394, %v394
        %v2686 = vmul.f32 %v395, %v395
        %v2687 = vmul.f32 %v396, %v396
        %v2688 = vmul.f32 %v397, %v397
        %v2689 = vmul.f32 %v398, %v398
        %v2690 = vmul.f32 %v399, %v399
        %v2691 = vmul.f32 %v400, %v400
        %v2692 = vmul.f32 %v401, %v401
        %v2693 = vmul.f32 %v402, %v402
        %v2694 = vmul.f32 %v403, %v403
        %v2695 = vmul.f32 %v404, %v404
        %v2696 = vmul.f32 %v405, %v405
        %v2697 = vmul.f32 %v406, %v406
        %v2698 = vmul.f32 %v407, %v407
        %v2699 = vmul.f32 %v408, %v408
        %v2700 = vmul.f32 %v409, %v409
        %v2701 = vmul.f32 %v410, %v410
        %v2702 = vmul.f32 %v411, %v411
        %v2703 = vmul.f32 %v412, %v412
        %v2704 = vmul.f32 %v413, %v413
        %v2705 = vmul.f32 %v414, %v414
        %v2706 = vmul.f32 %v415, %v415
        %v2707 = vmul.f32 %v416, %v416
        %v2708 = vmul.f32 %v417, %v417
        %v2709 = vmul.f32 %v418, %v418
        %v2710 = vmul.f32 %v419, %v419
        %v2711 = vmul.f32 %v420, %v420
        %v2712 = vmul.f32 %v421, %v421
        %v2713 = vmul.f32 %v422, %v422
        %v2714 = vmul.f32 %v423, %v423
        %v2715 = vmul.f32 %v424, %v424
        %v2716 = vmul.f32 %v425, %v425
        %v2717 = vmul.f32 %v426, %v426
        %v2718 = vmul.f32 %v427, %v427
        %v2719 = vmul.f32 %v428, %v428
        %v2720 = vmul.f32 %v429, %v429
        %v2721 = vmul.f32 %v430, %v430
        %v2722 = vmul.f32 %v431, %v431
        %v2723 = vmul.f32 %v432, %v432
        %v2724 = vmul.f32 %v433, %v433
        %v2725 = vmul.f32 %v434, %v434
        %v2726 = vmul.f32 %v435, %v435
        %v2727 = vmul.f32 %v436, %v436
        %v2728 = vmul.f32 %v437, %v437
        %v2729 = vmul.f32 %v438, %v438
        %v2730 = vmul.f32 %v439, %v439
        %v2731 = vmul.f32 %v440, %v440
        %v2732 = vmul.f32 %v441, %v441
        %v2733 = vmul.f32 %v442, %v442
        %v2734 = vmul.f32 %v443, %v443
        %v2735 = vmul.f32 %v444, %v444
        %v2736 = vmul.f32 %v445, %v445
        %v2737 = vmul.f32 %v446, %v446
        %v2738 = vmul.f32 %v447, %v447
        %v2739 = vmul.f32 %v448, %v448
        %v2740 = vmul.f32 %v449, %v449
        %v2741 = vmul.f32 %v450, %v450
        %v2742 = vmul.f32 %v451, %v451
        %v2743 = vmul.f32 %v452, %v452
        %v2744 = vmul.f32 %v453, %v453
        %v2745 = vmul.f32 %v454, %v454
        %v2746 = vmul.f32 %v455, %v455
        %v2747 = vmul.f32 %v456, %v456
        %v2748 = vmul.f32 %v457, %v457
        %v2749 = vmul.f32 %v458, %v458
        %v2750 = vmul.f32 %v459, %v459
        %v2751 = vmul.f32 %v460, %v460
        %v2752 = vmul.f32 %v461, %v461
        %v2753 = vmul.f32 %v462, %v462
        %v2754 = vmul.f32 %v463, %v463
        %v2755 = vmul.f32 %v464, %v464
        %v2756 = vmul.f32 %v465, %v465
        %v2757 = vmul.f32 %v466, %v466
        %v2758 = vmul.f32 %v467, %v467
        %v2759 = vmul.f32 %v468, %v468
        %v2760 = vmul.f32 %v469, %v469
        %v2761 = vmul.f32 %v470, %v470
        %v2762 = vmul.f32 %v471, %v471
        %v2763 = vmul.f32 %v472, %v472
        %v2764 = vmul.f32 %v473, %v473
        %v2765 = vmul.f32 %v474, %v474
        %v2766 = vmul.f32 %v475, %v475
        %v2767 = vmul.f32 %v476, %v476
        %v2768 = vmul.f32 %v477, %v477
        %v2769 = vmul.f32 %v478, %v478
        %v2770 = vmul.f32 %v479, %v479
        %v2771 = vmul.f32 %v480, %v480
        %v2772 = vmul.f32 %v481, %v481
        %v2773 = vmul.f32 %v482, %v482
        %v2774 = vmul.f32 %v483, %v483
        %v2775 = vmul.f32 %v484, %v484
        %v2776 = vmul.f32 %v485, %v485
        %v2777 = vmul.f32 %v486, %v486
        %v2778 = vmul.f32 %v487, %v487
        %v2779 = vmul.f32 %v488, %v488
        %v2780 = vmul.f32 %v489, %v489
        %v2781 = vmul.f32 %v490, %v490
        %v2782 = vmul.f32 %v491, %v491
        %v2783 = vmul.f32 %v492, %v492
        %v2784 = vmul.f32 %v493, %v493
        %v2785 = vmul.f32 %v494, %v494
        %v2786 = vmul.f32 %v495, %v495
        %v2787 = vmul.f32 %v496, %v496
        %v2788 = vmul.f32 %v497, %v497
        %v2789 = vmul.f32 %v498, %v498
        %v2790 = vmul.f32 %v499, %v499
        %v2791 = vmul.f32 %v500, %v500
        %v2792 = vmul.f32 %v501, %v501
        %v2793 = vmul.f32 %v502, %v502
        %v2794 = vmul.f32 %v503, %v503
        %v2795 = vmul.f32 %v504, %v504
        %v2796 = vmul.f32 %v505, %v505
        %v2797 = vmul.f32 %v506, %v506
        %v2798 = vmul.f32 %v507, %v507
        %v2799 = vmul.f32 %v508, %v508
        %v2800 = vmul.f32 %v509, %v509
        %v2801 = vmul.f32 %v510, %v510
        %v2802 = vmul.f32 %v511, %v511
        %v2803 = vmul.f32 %v512, %v512
        %v2804 = vmul.f32 %v513, %v513
        %v2805 = vmul.f32 %v514, %v514
        %v2806 = vmul.f32 %v515, %v515
        %v2807 = vmul.f32 %v516, %v516
        %v2808 = vmul.f32 %v517, %v517
        %v2809 = vmul.f32 %v518, %v518
        %v2810 = vmul.f32 %v519, %v519
        %v2811 = vmul.f32 %v520, %v520
        %v2812 = vmul.f32 %v521, %v521
        %v2813 = vmul.f32 %v522, %v522
        %v2814 = vmul.f32 %v523, %v523
        %v2815 = vmul.f32 %v524, %v524
        %v2816 = vmul.f32 %v525, %v525
        %v2817 = vmul.f32 %v526, %v526
        %v2818 = vmul.f32 %v527, %v527
        %v2819 = vmul.f32 %v528, %v528
        %v2820 = vmul.f32 %v529, %v529
        %v2821 = vmul.f32 %v530, %v530
        %v2822 = vmul.f32 %v531, %v531
        %v2823 = vmul.f32 %v532, %v532
        %v2824 = vmul.f32 %v533, %v533
        %v2825 = vmul.f32 %v534, %v534
        %v2826 = vmul.f32 %v535, %v535
        %v2827 = vmul.f32 %v536, %v536
        %v2828 = vmul.f32 %v537, %v537
        %v2829 = vmul.f32 %v538, %v538
        %v2830 = vmul.f32 %v539, %v539
        %v2831 = vmul.f32 %v540, %v540
        %v2832 = vmul.f32 %v541, %v541
        %v2833 = vmul.f32 %v542, %v542
        %v2834 = vmul.f32 %v543, %v543
        %v2835 = vmul.f32 %v544, %v544
        %v2836 = vmul.f32 %v545, %v545
        %v2837 = vmul.f32 %v546, %v546
        %v2838 = vmul.f32 %v547, %v547
        %v2839 = vmul.f32 %v548, %v548
        %v2840 = vmul.f32 %v549, %v549
        %v2841 = vmul.f32 %v550, %v550
        %v2842 = vmul.f32 %v551, %v551
        %v2843 = vmul.f32 %v552, %v552
        %v2844 = vmul.f32 %v553, %v553
        %v2845 = vmul.f32 %v554, %v554
        %v2846 = vmul.f32 %v555, %v555
        %v2847 = vmul.f32 %v556, %v556
        %v2848 = vmul.f32 %v557, %v557
        %v2849 = vmul.f32 %v558, %v558
        %v2850 = vmul.f32 %v559, %v559
        %v2851 = vmul.f32 %v560, %v560
        %v2852 = vmul.f32 %v561, %v561
        %v2853 = vmul.f32 %v562, %v562
        %v2854 = vmul.f32 %v563, %v563
        %v2855 = vmul.f32 %v564, %v564
        %v2856 = vmul.f32 %v565, %v565
        %v2857 = vmul.f32 %v566, %v566
        %v2858 = vmul.f32 %v567, %v567
        %v2859 = vmul.f32 %v568, %v568
        %v2860 = vmul.f32 %v569, %v569
        %v2861 = vmul.f32 %v570, %v570
        %v2862 = vmul.f32 %v571, %v571
        %v2863 = vmul.f32 %v572, %v572
        %v2864 = vmul.f32 %v573, %v573
        %v2865 = vmul.f32 %v574, %v574
        %v2866 = vmul.f32 %v575, %v575
        %v2867 = vmul.f32 %v576, %v576
        %v2868 = vmul.f32 %v577, %v577
        %v2869 = vmul.f32 %v578, %v578
        %v2870 = vmul.f32 %v579, %v579
        %v2871 = vmul.f32 %v580, %v580
        %v2872 = vmul.f32 %v581, %v581
        %v2873 = vmul.f32 %v582, %v582
        %v2874 = vmul.f32 %v583, %v583
        %v2875 = vmul.f32 %v584, %v584
        %v2876 = vmul.f32 %v585, %v585
        %v2877 = vmul.f32 %v586, %v586
        %v2878 = vmul.f32 %v587, %v587
        %v2879 = vmul.f32 %v588, %v588
        %v2880 = vmul.f32 %v589, %v589
        %v2881 = vmul.f32 %v590, %v590
        %v2882 = vmul.f32 %v591, %v591
        %v2883 = vmul.f32 %v592, %v592
        %v2884 = vmul.f32 %v593, %v593
        %v2885 = vmul.f32 %v594, %v594
        %v2886 = vmul.f32 %v595, %v595
        %v2887 = vmul.f32 %v596, %v596
        %v2888 = vmul.f32 %v597, %v597
        %v2889 = vmul.f32 %v598, %v598
        %v2890 = vmul.f32 %v599, %v599
        %v2891 = vmul.f32 %v600, %v600
        %v2892 = vsel %vm1257, %v2637, 0.0
        %v2893 = vadd.f32 %v2636, %v2892
        %2894 = vadd.xlane.f32.xlu0 %v2893
        %v2895 = vpop.xlane.xlu0 %2894
        %v2896 = vsel %vm1257, %v2639, 0.0
        %v2897 = vadd.f32 %v2638, %v2896
        %2898 = vadd.xlane.f32.xlu0 %v2897
        %v2899 = vpop.xlane.xlu0 %2898
        %v2900 = vsel %vm1257, %v2641, 0.0
        %v2901 = vadd.f32 %v2640, %v2900
        %2902 = vadd.xlane.f32.xlu0 %v2901
        %v2903 = vpop.xlane.xlu0 %2902
        %v2904 = vsel %vm1257, %v2643, 0.0
        %v2905 = vadd.f32 %v2642, %v2904
        %2906 = vadd.xlane.f32.xlu0 %v2905
        %v2907 = vpop.xlane.xlu0 %2906
        %v2908 = vsel %vm1257, %v2645, 0.0
        %v2909 = vadd.f32 %v2644, %v2908
        %2910 = vadd.xlane.f32.xlu0 %v2909
        %v2911 = vpop.xlane.xlu0 %2910
        %v2912 = vsel %vm1257, %v2647, 0.0
        %v2913 = vadd.f32 %v2646, %v2912
        %2914 = vadd.xlane.f32.xlu0 %v2913
        %v2915 = vpop.xlane.xlu0 %2914
        %v2916 = vsel %vm1257, %v2649, 0.0
        %v2917 = vadd.f32 %v2648, %v2916
        %2918 = vadd.xlane.f32.xlu0 %v2917
        %v2919 = vpop.xlane.xlu0 %2918
        %v2920 = vsel %vm1257, %v2651, 0.0
        %v2921 = vadd.f32 %v2650, %v2920
        %2922 = vadd.xlane.f32.xlu0 %v2921
        %v2923 = vpop.xlane.xlu0 %2922
        %v2924 = vsel %vm1257, %v2653, 0.0
        %v2925 = vadd.f32 %v2652, %v2924
        %2926 = vadd.xlane.f32.xlu0 %v2925
        %v2927 = vpop.xlane.xlu0 %2926
        %v2928 = vsel %vm1257, %v2655, 0.0
        %v2929 = vadd.f32 %v2654, %v2928
        %2930 = vadd.xlane.f32.xlu0 %v2929
        %v2931 = vpop.xlane.xlu0 %2930
        %v2932 = vsel %vm1257, %v2657, 0.0
        %v2933 = vadd.f32 %v2656, %v2932
        %2934 = vadd.xlane.f32.xlu0 %v2933
        %v2935 = vpop.xlane.xlu0 %2934
        %v2936 = vsel %vm1257, %v2659, 0.0
        %v2937 = vadd.f32 %v2658, %v2936
        %2938 = vadd.xlane.f32.xlu0 %v2937
        %v2939 = vpop.xlane.xlu0 %2938
        %v2940 = vsel %vm1257, %v2661, 0.0
        %v2941 = vadd.f32 %v2660, %v2940
        %2942 = vadd.xlane.f32.xlu0 %v2941
        %v2943 = vpop.xlane.xlu0 %2942
        %v2944 = vsel %vm1257, %v2663, 0.0
        %v2945 = vadd.f32 %v2662, %v2944
        %2946 = vadd.xlane.f32.xlu0 %v2945
        %v2947 = vpop.xlane.xlu0 %2946
        %v2948 = vsel %vm1257, %v2665, 0.0
        %v2949 = vadd.f32 %v2664, %v2948
        %2950 = vadd.xlane.f32.xlu0 %v2949
        %v2951 = vpop.xlane.xlu0 %2950
        %v2952 = vsel %vm1257, %v2667, 0.0
        %v2953 = vadd.f32 %v2666, %v2952
        %2954 = vadd.xlane.f32.xlu0 %v2953
        %v2955 = vpop.xlane.xlu0 %2954
        %v2956 = vsel %vm1257, %v2669, 0.0
        %v2957 = vadd.f32 %v2668, %v2956
        %2958 = vadd.xlane.f32.xlu0 %v2957
        %v2959 = vpop.xlane.xlu0 %2958
        %v2960 = vsel %vm1257, %v2671, 0.0
        %v2961 = vadd.f32 %v2670, %v2960
        %2962 = vadd.xlane.f32.xlu0 %v2961
        %v2963 = vpop.xlane.xlu0 %2962
        %v2964 = vsel %vm1257, %v2673, 0.0
        %v2965 = vadd.f32 %v2672, %v2964
        %2966 = vadd.xlane.f32.xlu0 %v2965
        %v2967 = vpop.xlane.xlu0 %2966
        %v2968 = vsel %vm1257, %v2675, 0.0
        %v2969 = vadd.f32 %v2674, %v2968
        %2970 = vadd.xlane.f32.xlu0 %v2969
        %v2971 = vpop.xlane.xlu0 %2970
        %v2972 = vsel %vm1257, %v2677, 0.0
        %v2973 = vadd.f32 %v2676, %v2972
        %2974 = vadd.xlane.f32.xlu0 %v2973
        %v2975 = vpop.xlane.xlu0 %2974
        %v2976 = vsel %vm1257, %v2679, 0.0
        %v2977 = vadd.f32 %v2678, %v2976
        %2978 = vadd.xlane.f32.xlu0 %v2977
        %v2979 = vpop.xlane.xlu0 %2978
        %v2980 = vsel %vm1257, %v2681, 0.0
        %v2981 = vadd.f32 %v2680, %v2980
        %2982 = vadd.xlane.f32.xlu0 %v2981
        %v2983 = vpop.xlane.xlu0 %2982
        %v2984 = vsel %vm1257, %v2683, 0.0
        %v2985 = vadd.f32 %v2682, %v2984
        %2986 = vadd.xlane.f32.xlu0 %v2985
        %v2987 = vpop.xlane.xlu0 %2986
        %v2988 = vsel %vm1257, %v2685, 0.0
        %v2989 = vadd.f32 %v2684, %v2988
        %2990 = vadd.xlane.f32.xlu0 %v2989
        %v2991 = vpop.xlane.xlu0 %2990
        %v2992 = vsel %vm1257, %v2687, 0.0
        %v2993 = vadd.f32 %v2686, %v2992
        %2994 = vadd.xlane.f32.xlu0 %v2993
        %v2995 = vpop.xlane.xlu0 %2994
        %v2996 = vsel %vm1257, %v2689, 0.0
        %v2997 = vadd.f32 %v2688, %v2996
        %2998 = vadd.xlane.f32.xlu0 %v2997
        %v2999 = vpop.xlane.xlu0 %2998
        %v3000 = vsel %vm1257, %v2691, 0.0
        %v3001 = vadd.f32 %v2690, %v3000
        %3002 = vadd.xlane.f32.xlu0 %v3001
        %v3003 = vpop.xlane.xlu0 %3002
        %v3004 = vsel %vm1257, %v2693, 0.0
        %v3005 = vadd.f32 %v2692, %v3004
        %3006 = vadd.xlane.f32.xlu0 %v3005
        %v3007 = vpop.xlane.xlu0 %3006
        %v3008 = vsel %vm1257, %v2695, 0.0
        %v3009 = vadd.f32 %v2694, %v3008
        %3010 = vadd.xlane.f32.xlu0 %v3009
        %v3011 = vpop.xlane.xlu0 %3010
        %v3012 = vsel %vm1257, %v2697, 0.0
        %v3013 = vadd.f32 %v2696, %v3012
        %3014 = vadd.xlane.f32.xlu0 %v3013
        %v3015 = vpop.xlane.xlu0 %3014
        %v3016 = vsel %vm1257, %v2699, 0.0
        %v3017 = vadd.f32 %v2698, %v3016
        %3018 = vadd.xlane.f32.xlu0 %v3017
        %v3019 = vpop.xlane.xlu0 %3018
        %v3020 = vsel %vm1257, %v2701, 0.0
        %v3021 = vadd.f32 %v2700, %v3020
        %3022 = vadd.xlane.f32.xlu0 %v3021
        %v3023 = vpop.xlane.xlu0 %3022
        %v3024 = vsel %vm1257, %v2703, 0.0
        %v3025 = vadd.f32 %v2702, %v3024
        %3026 = vadd.xlane.f32.xlu0 %v3025
        %v3027 = vpop.xlane.xlu0 %3026
        %v3028 = vsel %vm1257, %v2705, 0.0
        %v3029 = vadd.f32 %v2704, %v3028
        %3030 = vadd.xlane.f32.xlu0 %v3029
        %v3031 = vpop.xlane.xlu0 %3030
        %v3032 = vsel %vm1257, %v2707, 0.0
        %v3033 = vadd.f32 %v2706, %v3032
        %3034 = vadd.xlane.f32.xlu0 %v3033
        %v3035 = vpop.xlane.xlu0 %3034
        %v3036 = vsel %vm1257, %v2709, 0.0
        %v3037 = vadd.f32 %v2708, %v3036
        %3038 = vadd.xlane.f32.xlu0 %v3037
        %v3039 = vpop.xlane.xlu0 %3038
        %v3040 = vsel %vm1257, %v2711, 0.0
        %v3041 = vadd.f32 %v2710, %v3040
        %3042 = vadd.xlane.f32.xlu0 %v3041
        %v3043 = vpop.xlane.xlu0 %3042
        %v3044 = vsel %vm1257, %v2713, 0.0
        %v3045 = vadd.f32 %v2712, %v3044
        %3046 = vadd.xlane.f32.xlu0 %v3045
        %v3047 = vpop.xlane.xlu0 %3046
        %v3048 = vsel %vm1257, %v2715, 0.0
        %v3049 = vadd.f32 %v2714, %v3048
        %3050 = vadd.xlane.f32.xlu0 %v3049
        %v3051 = vpop.xlane.xlu0 %3050
        %v3052 = vsel %vm1257, %v2717, 0.0
        %v3053 = vadd.f32 %v2716, %v3052
        %3054 = vadd.xlane.f32.xlu0 %v3053
        %v3055 = vpop.xlane.xlu0 %3054
        %v3056 = vsel %vm1257, %v2719, 0.0
        %v3057 = vadd.f32 %v2718, %v3056
        %3058 = vadd.xlane.f32.xlu0 %v3057
        %v3059 = vpop.xlane.xlu0 %3058
        %v3060 = vsel %vm1257, %v2721, 0.0
        %v3061 = vadd.f32 %v2720, %v3060
        %3062 = vadd.xlane.f32.xlu0 %v3061
        %v3063 = vpop.xlane.xlu0 %3062
        %v3064 = vsel %vm1257, %v2723, 0.0
        %v3065 = vadd.f32 %v2722, %v3064
        %3066 = vadd.xlane.f32.xlu0 %v3065
        %v3067 = vpop.xlane.xlu0 %3066
        %v3068 = vsel %vm1257, %v2725, 0.0
        %v3069 = vadd.f32 %v2724, %v3068
        %3070 = vadd.xlane.f32.xlu0 %v3069
        %v3071 = vpop.xlane.xlu0 %3070
        %v3072 = vsel %vm1257, %v2727, 0.0
        %v3073 = vadd.f32 %v2726, %v3072
        %3074 = vadd.xlane.f32.xlu0 %v3073
        %v3075 = vpop.xlane.xlu0 %3074
        %v3076 = vsel %vm1257, %v2729, 0.0
        %v3077 = vadd.f32 %v2728, %v3076
        %3078 = vadd.xlane.f32.xlu0 %v3077
        %v3079 = vpop.xlane.xlu0 %3078
        %v3080 = vsel %vm1257, %v2731, 0.0
        %v3081 = vadd.f32 %v2730, %v3080
        %3082 = vadd.xlane.f32.xlu0 %v3081
        %v3083 = vpop.xlane.xlu0 %3082
        %v3084 = vsel %vm1257, %v2733, 0.0
        %v3085 = vadd.f32 %v2732, %v3084
        %3086 = vadd.xlane.f32.xlu0 %v3085
        %v3087 = vpop.xlane.xlu0 %3086
        %v3088 = vsel %vm1257, %v2735, 0.0
        %v3089 = vadd.f32 %v2734, %v3088
        %3090 = vadd.xlane.f32.xlu0 %v3089
        %v3091 = vpop.xlane.xlu0 %3090
        %v3092 = vsel %vm1257, %v2737, 0.0
        %v3093 = vadd.f32 %v2736, %v3092
        %3094 = vadd.xlane.f32.xlu0 %v3093
        %v3095 = vpop.xlane.xlu0 %3094
        %v3096 = vsel %vm1257, %v2739, 0.0
        %v3097 = vadd.f32 %v2738, %v3096
        %3098 = vadd.xlane.f32.xlu0 %v3097
        %v3099 = vpop.xlane.xlu0 %3098
        %v3100 = vsel %vm1257, %v2741, 0.0
        %v3101 = vadd.f32 %v2740, %v3100
        %3102 = vadd.xlane.f32.xlu0 %v3101
        %v3103 = vpop.xlane.xlu0 %3102
        %v3104 = vsel %vm1257, %v2743, 0.0
        %v3105 = vadd.f32 %v2742, %v3104
        %3106 = vadd.xlane.f32.xlu0 %v3105
        %v3107 = vpop.xlane.xlu0 %3106
        %v3108 = vsel %vm1257, %v2745, 0.0
        %v3109 = vadd.f32 %v2744, %v3108
        %3110 = vadd.xlane.f32.xlu0 %v3109
        %v3111 = vpop.xlane.xlu0 %3110
        %v3112 = vsel %vm1257, %v2747, 0.0
        %v3113 = vadd.f32 %v2746, %v3112
        %3114 = vadd.xlane.f32.xlu0 %v3113
        %v3115 = vpop.xlane.xlu0 %3114
        %v3116 = vsel %vm1257, %v2749, 0.0
        %v3117 = vadd.f32 %v2748, %v3116
        %3118 = vadd.xlane.f32.xlu0 %v3117
        %v3119 = vpop.xlane.xlu0 %3118
        %v3120 = vsel %vm1257, %v2751, 0.0
        %v3121 = vadd.f32 %v2750, %v3120
        %3122 = vadd.xlane.f32.xlu0 %v3121
        %v3123 = vpop.xlane.xlu0 %3122
        %v3124 = vsel %vm1257, %v2753, 0.0
        %v3125 = vadd.f32 %v2752, %v3124
        %3126 = vadd.xlane.f32.xlu0 %v3125
        %v3127 = vpop.xlane.xlu0 %3126
        %v3128 = vsel %vm1257, %v2755, 0.0
        %v3129 = vadd.f32 %v2754, %v3128
        %3130 = vadd.xlane.f32.xlu0 %v3129
        %v3131 = vpop.xlane.xlu0 %3130
        %v3132 = vsel %vm1257, %v2757, 0.0
        %v3133 = vadd.f32 %v2756, %v3132
        %3134 = vadd.xlane.f32.xlu0 %v3133
        %v3135 = vpop.xlane.xlu0 %3134
        %v3136 = vsel %vm1257, %v2759, 0.0
        %v3137 = vadd.f32 %v2758, %v3136
        %3138 = vadd.xlane.f32.xlu0 %v3137
        %v3139 = vpop.xlane.xlu0 %3138
        %v3140 = vsel %vm1257, %v2761, 0.0
        %v3141 = vadd.f32 %v2760, %v3140
        %3142 = vadd.xlane.f32.xlu0 %v3141
        %v3143 = vpop.xlane.xlu0 %3142
        %v3144 = vsel %vm1257, %v2763, 0.0
        %v3145 = vadd.f32 %v2762, %v3144
        %3146 = vadd.xlane.f32.xlu0 %v3145
        %v3147 = vpop.xlane.xlu0 %3146
        %v3148 = vsel %vm1257, %v2765, 0.0
        %v3149 = vadd.f32 %v2764, %v3148
        %3150 = vadd.xlane.f32.xlu0 %v3149
        %v3151 = vpop.xlane.xlu0 %3150
        %v3152 = vsel %vm1257, %v2767, 0.0
        %v3153 = vadd.f32 %v2766, %v3152
        %3154 = vadd.xlane.f32.xlu0 %v3153
        %v3155 = vpop.xlane.xlu0 %3154
        %v3156 = vsel %vm1257, %v2769, 0.0
        %v3157 = vadd.f32 %v2768, %v3156
        %3158 = vadd.xlane.f32.xlu0 %v3157
        %v3159 = vpop.xlane.xlu0 %3158
        %v3160 = vsel %vm1257, %v2771, 0.0
        %v3161 = vadd.f32 %v2770, %v3160
        %3162 = vadd.xlane.f32.xlu0 %v3161
        %v3163 = vpop.xlane.xlu0 %3162
        %v3164 = vsel %vm1257, %v2773, 0.0
        %v3165 = vadd.f32 %v2772, %v3164
        %3166 = vadd.xlane.f32.xlu0 %v3165
        %v3167 = vpop.xlane.xlu0 %3166
        %v3168 = vsel %vm1257, %v2775, 0.0
        %v3169 = vadd.f32 %v2774, %v3168
        %3170 = vadd.xlane.f32.xlu0 %v3169
        %v3171 = vpop.xlane.xlu0 %3170
        %v3172 = vsel %vm1257, %v2777, 0.0
        %v3173 = vadd.f32 %v2776, %v3172
        %3174 = vadd.xlane.f32.xlu0 %v3173
        %v3175 = vpop.xlane.xlu0 %3174
        %v3176 = vsel %vm1257, %v2779, 0.0
        %v3177 = vadd.f32 %v2778, %v3176
        %3178 = vadd.xlane.f32.xlu0 %v3177
        %v3179 = vpop.xlane.xlu0 %3178
        %v3180 = vsel %vm1257, %v2781, 0.0
        %v3181 = vadd.f32 %v2780, %v3180
        %3182 = vadd.xlane.f32.xlu0 %v3181
        %v3183 = vpop.xlane.xlu0 %3182
        %v3184 = vsel %vm1257, %v2783, 0.0
        %v3185 = vadd.f32 %v2782, %v3184
        %3186 = vadd.xlane.f32.xlu0 %v3185
        %v3187 = vpop.xlane.xlu0 %3186
        %v3188 = vsel %vm1257, %v2785, 0.0
        %v3189 = vadd.f32 %v2784, %v3188
        %3190 = vadd.xlane.f32.xlu0 %v3189
        %v3191 = vpop.xlane.xlu0 %3190
        %v3192 = vsel %vm1257, %v2787, 0.0
        %v3193 = vadd.f32 %v2786, %v3192
        %3194 = vadd.xlane.f32.xlu0 %v3193
        %v3195 = vpop.xlane.xlu0 %3194
        %v3196 = vsel %vm1257, %v2789, 0.0
        %v3197 = vadd.f32 %v2788, %v3196
        %3198 = vadd.xlane.f32.xlu0 %v3197
        %v3199 = vpop.xlane.xlu0 %3198
        %v3200 = vsel %vm1257, %v2791, 0.0
        %v3201 = vadd.f32 %v2790, %v3200
        %3202 = vadd.xlane.f32.xlu0 %v3201
        %v3203 = vpop.xlane.xlu0 %3202
        %v3204 = vsel %vm1257, %v2793, 0.0
        %v3205 = vadd.f32 %v2792, %v3204
        %3206 = vadd.xlane.f32.xlu0 %v3205
        %v3207 = vpop.xlane.xlu0 %3206
        %v3208 = vsel %vm1257, %v2795, 0.0
        %v3209 = vadd.f32 %v2794, %v3208
        %3210 = vadd.xlane.f32.xlu0 %v3209
        %v3211 = vpop.xlane.xlu0 %3210
        %v3212 = vsel %vm1257, %v2797, 0.0
        %v3213 = vadd.f32 %v2796, %v3212
        %3214 = vadd.xlane.f32.xlu0 %v3213
        %v3215 = vpop.xlane.xlu0 %3214
        %v3216 = vsel %vm1257, %v2799, 0.0
        %v3217 = vadd.f32 %v2798, %v3216
        %3218 = vadd.xlane.f32.xlu0 %v3217
        %v3219 = vpop.xlane.xlu0 %3218
        %v3220 = vsel %vm1257, %v2801, 0.0
        %v3221 = vadd.f32 %v2800, %v3220
        %3222 = vadd.xlane.f32.xlu0 %v3221
        %v3223 = vpop.xlane.xlu0 %3222
        %v3224 = vsel %vm1257, %v2803, 0.0
        %v3225 = vadd.f32 %v2802, %v3224
        %3226 = vadd.xlane.f32.xlu0 %v3225
        %v3227 = vpop.xlane.xlu0 %3226
        %v3228 = vsel %vm1257, %v2805, 0.0
        %v3229 = vadd.f32 %v2804, %v3228
        %3230 = vadd.xlane.f32.xlu0 %v3229
        %v3231 = vpop.xlane.xlu0 %3230
        %v3232 = vsel %vm1257, %v2807, 0.0
        %v3233 = vadd.f32 %v2806, %v3232
        %3234 = vadd.xlane.f32.xlu0 %v3233
        %v3235 = vpop.xlane.xlu0 %3234
        %v3236 = vsel %vm1257, %v2809, 0.0
        %v3237 = vadd.f32 %v2808, %v3236
        %3238 = vadd.xlane.f32.xlu0 %v3237
        %v3239 = vpop.xlane.xlu0 %3238
        %v3240 = vsel %vm1257, %v2811, 0.0
        %v3241 = vadd.f32 %v2810, %v3240
        %3242 = vadd.xlane.f32.xlu0 %v3241
        %v3243 = vpop.xlane.xlu0 %3242
        %v3244 = vsel %vm1257, %v2813, 0.0
        %v3245 = vadd.f32 %v2812, %v3244
        %3246 = vadd.xlane.f32.xlu0 %v3245
        %v3247 = vpop.xlane.xlu0 %3246
        %v3248 = vsel %vm1257, %v2815, 0.0
        %v3249 = vadd.f32 %v2814, %v3248
        %3250 = vadd.xlane.f32.xlu0 %v3249
        %v3251 = vpop.xlane.xlu0 %3250
        %v3252 = vsel %vm1257, %v2817, 0.0
        %v3253 = vadd.f32 %v2816, %v3252
        %3254 = vadd.xlane.f32.xlu0 %v3253
        %v3255 = vpop.xlane.xlu0 %3254
        %v3256 = vsel %vm1257, %v2819, 0.0
        %v3257 = vadd.f32 %v2818, %v3256
        %3258 = vadd.xlane.f32.xlu0 %v3257
        %v3259 = vpop.xlane.xlu0 %3258
        %v3260 = vsel %vm1257, %v2821, 0.0
        %v3261 = vadd.f32 %v2820, %v3260
        %3262 = vadd.xlane.f32.xlu0 %v3261
        %v3263 = vpop.xlane.xlu0 %3262
        %v3264 = vsel %vm1257, %v2823, 0.0
        %v3265 = vadd.f32 %v2822, %v3264
        %3266 = vadd.xlane.f32.xlu0 %v3265
        %v3267 = vpop.xlane.xlu0 %3266
        %v3268 = vsel %vm1257, %v2825, 0.0
        %v3269 = vadd.f32 %v2824, %v3268
        %3270 = vadd.xlane.f32.xlu0 %v3269
        %v3271 = vpop.xlane.xlu0 %3270
        %v3272 = vsel %vm1257, %v2827, 0.0
        %v3273 = vadd.f32 %v2826, %v3272
        %3274 = vadd.xlane.f32.xlu0 %v3273
        %v3275 = vpop.xlane.xlu0 %3274
        %v3276 = vsel %vm1257, %v2829, 0.0
        %v3277 = vadd.f32 %v2828, %v3276
        %3278 = vadd.xlane.f32.xlu0 %v3277
        %v3279 = vpop.xlane.xlu0 %3278
        %v3280 = vsel %vm1257, %v2831, 0.0
        %v3281 = vadd.f32 %v2830, %v3280
        %3282 = vadd.xlane.f32.xlu0 %v3281
        %v3283 = vpop.xlane.xlu0 %3282
        %v3284 = vsel %vm1257, %v2833, 0.0
        %v3285 = vadd.f32 %v2832, %v3284
        %3286 = vadd.xlane.f32.xlu0 %v3285
        %v3287 = vpop.xlane.xlu0 %3286
        %v3288 = vsel %vm1257, %v2835, 0.0
        %v3289 = vadd.f32 %v2834, %v3288
        %3290 = vadd.xlane.f32.xlu0 %v3289
        %v3291 = vpop.xlane.xlu0 %3290
        %v3292 = vsel %vm1257, %v2837, 0.0
        %v3293 = vadd.f32 %v2836, %v3292
        %3294 = vadd.xlane.f32.xlu0 %v3293
        %v3295 = vpop.xlane.xlu0 %3294
        %v3296 = vsel %vm1257, %v2839, 0.0
        %v3297 = vadd.f32 %v2838, %v3296
        %3298 = vadd.xlane.f32.xlu0 %v3297
        %v3299 = vpop.xlane.xlu0 %3298
        %v3300 = vsel %vm1257, %v2841, 0.0
        %v3301 = vadd.f32 %v2840, %v3300
        %3302 = vadd.xlane.f32.xlu0 %v3301
        %v3303 = vpop.xlane.xlu0 %3302
        %v3304 = vsel %vm1257, %v2843, 0.0
        %v3305 = vadd.f32 %v2842, %v3304
        %3306 = vadd.xlane.f32.xlu0 %v3305
        %v3307 = vpop.xlane.xlu0 %3306
        %v3308 = vsel %vm1257, %v2845, 0.0
        %v3309 = vadd.f32 %v2844, %v3308
        %3310 = vadd.xlane.f32.xlu0 %v3309
        %v3311 = vpop.xlane.xlu0 %3310
        %v3312 = vsel %vm1257, %v2847, 0.0
        %v3313 = vadd.f32 %v2846, %v3312
        %3314 = vadd.xlane.f32.xlu0 %v3313
        %v3315 = vpop.xlane.xlu0 %3314
        %v3316 = vsel %vm1257, %v2849, 0.0
        %v3317 = vadd.f32 %v2848, %v3316
        %3318 = vadd.xlane.f32.xlu0 %v3317
        %v3319 = vpop.xlane.xlu0 %3318
        %v3320 = vsel %vm1257, %v2851, 0.0
        %v3321 = vadd.f32 %v2850, %v3320
        %3322 = vadd.xlane.f32.xlu0 %v3321
        %v3323 = vpop.xlane.xlu0 %3322
        %v3324 = vsel %vm1257, %v2853, 0.0
        %v3325 = vadd.f32 %v2852, %v3324
        %3326 = vadd.xlane.f32.xlu0 %v3325
        %v3327 = vpop.xlane.xlu0 %3326
        %v3328 = vsel %vm1257, %v2855, 0.0
        %v3329 = vadd.f32 %v2854, %v3328
        %3330 = vadd.xlane.f32.xlu0 %v3329
        %v3331 = vpop.xlane.xlu0 %3330
        %v3332 = vsel %vm1257, %v2857, 0.0
        %v3333 = vadd.f32 %v2856, %v3332
        %3334 = vadd.xlane.f32.xlu0 %v3333
        %v3335 = vpop.xlane.xlu0 %3334
        %v3336 = vsel %vm1257, %v2859, 0.0
        %v3337 = vadd.f32 %v2858, %v3336
        %3338 = vadd.xlane.f32.xlu0 %v3337
        %v3339 = vpop.xlane.xlu0 %3338
        %v3340 = vsel %vm1257, %v2861, 0.0
        %v3341 = vadd.f32 %v2860, %v3340
        %3342 = vadd.xlane.f32.xlu0 %v3341
        %v3343 = vpop.xlane.xlu0 %3342
        %v3344 = vsel %vm1257, %v2863, 0.0
        %v3345 = vadd.f32 %v2862, %v3344
        %3346 = vadd.xlane.f32.xlu0 %v3345
        %v3347 = vpop.xlane.xlu0 %3346
        %v3348 = vsel %vm1257, %v2865, 0.0
        %v3349 = vadd.f32 %v2864, %v3348
        %3350 = vadd.xlane.f32.xlu0 %v3349
        %v3351 = vpop.xlane.xlu0 %3350
        %v3352 = vsel %vm1257, %v2867, 0.0
        %v3353 = vadd.f32 %v2866, %v3352
        %3354 = vadd.xlane.f32.xlu0 %v3353
        %v3355 = vpop.xlane.xlu0 %3354
        %v3356 = vsel %vm1257, %v2869, 0.0
        %v3357 = vadd.f32 %v2868, %v3356
        %3358 = vadd.xlane.f32.xlu0 %v3357
        %v3359 = vpop.xlane.xlu0 %3358
        %v3360 = vsel %vm1257, %v2871, 0.0
        %v3361 = vadd.f32 %v2870, %v3360
        %3362 = vadd.xlane.f32.xlu0 %v3361
        %v3363 = vpop.xlane.xlu0 %3362
        %v3364 = vsel %vm1257, %v2873, 0.0
        %v3365 = vadd.f32 %v2872, %v3364
        %3366 = vadd.xlane.f32.xlu0 %v3365
        %v3367 = vpop.xlane.xlu0 %3366
        %v3368 = vsel %vm1257, %v2875, 0.0
        %v3369 = vadd.f32 %v2874, %v3368
        %3370 = vadd.xlane.f32.xlu0 %v3369
        %v3371 = vpop.xlane.xlu0 %3370
        %v3372 = vsel %vm1257, %v2877, 0.0
        %v3373 = vadd.f32 %v2876, %v3372
        %3374 = vadd.xlane.f32.xlu0 %v3373
        %v3375 = vpop.xlane.xlu0 %3374
        %v3376 = vsel %vm1257, %v2879, 0.0
        %v3377 = vadd.f32 %v2878, %v3376
        %3378 = vadd.xlane.f32.xlu0 %v3377
        %v3379 = vpop.xlane.xlu0 %3378
        %v3380 = vsel %vm1257, %v2881, 0.0
        %v3381 = vadd.f32 %v2880, %v3380
        %3382 = vadd.xlane.f32.xlu0 %v3381
        %v3383 = vpop.xlane.xlu0 %3382
        %v3384 = vsel %vm1257, %v2883, 0.0
        %v3385 = vadd.f32 %v2882, %v3384
        %3386 = vadd.xlane.f32.xlu0 %v3385
        %v3387 = vpop.xlane.xlu0 %3386
        %v3388 = vsel %vm1257, %v2885, 0.0
        %v3389 = vadd.f32 %v2884, %v3388
        %3390 = vadd.xlane.f32.xlu0 %v3389
        %v3391 = vpop.xlane.xlu0 %3390
        %v3392 = vsel %vm1257, %v2887, 0.0
        %v3393 = vadd.f32 %v2886, %v3392
        %3394 = vadd.xlane.f32.xlu0 %v3393
        %v3395 = vpop.xlane.xlu0 %3394
        %v3396 = vsel %vm1257, %v2889, 0.0
        %v3397 = vadd.f32 %v2888, %v3396
        %3398 = vadd.xlane.f32.xlu0 %v3397
        %v3399 = vpop.xlane.xlu0 %3398
        %v3400 = vsel %vm1257, %v2891, 0.0
        %v3401 = vadd.f32 %v2890, %v3400
        %3402 = vadd.xlane.f32.xlu0 %v3401
        %v3403 = vpop.xlane.xlu0 %3402
        %v3404 = vmul.f32 %v2895, -0.5
        %v3405 = vmul.f32 %v2899, -0.5
        %v3406 = vmul.f32 %v2903, -0.5
        %v3407 = vmul.f32 %v2907, -0.5
        %v3408 = vmul.f32 %v2911, -0.5
        %v3409 = vmul.f32 %v2915, -0.5
        %v3410 = vmul.f32 %v2919, -0.5
        %v3411 = vmul.f32 %v2923, -0.5
        %v3412 = vmul.f32 %v2927, -0.5
        %v3413 = vmul.f32 %v2931, -0.5
        %v3414 = vmul.f32 %v2935, -0.5
        %v3415 = vmul.f32 %v2939, -0.5
        %v3416 = vmul.f32 %v2943, -0.5
        %v3417 = vmul.f32 %v2947, -0.5
        %v3418 = vmul.f32 %v2951, -0.5
        %v3419 = vmul.f32 %v2955, -0.5
        %v3420 = vmul.f32 %v2959, -0.5
        %v3421 = vmul.f32 %v2963, -0.5
        %v3422 = vmul.f32 %v2967, -0.5
        %v3423 = vmul.f32 %v2971, -0.5
        %v3424 = vmul.f32 %v2975, -0.5
        %v3425 = vmul.f32 %v2979, -0.5
        %v3426 = vmul.f32 %v2983, -0.5
        %v3427 = vmul.f32 %v2987, -0.5
        %v3428 = vmul.f32 %v2991, -0.5
        %v3429 = vmul.f32 %v2995, -0.5
        %v3430 = vmul.f32 %v2999, -0.5
        %v3431 = vmul.f32 %v3003, -0.5
        %v3432 = vmul.f32 %v3007, -0.5
        %v3433 = vmul.f32 %v3011, -0.5
        %v3434 = vmul.f32 %v3015, -0.5
        %v3435 = vmul.f32 %v3019, -0.5
        %v3436 = vmul.f32 %v3023, -0.5
        %v3437 = vmul.f32 %v3027, -0.5
        %v3438 = vmul.f32 %v3031, -0.5
        %v3439 = vmul.f32 %v3035, -0.5
        %v3440 = vmul.f32 %v3039, -0.5
        %v3441 = vmul.f32 %v3043, -0.5
        %v3442 = vmul.f32 %v3047, -0.5
        %v3443 = vmul.f32 %v3051, -0.5
        %v3444 = vmul.f32 %v3055, -0.5
        %v3445 = vmul.f32 %v3059, -0.5
        %v3446 = vmul.f32 %v3063, -0.5
        %v3447 = vmul.f32 %v3067, -0.5
        %v3448 = vmul.f32 %v3071, -0.5
        %v3449 = vmul.f32 %v3075, -0.5
        %v3450 = vmul.f32 %v3079, -0.5
        %v3451 = vmul.f32 %v3083, -0.5
        %v3452 = vmul.f32 %v3087, -0.5
        %v3453 = vmul.f32 %v3091, -0.5
        %v3454 = vmul.f32 %v3095, -0.5
        %v3455 = vmul.f32 %v3099, -0.5
        %v3456 = vmul.f32 %v3103, -0.5
        %v3457 = vmul.f32 %v3107, -0.5
        %v3458 = vmul.f32 %v3111, -0.5
        %v3459 = vmul.f32 %v3115, -0.5
        %v3460 = vmul.f32 %v3119, -0.5
        %v3461 = vmul.f32 %v3123, -0.5
        %v3462 = vmul.f32 %v3127, -0.5
        %v3463 = vmul.f32 %v3131, -0.5
        %v3464 = vmul.f32 %v3135, -0.5
        %v3465 = vmul.f32 %v3139, -0.5
        %v3466 = vmul.f32 %v3143, -0.5
        %v3467 = vmul.f32 %v3147, -0.5
        %v3468 = vmul.f32 %v3151, -0.5
        %v3469 = vmul.f32 %v3155, -0.5
        %v3470 = vmul.f32 %v3159, -0.5
        %v3471 = vmul.f32 %v3163, -0.5
        %v3472 = vmul.f32 %v3167, -0.5
        %v3473 = vmul.f32 %v3171, -0.5
        %v3474 = vmul.f32 %v3175, -0.5
        %v3475 = vmul.f32 %v3179, -0.5
        %v3476 = vmul.f32 %v3183, -0.5
        %v3477 = vmul.f32 %v3187, -0.5
        %v3478 = vmul.f32 %v3191, -0.5
        %v3479 = vmul.f32 %v3195, -0.5
        %v3480 = vmul.f32 %v3199, -0.5
        %v3481 = vmul.f32 %v3203, -0.5
        %v3482 = vmul.f32 %v3207, -0.5
        %v3483 = vmul.f32 %v3211, -0.5
        %v3484 = vmul.f32 %v3215, -0.5
        %v3485 = vmul.f32 %v3219, -0.5
        %v3486 = vmul.f32 %v3223, -0.5
        %v3487 = vmul.f32 %v3227, -0.5
        %v3488 = vmul.f32 %v3231, -0.5
        %v3489 = vmul.f32 %v3235, -0.5
        %v3490 = vmul.f32 %v3239, -0.5
        %v3491 = vmul.f32 %v3243, -0.5
        %v3492 = vmul.f32 %v3247, -0.5
        %v3493 = vmul.f32 %v3251, -0.5
        %v3494 = vmul.f32 %v3255, -0.5
        %v3495 = vmul.f32 %v3259, -0.5
        %v3496 = vmul.f32 %v3263, -0.5
        %v3497 = vmul.f32 %v3267, -0.5
        %v3498 = vmul.f32 %v3271, -0.5
        %v3499 = vmul.f32 %v3275, -0.5
        %v3500 = vmul.f32 %v3279, -0.5
        %v3501 = vmul.f32 %v3283, -0.5
        %v3502 = vmul.f32 %v3287, -0.5
        %v3503 = vmul.f32 %v3291, -0.5
        %v3504 = vmul.f32 %v3295, -0.5
        %v3505 = vmul.f32 %v3299, -0.5
        %v3506 = vmul.f32 %v3303, -0.5
        %v3507 = vmul.f32 %v3307, -0.5
        %v3508 = vmul.f32 %v3311, -0.5
        %v3509 = vmul.f32 %v3315, -0.5
        %v3510 = vmul.f32 %v3319, -0.5
        %v3511 = vmul.f32 %v3323, -0.5
        %v3512 = vmul.f32 %v3327, -0.5
        %v3513 = vmul.f32 %v3331, -0.5
        %v3514 = vmul.f32 %v3335, -0.5
        %v3515 = vmul.f32 %v3339, -0.5
        %v3516 = vmul.f32 %v3343, -0.5
        %v3517 = vmul.f32 %v3347, -0.5
        %v3518 = vmul.f32 %v3351, -0.5
        %v3519 = vmul.f32 %v3355, -0.5
        %v3520 = vmul.f32 %v3359, -0.5
        %v3521 = vmul.f32 %v3363, -0.5
        %v3522 = vmul.f32 %v3367, -0.5
        %v3523 = vmul.f32 %v3371, -0.5
        %v3524 = vmul.f32 %v3375, -0.5
        %v3525 = vmul.f32 %v3379, -0.5
        %v3526 = vmul.f32 %v3383, -0.5
        %v3527 = vmul.f32 %v3387, -0.5
        %v3528 = vmul.f32 %v3391, -0.5
        %v3529 = vmul.f32 %v3395, -0.5
        %v3530 = vmul.f32 %v3399, -0.5
        %v3531 = vmul.f32 %v3403, -0.5
        %v3532 = vadd.f32 %v3404, %v2508
        %v3533 = vadd.f32 %v3405, %v2509
        %v3534 = vadd.f32 %v3406, %v2510
        %v3535 = vadd.f32 %v3407, %v2511
        %v3536 = vadd.f32 %v3408, %v2512
        %v3537 = vadd.f32 %v3409, %v2513
        %v3538 = vadd.f32 %v3410, %v2514
        %v3539 = vadd.f32 %v3411, %v2515
        %v3540 = vadd.f32 %v3412, %v2516
        %v3541 = vadd.f32 %v3413, %v2517
        %v3542 = vadd.f32 %v3414, %v2518
        %v3543 = vadd.f32 %v3415, %v2519
        %v3544 = vadd.f32 %v3416, %v2520
        %v3545 = vadd.f32 %v3417, %v2521
        %v3546 = vadd.f32 %v3418, %v2522
        %v3547 = vadd.f32 %v3419, %v2523
        %v3548 = vadd.f32 %v3420, %v2524
        %v3549 = vadd.f32 %v3421, %v2525
        %v3550 = vadd.f32 %v3422, %v2526
        %v3551 = vadd.f32 %v3423, %v2527
        %v3552 = vadd.f32 %v3424, %v2528
        %v3553 = vadd.f32 %v3425, %v2529
        %v3554 = vadd.f32 %v3426, %v2530
        %v3555 = vadd.f32 %v3427, %v2531
        %v3556 = vadd.f32 %v3428, %v2532
        %v3557 = vadd.f32 %v3429, %v2533
        %v3558 = vadd.f32 %v3430, %v2534
        %v3559 = vadd.f32 %v3431, %v2535
        %v3560 = vadd.f32 %v3432, %v2536
        %v3561 = vadd.f32 %v3433, %v2537
        %v3562 = vadd.f32 %v3434, %v2538
        %v3563 = vadd.f32 %v3435, %v2539
        %v3564 = vadd.f32 %v3436, %v2540
        %v3565 = vadd.f32 %v3437, %v2541
        %v3566 = vadd.f32 %v3438, %v2542
        %v3567 = vadd.f32 %v3439, %v2543
        %v3568 = vadd.f32 %v3440, %v2544
        %v3569 = vadd.f32 %v3441, %v2545
        %v3570 = vadd.f32 %v3442, %v2546
        %v3571 = vadd.f32 %v3443, %v2547
        %v3572 = vadd.f32 %v3444, %v2548
        %v3573 = vadd.f32 %v3445, %v2549
        %v3574 = vadd.f32 %v3446, %v2550
        %v3575 = vadd.f32 %v3447, %v2551
        %v3576 = vadd.f32 %v3448, %v2552
        %v3577 = vadd.f32 %v3449, %v2553
        %v3578 = vadd.f32 %v3450, %v2554
        %v3579 = vadd.f32 %v3451, %v2555
        %v3580 = vadd.f32 %v3452, %v2556
        %v3581 = vadd.f32 %v3453, %v2557
        %v3582 = vadd.f32 %v3454, %v2558
        %v3583 = vadd.f32 %v3455, %v2559
        %v3584 = vadd.f32 %v3456, %v2560
        %v3585 = vadd.f32 %v3457, %v2561
        %v3586 = vadd.f32 %v3458, %v2562
        %v3587 = vadd.f32 %v3459, %v2563
        %v3588 = vadd.f32 %v3460, %v2564
        %v3589 = vadd.f32 %v3461, %v2565
        %v3590 = vadd.f32 %v3462, %v2566
        %v3591 = vadd.f32 %v3463, %v2567
        %v3592 = vadd.f32 %v3464, %v2568
        %v3593 = vadd.f32 %v3465, %v2569
        %v3594 = vadd.f32 %v3466, %v2570
        %v3595 = vadd.f32 %v3467, %v2571
        %v3596 = vadd.f32 %v3468, %v2572
        %v3597 = vadd.f32 %v3469, %v2573
        %v3598 = vadd.f32 %v3470, %v2574
        %v3599 = vadd.f32 %v3471, %v2575
        %v3600 = vadd.f32 %v3472, %v2576
        %v3601 = vadd.f32 %v3473, %v2577
        %v3602 = vadd.f32 %v3474, %v2578
        %v3603 = vadd.f32 %v3475, %v2579
        %v3604 = vadd.f32 %v3476, %v2580
        %v3605 = vadd.f32 %v3477, %v2581
        %v3606 = vadd.f32 %v3478, %v2582
        %v3607 = vadd.f32 %v3479, %v2583
        %v3608 = vadd.f32 %v3480, %v2584
        %v3609 = vadd.f32 %v3481, %v2585
        %v3610 = vadd.f32 %v3482, %v2586
        %v3611 = vadd.f32 %v3483, %v2587
        %v3612 = vadd.f32 %v3484, %v2588
        %v3613 = vadd.f32 %v3485, %v2589
        %v3614 = vadd.f32 %v3486, %v2590
        %v3615 = vadd.f32 %v3487, %v2591
        %v3616 = vadd.f32 %v3488, %v2592
        %v3617 = vadd.f32 %v3489, %v2593
        %v3618 = vadd.f32 %v3490, %v2594
        %v3619 = vadd.f32 %v3491, %v2595
        %v3620 = vadd.f32 %v3492, %v2596
        %v3621 = vadd.f32 %v3493, %v2597
        %v3622 = vadd.f32 %v3494, %v2598
        %v3623 = vadd.f32 %v3495, %v2599
        %v3624 = vadd.f32 %v3496, %v2600
        %v3625 = vadd.f32 %v3497, %v2601
        %v3626 = vadd.f32 %v3498, %v2602
        %v3627 = vadd.f32 %v3499, %v2603
        %v3628 = vadd.f32 %v3500, %v2604
        %v3629 = vadd.f32 %v3501, %v2605
        %v3630 = vadd.f32 %v3502, %v2606
        %v3631 = vadd.f32 %v3503, %v2607
        %v3632 = vadd.f32 %v3504, %v2608
        %v3633 = vadd.f32 %v3505, %v2609
        %v3634 = vadd.f32 %v3506, %v2610
        %v3635 = vadd.f32 %v3507, %v2611
        %v3636 = vadd.f32 %v3508, %v2612
        %v3637 = vadd.f32 %v3509, %v2613
        %v3638 = vadd.f32 %v3510, %v2614
        %v3639 = vadd.f32 %v3511, %v2615
        %v3640 = vadd.f32 %v3512, %v2616
        %v3641 = vadd.f32 %v3513, %v2617
        %v3642 = vadd.f32 %v3514, %v2618
        %v3643 = vadd.f32 %v3515, %v2619
        %v3644 = vadd.f32 %v3516, %v2620
        %v3645 = vadd.f32 %v3517, %v2621
        %v3646 = vadd.f32 %v3518, %v2622
        %v3647 = vadd.f32 %v3519, %v2623
        %v3648 = vadd.f32 %v3520, %v2624
        %v3649 = vadd.f32 %v3521, %v2625
        %v3650 = vadd.f32 %v3522, %v2626
        %v3651 = vadd.f32 %v3523, %v2627
        %v3652 = vadd.f32 %v3524, %v2628
        %v3653 = vadd.f32 %v3525, %v2629
        %v3654 = vadd.f32 %v3526, %v2630
        %v3655 = vadd.f32 %v3527, %v2631
        %v3656 = vadd.f32 %v3528, %v2632
        %v3657 = vadd.f32 %v3529, %v2633
        %v3658 = vadd.f32 %v3530, %v2634
        %v3659 = vadd.f32 %v3531, %v2635
        %v3660 = vadd.f32 %v3532, %v1485
        %v3661 = vadd.f32 %v3533, %v1488
        %v3662 = vadd.f32 %v3534, %v1493
        %v3663 = vadd.f32 %v3535, %v1496
        %v3664 = vadd.f32 %v3536, %v1501
        %v3665 = vadd.f32 %v3537, %v1504
        %v3666 = vadd.f32 %v3538, %v1509
        %v3667 = vadd.f32 %v3539, %v1512
        %v3668 = vadd.f32 %v3540, %v1517
        %v3669 = vadd.f32 %v3541, %v1520
        %v3670 = vadd.f32 %v3542, %v1525
        %v3671 = vadd.f32 %v3543, %v1528
        %v3672 = vadd.f32 %v3544, %v1533
        %v3673 = vadd.f32 %v3545, %v1536
        %v3674 = vadd.f32 %v3546, %v1541
        %v3675 = vadd.f32 %v3547, %v1544
        %v3676 = vadd.f32 %v3548, %v1549
        %v3677 = vadd.f32 %v3549, %v1552
        %v3678 = vadd.f32 %v3550, %v1557
        %v3679 = vadd.f32 %v3551, %v1560
        %v3680 = vadd.f32 %v3552, %v1565
        %v3681 = vadd.f32 %v3553, %v1568
        %v3682 = vadd.f32 %v3554, %v1573
        %v3683 = vadd.f32 %v3555, %v1576
        %v3684 = vadd.f32 %v3556, %v1581
        %v3685 = vadd.f32 %v3557, %v1584
        %v3686 = vadd.f32 %v3558, %v1589
        %v3687 = vadd.f32 %v3559, %v1592
        %v3688 = vadd.f32 %v3560, %v1597
        %v3689 = vadd.f32 %v3561, %v1600
        %v3690 = vadd.f32 %v3562, %v1605
        %v3691 = vadd.f32 %v3563, %v1608
        %v3692 = vadd.f32 %v3564, %v1613
        %v3693 = vadd.f32 %v3565, %v1616
        %v3694 = vadd.f32 %v3566, %v1621
        %v3695 = vadd.f32 %v3567, %v1624
        %v3696 = vadd.f32 %v3568, %v1629
        %v3697 = vadd.f32 %v3569, %v1632
        %v3698 = vadd.f32 %v3570, %v1637
        %v3699 = vadd.f32 %v3571, %v1640
        %v3700 = vadd.f32 %v3572, %v1645
        %v3701 = vadd.f32 %v3573, %v1648
        %v3702 = vadd.f32 %v3574, %v1653
        %v3703 = vadd.f32 %v3575, %v1656
        %v3704 = vadd.f32 %v3576, %v1661
        %v3705 = vadd.f32 %v3577, %v1664
        %v3706 = vadd.f32 %v3578, %v1669
        %v3707 = vadd.f32 %v3579, %v1672
        %v3708 = vadd.f32 %v3580, %v1677
        %v3709 = vadd.f32 %v3581, %v1680
        %v3710 = vadd.f32 %v3582, %v1685
        %v3711 = vadd.f32 %v3583, %v1688
        %v3712 = vadd.f32 %v3584, %v1693
        %v3713 = vadd.f32 %v3585, %v1696
        %v3714 = vadd.f32 %v3586, %v1701
        %v3715 = vadd.f32 %v3587, %v1704
        %v3716 = vadd.f32 %v3588, %v1709
        %v3717 = vadd.f32 %v3589, %v1712
        %v3718 = vadd.f32 %v3590, %v1717
        %v3719 = vadd.f32 %v3591, %v1720
        %v3720 = vadd.f32 %v3592, %v1725
        %v3721 = vadd.f32 %v3593, %v1728
        %v3722 = vadd.f32 %v3594, %v1733
        %v3723 = vadd.f32 %v3595, %v1736
        %v3724 = vadd.f32 %v3596, %v1741
        %v3725 = vadd.f32 %v3597, %v1744
        %v3726 = vadd.f32 %v3598, %v1749
        %v3727 = vadd.f32 %v3599, %v1752
        %v3728 = vadd.f32 %v3600, %v1757
        %v3729 = vadd.f32 %v3601, %v1760
        %v3730 = vadd.f32 %v3602, %v1765
        %v3731 = vadd.f32 %v3603, %v1768
        %v3732 = vadd.f32 %v3604, %v1773
        %v3733 = vadd.f32 %v3605, %v1776
        %v3734 = vadd.f32 %v3606, %v1781
        %v3735 = vadd.f32 %v3607, %v1784
        %v3736 = vadd.f32 %v3608, %v1789
        %v3737 = vadd.f32 %v3609, %v1792
        %v3738 = vadd.f32 %v3610, %v1797
        %v3739 = vadd.f32 %v3611, %v1800
        %v3740 = vadd.f32 %v3612, %v1805
        %v3741 = vadd.f32 %v3613, %v1808
        %v3742 = vadd.f32 %v3614, %v1813
        %v3743 = vadd.f32 %v3615, %v1816
        %v3744 = vadd.f32 %v3616, %v1821
        %v3745 = vadd.f32 %v3617, %v1824
        %v3746 = vadd.f32 %v3618, %v1829
        %v3747 = vadd.f32 %v3619, %v1832
        %v3748 = vadd.f32 %v3620, %v1837
        %v3749 = vadd.f32 %v3621, %v1840
        %v3750 = vadd.f32 %v3622, %v1845
        %v3751 = vadd.f32 %v3623, %v1848
        %v3752 = vadd.f32 %v3624, %v1853
        %v3753 = vadd.f32 %v3625, %v1856
        %v3754 = vadd.f32 %v3626, %v1861
        %v3755 = vadd.f32 %v3627, %v1864
        %v3756 = vadd.f32 %v3628, %v1869
        %v3757 = vadd.f32 %v3629, %v1872
        %v3758 = vadd.f32 %v3630, %v1877
        %v3759 = vadd.f32 %v3631, %v1880
        %v3760 = vadd.f32 %v3632, %v1885
        %v3761 = vadd.f32 %v3633, %v1888
        %v3762 = vadd.f32 %v3634, %v1893
        %v3763 = vadd.f32 %v3635, %v1896
        %v3764 = vadd.f32 %v3636, %v1901
        %v3765 = vadd.f32 %v3637, %v1904
        %v3766 = vadd.f32 %v3638, %v1909
        %v3767 = vadd.f32 %v3639, %v1912
        %v3768 = vadd.f32 %v3640, %v1917
        %v3769 = vadd.f32 %v3641, %v1920
        %v3770 = vadd.f32 %v3642, %v1925
        %v3771 = vadd.f32 %v3643, %v1928
        %v3772 = vadd.f32 %v3644, %v1933
        %v3773 = vadd.f32 %v3645, %v1936
        %v3774 = vadd.f32 %v3646, %v1941
        %v3775 = vadd.f32 %v3647, %v1944
        %v3776 = vadd.f32 %v3648, %v1949
        %v3777 = vadd.f32 %v3649, %v1952
        %v3778 = vadd.f32 %v3650, %v1957
        %v3779 = vadd.f32 %v3651, %v1960
        %v3780 = vadd.f32 %v3652, %v1965
        %v3781 = vadd.f32 %v3653, %v1968
        %v3782 = vadd.f32 %v3654, %v1973
        %v3783 = vadd.f32 %v3655, %v1976
        %v3784 = vadd.f32 %v3656, %v1981
        %v3785 = vadd.f32 %v3657, %v1984
        %v3786 = vadd.f32 %v3658, %v1989
        %v3787 = vadd.f32 %v3659, %v1992
        %v3788 = vld [vmem:[%s215] sm:$0xff]
        %v3790 = vlaneseq
        %v3791 = vshrl.u32 %v3790, 7
        %v3792 = vsub.s32 0, %v3791
        %v3793 = vrot.slane %v3788, %v3792
        %3795 = vbcast.lane.b32.xlu0 %v3793, 256
        %v3796 = vpop.permute.xlu0 %3795
        %s3798 = sor.u32 256, 8
        %3799 = vbcast.lane.b32.xlu0 %v3793, %s3798
        %v3800 = vpop.permute.xlu0 %3799
        %s3802 = sor.u32 256, 16
        %3803 = vbcast.lane.b32.xlu0 %v3793, %s3802
        %v3804 = vpop.permute.xlu0 %3803
        %s3806 = sor.u32 256, 24
        %3807 = vbcast.lane.b32.xlu0 %v3793, %s3806
        %v3808 = vpop.permute.xlu0 %3807
        %s3810 = sor.u32 256, 32
        %3811 = vbcast.lane.b32.xlu0 %v3793, %s3810
        %v3812 = vpop.permute.xlu0 %3811
        %s3814 = sor.u32 256, 40
        %3815 = vbcast.lane.b32.xlu0 %v3793, %s3814
        %v3816 = vpop.permute.xlu0 %3815
        %s3818 = sor.u32 256, 48
        %3819 = vbcast.lane.b32.xlu0 %v3793, %s3818
        %v3820 = vpop.permute.xlu0 %3819
        %s3822 = sor.u32 256, 56
        %3823 = vbcast.lane.b32.xlu0 %v3793, %s3822
        %v3824 = vpop.permute.xlu0 %3823
        %s3826 = sor.u32 256, 64
        %3827 = vbcast.lane.b32.xlu0 %v3793, %s3826
        %v3828 = vpop.permute.xlu0 %3827
        %s3830 = sor.u32 256, 72
        %3831 = vbcast.lane.b32.xlu0 %v3793, %s3830
        %v3832 = vpop.permute.xlu0 %3831
        %s3834 = sor.u32 256, 80
        %3835 = vbcast.lane.b32.xlu0 %v3793, %s3834
        %v3836 = vpop.permute.xlu0 %3835
        %s3838 = sor.u32 256, 88
        %3839 = vbcast.lane.b32.xlu0 %v3793, %s3838
        %v3840 = vpop.permute.xlu0 %3839
        %s3842 = sor.u32 256, 96
        %3843 = vbcast.lane.b32.xlu0 %v3793, %s3842
        %v3844 = vpop.permute.xlu0 %3843
        %s3846 = sor.u32 256, 104
        %3847 = vbcast.lane.b32.xlu0 %v3793, %s3846
        %v3848 = vpop.permute.xlu0 %3847
        %s3850 = sor.u32 256, 112
        %3851 = vbcast.lane.b32.xlu0 %v3793, %s3850
        %v3852 = vpop.permute.xlu0 %3851
        %s3854 = sor.u32 256, 120
        %3855 = vbcast.lane.b32.xlu0 %v3793, %s3854
        %v3856 = vpop.permute.xlu0 %3855
        %v3857 = vlaneseq
        %v3858 = vshrl.u32 %v3857, 7
        %v3859 = vsub.s32 1, %v3858
        %v3860 = vrot.slane %v3788, %v3859
        %3862 = vbcast.lane.b32.xlu0 %v3860, 256
        %v3863 = vpop.permute.xlu0 %3862
        %s3865 = sor.u32 256, 8
        %3866 = vbcast.lane.b32.xlu0 %v3860, %s3865
        %v3867 = vpop.permute.xlu0 %3866
        %s3869 = sor.u32 256, 16
        %3870 = vbcast.lane.b32.xlu0 %v3860, %s3869
        %v3871 = vpop.permute.xlu0 %3870
        %s3873 = sor.u32 256, 24
        %3874 = vbcast.lane.b32.xlu0 %v3860, %s3873
        %v3875 = vpop.permute.xlu0 %3874
        %s3877 = sor.u32 256, 32
        %3878 = vbcast.lane.b32.xlu0 %v3860, %s3877
        %v3879 = vpop.permute.xlu0 %3878
        %s3881 = sor.u32 256, 40
        %3882 = vbcast.lane.b32.xlu0 %v3860, %s3881
        %v3883 = vpop.permute.xlu0 %3882
        %s3885 = sor.u32 256, 48
        %3886 = vbcast.lane.b32.xlu0 %v3860, %s3885
        %v3887 = vpop.permute.xlu0 %3886
        %s3889 = sor.u32 256, 56
        %3890 = vbcast.lane.b32.xlu0 %v3860, %s3889
        %v3891 = vpop.permute.xlu0 %3890
        %s3893 = sor.u32 256, 64
        %3894 = vbcast.lane.b32.xlu0 %v3860, %s3893
        %v3895 = vpop.permute.xlu0 %3894
        %s3897 = sor.u32 256, 72
        %3898 = vbcast.lane.b32.xlu0 %v3860, %s3897
        %v3899 = vpop.permute.xlu0 %3898
        %s3901 = sor.u32 256, 80
        %3902 = vbcast.lane.b32.xlu0 %v3860, %s3901
        %v3903 = vpop.permute.xlu0 %3902
        %s3905 = sor.u32 256, 88
        %3906 = vbcast.lane.b32.xlu0 %v3860, %s3905
        %v3907 = vpop.permute.xlu0 %3906
        %s3909 = sor.u32 256, 96
        %3910 = vbcast.lane.b32.xlu0 %v3860, %s3909
        %v3911 = vpop.permute.xlu0 %3910
        %s3913 = sor.u32 256, 104
        %3914 = vbcast.lane.b32.xlu0 %v3860, %s3913
        %v3915 = vpop.permute.xlu0 %3914
        %s3917 = sor.u32 256, 112
        %3918 = vbcast.lane.b32.xlu0 %v3860, %s3917
        %v3919 = vpop.permute.xlu0 %3918
        %s3921 = sor.u32 256, 120
        %3922 = vbcast.lane.b32.xlu0 %v3860, %s3921
        %v3923 = vpop.permute.xlu0 %3922
        %v3924 = vlaneseq
        %v3925 = vshrl.u32 %v3924, 7
        %v3926 = vsub.s32 2, %v3925
        %v3927 = vrot.slane %v3788, %v3926
        %3929 = vbcast.lane.b32.xlu0 %v3927, 256
        %v3930 = vpop.permute.xlu0 %3929
        %s3932 = sor.u32 256, 8
        %3933 = vbcast.lane.b32.xlu0 %v3927, %s3932
        %v3934 = vpop.permute.xlu0 %3933
        %s3936 = sor.u32 256, 16
        %3937 = vbcast.lane.b32.xlu0 %v3927, %s3936
        %v3938 = vpop.permute.xlu0 %3937
        %s3940 = sor.u32 256, 24
        %3941 = vbcast.lane.b32.xlu0 %v3927, %s3940
        %v3942 = vpop.permute.xlu0 %3941
        %s3944 = sor.u32 256, 32
        %3945 = vbcast.lane.b32.xlu0 %v3927, %s3944
        %v3946 = vpop.permute.xlu0 %3945
        %s3948 = sor.u32 256, 40
        %3949 = vbcast.lane.b32.xlu0 %v3927, %s3948
        %v3950 = vpop.permute.xlu0 %3949
        %s3952 = sor.u32 256, 48
        %3953 = vbcast.lane.b32.xlu0 %v3927, %s3952
        %v3954 = vpop.permute.xlu0 %3953
        %s3956 = sor.u32 256, 56
        %3957 = vbcast.lane.b32.xlu0 %v3927, %s3956
        %v3958 = vpop.permute.xlu0 %3957
        %s3960 = sor.u32 256, 64
        %3961 = vbcast.lane.b32.xlu0 %v3927, %s3960
        %v3962 = vpop.permute.xlu0 %3961
        %s3964 = sor.u32 256, 72
        %3965 = vbcast.lane.b32.xlu0 %v3927, %s3964
        %v3966 = vpop.permute.xlu0 %3965
        %s3968 = sor.u32 256, 80
        %3969 = vbcast.lane.b32.xlu0 %v3927, %s3968
        %v3970 = vpop.permute.xlu0 %3969
        %s3972 = sor.u32 256, 88
        %3973 = vbcast.lane.b32.xlu0 %v3927, %s3972
        %v3974 = vpop.permute.xlu0 %3973
        %s3976 = sor.u32 256, 96
        %3977 = vbcast.lane.b32.xlu0 %v3927, %s3976
        %v3978 = vpop.permute.xlu0 %3977
        %s3980 = sor.u32 256, 104
        %3981 = vbcast.lane.b32.xlu0 %v3927, %s3980
        %v3982 = vpop.permute.xlu0 %3981
        %s3984 = sor.u32 256, 112
        %3985 = vbcast.lane.b32.xlu0 %v3927, %s3984
        %v3986 = vpop.permute.xlu0 %3985
        %s3988 = sor.u32 256, 120
        %3989 = vbcast.lane.b32.xlu0 %v3927, %s3988
        %v3990 = vpop.permute.xlu0 %3989
        %v3991 = vlaneseq
        %v3992 = vshrl.u32 %v3991, 7
        %v3993 = vsub.s32 3, %v3992
        %v3994 = vrot.slane %v3788, %v3993
        %3996 = vbcast.lane.b32.xlu0 %v3994, 256
        %v3997 = vpop.permute.xlu0 %3996
        %s3999 = sor.u32 256, 8
        %4000 = vbcast.lane.b32.xlu0 %v3994, %s3999
        %v4001 = vpop.permute.xlu0 %4000
        %s4003 = sor.u32 256, 16
        %4004 = vbcast.lane.b32.xlu0 %v3994, %s4003
        %v4005 = vpop.permute.xlu0 %4004
        %s4007 = sor.u32 256, 24
        %4008 = vbcast.lane.b32.xlu0 %v3994, %s4007
        %v4009 = vpop.permute.xlu0 %4008
        %s4011 = sor.u32 256, 32
        %4012 = vbcast.lane.b32.xlu0 %v3994, %s4011
        %v4013 = vpop.permute.xlu0 %4012
        %s4015 = sor.u32 256, 40
        %4016 = vbcast.lane.b32.xlu0 %v3994, %s4015
        %v4017 = vpop.permute.xlu0 %4016
        %s4019 = sor.u32 256, 48
        %4020 = vbcast.lane.b32.xlu0 %v3994, %s4019
        %v4021 = vpop.permute.xlu0 %4020
        %s4023 = sor.u32 256, 56
        %4024 = vbcast.lane.b32.xlu0 %v3994, %s4023
        %v4025 = vpop.permute.xlu0 %4024
        %s4027 = sor.u32 256, 64
        %4028 = vbcast.lane.b32.xlu0 %v3994, %s4027
        %v4029 = vpop.permute.xlu0 %4028
        %s4031 = sor.u32 256, 72
        %4032 = vbcast.lane.b32.xlu0 %v3994, %s4031
        %v4033 = vpop.permute.xlu0 %4032
        %s4035 = sor.u32 256, 80
        %4036 = vbcast.lane.b32.xlu0 %v3994, %s4035
        %v4037 = vpop.permute.xlu0 %4036
        %s4039 = sor.u32 256, 88
        %4040 = vbcast.lane.b32.xlu0 %v3994, %s4039
        %v4041 = vpop.permute.xlu0 %4040
        %s4043 = sor.u32 256, 96
        %4044 = vbcast.lane.b32.xlu0 %v3994, %s4043
        %v4045 = vpop.permute.xlu0 %4044
        %s4047 = sor.u32 256, 104
        %4048 = vbcast.lane.b32.xlu0 %v3994, %s4047
        %v4049 = vpop.permute.xlu0 %4048
        %s4051 = sor.u32 256, 112
        %4052 = vbcast.lane.b32.xlu0 %v3994, %s4051
        %v4053 = vpop.permute.xlu0 %4052
        %s4055 = sor.u32 256, 120
        %4056 = vbcast.lane.b32.xlu0 %v3994, %s4055
        %v4057 = vpop.permute.xlu0 %4056
        %v4058 = vlaneseq
        %v4059 = vshrl.u32 %v4058, 7
        %v4060 = vsub.s32 4, %v4059
        %v4061 = vrot.slane %v3788, %v4060
        %4063 = vbcast.lane.b32.xlu0 %v4061, 256
        %v4064 = vpop.permute.xlu0 %4063
        %s4066 = sor.u32 256, 8
        %4067 = vbcast.lane.b32.xlu0 %v4061, %s4066
        %v4068 = vpop.permute.xlu0 %4067
        %s4070 = sor.u32 256, 16
        %4071 = vbcast.lane.b32.xlu0 %v4061, %s4070
        %v4072 = vpop.permute.xlu0 %4071
        %s4074 = sor.u32 256, 24
        %4075 = vbcast.lane.b32.xlu0 %v4061, %s4074
        %v4076 = vpop.permute.xlu0 %4075
        %s4078 = sor.u32 256, 32
        %4079 = vbcast.lane.b32.xlu0 %v4061, %s4078
        %v4080 = vpop.permute.xlu0 %4079
        %s4082 = sor.u32 256, 40
        %4083 = vbcast.lane.b32.xlu0 %v4061, %s4082
        %v4084 = vpop.permute.xlu0 %4083
        %s4086 = sor.u32 256, 48
        %4087 = vbcast.lane.b32.xlu0 %v4061, %s4086
        %v4088 = vpop.permute.xlu0 %4087
        %s4090 = sor.u32 256, 56
        %4091 = vbcast.lane.b32.xlu0 %v4061, %s4090
        %v4092 = vpop.permute.xlu0 %4091
        %s4094 = sor.u32 256, 64
        %4095 = vbcast.lane.b32.xlu0 %v4061, %s4094
        %v4096 = vpop.permute.xlu0 %4095
        %s4098 = sor.u32 256, 72
        %4099 = vbcast.lane.b32.xlu0 %v4061, %s4098
        %v4100 = vpop.permute.xlu0 %4099
        %s4102 = sor.u32 256, 80
        %4103 = vbcast.lane.b32.xlu0 %v4061, %s4102
        %v4104 = vpop.permute.xlu0 %4103
        %s4106 = sor.u32 256, 88
        %4107 = vbcast.lane.b32.xlu0 %v4061, %s4106
        %v4108 = vpop.permute.xlu0 %4107
        %s4110 = sor.u32 256, 96
        %4111 = vbcast.lane.b32.xlu0 %v4061, %s4110
        %v4112 = vpop.permute.xlu0 %4111
        %s4114 = sor.u32 256, 104
        %4115 = vbcast.lane.b32.xlu0 %v4061, %s4114
        %v4116 = vpop.permute.xlu0 %4115
        %s4118 = sor.u32 256, 112
        %4119 = vbcast.lane.b32.xlu0 %v4061, %s4118
        %v4120 = vpop.permute.xlu0 %4119
        %s4122 = sor.u32 256, 120
        %4123 = vbcast.lane.b32.xlu0 %v4061, %s4122
        %v4124 = vpop.permute.xlu0 %4123
        %v4125 = vlaneseq
        %v4126 = vshrl.u32 %v4125, 7
        %v4127 = vsub.s32 5, %v4126
        %v4128 = vrot.slane %v3788, %v4127
        %4130 = vbcast.lane.b32.xlu0 %v4128, 256
        %v4131 = vpop.permute.xlu0 %4130
        %s4133 = sor.u32 256, 8
        %4134 = vbcast.lane.b32.xlu0 %v4128, %s4133
        %v4135 = vpop.permute.xlu0 %4134
        %s4137 = sor.u32 256, 16
        %4138 = vbcast.lane.b32.xlu0 %v4128, %s4137
        %v4139 = vpop.permute.xlu0 %4138
        %s4141 = sor.u32 256, 24
        %4142 = vbcast.lane.b32.xlu0 %v4128, %s4141
        %v4143 = vpop.permute.xlu0 %4142
        %s4145 = sor.u32 256, 32
        %4146 = vbcast.lane.b32.xlu0 %v4128, %s4145
        %v4147 = vpop.permute.xlu0 %4146
        %s4149 = sor.u32 256, 40
        %4150 = vbcast.lane.b32.xlu0 %v4128, %s4149
        %v4151 = vpop.permute.xlu0 %4150
        %s4153 = sor.u32 256, 48
        %4154 = vbcast.lane.b32.xlu0 %v4128, %s4153
        %v4155 = vpop.permute.xlu0 %4154
        %s4157 = sor.u32 256, 56
        %4158 = vbcast.lane.b32.xlu0 %v4128, %s4157
        %v4159 = vpop.permute.xlu0 %4158
        %s4161 = sor.u32 256, 64
        %4162 = vbcast.lane.b32.xlu0 %v4128, %s4161
        %v4163 = vpop.permute.xlu0 %4162
        %s4165 = sor.u32 256, 72
        %4166 = vbcast.lane.b32.xlu0 %v4128, %s4165
        %v4167 = vpop.permute.xlu0 %4166
        %s4169 = sor.u32 256, 80
        %4170 = vbcast.lane.b32.xlu0 %v4128, %s4169
        %v4171 = vpop.permute.xlu0 %4170
        %s4173 = sor.u32 256, 88
        %4174 = vbcast.lane.b32.xlu0 %v4128, %s4173
        %v4175 = vpop.permute.xlu0 %4174
        %s4177 = sor.u32 256, 96
        %4178 = vbcast.lane.b32.xlu0 %v4128, %s4177
        %v4179 = vpop.permute.xlu0 %4178
        %s4181 = sor.u32 256, 104
        %4182 = vbcast.lane.b32.xlu0 %v4128, %s4181
        %v4183 = vpop.permute.xlu0 %4182
        %s4185 = sor.u32 256, 112
        %4186 = vbcast.lane.b32.xlu0 %v4128, %s4185
        %v4187 = vpop.permute.xlu0 %4186
        %s4189 = sor.u32 256, 120
        %4190 = vbcast.lane.b32.xlu0 %v4128, %s4189
        %v4191 = vpop.permute.xlu0 %4190
        %v4192 = vlaneseq
        %v4193 = vshrl.u32 %v4192, 7
        %v4194 = vsub.s32 6, %v4193
        %v4195 = vrot.slane %v3788, %v4194
        %4197 = vbcast.lane.b32.xlu0 %v4195, 256
        %v4198 = vpop.permute.xlu0 %4197
        %s4200 = sor.u32 256, 8
        %4201 = vbcast.lane.b32.xlu0 %v4195, %s4200
        %v4202 = vpop.permute.xlu0 %4201
        %s4204 = sor.u32 256, 16
        %4205 = vbcast.lane.b32.xlu0 %v4195, %s4204
        %v4206 = vpop.permute.xlu0 %4205
        %s4208 = sor.u32 256, 24
        %4209 = vbcast.lane.b32.xlu0 %v4195, %s4208
        %v4210 = vpop.permute.xlu0 %4209
        %s4212 = sor.u32 256, 32
        %4213 = vbcast.lane.b32.xlu0 %v4195, %s4212
        %v4214 = vpop.permute.xlu0 %4213
        %s4216 = sor.u32 256, 40
        %4217 = vbcast.lane.b32.xlu0 %v4195, %s4216
        %v4218 = vpop.permute.xlu0 %4217
        %s4220 = sor.u32 256, 48
        %4221 = vbcast.lane.b32.xlu0 %v4195, %s4220
        %v4222 = vpop.permute.xlu0 %4221
        %s4224 = sor.u32 256, 56
        %4225 = vbcast.lane.b32.xlu0 %v4195, %s4224
        %v4226 = vpop.permute.xlu0 %4225
        %s4228 = sor.u32 256, 64
        %4229 = vbcast.lane.b32.xlu0 %v4195, %s4228
        %v4230 = vpop.permute.xlu0 %4229
        %s4232 = sor.u32 256, 72
        %4233 = vbcast.lane.b32.xlu0 %v4195, %s4232
        %v4234 = vpop.permute.xlu0 %4233
        %s4236 = sor.u32 256, 80
        %4237 = vbcast.lane.b32.xlu0 %v4195, %s4236
        %v4238 = vpop.permute.xlu0 %4237
        %s4240 = sor.u32 256, 88
        %4241 = vbcast.lane.b32.xlu0 %v4195, %s4240
        %v4242 = vpop.permute.xlu0 %4241
        %s4244 = sor.u32 256, 96
        %4245 = vbcast.lane.b32.xlu0 %v4195, %s4244
        %v4246 = vpop.permute.xlu0 %4245
        %s4248 = sor.u32 256, 104
        %4249 = vbcast.lane.b32.xlu0 %v4195, %s4248
        %v4250 = vpop.permute.xlu0 %4249
        %s4252 = sor.u32 256, 112
        %4253 = vbcast.lane.b32.xlu0 %v4195, %s4252
        %v4254 = vpop.permute.xlu0 %4253
        %s4256 = sor.u32 256, 120
        %4257 = vbcast.lane.b32.xlu0 %v4195, %s4256
        %v4258 = vpop.permute.xlu0 %4257
        %v4259 = vlaneseq
        %v4260 = vshrl.u32 %v4259, 7
        %v4261 = vsub.s32 7, %v4260
        %v4262 = vrot.slane %v3788, %v4261
        %4264 = vbcast.lane.b32.xlu0 %v4262, 256
        %v4265 = vpop.permute.xlu0 %4264
        %s4267 = sor.u32 256, 8
        %4268 = vbcast.lane.b32.xlu0 %v4262, %s4267
        %v4269 = vpop.permute.xlu0 %4268
        %s4271 = sor.u32 256, 16
        %4272 = vbcast.lane.b32.xlu0 %v4262, %s4271
        %v4273 = vpop.permute.xlu0 %4272
        %s4275 = sor.u32 256, 24
        %4276 = vbcast.lane.b32.xlu0 %v4262, %s4275
        %v4277 = vpop.permute.xlu0 %4276
        %s4279 = sor.u32 256, 32
        %4280 = vbcast.lane.b32.xlu0 %v4262, %s4279
        %v4281 = vpop.permute.xlu0 %4280
        %s4283 = sor.u32 256, 40
        %4284 = vbcast.lane.b32.xlu0 %v4262, %s4283
        %v4285 = vpop.permute.xlu0 %4284
        %s4287 = sor.u32 256, 48
        %4288 = vbcast.lane.b32.xlu0 %v4262, %s4287
        %v4289 = vpop.permute.xlu0 %4288
        %s4291 = sor.u32 256, 56
        %4292 = vbcast.lane.b32.xlu0 %v4262, %s4291
        %v4293 = vpop.permute.xlu0 %4292
        %s4295 = sor.u32 256, 64
        %4296 = vbcast.lane.b32.xlu0 %v4262, %s4295
        %v4297 = vpop.permute.xlu0 %4296
        %s4299 = sor.u32 256, 72
        %4300 = vbcast.lane.b32.xlu0 %v4262, %s4299
        %v4301 = vpop.permute.xlu0 %4300
        %s4303 = sor.u32 256, 80
        %4304 = vbcast.lane.b32.xlu0 %v4262, %s4303
        %v4305 = vpop.permute.xlu0 %4304
        %s4307 = sor.u32 256, 88
        %4308 = vbcast.lane.b32.xlu0 %v4262, %s4307
        %v4309 = vpop.permute.xlu0 %4308
        %s4311 = sor.u32 256, 96
        %4312 = vbcast.lane.b32.xlu0 %v4262, %s4311
        %v4313 = vpop.permute.xlu0 %4312
        %s4315 = sor.u32 256, 104
        %4316 = vbcast.lane.b32.xlu0 %v4262, %s4315
        %v4317 = vpop.permute.xlu0 %4316
        %s4319 = sor.u32 256, 112
        %4320 = vbcast.lane.b32.xlu0 %v4262, %s4319
        %v4321 = vpop.permute.xlu0 %4320
        %s4323 = sor.u32 256, 120
        %4324 = vbcast.lane.b32.xlu0 %v4262, %s4323
        %v4325 = vpop.permute.xlu0 %4324
        %v4454 = vadd.f32 %v3660, %v3796
        %v4455 = vadd.f32 %v3661, %v3800
        %v4456 = vadd.f32 %v3662, %v3804
        %v4457 = vadd.f32 %v3663, %v3808
        %v4458 = vadd.f32 %v3664, %v3812
        %v4459 = vadd.f32 %v3665, %v3816
        %v4460 = vadd.f32 %v3666, %v3820
        %v4461 = vadd.f32 %v3667, %v3824
        %v4462 = vadd.f32 %v3668, %v3828
        %v4463 = vadd.f32 %v3669, %v3832
        %v4464 = vadd.f32 %v3670, %v3836
        %v4465 = vadd.f32 %v3671, %v3840
        %v4466 = vadd.f32 %v3672, %v3844
        %v4467 = vadd.f32 %v3673, %v3848
        %v4468 = vadd.f32 %v3674, %v3852
        %v4469 = vadd.f32 %v3675, %v3856
        %v4470 = vadd.f32 %v3676, %v3863
        %v4471 = vadd.f32 %v3677, %v3867
        %v4472 = vadd.f32 %v3678, %v3871
        %v4473 = vadd.f32 %v3679, %v3875
        %v4474 = vadd.f32 %v3680, %v3879
        %v4475 = vadd.f32 %v3681, %v3883
        %v4476 = vadd.f32 %v3682, %v3887
        %v4477 = vadd.f32 %v3683, %v3891
        %v4478 = vadd.f32 %v3684, %v3895
        %v4479 = vadd.f32 %v3685, %v3899
        %v4480 = vadd.f32 %v3686, %v3903
        %v4481 = vadd.f32 %v3687, %v3907
        %v4482 = vadd.f32 %v3688, %v3911
        %v4483 = vadd.f32 %v3689, %v3915
        %v4484 = vadd.f32 %v3690, %v3919
        %v4485 = vadd.f32 %v3691, %v3923
        %v4486 = vadd.f32 %v3692, %v3930
        %v4487 = vadd.f32 %v3693, %v3934
        %v4488 = vadd.f32 %v3694, %v3938
        %v4489 = vadd.f32 %v3695, %v3942
        %v4490 = vadd.f32 %v3696, %v3946
        %v4491 = vadd.f32 %v3697, %v3950
        %v4492 = vadd.f32 %v3698, %v3954
        %v4493 = vadd.f32 %v3699, %v3958
        %v4494 = vadd.f32 %v3700, %v3962
        %v4495 = vadd.f32 %v3701, %v3966
        %v4496 = vadd.f32 %v3702, %v3970
        %v4497 = vadd.f32 %v3703, %v3974
        %v4498 = vadd.f32 %v3704, %v3978
        %v4499 = vadd.f32 %v3705, %v3982
        %v4500 = vadd.f32 %v3706, %v3986
        %v4501 = vadd.f32 %v3707, %v3990
        %v4502 = vadd.f32 %v3708, %v3997
        %v4503 = vadd.f32 %v3709, %v4001
        %v4504 = vadd.f32 %v3710, %v4005
        %v4505 = vadd.f32 %v3711, %v4009
        %v4506 = vadd.f32 %v3712, %v4013
        %v4507 = vadd.f32 %v3713, %v4017
        %v4508 = vadd.f32 %v3714, %v4021
        %v4509 = vadd.f32 %v3715, %v4025
        %v4510 = vadd.f32 %v3716, %v4029
        %v4511 = vadd.f32 %v3717, %v4033
        %v4512 = vadd.f32 %v3718, %v4037
        %v4513 = vadd.f32 %v3719, %v4041
        %v4514 = vadd.f32 %v3720, %v4045
        %v4515 = vadd.f32 %v3721, %v4049
        %v4516 = vadd.f32 %v3722, %v4053
        %v4517 = vadd.f32 %v3723, %v4057
        %v4518 = vadd.f32 %v3724, %v4064
        %v4519 = vadd.f32 %v3725, %v4068
        %v4520 = vadd.f32 %v3726, %v4072
        %v4521 = vadd.f32 %v3727, %v4076
        %v4522 = vadd.f32 %v3728, %v4080
        %v4523 = vadd.f32 %v3729, %v4084
        %v4524 = vadd.f32 %v3730, %v4088
        %v4525 = vadd.f32 %v3731, %v4092
        %v4526 = vadd.f32 %v3732, %v4096
        %v4527 = vadd.f32 %v3733, %v4100
        %v4528 = vadd.f32 %v3734, %v4104
        %v4529 = vadd.f32 %v3735, %v4108
        %v4530 = vadd.f32 %v3736, %v4112
        %v4531 = vadd.f32 %v3737, %v4116
        %v4532 = vadd.f32 %v3738, %v4120
        %v4533 = vadd.f32 %v3739, %v4124
        %v4534 = vadd.f32 %v3740, %v4131
        %v4535 = vadd.f32 %v3741, %v4135
        %v4536 = vadd.f32 %v3742, %v4139
        %v4537 = vadd.f32 %v3743, %v4143
        %v4538 = vadd.f32 %v3744, %v4147
        %v4539 = vadd.f32 %v3745, %v4151
        %v4540 = vadd.f32 %v3746, %v4155
        %v4541 = vadd.f32 %v3747, %v4159
        %v4542 = vadd.f32 %v3748, %v4163
        %v4543 = vadd.f32 %v3749, %v4167
        %v4544 = vadd.f32 %v3750, %v4171
        %v4545 = vadd.f32 %v3751, %v4175
        %v4546 = vadd.f32 %v3752, %v4179
        %v4547 = vadd.f32 %v3753, %v4183
        %v4548 = vadd.f32 %v3754, %v4187
        %v4549 = vadd.f32 %v3755, %v4191
        %v4550 = vadd.f32 %v3756, %v4198
        %v4551 = vadd.f32 %v3757, %v4202
        %v4552 = vadd.f32 %v3758, %v4206
        %v4553 = vadd.f32 %v3759, %v4210
        %v4554 = vadd.f32 %v3760, %v4214
        %v4555 = vadd.f32 %v3761, %v4218
        %v4556 = vadd.f32 %v3762, %v4222
        %v4557 = vadd.f32 %v3763, %v4226
        %v4558 = vadd.f32 %v3764, %v4230
        %v4559 = vadd.f32 %v3765, %v4234
        %v4560 = vadd.f32 %v3766, %v4238
        %v4561 = vadd.f32 %v3767, %v4242
        %v4562 = vadd.f32 %v3768, %v4246
        %v4563 = vadd.f32 %v3769, %v4250
        %v4564 = vadd.f32 %v3770, %v4254
        %v4565 = vadd.f32 %v3771, %v4258
        %v4566 = vadd.f32 %v3772, %v4265
        %v4567 = vadd.f32 %v3773, %v4269
        %v4568 = vadd.f32 %v3774, %v4273
        %v4569 = vadd.f32 %v3775, %v4277
        %v4570 = vadd.f32 %v3776, %v4281
        %v4571 = vadd.f32 %v3777, %v4285
        %v4572 = vadd.f32 %v3778, %v4289
        %v4573 = vadd.f32 %v3779, %v4293
        %v4574 = vadd.f32 %v3780, %v4297
        %v4575 = vadd.f32 %v3781, %v4301
        %v4576 = vadd.f32 %v3782, %v4305
        %v4577 = vadd.f32 %v3783, %v4309
        %v4578 = vadd.f32 %v3784, %v4313
        %v4579 = vadd.f32 %v3785, %v4317
        %v4580 = vadd.f32 %v3786, %v4321
        %v4581 = vadd.f32 %v3787, %v4325
        %4710 = vset.pattern.permute.xlu0 4
        %4711 = vperm.xlu0 %4710, %v4454
        %v4712 = vpop.permute.xlu0 %4711
        %4713 = vset.pattern.permute.xlu0 4
        %4714 = vperm.xlu0 %4713, %v4455
        %v4715 = vpop.permute.xlu0 %4714
        %4716 = vset.pattern.permute.xlu0 4
        %4717 = vperm.xlu0 %4716, %v4456
        %v4718 = vpop.permute.xlu0 %4717
        %4719 = vset.pattern.permute.xlu0 4
        %4720 = vperm.xlu0 %4719, %v4457
        %v4721 = vpop.permute.xlu0 %4720
        %4722 = vset.pattern.permute.xlu0 4
        %4723 = vperm.xlu0 %4722, %v4458
        %v4724 = vpop.permute.xlu0 %4723
        %4725 = vset.pattern.permute.xlu0 4
        %4726 = vperm.xlu0 %4725, %v4459
        %v4727 = vpop.permute.xlu0 %4726
        %4728 = vset.pattern.permute.xlu0 4
        %4729 = vperm.xlu0 %4728, %v4460
        %v4730 = vpop.permute.xlu0 %4729
        %4731 = vset.pattern.permute.xlu0 4
        %4732 = vperm.xlu0 %4731, %v4461
        %v4733 = vpop.permute.xlu0 %4732
        %4734 = vset.pattern.permute.xlu0 4
        %4735 = vperm.xlu0 %4734, %v4462
        %v4736 = vpop.permute.xlu0 %4735
        %4737 = vset.pattern.permute.xlu0 4
        %4738 = vperm.xlu0 %4737, %v4463
        %v4739 = vpop.permute.xlu0 %4738
        %4740 = vset.pattern.permute.xlu0 4
        %4741 = vperm.xlu0 %4740, %v4464
        %v4742 = vpop.permute.xlu0 %4741
        %4743 = vset.pattern.permute.xlu0 4
        %4744 = vperm.xlu0 %4743, %v4465
        %v4745 = vpop.permute.xlu0 %4744
        %4746 = vset.pattern.permute.xlu0 4
        %4747 = vperm.xlu0 %4746, %v4466
        %v4748 = vpop.permute.xlu0 %4747
        %4749 = vset.pattern.permute.xlu0 4
        %4750 = vperm.xlu0 %4749, %v4467
        %v4751 = vpop.permute.xlu0 %4750
        %4752 = vset.pattern.permute.xlu0 4
        %4753 = vperm.xlu0 %4752, %v4468
        %v4754 = vpop.permute.xlu0 %4753
        %4755 = vset.pattern.permute.xlu0 4
        %4756 = vperm.xlu0 %4755, %v4469
        %v4757 = vpop.permute.xlu0 %4756
        %4758 = vset.pattern.permute.xlu0 4
        %4759 = vperm.xlu0 %4758, %v4470
        %v4760 = vpop.permute.xlu0 %4759
        %4761 = vset.pattern.permute.xlu0 4
        %4762 = vperm.xlu0 %4761, %v4471
        %v4763 = vpop.permute.xlu0 %4762
        %4764 = vset.pattern.permute.xlu0 4
        %4765 = vperm.xlu0 %4764, %v4472
        %v4766 = vpop.permute.xlu0 %4765
        %4767 = vset.pattern.permute.xlu0 4
        %4768 = vperm.xlu0 %4767, %v4473
        %v4769 = vpop.permute.xlu0 %4768
        %4770 = vset.pattern.permute.xlu0 4
        %4771 = vperm.xlu0 %4770, %v4474
        %v4772 = vpop.permute.xlu0 %4771
        %4773 = vset.pattern.permute.xlu0 4
        %4774 = vperm.xlu0 %4773, %v4475
        %v4775 = vpop.permute.xlu0 %4774
        %4776 = vset.pattern.permute.xlu0 4
        %4777 = vperm.xlu0 %4776, %v4476
        %v4778 = vpop.permute.xlu0 %4777
        %4779 = vset.pattern.permute.xlu0 4
        %4780 = vperm.xlu0 %4779, %v4477
        %v4781 = vpop.permute.xlu0 %4780
        %4782 = vset.pattern.permute.xlu0 4
        %4783 = vperm.xlu0 %4782, %v4478
        %v4784 = vpop.permute.xlu0 %4783
        %4785 = vset.pattern.permute.xlu0 4
        %4786 = vperm.xlu0 %4785, %v4479
        %v4787 = vpop.permute.xlu0 %4786
        %4788 = vset.pattern.permute.xlu0 4
        %4789 = vperm.xlu0 %4788, %v4480
        %v4790 = vpop.permute.xlu0 %4789
        %4791 = vset.pattern.permute.xlu0 4
        %4792 = vperm.xlu0 %4791, %v4481
        %v4793 = vpop.permute.xlu0 %4792
        %4794 = vset.pattern.permute.xlu0 4
        %4795 = vperm.xlu0 %4794, %v4482
        %v4796 = vpop.permute.xlu0 %4795
        %4797 = vset.pattern.permute.xlu0 4
        %4798 = vperm.xlu0 %4797, %v4483
        %v4799 = vpop.permute.xlu0 %4798
        %4800 = vset.pattern.permute.xlu0 4
        %4801 = vperm.xlu0 %4800, %v4484
        %v4802 = vpop.permute.xlu0 %4801
        %4803 = vset.pattern.permute.xlu0 4
        %4804 = vperm.xlu0 %4803, %v4485
        %v4805 = vpop.permute.xlu0 %4804
        %4806 = vset.pattern.permute.xlu0 4
        %4807 = vperm.xlu0 %4806, %v4486
        %v4808 = vpop.permute.xlu0 %4807
        %4809 = vset.pattern.permute.xlu0 4
        %4810 = vperm.xlu0 %4809, %v4487
        %v4811 = vpop.permute.xlu0 %4810
        %4812 = vset.pattern.permute.xlu0 4
        %4813 = vperm.xlu0 %4812, %v4488
        %v4814 = vpop.permute.xlu0 %4813
        %4815 = vset.pattern.permute.xlu0 4
        %4816 = vperm.xlu0 %4815, %v4489
        %v4817 = vpop.permute.xlu0 %4816
        %4818 = vset.pattern.permute.xlu0 4
        %4819 = vperm.xlu0 %4818, %v4490
        %v4820 = vpop.permute.xlu0 %4819
        %4821 = vset.pattern.permute.xlu0 4
        %4822 = vperm.xlu0 %4821, %v4491
        %v4823 = vpop.permute.xlu0 %4822
        %4824 = vset.pattern.permute.xlu0 4
        %4825 = vperm.xlu0 %4824, %v4492
        %v4826 = vpop.permute.xlu0 %4825
        %4827 = vset.pattern.permute.xlu0 4
        %4828 = vperm.xlu0 %4827, %v4493
        %v4829 = vpop.permute.xlu0 %4828
        %4830 = vset.pattern.permute.xlu0 4
        %4831 = vperm.xlu0 %4830, %v4494
        %v4832 = vpop.permute.xlu0 %4831
        %4833 = vset.pattern.permute.xlu0 4
        %4834 = vperm.xlu0 %4833, %v4495
        %v4835 = vpop.permute.xlu0 %4834
        %4836 = vset.pattern.permute.xlu0 4
        %4837 = vperm.xlu0 %4836, %v4496
        %v4838 = vpop.permute.xlu0 %4837
        %4839 = vset.pattern.permute.xlu0 4
        %4840 = vperm.xlu0 %4839, %v4497
        %v4841 = vpop.permute.xlu0 %4840
        %4842 = vset.pattern.permute.xlu0 4
        %4843 = vperm.xlu0 %4842, %v4498
        %v4844 = vpop.permute.xlu0 %4843
        %4845 = vset.pattern.permute.xlu0 4
        %4846 = vperm.xlu0 %4845, %v4499
        %v4847 = vpop.permute.xlu0 %4846
        %4848 = vset.pattern.permute.xlu0 4
        %4849 = vperm.xlu0 %4848, %v4500
        %v4850 = vpop.permute.xlu0 %4849
        %4851 = vset.pattern.permute.xlu0 4
        %4852 = vperm.xlu0 %4851, %v4501
        %v4853 = vpop.permute.xlu0 %4852
        %4854 = vset.pattern.permute.xlu0 4
        %4855 = vperm.xlu0 %4854, %v4502
        %v4856 = vpop.permute.xlu0 %4855
        %4857 = vset.pattern.permute.xlu0 4
        %4858 = vperm.xlu0 %4857, %v4503
        %v4859 = vpop.permute.xlu0 %4858
        %4860 = vset.pattern.permute.xlu0 4
        %4861 = vperm.xlu0 %4860, %v4504
        %v4862 = vpop.permute.xlu0 %4861
        %4863 = vset.pattern.permute.xlu0 4
        %4864 = vperm.xlu0 %4863, %v4505
        %v4865 = vpop.permute.xlu0 %4864
        %4866 = vset.pattern.permute.xlu0 4
        %4867 = vperm.xlu0 %4866, %v4506
        %v4868 = vpop.permute.xlu0 %4867
        %4869 = vset.pattern.permute.xlu0 4
        %4870 = vperm.xlu0 %4869, %v4507
        %v4871 = vpop.permute.xlu0 %4870
        %4872 = vset.pattern.permute.xlu0 4
        %4873 = vperm.xlu0 %4872, %v4508
        %v4874 = vpop.permute.xlu0 %4873
        %4875 = vset.pattern.permute.xlu0 4
        %4876 = vperm.xlu0 %4875, %v4509
        %v4877 = vpop.permute.xlu0 %4876
        %4878 = vset.pattern.permute.xlu0 4
        %4879 = vperm.xlu0 %4878, %v4510
        %v4880 = vpop.permute.xlu0 %4879
        %4881 = vset.pattern.permute.xlu0 4
        %4882 = vperm.xlu0 %4881, %v4511
        %v4883 = vpop.permute.xlu0 %4882
        %4884 = vset.pattern.permute.xlu0 4
        %4885 = vperm.xlu0 %4884, %v4512
        %v4886 = vpop.permute.xlu0 %4885
        %4887 = vset.pattern.permute.xlu0 4
        %4888 = vperm.xlu0 %4887, %v4513
        %v4889 = vpop.permute.xlu0 %4888
        %4890 = vset.pattern.permute.xlu0 4
        %4891 = vperm.xlu0 %4890, %v4514
        %v4892 = vpop.permute.xlu0 %4891
        %4893 = vset.pattern.permute.xlu0 4
        %4894 = vperm.xlu0 %4893, %v4515
        %v4895 = vpop.permute.xlu0 %4894
        %4896 = vset.pattern.permute.xlu0 4
        %4897 = vperm.xlu0 %4896, %v4516
        %v4898 = vpop.permute.xlu0 %4897
        %4899 = vset.pattern.permute.xlu0 4
        %4900 = vperm.xlu0 %4899, %v4517
        %v4901 = vpop.permute.xlu0 %4900
        %4902 = vset.pattern.permute.xlu0 4
        %4903 = vperm.xlu0 %4902, %v4518
        %v4904 = vpop.permute.xlu0 %4903
        %4905 = vset.pattern.permute.xlu0 4
        %4906 = vperm.xlu0 %4905, %v4519
        %v4907 = vpop.permute.xlu0 %4906
        %4908 = vset.pattern.permute.xlu0 4
        %4909 = vperm.xlu0 %4908, %v4520
        %v4910 = vpop.permute.xlu0 %4909
        %4911 = vset.pattern.permute.xlu0 4
        %4912 = vperm.xlu0 %4911, %v4521
        %v4913 = vpop.permute.xlu0 %4912
        %4914 = vset.pattern.permute.xlu0 4
        %4915 = vperm.xlu0 %4914, %v4522
        %v4916 = vpop.permute.xlu0 %4915
        %4917 = vset.pattern.permute.xlu0 4
        %4918 = vperm.xlu0 %4917, %v4523
        %v4919 = vpop.permute.xlu0 %4918
        %4920 = vset.pattern.permute.xlu0 4
        %4921 = vperm.xlu0 %4920, %v4524
        %v4922 = vpop.permute.xlu0 %4921
        %4923 = vset.pattern.permute.xlu0 4
        %4924 = vperm.xlu0 %4923, %v4525
        %v4925 = vpop.permute.xlu0 %4924
        %4926 = vset.pattern.permute.xlu0 4
        %4927 = vperm.xlu0 %4926, %v4526
        %v4928 = vpop.permute.xlu0 %4927
        %4929 = vset.pattern.permute.xlu0 4
        %4930 = vperm.xlu0 %4929, %v4527
        %v4931 = vpop.permute.xlu0 %4930
        %4932 = vset.pattern.permute.xlu0 4
        %4933 = vperm.xlu0 %4932, %v4528
        %v4934 = vpop.permute.xlu0 %4933
        %4935 = vset.pattern.permute.xlu0 4
        %4936 = vperm.xlu0 %4935, %v4529
        %v4937 = vpop.permute.xlu0 %4936
        %4938 = vset.pattern.permute.xlu0 4
        %4939 = vperm.xlu0 %4938, %v4530
        %v4940 = vpop.permute.xlu0 %4939
        %4941 = vset.pattern.permute.xlu0 4
        %4942 = vperm.xlu0 %4941, %v4531
        %v4943 = vpop.permute.xlu0 %4942
        %4944 = vset.pattern.permute.xlu0 4
        %4945 = vperm.xlu0 %4944, %v4532
        %v4946 = vpop.permute.xlu0 %4945
        %4947 = vset.pattern.permute.xlu0 4
        %4948 = vperm.xlu0 %4947, %v4533
        %v4949 = vpop.permute.xlu0 %4948
        %4950 = vset.pattern.permute.xlu0 4
        %4951 = vperm.xlu0 %4950, %v4534
        %v4952 = vpop.permute.xlu0 %4951
        %4953 = vset.pattern.permute.xlu0 4
        %4954 = vperm.xlu0 %4953, %v4535
        %v4955 = vpop.permute.xlu0 %4954
        %4956 = vset.pattern.permute.xlu0 4
        %4957 = vperm.xlu0 %4956, %v4536
        %v4958 = vpop.permute.xlu0 %4957
        %4959 = vset.pattern.permute.xlu0 4
        %4960 = vperm.xlu0 %4959, %v4537
        %v4961 = vpop.permute.xlu0 %4960
        %4962 = vset.pattern.permute.xlu0 4
        %4963 = vperm.xlu0 %4962, %v4538
        %v4964 = vpop.permute.xlu0 %4963
        %4965 = vset.pattern.permute.xlu0 4
        %4966 = vperm.xlu0 %4965, %v4539
        %v4967 = vpop.permute.xlu0 %4966
        %4968 = vset.pattern.permute.xlu0 4
        %4969 = vperm.xlu0 %4968, %v4540
        %v4970 = vpop.permute.xlu0 %4969
        %4971 = vset.pattern.permute.xlu0 4
        %4972 = vperm.xlu0 %4971, %v4541
        %v4973 = vpop.permute.xlu0 %4972
        %4974 = vset.pattern.permute.xlu0 4
        %4975 = vperm.xlu0 %4974, %v4542
        %v4976 = vpop.permute.xlu0 %4975
        %4977 = vset.pattern.permute.xlu0 4
        %4978 = vperm.xlu0 %4977, %v4543
        %v4979 = vpop.permute.xlu0 %4978
        %4980 = vset.pattern.permute.xlu0 4
        %4981 = vperm.xlu0 %4980, %v4544
        %v4982 = vpop.permute.xlu0 %4981
        %4983 = vset.pattern.permute.xlu0 4
        %4984 = vperm.xlu0 %4983, %v4545
        %v4985 = vpop.permute.xlu0 %4984
        %4986 = vset.pattern.permute.xlu0 4
        %4987 = vperm.xlu0 %4986, %v4546
        %v4988 = vpop.permute.xlu0 %4987
        %4989 = vset.pattern.permute.xlu0 4
        %4990 = vperm.xlu0 %4989, %v4547
        %v4991 = vpop.permute.xlu0 %4990
        %4992 = vset.pattern.permute.xlu0 4
        %4993 = vperm.xlu0 %4992, %v4548
        %v4994 = vpop.permute.xlu0 %4993
        %4995 = vset.pattern.permute.xlu0 4
        %4996 = vperm.xlu0 %4995, %v4549
        %v4997 = vpop.permute.xlu0 %4996
        %4998 = vset.pattern.permute.xlu0 4
        %4999 = vperm.xlu0 %4998, %v4550
        %v5000 = vpop.permute.xlu0 %4999
        %5001 = vset.pattern.permute.xlu0 4
        %5002 = vperm.xlu0 %5001, %v4551
        %v5003 = vpop.permute.xlu0 %5002
        %5004 = vset.pattern.permute.xlu0 4
        %5005 = vperm.xlu0 %5004, %v4552
        %v5006 = vpop.permute.xlu0 %5005
        %5007 = vset.pattern.permute.xlu0 4
        %5008 = vperm.xlu0 %5007, %v4553
        %v5009 = vpop.permute.xlu0 %5008
        %5010 = vset.pattern.permute.xlu0 4
        %5011 = vperm.xlu0 %5010, %v4554
        %v5012 = vpop.permute.xlu0 %5011
        %5013 = vset.pattern.permute.xlu0 4
        %5014 = vperm.xlu0 %5013, %v4555
        %v5015 = vpop.permute.xlu0 %5014
        %5016 = vset.pattern.permute.xlu0 4
        %5017 = vperm.xlu0 %5016, %v4556
        %v5018 = vpop.permute.xlu0 %5017
        %5019 = vset.pattern.permute.xlu0 4
        %5020 = vperm.xlu0 %5019, %v4557
        %v5021 = vpop.permute.xlu0 %5020
        %5022 = vset.pattern.permute.xlu0 4
        %5023 = vperm.xlu0 %5022, %v4558
        %v5024 = vpop.permute.xlu0 %5023
        %5025 = vset.pattern.permute.xlu0 4
        %5026 = vperm.xlu0 %5025, %v4559
        %v5027 = vpop.permute.xlu0 %5026
        %5028 = vset.pattern.permute.xlu0 4
        %5029 = vperm.xlu0 %5028, %v4560
        %v5030 = vpop.permute.xlu0 %5029
        %5031 = vset.pattern.permute.xlu0 4
        %5032 = vperm.xlu0 %5031, %v4561
        %v5033 = vpop.permute.xlu0 %5032
        %5034 = vset.pattern.permute.xlu0 4
        %5035 = vperm.xlu0 %5034, %v4562
        %v5036 = vpop.permute.xlu0 %5035
        %5037 = vset.pattern.permute.xlu0 4
        %5038 = vperm.xlu0 %5037, %v4563
        %v5039 = vpop.permute.xlu0 %5038
        %5040 = vset.pattern.permute.xlu0 4
        %5041 = vperm.xlu0 %5040, %v4564
        %v5042 = vpop.permute.xlu0 %5041
        %5043 = vset.pattern.permute.xlu0 4
        %5044 = vperm.xlu0 %5043, %v4565
        %v5045 = vpop.permute.xlu0 %5044
        %5046 = vset.pattern.permute.xlu0 4
        %5047 = vperm.xlu0 %5046, %v4566
        %v5048 = vpop.permute.xlu0 %5047
        %5049 = vset.pattern.permute.xlu0 4
        %5050 = vperm.xlu0 %5049, %v4567
        %v5051 = vpop.permute.xlu0 %5050
        %5052 = vset.pattern.permute.xlu0 4
        %5053 = vperm.xlu0 %5052, %v4568
        %v5054 = vpop.permute.xlu0 %5053
        %5055 = vset.pattern.permute.xlu0 4
        %5056 = vperm.xlu0 %5055, %v4569
        %v5057 = vpop.permute.xlu0 %5056
        %5058 = vset.pattern.permute.xlu0 4
        %5059 = vperm.xlu0 %5058, %v4570
        %v5060 = vpop.permute.xlu0 %5059
        %5061 = vset.pattern.permute.xlu0 4
        %5062 = vperm.xlu0 %5061, %v4571
        %v5063 = vpop.permute.xlu0 %5062
        %5064 = vset.pattern.permute.xlu0 4
        %5065 = vperm.xlu0 %5064, %v4572
        %v5066 = vpop.permute.xlu0 %5065
        %5067 = vset.pattern.permute.xlu0 4
        %5068 = vperm.xlu0 %5067, %v4573
        %v5069 = vpop.permute.xlu0 %5068
        %5070 = vset.pattern.permute.xlu0 4
        %5071 = vperm.xlu0 %5070, %v4574
        %v5072 = vpop.permute.xlu0 %5071
        %5073 = vset.pattern.permute.xlu0 4
        %5074 = vperm.xlu0 %5073, %v4575
        %v5075 = vpop.permute.xlu0 %5074
        %5076 = vset.pattern.permute.xlu0 4
        %5077 = vperm.xlu0 %5076, %v4576
        %v5078 = vpop.permute.xlu0 %5077
        %5079 = vset.pattern.permute.xlu0 4
        %5080 = vperm.xlu0 %5079, %v4577
        %v5081 = vpop.permute.xlu0 %5080
        %5082 = vset.pattern.permute.xlu0 4
        %5083 = vperm.xlu0 %5082, %v4578
        %v5084 = vpop.permute.xlu0 %5083
        %5085 = vset.pattern.permute.xlu0 4
        %5086 = vperm.xlu0 %5085, %v4579
        %v5087 = vpop.permute.xlu0 %5086
        %5088 = vset.pattern.permute.xlu0 4
        %5089 = vperm.xlu0 %5088, %v4580
        %v5090 = vpop.permute.xlu0 %5089
        %5091 = vset.pattern.permute.xlu0 4
        %5092 = vperm.xlu0 %5091, %v4581
        %v5093 = vpop.permute.xlu0 %5092
        %v5094 = vlaneseq
        %v5095 = vand.u32 %v5094, 127
        %v5096 = vlaneseq
        %v5097 = vshrl.u32 %v5096, 7
        %v5098 = vsub.s32 %v5095, %v5097
        %v5099 = vrot.slane %v4712, %v5098
        %v5100 = vadd.s32 %v5095, 4294967288
        %v5101 = vlaneseq
        %v5102 = vshrl.u32 %v5101, 7
        %v5103 = vsub.s32 %v5100, %v5102
        %v5104 = vrot.slane %v4715, %v5103
        %vm5105 = vcmask 130112
        %v5106 = vsel %vm5105, %v5104, %v5099
        %v5107 = vadd.s32 %v5095, 4294967280
        %v5108 = vlaneseq
        %v5109 = vshrl.u32 %v5108, 7
        %v5110 = vsub.s32 %v5107, %v5109
        %v5111 = vrot.slane %v4718, %v5110
        %vm5112 = vcmask 195712
        %v5113 = vsel %vm5112, %v5111, %v5106
        %v5114 = vadd.s32 %v5095, 4294967272
        %v5115 = vlaneseq
        %v5116 = vshrl.u32 %v5115, 7
        %v5117 = vsub.s32 %v5114, %v5116
        %v5118 = vrot.slane %v4721, %v5117
        %vm5119 = vcmask 261312
        %v5120 = vsel %vm5119, %v5118, %v5113
        %v5121 = vadd.s32 %v5095, 4294967264
        %v5122 = vlaneseq
        %v5123 = vshrl.u32 %v5122, 7
        %v5124 = vsub.s32 %v5121, %v5123
        %v5125 = vrot.slane %v4724, %v5124
        %vm5126 = vcmask 326912
        %v5127 = vsel %vm5126, %v5125, %v5120
        %v5128 = vadd.s32 %v5095, 4294967256
        %v5129 = vlaneseq
        %v5130 = vshrl.u32 %v5129, 7
        %v5131 = vsub.s32 %v5128, %v5130
        %v5132 = vrot.slane %v4727, %v5131
        %vm5133 = vcmask 392512
        %v5134 = vsel %vm5133, %v5132, %v5127
        %v5135 = vadd.s32 %v5095, 4294967248
        %v5136 = vlaneseq
        %v5137 = vshrl.u32 %v5136, 7
        %v5138 = vsub.s32 %v5135, %v5137
        %v5139 = vrot.slane %v4730, %v5138
        %vm5140 = vcmask 458112
        %v5141 = vsel %vm5140, %v5139, %v5134
        %v5142 = vadd.s32 %v5095, 4294967240
        %v5143 = vlaneseq
        %v5144 = vshrl.u32 %v5143, 7
        %v5145 = vsub.s32 %v5142, %v5144
        %v5146 = vrot.slane %v4733, %v5145
        %vm5147 = vcmask 523712
        %v5148 = vsel %vm5147, %v5146, %v5141
        %v5149 = vadd.s32 %v5095, 4294967232
        %v5150 = vlaneseq
        %v5151 = vshrl.u32 %v5150, 7
        %v5152 = vsub.s32 %v5149, %v5151
        %v5153 = vrot.slane %v4736, %v5152
        %vm5154 = vcmask 589312
        %v5155 = vsel %vm5154, %v5153, %v5148
        %v5156 = vadd.s32 %v5095, 4294967224
        %v5157 = vlaneseq
        %v5158 = vshrl.u32 %v5157, 7
        %v5159 = vsub.s32 %v5156, %v5158
        %v5160 = vrot.slane %v4739, %v5159
        %vm5161 = vcmask 654912
        %v5162 = vsel %vm5161, %v5160, %v5155
        %v5163 = vadd.s32 %v5095, 4294967216
        %v5164 = vlaneseq
        %v5165 = vshrl.u32 %v5164, 7
        %v5166 = vsub.s32 %v5163, %v5165
        %v5167 = vrot.slane %v4742, %v5166
        %vm5168 = vcmask 720512
        %v5169 = vsel %vm5168, %v5167, %v5162
        %v5170 = vadd.s32 %v5095, 4294967208
        %v5171 = vlaneseq
        %v5172 = vshrl.u32 %v5171, 7
        %v5173 = vsub.s32 %v5170, %v5172
        %v5174 = vrot.slane %v4745, %v5173
        %vm5175 = vcmask 786112
        %v5176 = vsel %vm5175, %v5174, %v5169
        %v5177 = vadd.s32 %v5095, 4294967200
        %v5178 = vlaneseq
        %v5179 = vshrl.u32 %v5178, 7
        %v5180 = vsub.s32 %v5177, %v5179
        %v5181 = vrot.slane %v4748, %v5180
        %vm5182 = vcmask 851712
        %v5183 = vsel %vm5182, %v5181, %v5176
        %v5184 = vadd.s32 %v5095, 4294967192
        %v5185 = vlaneseq
        %v5186 = vshrl.u32 %v5185, 7
        %v5187 = vsub.s32 %v5184, %v5186
        %v5188 = vrot.slane %v4751, %v5187
        %vm5189 = vcmask 917312
        %v5190 = vsel %vm5189, %v5188, %v5183
        %v5191 = vadd.s32 %v5095, 4294967184
        %v5192 = vlaneseq
        %v5193 = vshrl.u32 %v5192, 7
        %v5194 = vsub.s32 %v5191, %v5193
        %v5195 = vrot.slane %v4754, %v5194
        %vm5196 = vcmask 982912
        %v5197 = vsel %vm5196, %v5195, %v5190
        %v5198 = vadd.s32 %v5095, 4294967176
        %v5199 = vlaneseq
        %v5200 = vshrl.u32 %v5199, 7
        %v5201 = vsub.s32 %v5198, %v5200
        %v5202 = vrot.slane %v4757, %v5201
        %vm5203 = vcmask 1048512
        %v5204 = vsel %vm5203, %v5202, %v5197
        %v5205 = vlaneseq
        %v5206 = vshrl.u32 %v5205, 7
        %v5207 = vsub.s32 %v5095, %v5206
        %v5208 = vrot.slane %v4760, %v5207
        %v5209 = vlaneseq
        %v5210 = vshrl.u32 %v5209, 7
        %v5211 = vsub.s32 %v5100, %v5210
        %v5212 = vrot.slane %v4763, %v5211
        %v5213 = vsel %vm5105, %v5212, %v5208
        %v5214 = vlaneseq
        %v5215 = vshrl.u32 %v5214, 7
        %v5216 = vsub.s32 %v5107, %v5215
        %v5217 = vrot.slane %v4766, %v5216
        %v5218 = vsel %vm5112, %v5217, %v5213
        %v5219 = vlaneseq
        %v5220 = vshrl.u32 %v5219, 7
        %v5221 = vsub.s32 %v5114, %v5220
        %v5222 = vrot.slane %v4769, %v5221
        %v5223 = vsel %vm5119, %v5222, %v5218
        %v5224 = vlaneseq
        %v5225 = vshrl.u32 %v5224, 7
        %v5226 = vsub.s32 %v5121, %v5225
        %v5227 = vrot.slane %v4772, %v5226
        %v5228 = vsel %vm5126, %v5227, %v5223
        %v5229 = vlaneseq
        %v5230 = vshrl.u32 %v5229, 7
        %v5231 = vsub.s32 %v5128, %v5230
        %v5232 = vrot.slane %v4775, %v5231
        %v5233 = vsel %vm5133, %v5232, %v5228
        %v5234 = vlaneseq
        %v5235 = vshrl.u32 %v5234, 7
        %v5236 = vsub.s32 %v5135, %v5235
        %v5237 = vrot.slane %v4778, %v5236
        %v5238 = vsel %vm5140, %v5237, %v5233
        %v5239 = vlaneseq
        %v5240 = vshrl.u32 %v5239, 7
        %v5241 = vsub.s32 %v5142, %v5240
        %v5242 = vrot.slane %v4781, %v5241
        %v5243 = vsel %vm5147, %v5242, %v5238
        %v5244 = vlaneseq
        %v5245 = vshrl.u32 %v5244, 7
        %v5246 = vsub.s32 %v5149, %v5245
        %v5247 = vrot.slane %v4784, %v5246
        %v5248 = vsel %vm5154, %v5247, %v5243
        %v5249 = vlaneseq
        %v5250 = vshrl.u32 %v5249, 7
        %v5251 = vsub.s32 %v5156, %v5250
        %v5252 = vrot.slane %v4787, %v5251
        %v5253 = vsel %vm5161, %v5252, %v5248
        %v5254 = vlaneseq
        %v5255 = vshrl.u32 %v5254, 7
        %v5256 = vsub.s32 %v5163, %v5255
        %v5257 = vrot.slane %v4790, %v5256
        %v5258 = vsel %vm5168, %v5257, %v5253
        %v5259 = vlaneseq
        %v5260 = vshrl.u32 %v5259, 7
        %v5261 = vsub.s32 %v5170, %v5260
        %v5262 = vrot.slane %v4793, %v5261
        %v5263 = vsel %vm5175, %v5262, %v5258
        %v5264 = vlaneseq
        %v5265 = vshrl.u32 %v5264, 7
        %v5266 = vsub.s32 %v5177, %v5265
        %v5267 = vrot.slane %v4796, %v5266
        %v5268 = vsel %vm5182, %v5267, %v5263
        %v5269 = vlaneseq
        %v5270 = vshrl.u32 %v5269, 7
        %v5271 = vsub.s32 %v5184, %v5270
        %v5272 = vrot.slane %v4799, %v5271
        %v5273 = vsel %vm5189, %v5272, %v5268
        %v5274 = vlaneseq
        %v5275 = vshrl.u32 %v5274, 7
        %v5276 = vsub.s32 %v5191, %v5275
        %v5277 = vrot.slane %v4802, %v5276
        %v5278 = vsel %vm5196, %v5277, %v5273
        %v5279 = vlaneseq
        %v5280 = vshrl.u32 %v5279, 7
        %v5281 = vsub.s32 %v5198, %v5280
        %v5282 = vrot.slane %v4805, %v5281
        %v5283 = vsel %vm5203, %v5282, %v5278
        %v5284 = vlaneseq
        %v5285 = vshrl.u32 %v5284, 7
        %v5286 = vsub.s32 %v5095, %v5285
        %v5287 = vrot.slane %v4808, %v5286
        %v5288 = vlaneseq
        %v5289 = vshrl.u32 %v5288, 7
        %v5290 = vsub.s32 %v5100, %v5289
        %v5291 = vrot.slane %v4811, %v5290
        %v5292 = vsel %vm5105, %v5291, %v5287
        %v5293 = vlaneseq
        %v5294 = vshrl.u32 %v5293, 7
        %v5295 = vsub.s32 %v5107, %v5294
        %v5296 = vrot.slane %v4814, %v5295
        %v5297 = vsel %vm5112, %v5296, %v5292
        %v5298 = vlaneseq
        %v5299 = vshrl.u32 %v5298, 7
        %v5300 = vsub.s32 %v5114, %v5299
        %v5301 = vrot.slane %v4817, %v5300
        %v5302 = vsel %vm5119, %v5301, %v5297
        %v5303 = vlaneseq
        %v5304 = vshrl.u32 %v5303, 7
        %v5305 = vsub.s32 %v5121, %v5304
        %v5306 = vrot.slane %v4820, %v5305
        %v5307 = vsel %vm5126, %v5306, %v5302
        %v5308 = vlaneseq
        %v5309 = vshrl.u32 %v5308, 7
        %v5310 = vsub.s32 %v5128, %v5309
        %v5311 = vrot.slane %v4823, %v5310
        %v5312 = vsel %vm5133, %v5311, %v5307
        %v5313 = vlaneseq
        %v5314 = vshrl.u32 %v5313, 7
        %v5315 = vsub.s32 %v5135, %v5314
        %v5316 = vrot.slane %v4826, %v5315
        %v5317 = vsel %vm5140, %v5316, %v5312
        %v5318 = vlaneseq
        %v5319 = vshrl.u32 %v5318, 7
        %v5320 = vsub.s32 %v5142, %v5319
        %v5321 = vrot.slane %v4829, %v5320
        %v5322 = vsel %vm5147, %v5321, %v5317
        %v5323 = vlaneseq
        %v5324 = vshrl.u32 %v5323, 7
        %v5325 = vsub.s32 %v5149, %v5324
        %v5326 = vrot.slane %v4832, %v5325
        %v5327 = vsel %vm5154, %v5326, %v5322
        %v5328 = vlaneseq
        %v5329 = vshrl.u32 %v5328, 7
        %v5330 = vsub.s32 %v5156, %v5329
        %v5331 = vrot.slane %v4835, %v5330
        %v5332 = vsel %vm5161, %v5331, %v5327
        %v5333 = vlaneseq
        %v5334 = vshrl.u32 %v5333, 7
        %v5335 = vsub.s32 %v5163, %v5334
        %v5336 = vrot.slane %v4838, %v5335
        %v5337 = vsel %vm5168, %v5336, %v5332
        %v5338 = vlaneseq
        %v5339 = vshrl.u32 %v5338, 7
        %v5340 = vsub.s32 %v5170, %v5339
        %v5341 = vrot.slane %v4841, %v5340
        %v5342 = vsel %vm5175, %v5341, %v5337
        %v5343 = vlaneseq
        %v5344 = vshrl.u32 %v5343, 7
        %v5345 = vsub.s32 %v5177, %v5344
        %v5346 = vrot.slane %v4844, %v5345
        %v5347 = vsel %vm5182, %v5346, %v5342
        %v5348 = vlaneseq
        %v5349 = vshrl.u32 %v5348, 7
        %v5350 = vsub.s32 %v5184, %v5349
        %v5351 = vrot.slane %v4847, %v5350
        %v5352 = vsel %vm5189, %v5351, %v5347
        %v5353 = vlaneseq
        %v5354 = vshrl.u32 %v5353, 7
        %v5355 = vsub.s32 %v5191, %v5354
        %v5356 = vrot.slane %v4850, %v5355
        %v5357 = vsel %vm5196, %v5356, %v5352
        %v5358 = vlaneseq
        %v5359 = vshrl.u32 %v5358, 7
        %v5360 = vsub.s32 %v5198, %v5359
        %v5361 = vrot.slane %v4853, %v5360
        %v5362 = vsel %vm5203, %v5361, %v5357
        %v5363 = vlaneseq
        %v5364 = vshrl.u32 %v5363, 7
        %v5365 = vsub.s32 %v5095, %v5364
        %v5366 = vrot.slane %v4856, %v5365
        %v5367 = vlaneseq
        %v5368 = vshrl.u32 %v5367, 7
        %v5369 = vsub.s32 %v5100, %v5368
        %v5370 = vrot.slane %v4859, %v5369
        %v5371 = vsel %vm5105, %v5370, %v5366
        %v5372 = vlaneseq
        %v5373 = vshrl.u32 %v5372, 7
        %v5374 = vsub.s32 %v5107, %v5373
        %v5375 = vrot.slane %v4862, %v5374
        %v5376 = vsel %vm5112, %v5375, %v5371
        %v5377 = vlaneseq
        %v5378 = vshrl.u32 %v5377, 7
        %v5379 = vsub.s32 %v5114, %v5378
        %v5380 = vrot.slane %v4865, %v5379
        %v5381 = vsel %vm5119, %v5380, %v5376
        %v5382 = vlaneseq
        %v5383 = vshrl.u32 %v5382, 7
        %v5384 = vsub.s32 %v5121, %v5383
        %v5385 = vrot.slane %v4868, %v5384
        %v5386 = vsel %vm5126, %v5385, %v5381
        %v5387 = vlaneseq
        %v5388 = vshrl.u32 %v5387, 7
        %v5389 = vsub.s32 %v5128, %v5388
        %v5390 = vrot.slane %v4871, %v5389
        %v5391 = vsel %vm5133, %v5390, %v5386
        %v5392 = vlaneseq
        %v5393 = vshrl.u32 %v5392, 7
        %v5394 = vsub.s32 %v5135, %v5393
        %v5395 = vrot.slane %v4874, %v5394
        %v5396 = vsel %vm5140, %v5395, %v5391
        %v5397 = vlaneseq
        %v5398 = vshrl.u32 %v5397, 7
        %v5399 = vsub.s32 %v5142, %v5398
        %v5400 = vrot.slane %v4877, %v5399
        %v5401 = vsel %vm5147, %v5400, %v5396
        %v5402 = vlaneseq
        %v5403 = vshrl.u32 %v5402, 7
        %v5404 = vsub.s32 %v5149, %v5403
        %v5405 = vrot.slane %v4880, %v5404
        %v5406 = vsel %vm5154, %v5405, %v5401
        %v5407 = vlaneseq
        %v5408 = vshrl.u32 %v5407, 7
        %v5409 = vsub.s32 %v5156, %v5408
        %v5410 = vrot.slane %v4883, %v5409
        %v5411 = vsel %vm5161, %v5410, %v5406
        %v5412 = vlaneseq
        %v5413 = vshrl.u32 %v5412, 7
        %v5414 = vsub.s32 %v5163, %v5413
        %v5415 = vrot.slane %v4886, %v5414
        %v5416 = vsel %vm5168, %v5415, %v5411
        %v5417 = vlaneseq
        %v5418 = vshrl.u32 %v5417, 7
        %v5419 = vsub.s32 %v5170, %v5418
        %v5420 = vrot.slane %v4889, %v5419
        %v5421 = vsel %vm5175, %v5420, %v5416
        %v5422 = vlaneseq
        %v5423 = vshrl.u32 %v5422, 7
        %v5424 = vsub.s32 %v5177, %v5423
        %v5425 = vrot.slane %v4892, %v5424
        %v5426 = vsel %vm5182, %v5425, %v5421
        %v5427 = vlaneseq
        %v5428 = vshrl.u32 %v5427, 7
        %v5429 = vsub.s32 %v5184, %v5428
        %v5430 = vrot.slane %v4895, %v5429
        %v5431 = vsel %vm5189, %v5430, %v5426
        %v5432 = vlaneseq
        %v5433 = vshrl.u32 %v5432, 7
        %v5434 = vsub.s32 %v5191, %v5433
        %v5435 = vrot.slane %v4898, %v5434
        %v5436 = vsel %vm5196, %v5435, %v5431
        %v5437 = vlaneseq
        %v5438 = vshrl.u32 %v5437, 7
        %v5439 = vsub.s32 %v5198, %v5438
        %v5440 = vrot.slane %v4901, %v5439
        %v5441 = vsel %vm5203, %v5440, %v5436
        %v5442 = vlaneseq
        %v5443 = vshrl.u32 %v5442, 7
        %v5444 = vsub.s32 %v5095, %v5443
        %v5445 = vrot.slane %v4904, %v5444
        %v5446 = vlaneseq
        %v5447 = vshrl.u32 %v5446, 7
        %v5448 = vsub.s32 %v5100, %v5447
        %v5449 = vrot.slane %v4907, %v5448
        %v5450 = vsel %vm5105, %v5449, %v5445
        %v5451 = vlaneseq
        %v5452 = vshrl.u32 %v5451, 7
        %v5453 = vsub.s32 %v5107, %v5452
        %v5454 = vrot.slane %v4910, %v5453
        %v5455 = vsel %vm5112, %v5454, %v5450
        %v5456 = vlaneseq
        %v5457 = vshrl.u32 %v5456, 7
        %v5458 = vsub.s32 %v5114, %v5457
        %v5459 = vrot.slane %v4913, %v5458
        %v5460 = vsel %vm5119, %v5459, %v5455
        %v5461 = vlaneseq
        %v5462 = vshrl.u32 %v5461, 7
        %v5463 = vsub.s32 %v5121, %v5462
        %v5464 = vrot.slane %v4916, %v5463
        %v5465 = vsel %vm5126, %v5464, %v5460
        %v5466 = vlaneseq
        %v5467 = vshrl.u32 %v5466, 7
        %v5468 = vsub.s32 %v5128, %v5467
        %v5469 = vrot.slane %v4919, %v5468
        %v5470 = vsel %vm5133, %v5469, %v5465
        %v5471 = vlaneseq
        %v5472 = vshrl.u32 %v5471, 7
        %v5473 = vsub.s32 %v5135, %v5472
        %v5474 = vrot.slane %v4922, %v5473
        %v5475 = vsel %vm5140, %v5474, %v5470
        %v5476 = vlaneseq
        %v5477 = vshrl.u32 %v5476, 7
        %v5478 = vsub.s32 %v5142, %v5477
        %v5479 = vrot.slane %v4925, %v5478
        %v5480 = vsel %vm5147, %v5479, %v5475
        %v5481 = vlaneseq
        %v5482 = vshrl.u32 %v5481, 7
        %v5483 = vsub.s32 %v5149, %v5482
        %v5484 = vrot.slane %v4928, %v5483
        %v5485 = vsel %vm5154, %v5484, %v5480
        %v5486 = vlaneseq
        %v5487 = vshrl.u32 %v5486, 7
        %v5488 = vsub.s32 %v5156, %v5487
        %v5489 = vrot.slane %v4931, %v5488
        %v5490 = vsel %vm5161, %v5489, %v5485
        %v5491 = vlaneseq
        %v5492 = vshrl.u32 %v5491, 7
        %v5493 = vsub.s32 %v5163, %v5492
        %v5494 = vrot.slane %v4934, %v5493
        %v5495 = vsel %vm5168, %v5494, %v5490
        %v5496 = vlaneseq
        %v5497 = vshrl.u32 %v5496, 7
        %v5498 = vsub.s32 %v5170, %v5497
        %v5499 = vrot.slane %v4937, %v5498
        %v5500 = vsel %vm5175, %v5499, %v5495
        %v5501 = vlaneseq
        %v5502 = vshrl.u32 %v5501, 7
        %v5503 = vsub.s32 %v5177, %v5502
        %v5504 = vrot.slane %v4940, %v5503
        %v5505 = vsel %vm5182, %v5504, %v5500
        %v5506 = vlaneseq
        %v5507 = vshrl.u32 %v5506, 7
        %v5508 = vsub.s32 %v5184, %v5507
        %v5509 = vrot.slane %v4943, %v5508
        %v5510 = vsel %vm5189, %v5509, %v5505
        %v5511 = vlaneseq
        %v5512 = vshrl.u32 %v5511, 7
        %v5513 = vsub.s32 %v5191, %v5512
        %v5514 = vrot.slane %v4946, %v5513
        %v5515 = vsel %vm5196, %v5514, %v5510
        %v5516 = vlaneseq
        %v5517 = vshrl.u32 %v5516, 7
        %v5518 = vsub.s32 %v5198, %v5517
        %v5519 = vrot.slane %v4949, %v5518
        %v5520 = vsel %vm5203, %v5519, %v5515
        %v5521 = vlaneseq
        %v5522 = vshrl.u32 %v5521, 7
        %v5523 = vsub.s32 %v5095, %v5522
        %v5524 = vrot.slane %v4952, %v5523
        %v5525 = vlaneseq
        %v5526 = vshrl.u32 %v5525, 7
        %v5527 = vsub.s32 %v5100, %v5526
        %v5528 = vrot.slane %v4955, %v5527
        %v5529 = vsel %vm5105, %v5528, %v5524
        %v5530 = vlaneseq
        %v5531 = vshrl.u32 %v5530, 7
        %v5532 = vsub.s32 %v5107, %v5531
        %v5533 = vrot.slane %v4958, %v5532
        %v5534 = vsel %vm5112, %v5533, %v5529
        %v5535 = vlaneseq
        %v5536 = vshrl.u32 %v5535, 7
        %v5537 = vsub.s32 %v5114, %v5536
        %v5538 = vrot.slane %v4961, %v5537
        %v5539 = vsel %vm5119, %v5538, %v5534
        %v5540 = vlaneseq
        %v5541 = vshrl.u32 %v5540, 7
        %v5542 = vsub.s32 %v5121, %v5541
        %v5543 = vrot.slane %v4964, %v5542
        %v5544 = vsel %vm5126, %v5543, %v5539
        %v5545 = vlaneseq
        %v5546 = vshrl.u32 %v5545, 7
        %v5547 = vsub.s32 %v5128, %v5546
        %v5548 = vrot.slane %v4967, %v5547
        %v5549 = vsel %vm5133, %v5548, %v5544
        %v5550 = vlaneseq
        %v5551 = vshrl.u32 %v5550, 7
        %v5552 = vsub.s32 %v5135, %v5551
        %v5553 = vrot.slane %v4970, %v5552
        %v5554 = vsel %vm5140, %v5553, %v5549
        %v5555 = vlaneseq
        %v5556 = vshrl.u32 %v5555, 7
        %v5557 = vsub.s32 %v5142, %v5556
        %v5558 = vrot.slane %v4973, %v5557
        %v5559 = vsel %vm5147, %v5558, %v5554
        %v5560 = vlaneseq
        %v5561 = vshrl.u32 %v5560, 7
        %v5562 = vsub.s32 %v5149, %v5561
        %v5563 = vrot.slane %v4976, %v5562
        %v5564 = vsel %vm5154, %v5563, %v5559
        %v5565 = vlaneseq
        %v5566 = vshrl.u32 %v5565, 7
        %v5567 = vsub.s32 %v5156, %v5566
        %v5568 = vrot.slane %v4979, %v5567
        %v5569 = vsel %vm5161, %v5568, %v5564
        %v5570 = vlaneseq
        %v5571 = vshrl.u32 %v5570, 7
        %v5572 = vsub.s32 %v5163, %v5571
        %v5573 = vrot.slane %v4982, %v5572
        %v5574 = vsel %vm5168, %v5573, %v5569
        %v5575 = vlaneseq
        %v5576 = vshrl.u32 %v5575, 7
        %v5577 = vsub.s32 %v5170, %v5576
        %v5578 = vrot.slane %v4985, %v5577
        %v5579 = vsel %vm5175, %v5578, %v5574
        %v5580 = vlaneseq
        %v5581 = vshrl.u32 %v5580, 7
        %v5582 = vsub.s32 %v5177, %v5581
        %v5583 = vrot.slane %v4988, %v5582
        %v5584 = vsel %vm5182, %v5583, %v5579
        %v5585 = vlaneseq
        %v5586 = vshrl.u32 %v5585, 7
        %v5587 = vsub.s32 %v5184, %v5586
        %v5588 = vrot.slane %v4991, %v5587
        %v5589 = vsel %vm5189, %v5588, %v5584
        %v5590 = vlaneseq
        %v5591 = vshrl.u32 %v5590, 7
        %v5592 = vsub.s32 %v5191, %v5591
        %v5593 = vrot.slane %v4994, %v5592
        %v5594 = vsel %vm5196, %v5593, %v5589
        %v5595 = vlaneseq
        %v5596 = vshrl.u32 %v5595, 7
        %v5597 = vsub.s32 %v5198, %v5596
        %v5598 = vrot.slane %v4997, %v5597
        %v5599 = vsel %vm5203, %v5598, %v5594
        %v5600 = vlaneseq
        %v5601 = vshrl.u32 %v5600, 7
        %v5602 = vsub.s32 %v5095, %v5601
        %v5603 = vrot.slane %v5000, %v5602
        %v5604 = vlaneseq
        %v5605 = vshrl.u32 %v5604, 7
        %v5606 = vsub.s32 %v5100, %v5605
        %v5607 = vrot.slane %v5003, %v5606
        %v5608 = vsel %vm5105, %v5607, %v5603
        %v5609 = vlaneseq
        %v5610 = vshrl.u32 %v5609, 7
        %v5611 = vsub.s32 %v5107, %v5610
        %v5612 = vrot.slane %v5006, %v5611
        %v5613 = vsel %vm5112, %v5612, %v5608
        %v5614 = vlaneseq
        %v5615 = vshrl.u32 %v5614, 7
        %v5616 = vsub.s32 %v5114, %v5615
        %v5617 = vrot.slane %v5009, %v5616
        %v5618 = vsel %vm5119, %v5617, %v5613
        %v5619 = vlaneseq
        %v5620 = vshrl.u32 %v5619, 7
        %v5621 = vsub.s32 %v5121, %v5620
        %v5622 = vrot.slane %v5012, %v5621
        %v5623 = vsel %vm5126, %v5622, %v5618
        %v5624 = vlaneseq
        %v5625 = vshrl.u32 %v5624, 7
        %v5626 = vsub.s32 %v5128, %v5625
        %v5627 = vrot.slane %v5015, %v5626
        %v5628 = vsel %vm5133, %v5627, %v5623
        %v5629 = vlaneseq
        %v5630 = vshrl.u32 %v5629, 7
        %v5631 = vsub.s32 %v5135, %v5630
        %v5632 = vrot.slane %v5018, %v5631
        %v5633 = vsel %vm5140, %v5632, %v5628
        %v5634 = vlaneseq
        %v5635 = vshrl.u32 %v5634, 7
        %v5636 = vsub.s32 %v5142, %v5635
        %v5637 = vrot.slane %v5021, %v5636
        %v5638 = vsel %vm5147, %v5637, %v5633
        %v5639 = vlaneseq
        %v5640 = vshrl.u32 %v5639, 7
        %v5641 = vsub.s32 %v5149, %v5640
        %v5642 = vrot.slane %v5024, %v5641
        %v5643 = vsel %vm5154, %v5642, %v5638
        %v5644 = vlaneseq
        %v5645 = vshrl.u32 %v5644, 7
        %v5646 = vsub.s32 %v5156, %v5645
        %v5647 = vrot.slane %v5027, %v5646
        %v5648 = vsel %vm5161, %v5647, %v5643
        %v5649 = vlaneseq
        %v5650 = vshrl.u32 %v5649, 7
        %v5651 = vsub.s32 %v5163, %v5650
        %v5652 = vrot.slane %v5030, %v5651
        %v5653 = vsel %vm5168, %v5652, %v5648
        %v5654 = vlaneseq
        %v5655 = vshrl.u32 %v5654, 7
        %v5656 = vsub.s32 %v5170, %v5655
        %v5657 = vrot.slane %v5033, %v5656
        %v5658 = vsel %vm5175, %v5657, %v5653
        %v5659 = vlaneseq
        %v5660 = vshrl.u32 %v5659, 7
        %v5661 = vsub.s32 %v5177, %v5660
        %v5662 = vrot.slane %v5036, %v5661
        %v5663 = vsel %vm5182, %v5662, %v5658
        %v5664 = vlaneseq
        %v5665 = vshrl.u32 %v5664, 7
        %v5666 = vsub.s32 %v5184, %v5665
        %v5667 = vrot.slane %v5039, %v5666
        %v5668 = vsel %vm5189, %v5667, %v5663
        %v5669 = vlaneseq
        %v5670 = vshrl.u32 %v5669, 7
        %v5671 = vsub.s32 %v5191, %v5670
        %v5672 = vrot.slane %v5042, %v5671
        %v5673 = vsel %vm5196, %v5672, %v5668
        %v5674 = vlaneseq
        %v5675 = vshrl.u32 %v5674, 7
        %v5676 = vsub.s32 %v5198, %v5675
        %v5677 = vrot.slane %v5045, %v5676
        %v5678 = vsel %vm5203, %v5677, %v5673
        %v5679 = vlaneseq
        %v5680 = vshrl.u32 %v5679, 7
        %v5681 = vsub.s32 %v5095, %v5680
        %v5682 = vrot.slane %v5048, %v5681
        %v5683 = vlaneseq
        %v5684 = vshrl.u32 %v5683, 7
        %v5685 = vsub.s32 %v5100, %v5684
        %v5686 = vrot.slane %v5051, %v5685
        %v5687 = vsel %vm5105, %v5686, %v5682
        %v5688 = vlaneseq
        %v5689 = vshrl.u32 %v5688, 7
        %v5690 = vsub.s32 %v5107, %v5689
        %v5691 = vrot.slane %v5054, %v5690
        %v5692 = vsel %vm5112, %v5691, %v5687
        %v5693 = vlaneseq
        %v5694 = vshrl.u32 %v5693, 7
        %v5695 = vsub.s32 %v5114, %v5694
        %v5696 = vrot.slane %v5057, %v5695
        %v5697 = vsel %vm5119, %v5696, %v5692
        %v5698 = vlaneseq
        %v5699 = vshrl.u32 %v5698, 7
        %v5700 = vsub.s32 %v5121, %v5699
        %v5701 = vrot.slane %v5060, %v5700
        %v5702 = vsel %vm5126, %v5701, %v5697
        %v5703 = vlaneseq
        %v5704 = vshrl.u32 %v5703, 7
        %v5705 = vsub.s32 %v5128, %v5704
        %v5706 = vrot.slane %v5063, %v5705
        %v5707 = vsel %vm5133, %v5706, %v5702
        %v5708 = vlaneseq
        %v5709 = vshrl.u32 %v5708, 7
        %v5710 = vsub.s32 %v5135, %v5709
        %v5711 = vrot.slane %v5066, %v5710
        %v5712 = vsel %vm5140, %v5711, %v5707
        %v5713 = vlaneseq
        %v5714 = vshrl.u32 %v5713, 7
        %v5715 = vsub.s32 %v5142, %v5714
        %v5716 = vrot.slane %v5069, %v5715
        %v5717 = vsel %vm5147, %v5716, %v5712
        %v5718 = vlaneseq
        %v5719 = vshrl.u32 %v5718, 7
        %v5720 = vsub.s32 %v5149, %v5719
        %v5721 = vrot.slane %v5072, %v5720
        %v5722 = vsel %vm5154, %v5721, %v5717
        %v5723 = vlaneseq
        %v5724 = vshrl.u32 %v5723, 7
        %v5725 = vsub.s32 %v5156, %v5724
        %v5726 = vrot.slane %v5075, %v5725
        %v5727 = vsel %vm5161, %v5726, %v5722
        %v5728 = vlaneseq
        %v5729 = vshrl.u32 %v5728, 7
        %v5730 = vsub.s32 %v5163, %v5729
        %v5731 = vrot.slane %v5078, %v5730
        %v5732 = vsel %vm5168, %v5731, %v5727
        %v5733 = vlaneseq
        %v5734 = vshrl.u32 %v5733, 7
        %v5735 = vsub.s32 %v5170, %v5734
        %v5736 = vrot.slane %v5081, %v5735
        %v5737 = vsel %vm5175, %v5736, %v5732
        %v5738 = vlaneseq
        %v5739 = vshrl.u32 %v5738, 7
        %v5740 = vsub.s32 %v5177, %v5739
        %v5741 = vrot.slane %v5084, %v5740
        %v5742 = vsel %vm5182, %v5741, %v5737
        %v5743 = vlaneseq
        %v5744 = vshrl.u32 %v5743, 7
        %v5745 = vsub.s32 %v5184, %v5744
        %v5746 = vrot.slane %v5087, %v5745
        %v5747 = vsel %vm5189, %v5746, %v5742
        %v5748 = vlaneseq
        %v5749 = vshrl.u32 %v5748, 7
        %v5750 = vsub.s32 %v5191, %v5749
        %v5751 = vrot.slane %v5090, %v5750
        %v5752 = vsel %vm5196, %v5751, %v5747
        %v5753 = vlaneseq
        %v5754 = vshrl.u32 %v5753, 7
        %v5755 = vsub.s32 %v5198, %v5754
        %v5756 = vrot.slane %v5093, %v5755
        %v5757 = vsel %vm5203, %v5756, %v5752
        %vm5758 = vcmask 1041409
        %v5759 = vsel %vm5758, %v5283, %v5204
        %vm5760 = vcmask 1042434
        %v5761 = vsel %vm5760, %v5362, %v5759
        %vm5762 = vcmask 1043459
        %v5763 = vsel %vm5762, %v5441, %v5761
        %vm5764 = vcmask 1044484
        %v5765 = vsel %vm5764, %v5520, %v5763
        %vm5766 = vcmask 1045509
        %v5767 = vsel %vm5766, %v5599, %v5765
        %vm5768 = vcmask 1046534
        %v5769 = vsel %vm5768, %v5678, %v5767
        %vm5770 = vcmask 1047559
        %v5771 = vsel %vm5770, %v5757, %v5769
        %5773 = vst [vmem:[%s194] sm:$0xff] %v5771
        %s5774 = sand.u32 %s98, 1
        %s5775 = scalar_lea.sflag [#allocation3], %s5774
        %s5776 = sand.u32 %s98, 1
        %s5777 = smul.addr %s5776, 8
        %s5778 = scalar_lea.vmem [#allocation2], %s5777
        // Predicated region
        $region33: #{tpu_custom_call.1} parent=31 // pred_check
          %p5779 = pneg %p108
        $region34: #{tpu_custom_call.1} parent=31 // pred_check_branch
          %5781 = sbr.rel (%p5779) target = $region36
        $region35: #{tpu_custom_call.1} parent=31 // pred_region
          %s5783 = ssub.s32 128, 128
          %5784 = vsyncadd %s5775, %s5783
          %s5785 = smul.addr %s17, 128
          %s5786 = scalar_lea.hbm %s3, %s5785
          %s5788 = sshll.u32 %s5778, 4
          %s5789 = int_to_ptr.vmem [resolvable:$true] %s5788
          %5791 = dma.vmem_to_hbm [thread:$0]  %s5789, 128, %s5786, %s5775
        $region36: #{tpu_custom_call.1} parent=31 // pred_fallthru
          _
      $region32: #{tpu_custom_call.1} parent=5 // pred_fallthru
        _
      %p5792 = scmp.le.s32.totalorder 2, %s12
      // Predicated region
      $region37: #{tpu_custom_call.1} parent=5 // pred_check
        %p5793 = pneg %p5792
      $region38: #{tpu_custom_call.1} parent=5 // pred_check_branch
        %5795 = sbr.rel (%p5793) target = $region40
      $region39: #{tpu_custom_call.1} parent=5 // pred_region
        %s5796 = ssub.s32 %s12, 2
        // Predicated region
        $region41: #{tpu_custom_call.1} parent=39 // pred_check
          %p5797 = pneg %p114
        $region42: #{tpu_custom_call.1} parent=39 // pred_check_branch
          %5799 = sbr.rel (%p5797) target = $region44
        $region43: #{tpu_custom_call.1} parent=39 // pred_region
          %s5800 = sand.u32 %s99, 1
          %s5801 = scalar_lea.sflag [#allocation3], %s5800
          %s5802 = sand.u32 %s99, 1
          %s5803 = smul.addr %s5802, 8
          %s5804 = scalar_lea.vmem [#allocation2], %s5803
          %5805 = dma.done %s5801, 128
        $region44: #{tpu_custom_call.1} parent=39 // pred_fallthru
          _
      $region40: #{tpu_custom_call.1} parent=5 // pred_fallthru
        _
    $region6: #{tpu_custom_call.1} parent=1 // loop_footer
      %s16 = sadd.s32 1, %s12
    $region7: #{tpu_custom_call.1} parent=1 // loop_footer_branch
      %11 = sbr.rel target = $region3
    $region8: #{tpu_custom_call.1} parent=1 // loop_exit
      _
    %5806 = vsyncpa [#allocation3], 1
    %s5807 = scalar_lea.sflag [#allocation3], 1
    %5808 = vsyncpa %s5807, 1

// kernel: tpu_custom_call.1
$region0: #{tpu_custom_call.1}
  #allocation0 [shape = 'u32[]', space=smem, size = 0x4, offset = 0x4, fixed_abs, tag = 'smem constant byte address 0x4 - core index']
  #allocation1 [shape = 'u32[144,128]{1,0:T(1,128)}', space=vmem, size = 0x12000, scoped, tag = 'internal scratch']
  %s0 = inlined_call_operand.vmem [shape: bf16[2000,160], index: 0, kind: input, shape index: {}]
  %s1 = inlined_call_operand.vmem [shape: f32[2048,1], index: 1, kind: input, shape index: {}]
  %s2 = inlined_call_operand.vmem [shape: bf16[160,5], index: 2, kind: input, shape index: {}]
  %s3 = inlined_call_operand.vmem [shape: f32[2048,1], index: 3, kind: output, shape index: {}]
  %s4 = sld [smem:[#allocation0]]
  $region45: #{tpu_custom_call.1} parent=0
    _
  %s6 = ssub.s32 1, %s4
  %s7 = scalar_select 0, %s6, %s4
  loop: start=0, step=1, limit=4
  $region2: #{tpu_custom_call.1} parent=0 // loop_pre_header
    _
  $region3: #{tpu_custom_call.1} parent=0 // loop_header
    %s9 = sphi 0, %s13
    %p10 = scmp.ge.s32.totalorder %s9, 4
    %s19 = sphi 0, %s21
    %s22 = sphi 0, %s19
    %s23 = sphi 0, %s22
    %s39 = sphi 0, %s23
    %s45 = sphi 0, %s47
    %s48 = sphi 0, %s45
    %s49 = sphi 0, %s48
    %s65 = sphi 0, %s49
    %s69 = sphi 0, %s69
    %s71 = sphi 0, %s69
    %s72 = sphi 0, %s71
    %s86 = sphi 0, %s72
    %s92 = sphi 0, %s94
    %s95 = sphi 0, %s92
    %s96 = sphi 0, %s95
    %s112 = sphi 0, %s96
  $region4: #{tpu_custom_call.1} parent=0 // loop_header_branch
    %12 = sbr.rel (%p10) target = $region8
  $region5: #{tpu_custom_call.1} parent=0 // loop_body
    %s14 = ssub.s32 %s9, 1
    %s15 = ssub.s32 %s9, 2
    %s16 = sadd.s32 %s9, 1
    %s17 = ssub.s32 %s9, %s16
    %p18 = scmp.eq.s32.totalorder %s17, 0
    %s20 = sadd.s32 %s19, 1
    %s21 = scalar_select %p18, %s19, %s20
    %p24 = pneg %p18
    %p25 = scmp.eq.s32.totalorder %s9, 1
    %p26 = por %p24, %p25
    %p27 = scmp.ne.s32.totalorder %s19, %s22
    %p28 = scmp.eq.s32.totalorder %s9, 0
    %p29 = por %p27, %p28
    %p30 = scmp.ne.s32.totalorder %s19, %s22
    %p31 = scmp.eq.s32.totalorder %s14, 1
    %p32 = por %p30, %p31
    %p33 = scmp.ne.s32.totalorder %s22, %s23
    %p34 = scmp.eq.s32.totalorder %s14, 0
    %p35 = por %p33, %p34
    %p36 = scmp.ne.s32.totalorder %s22, %s23
    %p37 = scmp.eq.s32.totalorder %s15, 1
    %p38 = por %p36, %p37
    %p40 = scmp.ne.s32.totalorder %s23, %s39
    %p41 = scmp.eq.s32.totalorder %s15, 0
    %p42 = por %p40, %p41
    %s43 = ssub.s32 %s9, %s16
    %p44 = scmp.eq.s32.totalorder %s43, 0
    %s46 = sadd.s32 %s45, 1
    %s47 = scalar_select %p44, %s45, %s46
    %p50 = pneg %p44
    %p51 = scmp.eq.s32.totalorder %s9, 1
    %p52 = por %p50, %p51
    %p53 = scmp.ne.s32.totalorder %s45, %s48
    %p54 = scmp.eq.s32.totalorder %s9, 0
    %p55 = por %p53, %p54
    %p56 = scmp.ne.s32.totalorder %s45, %s48
    %p57 = scmp.eq.s32.totalorder %s14, 1
    %p58 = por %p56, %p57
    %p59 = scmp.ne.s32.totalorder %s48, %s49
    %p60 = scmp.eq.s32.totalorder %s14, 0
    %p61 = por %p59, %p60
    %p62 = scmp.ne.s32.totalorder %s48, %s49
    %p63 = scmp.eq.s32.totalorder %s15, 1
    %p64 = por %p62, %p63
    %p66 = scmp.ne.s32.totalorder %s49, %s65
    %p67 = scmp.eq.s32.totalorder %s15, 0
    %p68 = por %p66, %p67
    %s70 = sadd.s32 %s69, 1
    %p73 = scmp.eq.s32.totalorder %s9, 1
    %p74 = scmp.ne.s32.totalorder %s69, %s71
    %p75 = scmp.eq.s32.totalorder %s9, 0
    %p76 = por %p74, %p75
    %p77 = scmp.ne.s32.totalorder %s69, %s71
    %p78 = scmp.eq.s32.totalorder %s14, 1
    %p79 = por %p77, %p78
    %p80 = scmp.ne.s32.totalorder %s71, %s72
    %p81 = scmp.eq.s32.totalorder %s14, 0
    %p82 = por %p80, %p81
    %p83 = scmp.ne.s32.totalorder %s71, %s72
    %p84 = scmp.eq.s32.totalorder %s15, 1
    %p85 = por %p83, %p84
    %p87 = scmp.ne.s32.totalorder %s72, %s86
    %p88 = scmp.eq.s32.totalorder %s15, 0
    %p89 = por %p87, %p88
    %s90 = ssub.s32 %s9, %s16
    %p91 = scmp.eq.s32.totalorder %s90, 0
    %s93 = sadd.s32 %s92, 1
    %s94 = scalar_select %p91, %s92, %s93
    %p97 = pneg %p91
    %p98 = scmp.eq.s32.totalorder %s9, 1
    %p99 = por %p97, %p98
    %p100 = scmp.ne.s32.totalorder %s92, %s95
    %p101 = scmp.eq.s32.totalorder %s9, 0
    %p102 = por %p100, %p101
    %p103 = scmp.ne.s32.totalorder %s92, %s95
    %p104 = scmp.eq.s32.totalorder %s14, 1
    %p105 = por %p103, %p104
    %p106 = scmp.ne.s32.totalorder %s95, %s96
    %p107 = scmp.eq.s32.totalorder %s14, 0
    %p108 = por %p106, %p107
    %p109 = scmp.ne.s32.totalorder %s95, %s96
    %p110 = scmp.eq.s32.totalorder %s15, 1
    %p111 = por %p109, %p110
    %p113 = scmp.ne.s32.totalorder %s96, %s112
    %p114 = scmp.eq.s32.totalorder %s15, 0
    %p115 = por %p113, %p114
    %p116 = scmp.le.s32.totalorder 1, %s9
    %p117 = scmp.lt.s32.totalorder %s9, 3
    %p118 = pnand %p116, %p117
    %p119 = pneg %p118
    // Predicated region
    $region9: #{tpu_custom_call.1} parent=5 // pred_check
      _
    $region10: #{tpu_custom_call.1} parent=5 // pred_check_branch
      %121 = sbr.rel (%p118) target = $region12
    $region11: #{tpu_custom_call.1} parent=5 // pred_region
      %s122 = ssub.s32 %s9, 1
      // Predicated region
      $region13: #{tpu_custom_call.1} parent=11 // pred_check
        %p123 = pneg %p82
      $region14: #{tpu_custom_call.1} parent=11 // pred_check_branch
        %125 = sbr.rel (%p123) target = $region16
      $region15: #{tpu_custom_call.1} parent=11 // pred_region
        _
      $region16: #{tpu_custom_call.1} parent=11 // pred_fallthru
        _
    $region12: #{tpu_custom_call.1} parent=5 // pred_fallthru
      _
    %p126 = scmp.lt.s32.totalorder %s9, 2
    // Predicated region
    $region17: #{tpu_custom_call.1} parent=5 // pred_check
      %p127 = pneg %p126
    $region18: #{tpu_custom_call.1} parent=5 // pred_check_branch
      %129 = sbr.rel (%p127) target = $region20
    $region19: #{tpu_custom_call.1} parent=5 // pred_region
      // Predicated region
      $region21: #{tpu_custom_call.1} parent=19 // pred_check
        %p130 = pneg %p29
      $region22: #{tpu_custom_call.1} parent=19 // pred_check_branch
        %132 = sbr.rel (%p130) target = $region24
      $region23: #{tpu_custom_call.1} parent=19 // pred_region
        %s133 = smul.u32 128, %s9
        %s134 = ssub.s32 250, %s133
        %p135 = scmp.lt.s32.totalorder %s134, 128
        %s136 = scalar_select %p135, %s134, 128
        %s137 = smul.u32 64, %s136
        %s138 = smul.u32 %s137, 2
        %p139 = scmp.lt.s32.totalorder %s133, 249
        %s140 = scalar_select %p139, %s133, 249
        %s141 = smul.addr %s140, 2
        %s142 = smul.addr %s141, 4
        %s143 = scalar_lea.vmem %s0, %s142
        %s144 = smul.u32 128, %s9
        %s145 = ssub.s32 250, %s144
        %p146 = scmp.lt.s32.totalorder %s145, 128
        %s147 = scalar_select %p146, %s145, 128
        %s148 = smul.u32 64, %s147
        %s149 = smul.u32 %s148, 2
      $region24: #{tpu_custom_call.1} parent=19 // pred_fallthru
        _
      // Predicated region
      $region25: #{tpu_custom_call.1} parent=19 // pred_check
        %p150 = pneg %p55
      $region26: #{tpu_custom_call.1} parent=19 // pred_check_branch
        %152 = sbr.rel (%p150) target = $region28
      $region27: #{tpu_custom_call.1} parent=19 // pred_region
        %s153 = smul.u32 128, %s9
        %p154 = scmp.lt.s32.totalorder %s153, 255
        %s155 = scalar_select %p154, %s153, 255
        %s156 = smul.addr %s155, 8
        %s157 = scalar_lea.vmem %s1, %s156
        %s158 = smul.u32 128, %s9
      $region28: #{tpu_custom_call.1} parent=19 // pred_fallthru
        _
    $region20: #{tpu_custom_call.1} parent=5 // pred_fallthru
      _
    %p159 = scmp.le.s32.totalorder 1, %s9
    %p160 = scmp.lt.s32.totalorder %s9, 3
    %p161 = pnand %p159, %p160
    %p162 = pneg %p161
    // Predicated region
    $region29: #{tpu_custom_call.1} parent=5 // pred_check
      _
    $region30: #{tpu_custom_call.1} parent=5 // pred_check_branch
      %164 = sbr.rel (%p161) target = $region32
    $region31: #{tpu_custom_call.1} parent=5 // pred_region
      %s165 = ssub.s32 %s9, 1
      %s166 = smul.u32 128, %s14
      %s167 = ssub.s32 250, %s166
      %p168 = scmp.lt.s32.totalorder %s167, 128
      %s169 = scalar_select %p168, %s167, 128
      %s170 = smul.u32 64, %s169
      %s171 = smul.u32 %s170, 2
      %p172 = scmp.lt.s32.totalorder %s166, 249
      %s173 = scalar_select %p172, %s166, 249
      %s174 = smul.addr %s173, 2
      %s175 = smul.addr %s174, 4
      %s176 = scalar_lea.vmem %s0, %s175
      %p177 = pneg %p35
      %p178 = pneg %p32
      %s179 = smul.u32 128, %s14
      %p180 = scmp.lt.s32.totalorder %s179, 255
      %s181 = scalar_select %p180, %s179, 255
      %s182 = smul.addr %s181, 8
      %s183 = scalar_lea.vmem %s1, %s182
      %p184 = pneg %p61
      %p185 = pneg %p58
      %p186 = pneg %p82
      %p187 = pneg %p79
      %p188 = pneg %p108
      %p189 = pneg %p105
      %s190 = smul.u32 128, %s14
      %p191 = scmp.lt.s32.totalorder %s190, 255
      %s192 = scalar_select %p191, %s190, 255
      %s193 = smul.addr %s192, 8
      %s194 = scalar_lea.vmem %s3, %s193
      %s195 = smul.u32 128, %s14
      %s196 = ssub.s32 250, %s195
      %p197 = scmp.lt.s32.totalorder %s196, 128
      %s198 = scalar_select %p197, %s196, 128
      %s199 = smul.u32 64, %s198
      %s200 = smul.u32 %s199, 2
      %p201 = scmp.lt.s32.totalorder %s195, 249
      %s202 = scalar_select %p201, %s195, 249
      %s203 = smul.addr %s202, 2
      %s204 = smul.addr %s203, 4
      %s205 = scalar_lea.vmem %s0, %s204
      %s206 = smul.u32 128, %s14
      %s207 = ssub.s32 250, %s206
      %p208 = scmp.lt.s32.totalorder %s207, 128
      %s209 = scalar_select %p208, %s207, 128
      %s210 = smul.u32 64, %s209
      %s211 = smul.u32 %s210, 2
      %s212 = smul.u32 128, %s14
      %p213 = scmp.lt.s32.totalorder %s212, 255
      %s214 = scalar_select %p213, %s212, 255
      %s215 = smul.addr %s214, 8
      %s216 = scalar_lea.vmem %s1, %s215
      %s217 = smul.u32 128, %s14
      %s218 = smul.u32 128, %s14
      %p219 = scmp.lt.s32.totalorder %s218, 255
      %s220 = scalar_select %p219, %s218, 255
      %s221 = smul.addr %s220, 8
      %s222 = scalar_lea.vmem %s3, %s221
      %s223 = smul.u32 128, %s14
      %v225 = vld [vmem:[%s205] sm:$0xff]
      %v226 = vld [vmem:[%s205 + $0x8] sm:$0xff]
      %v227 = vld [vmem:[%s205 + $0x10] sm:$0xff]
      %v228 = vld [vmem:[%s205 + $0x18] sm:$0xff]
      %v229 = vld [vmem:[%s205 + $0x20] sm:$0xff]
      %v230 = vld [vmem:[%s205 + $0x28] sm:$0xff]
      %v231 = vld [vmem:[%s205 + $0x30] sm:$0xff]
      %v232 = vld [vmem:[%s205 + $0x38] sm:$0xff]
      %v233 = vld [vmem:[%s205 + $0x40] sm:$0xff]
      %v234 = vld [vmem:[%s205 + $0x48] sm:$0xff]
      %v235 = vld [vmem:[%s205 + $0x50] sm:$0xff]
      %v236 = vld [vmem:[%s205 + $0x58] sm:$0xff]
      %v237 = vld [vmem:[%s205 + $0x60] sm:$0xff]
      %v238 = vld [vmem:[%s205 + $0x68] sm:$0xff]
      %v239 = vld [vmem:[%s205 + $0x70] sm:$0xff]
      %v240 = vld [vmem:[%s205 + $0x78] sm:$0xff]
      %v241 = vld [vmem:[%s205 + $0x80] sm:$0xff]
      %v242 = vld [vmem:[%s205 + $0x88] sm:$0xff]
      %v243 = vld [vmem:[%s205 + $0x90] sm:$0xff]
      %v244 = vld [vmem:[%s205 + $0x98] sm:$0xff]
      %v245 = vld [vmem:[%s205 + $0xa0] sm:$0xff]
      %v246 = vld [vmem:[%s205 + $0xa8] sm:$0xff]
      %v247 = vld [vmem:[%s205 + $0xb0] sm:$0xff]
      %v248 = vld [vmem:[%s205 + $0xb8] sm:$0xff]
      %v249 = vld [vmem:[%s205 + $0xc0] sm:$0xff]
      %v250 = vld [vmem:[%s205 + $0xc8] sm:$0xff]
      %v251 = vld [vmem:[%s205 + $0xd0] sm:$0xff]
      %v252 = vld [vmem:[%s205 + $0xd8] sm:$0xff]
      %v253 = vld [vmem:[%s205 + $0xe0] sm:$0xff]
      %v254 = vld [vmem:[%s205 + $0xe8] sm:$0xff]
      %v255 = vld [vmem:[%s205 + $0xf0] sm:$0xff]
      %v256 = vld [vmem:[%s205 + $0xf8] sm:$0xff]
      %v257 = vld [vmem:[%s205 + $0x100] sm:$0xff]
      %v258 = vld [vmem:[%s205 + $0x108] sm:$0xff]
      %v259 = vld [vmem:[%s205 + $0x110] sm:$0xff]
      %v260 = vld [vmem:[%s205 + $0x118] sm:$0xff]
      %v261 = vld [vmem:[%s205 + $0x120] sm:$0xff]
      %v262 = vld [vmem:[%s205 + $0x128] sm:$0xff]
      %v263 = vld [vmem:[%s205 + $0x130] sm:$0xff]
      %v264 = vld [vmem:[%s205 + $0x138] sm:$0xff]
      %v265 = vld [vmem:[%s205 + $0x140] sm:$0xff]
      %v266 = vld [vmem:[%s205 + $0x148] sm:$0xff]
      %v267 = vld [vmem:[%s205 + $0x150] sm:$0xff]
      %v268 = vld [vmem:[%s205 + $0x158] sm:$0xff]
      %v269 = vld [vmem:[%s205 + $0x160] sm:$0xff]
      %v270 = vld [vmem:[%s205 + $0x168] sm:$0xff]
      %v271 = vld [vmem:[%s205 + $0x170] sm:$0xff]
      %v272 = vld [vmem:[%s205 + $0x178] sm:$0xff]
      %v273 = vld [vmem:[%s205 + $0x180] sm:$0xff]
      %v274 = vld [vmem:[%s205 + $0x188] sm:$0xff]
      %v275 = vld [vmem:[%s205 + $0x190] sm:$0xff]
      %v276 = vld [vmem:[%s205 + $0x198] sm:$0xff]
      %v277 = vld [vmem:[%s205 + $0x1a0] sm:$0xff]
      %v278 = vld [vmem:[%s205 + $0x1a8] sm:$0xff]
      %v279 = vld [vmem:[%s205 + $0x1b0] sm:$0xff]
      %v280 = vld [vmem:[%s205 + $0x1b8] sm:$0xff]
      %v281 = vld [vmem:[%s205 + $0x1c0] sm:$0xff]
      %v282 = vld [vmem:[%s205 + $0x1c8] sm:$0xff]
      %v283 = vld [vmem:[%s205 + $0x1d0] sm:$0xff]
      %v284 = vld [vmem:[%s205 + $0x1d8] sm:$0xff]
      %v285 = vld [vmem:[%s205 + $0x1e0] sm:$0xff]
      %v286 = vld [vmem:[%s205 + $0x1e8] sm:$0xff]
      %v287 = vld [vmem:[%s205 + $0x1f0] sm:$0xff]
      %v288 = vld [vmem:[%s205 + $0x1f8] sm:$0xff]
      %v289 = vld [vmem:[%s205 + $0x200] sm:$0xff]
      %v290 = vld [vmem:[%s205 + $0x208] sm:$0xff]
      %v291 = vld [vmem:[%s205 + $0x210] sm:$0xff]
      %v292 = vld [vmem:[%s205 + $0x218] sm:$0xff]
      %v293 = vld [vmem:[%s205 + $0x220] sm:$0xff]
      %v294 = vld [vmem:[%s205 + $0x228] sm:$0xff]
      %v295 = vld [vmem:[%s205 + $0x230] sm:$0xff]
      %v296 = vld [vmem:[%s205 + $0x238] sm:$0xff]
      %v297 = vld [vmem:[%s205 + $0x240] sm:$0xff]
      %v298 = vld [vmem:[%s205 + $0x248] sm:$0xff]
      %v299 = vld [vmem:[%s205 + $0x250] sm:$0xff]
      %v300 = vld [vmem:[%s205 + $0x258] sm:$0xff]
      %v301 = vld [vmem:[%s205 + $0x260] sm:$0xff]
      %v302 = vld [vmem:[%s205 + $0x268] sm:$0xff]
      %v303 = vld [vmem:[%s205 + $0x270] sm:$0xff]
      %v304 = vld [vmem:[%s205 + $0x278] sm:$0xff]
      %v305 = vld [vmem:[%s205 + $0x280] sm:$0xff]
      %v306 = vld [vmem:[%s205 + $0x288] sm:$0xff]
      %v307 = vld [vmem:[%s205 + $0x290] sm:$0xff]
      %v308 = vld [vmem:[%s205 + $0x298] sm:$0xff]
      %v309 = vld [vmem:[%s205 + $0x2a0] sm:$0xff]
      %v310 = vld [vmem:[%s205 + $0x2a8] sm:$0xff]
      %v311 = vld [vmem:[%s205 + $0x2b0] sm:$0xff]
      %v312 = vld [vmem:[%s205 + $0x2b8] sm:$0xff]
      %v313 = vld [vmem:[%s205 + $0x2c0] sm:$0xff]
      %v314 = vld [vmem:[%s205 + $0x2c8] sm:$0xff]
      %v315 = vld [vmem:[%s205 + $0x2d0] sm:$0xff]
      %v316 = vld [vmem:[%s205 + $0x2d8] sm:$0xff]
      %v317 = vld [vmem:[%s205 + $0x2e0] sm:$0xff]
      %v318 = vld [vmem:[%s205 + $0x2e8] sm:$0xff]
      %v319 = vld [vmem:[%s205 + $0x2f0] sm:$0xff]
      %v320 = vld [vmem:[%s205 + $0x2f8] sm:$0xff]
      %v321 = vld [vmem:[%s205 + $0x300] sm:$0xff]
      %v322 = vld [vmem:[%s205 + $0x308] sm:$0xff]
      %v323 = vld [vmem:[%s205 + $0x310] sm:$0xff]
      %v324 = vld [vmem:[%s205 + $0x318] sm:$0xff]
      %v325 = vld [vmem:[%s205 + $0x320] sm:$0xff]
      %v326 = vld [vmem:[%s205 + $0x328] sm:$0xff]
      %v327 = vld [vmem:[%s205 + $0x330] sm:$0xff]
      %v328 = vld [vmem:[%s205 + $0x338] sm:$0xff]
      %v329 = vld [vmem:[%s205 + $0x340] sm:$0xff]
      %v330 = vld [vmem:[%s205 + $0x348] sm:$0xff]
      %v331 = vld [vmem:[%s205 + $0x350] sm:$0xff]
      %v332 = vld [vmem:[%s205 + $0x358] sm:$0xff]
      %v333 = vld [vmem:[%s205 + $0x360] sm:$0xff]
      %v334 = vld [vmem:[%s205 + $0x368] sm:$0xff]
      %v335 = vld [vmem:[%s205 + $0x370] sm:$0xff]
      %v336 = vld [vmem:[%s205 + $0x378] sm:$0xff]
      %v337 = vld [vmem:[%s205 + $0x380] sm:$0xff]
      %v338 = vld [vmem:[%s205 + $0x388] sm:$0xff]
      %v339 = vld [vmem:[%s205 + $0x390] sm:$0xff]
      %v340 = vld [vmem:[%s205 + $0x398] sm:$0xff]
      %v341 = vld [vmem:[%s205 + $0x3a0] sm:$0xff]
      %v342 = vld [vmem:[%s205 + $0x3a8] sm:$0xff]
      %v343 = vld [vmem:[%s205 + $0x3b0] sm:$0xff]
      %v344 = vld [vmem:[%s205 + $0x3b8] sm:$0xff]
      %v345 = vld [vmem:[%s205 + $0x3c0] sm:$0xff]
      %v346 = vld [vmem:[%s205 + $0x3c8] sm:$0xff]
      %v347 = vld [vmem:[%s205 + $0x3d0] sm:$0xff]
      %v348 = vld [vmem:[%s205 + $0x3d8] sm:$0xff]
      %v349 = vld [vmem:[%s205 + $0x3e0] sm:$0xff]
      %v350 = vld [vmem:[%s205 + $0x3e8] sm:$0xff]
      %v351 = vld [vmem:[%s205 + $0x3f0] sm:$0xff]
      %v352 = vld [vmem:[%s205 + $0x3f8] sm:$0xff]
      %v353 = vunpack.c.l.bf16 %v225
      %v354 = vunpack.c.h.bf16 %v225
      %v355 = vunpack.c.l.bf16 %v226
      %v356 = vunpack.c.h.bf16 %v226
      %v357 = vunpack.c.l.bf16 %v227
      %v358 = vunpack.c.h.bf16 %v227
      %v359 = vunpack.c.l.bf16 %v228
      %v360 = vunpack.c.h.bf16 %v228
      %v361 = vunpack.c.l.bf16 %v229
      %v362 = vunpack.c.h.bf16 %v229
      %v363 = vunpack.c.l.bf16 %v230
      %v364 = vunpack.c.h.bf16 %v230
      %v365 = vunpack.c.l.bf16 %v231
      %v366 = vunpack.c.h.bf16 %v231
      %v367 = vunpack.c.l.bf16 %v232
      %v368 = vunpack.c.h.bf16 %v232
      %v369 = vunpack.c.l.bf16 %v233
      %v370 = vunpack.c.h.bf16 %v233
      %v371 = vunpack.c.l.bf16 %v234
      %v372 = vunpack.c.h.bf16 %v234
      %v373 = vunpack.c.l.bf16 %v235
      %v374 = vunpack.c.h.bf16 %v235
      %v375 = vunpack.c.l.bf16 %v236
      %v376 = vunpack.c.h.bf16 %v236
      %v377 = vunpack.c.l.bf16 %v237
      %v378 = vunpack.c.h.bf16 %v237
      %v379 = vunpack.c.l.bf16 %v238
      %v380 = vunpack.c.h.bf16 %v238
      %v381 = vunpack.c.l.bf16 %v239
      %v382 = vunpack.c.h.bf16 %v239
      %v383 = vunpack.c.l.bf16 %v240
      %v384 = vunpack.c.h.bf16 %v240
      %v385 = vunpack.c.l.bf16 %v241
      %v386 = vunpack.c.h.bf16 %v241
      %v387 = vunpack.c.l.bf16 %v242
      %v388 = vunpack.c.h.bf16 %v242
      %v389 = vunpack.c.l.bf16 %v243
      %v390 = vunpack.c.h.bf16 %v243
      %v391 = vunpack.c.l.bf16 %v244
      %v392 = vunpack.c.h.bf16 %v244
      %v393 = vunpack.c.l.bf16 %v245
      %v394 = vunpack.c.h.bf16 %v245
      %v395 = vunpack.c.l.bf16 %v246
      %v396 = vunpack.c.h.bf16 %v246
      %v397 = vunpack.c.l.bf16 %v247
      %v398 = vunpack.c.h.bf16 %v247
      %v399 = vunpack.c.l.bf16 %v248
      %v400 = vunpack.c.h.bf16 %v248
      %v401 = vunpack.c.l.bf16 %v249
      %v402 = vunpack.c.h.bf16 %v249
      %v403 = vunpack.c.l.bf16 %v250
      %v404 = vunpack.c.h.bf16 %v250
      %v405 = vunpack.c.l.bf16 %v251
      %v406 = vunpack.c.h.bf16 %v251
      %v407 = vunpack.c.l.bf16 %v252
      %v408 = vunpack.c.h.bf16 %v252
      %v409 = vunpack.c.l.bf16 %v253
      %v410 = vunpack.c.h.bf16 %v253
      %v411 = vunpack.c.l.bf16 %v254
      %v412 = vunpack.c.h.bf16 %v254
      %v413 = vunpack.c.l.bf16 %v255
      %v414 = vunpack.c.h.bf16 %v255
      %v415 = vunpack.c.l.bf16 %v256
      %v416 = vunpack.c.h.bf16 %v256
      %v417 = vunpack.c.l.bf16 %v257
      %v418 = vunpack.c.h.bf16 %v257
      %v419 = vunpack.c.l.bf16 %v258
      %v420 = vunpack.c.h.bf16 %v258
      %v421 = vunpack.c.l.bf16 %v259
      %v422 = vunpack.c.h.bf16 %v259
      %v423 = vunpack.c.l.bf16 %v260
      %v424 = vunpack.c.h.bf16 %v260
      %v425 = vunpack.c.l.bf16 %v261
      %v426 = vunpack.c.h.bf16 %v261
      %v427 = vunpack.c.l.bf16 %v262
      %v428 = vunpack.c.h.bf16 %v262
      %v429 = vunpack.c.l.bf16 %v263
      %v430 = vunpack.c.h.bf16 %v263
      %v431 = vunpack.c.l.bf16 %v264
      %v432 = vunpack.c.h.bf16 %v264
      %v433 = vunpack.c.l.bf16 %v265
      %v434 = vunpack.c.h.bf16 %v265
      %v435 = vunpack.c.l.bf16 %v266
      %v436 = vunpack.c.h.bf16 %v266
      %v437 = vunpack.c.l.bf16 %v267
      %v438 = vunpack.c.h.bf16 %v267
      %v439 = vunpack.c.l.bf16 %v268
      %v440 = vunpack.c.h.bf16 %v268
      %v441 = vunpack.c.l.bf16 %v269
      %v442 = vunpack.c.h.bf16 %v269
      %v443 = vunpack.c.l.bf16 %v270
      %v444 = vunpack.c.h.bf16 %v270
      %v445 = vunpack.c.l.bf16 %v271
      %v446 = vunpack.c.h.bf16 %v271
      %v447 = vunpack.c.l.bf16 %v272
      %v448 = vunpack.c.h.bf16 %v272
      %v449 = vunpack.c.l.bf16 %v273
      %v450 = vunpack.c.h.bf16 %v273
      %v451 = vunpack.c.l.bf16 %v274
      %v452 = vunpack.c.h.bf16 %v274
      %v453 = vunpack.c.l.bf16 %v275
      %v454 = vunpack.c.h.bf16 %v275
      %v455 = vunpack.c.l.bf16 %v276
      %v456 = vunpack.c.h.bf16 %v276
      %v457 = vunpack.c.l.bf16 %v277
      %v458 = vunpack.c.h.bf16 %v277
      %v459 = vunpack.c.l.bf16 %v278
      %v460 = vunpack.c.h.bf16 %v278
      %v461 = vunpack.c.l.bf16 %v279
      %v462 = vunpack.c.h.bf16 %v279
      %v463 = vunpack.c.l.bf16 %v280
      %v464 = vunpack.c.h.bf16 %v280
      %v465 = vunpack.c.l.bf16 %v281
      %v466 = vunpack.c.h.bf16 %v281
      %v467 = vunpack.c.l.bf16 %v282
      %v468 = vunpack.c.h.bf16 %v282
      %v469 = vunpack.c.l.bf16 %v283
      %v470 = vunpack.c.h.bf16 %v283
      %v471 = vunpack.c.l.bf16 %v284
      %v472 = vunpack.c.h.bf16 %v284
      %v473 = vunpack.c.l.bf16 %v285
      %v474 = vunpack.c.h.bf16 %v285
      %v475 = vunpack.c.l.bf16 %v286
      %v476 = vunpack.c.h.bf16 %v286
      %v477 = vunpack.c.l.bf16 %v287
      %v478 = vunpack.c.h.bf16 %v287
      %v479 = vunpack.c.l.bf16 %v288
      %v480 = vunpack.c.h.bf16 %v288
      %v481 = vunpack.c.l.bf16 %v289
      %v482 = vunpack.c.h.bf16 %v289
      %v483 = vunpack.c.l.bf16 %v290
      %v484 = vunpack.c.h.bf16 %v290
      %v485 = vunpack.c.l.bf16 %v291
      %v486 = vunpack.c.h.bf16 %v291
      %v487 = vunpack.c.l.bf16 %v292
      %v488 = vunpack.c.h.bf16 %v292
      %v489 = vunpack.c.l.bf16 %v293
      %v490 = vunpack.c.h.bf16 %v293
      %v491 = vunpack.c.l.bf16 %v294
      %v492 = vunpack.c.h.bf16 %v294
      %v493 = vunpack.c.l.bf16 %v295
      %v494 = vunpack.c.h.bf16 %v295
      %v495 = vunpack.c.l.bf16 %v296
      %v496 = vunpack.c.h.bf16 %v296
      %v497 = vunpack.c.l.bf16 %v297
      %v498 = vunpack.c.h.bf16 %v297
      %v499 = vunpack.c.l.bf16 %v298
      %v500 = vunpack.c.h.bf16 %v298
      %v501 = vunpack.c.l.bf16 %v299
      %v502 = vunpack.c.h.bf16 %v299
      %v503 = vunpack.c.l.bf16 %v300
      %v504 = vunpack.c.h.bf16 %v300
      %v505 = vunpack.c.l.bf16 %v301
      %v506 = vunpack.c.h.bf16 %v301
      %v507 = vunpack.c.l.bf16 %v302
      %v508 = vunpack.c.h.bf16 %v302
      %v509 = vunpack.c.l.bf16 %v303
      %v510 = vunpack.c.h.bf16 %v303
      %v511 = vunpack.c.l.bf16 %v304
      %v512 = vunpack.c.h.bf16 %v304
      %v513 = vunpack.c.l.bf16 %v305
      %v514 = vunpack.c.h.bf16 %v305
      %v515 = vunpack.c.l.bf16 %v306
      %v516 = vunpack.c.h.bf16 %v306
      %v517 = vunpack.c.l.bf16 %v307
      %v518 = vunpack.c.h.bf16 %v307
      %v519 = vunpack.c.l.bf16 %v308
      %v520 = vunpack.c.h.bf16 %v308
      %v521 = vunpack.c.l.bf16 %v309
      %v522 = vunpack.c.h.bf16 %v309
      %v523 = vunpack.c.l.bf16 %v310
      %v524 = vunpack.c.h.bf16 %v310
      %v525 = vunpack.c.l.bf16 %v311
      %v526 = vunpack.c.h.bf16 %v311
      %v527 = vunpack.c.l.bf16 %v312
      %v528 = vunpack.c.h.bf16 %v312
      %v529 = vunpack.c.l.bf16 %v313
      %v530 = vunpack.c.h.bf16 %v313
      %v531 = vunpack.c.l.bf16 %v314
      %v532 = vunpack.c.h.bf16 %v314
      %v533 = vunpack.c.l.bf16 %v315
      %v534 = vunpack.c.h.bf16 %v315
      %v535 = vunpack.c.l.bf16 %v316
      %v536 = vunpack.c.h.bf16 %v316
      %v537 = vunpack.c.l.bf16 %v317
      %v538 = vunpack.c.h.bf16 %v317
      %v539 = vunpack.c.l.bf16 %v318
      %v540 = vunpack.c.h.bf16 %v318
      %v541 = vunpack.c.l.bf16 %v319
      %v542 = vunpack.c.h.bf16 %v319
      %v543 = vunpack.c.l.bf16 %v320
      %v544 = vunpack.c.h.bf16 %v320
      %v545 = vunpack.c.l.bf16 %v321
      %v546 = vunpack.c.h.bf16 %v321
      %v547 = vunpack.c.l.bf16 %v322
      %v548 = vunpack.c.h.bf16 %v322
      %v549 = vunpack.c.l.bf16 %v323
      %v550 = vunpack.c.h.bf16 %v323
      %v551 = vunpack.c.l.bf16 %v324
      %v552 = vunpack.c.h.bf16 %v324
      %v553 = vunpack.c.l.bf16 %v325
      %v554 = vunpack.c.h.bf16 %v325
      %v555 = vunpack.c.l.bf16 %v326
      %v556 = vunpack.c.h.bf16 %v326
      %v557 = vunpack.c.l.bf16 %v327
      %v558 = vunpack.c.h.bf16 %v327
      %v559 = vunpack.c.l.bf16 %v328
      %v560 = vunpack.c.h.bf16 %v328
      %v561 = vunpack.c.l.bf16 %v329
      %v562 = vunpack.c.h.bf16 %v329
      %v563 = vunpack.c.l.bf16 %v330
      %v564 = vunpack.c.h.bf16 %v330
      %v565 = vunpack.c.l.bf16 %v331
      %v566 = vunpack.c.h.bf16 %v331
      %v567 = vunpack.c.l.bf16 %v332
      %v568 = vunpack.c.h.bf16 %v332
      %v569 = vunpack.c.l.bf16 %v333
      %v570 = vunpack.c.h.bf16 %v333
      %v571 = vunpack.c.l.bf16 %v334
      %v572 = vunpack.c.h.bf16 %v334
      %v573 = vunpack.c.l.bf16 %v335
      %v574 = vunpack.c.h.bf16 %v335
      %v575 = vunpack.c.l.bf16 %v336
      %v576 = vunpack.c.h.bf16 %v336
      %v577 = vunpack.c.l.bf16 %v337
      %v578 = vunpack.c.h.bf16 %v337
      %v579 = vunpack.c.l.bf16 %v338
      %v580 = vunpack.c.h.bf16 %v338
      %v581 = vunpack.c.l.bf16 %v339
      %v582 = vunpack.c.h.bf16 %v339
      %v583 = vunpack.c.l.bf16 %v340
      %v584 = vunpack.c.h.bf16 %v340
      %v585 = vunpack.c.l.bf16 %v341
      %v586 = vunpack.c.h.bf16 %v341
      %v587 = vunpack.c.l.bf16 %v342
      %v588 = vunpack.c.h.bf16 %v342
      %v589 = vunpack.c.l.bf16 %v343
      %v590 = vunpack.c.h.bf16 %v343
      %v591 = vunpack.c.l.bf16 %v344
      %v592 = vunpack.c.h.bf16 %v344
      %v593 = vunpack.c.l.bf16 %v345
      %v594 = vunpack.c.h.bf16 %v345
      %v595 = vunpack.c.l.bf16 %v346
      %v596 = vunpack.c.h.bf16 %v346
      %v597 = vunpack.c.l.bf16 %v347
      %v598 = vunpack.c.h.bf16 %v347
      %v599 = vunpack.c.l.bf16 %v348
      %v600 = vunpack.c.h.bf16 %v348
      %v601 = vunpack.c.l.bf16 %v349
      %v602 = vunpack.c.h.bf16 %v349
      %v603 = vunpack.c.l.bf16 %v350
      %v604 = vunpack.c.h.bf16 %v350
      %v605 = vunpack.c.l.bf16 %v351
      %v606 = vunpack.c.h.bf16 %v351
      %v607 = vunpack.c.l.bf16 %v352
      %v608 = vunpack.c.h.bf16 %v352
      %v609 = vld [vmem:[%s2] sm:$0xf]
      %v610 = vld [vmem:[%s2 + $0x4] sm:$0xf]
      %v611 = vld [vmem:[%s2 + $0x8] sm:$0xf]
      %v612 = vld [vmem:[%s2 + $0xc] sm:$0xf]
      %v613 = vld [vmem:[%s2 + $0x10] sm:$0xf]
      %v614 = vld [vmem:[%s2 + $0x14] sm:$0xf]
      %v615 = vld [vmem:[%s2 + $0x18] sm:$0xf]
      %v616 = vld [vmem:[%s2 + $0x1c] sm:$0xf]
      %v617 = vld [vmem:[%s2 + $0x20] sm:$0xf]
      %v618 = vld [vmem:[%s2 + $0x24] sm:$0xf]
      %v619 = vld [vmem:[%s2 + $0x28] sm:$0xf]
      %v620 = vld [vmem:[%s2 + $0x2c] sm:$0xf]
      %v621 = vld [vmem:[%s2 + $0x30] sm:$0xf]
      %v622 = vld [vmem:[%s2 + $0x34] sm:$0xf]
      %v623 = vld [vmem:[%s2 + $0x38] sm:$0xf]
      %v624 = vld [vmem:[%s2 + $0x3c] sm:$0xf]
      %v625 = vld [vmem:[%s2 + $0x40] sm:$0xf]
      %v626 = vld [vmem:[%s2 + $0x44] sm:$0xf]
      %v627 = vld [vmem:[%s2 + $0x48] sm:$0xf]
      %v628 = vld [vmem:[%s2 + $0x4c] sm:$0xf]
      %v757 = vunpack.c.l.b16 %v225
      %v758 = vunpack.c.h.b16 %v225
      %v759 = vunpack.c.l.b16 %v226
      %v760 = vunpack.c.h.b16 %v226
      %v761 = vunpack.c.l.b16 %v227
      %v762 = vunpack.c.h.b16 %v227
      %v763 = vunpack.c.l.b16 %v228
      %v764 = vunpack.c.h.b16 %v228
      %v765 = vunpack.c.l.b16 %v229
      %v766 = vunpack.c.h.b16 %v229
      %v767 = vunpack.c.l.b16 %v230
      %v768 = vunpack.c.h.b16 %v230
      %v769 = vunpack.c.l.b16 %v231
      %v770 = vunpack.c.h.b16 %v231
      %v771 = vunpack.c.l.b16 %v232
      %v772 = vunpack.c.h.b16 %v232
      %v773 = vunpack.c.l.b16 %v233
      %v774 = vunpack.c.h.b16 %v233
      %v775 = vunpack.c.l.b16 %v234
      %v776 = vunpack.c.h.b16 %v234
      %v777 = vunpack.c.l.b16 %v235
      %v778 = vunpack.c.h.b16 %v235
      %v779 = vunpack.c.l.b16 %v236
      %v780 = vunpack.c.h.b16 %v236
      %v781 = vunpack.c.l.b16 %v237
      %v782 = vunpack.c.h.b16 %v237
      %v783 = vunpack.c.l.b16 %v238
      %v784 = vunpack.c.h.b16 %v238
      %v785 = vunpack.c.l.b16 %v239
      %v786 = vunpack.c.h.b16 %v239
      %v787 = vunpack.c.l.b16 %v240
      %v788 = vunpack.c.h.b16 %v240
      %v789 = vunpack.c.l.b16 %v241
      %v790 = vunpack.c.h.b16 %v241
      %v791 = vunpack.c.l.b16 %v242
      %v792 = vunpack.c.h.b16 %v242
      %v793 = vunpack.c.l.b16 %v243
      %v794 = vunpack.c.h.b16 %v243
      %v795 = vunpack.c.l.b16 %v244
      %v796 = vunpack.c.h.b16 %v244
      %v797 = vunpack.c.l.b16 %v245
      %v798 = vunpack.c.h.b16 %v245
      %v799 = vunpack.c.l.b16 %v246
      %v800 = vunpack.c.h.b16 %v246
      %v801 = vunpack.c.l.b16 %v247
      %v802 = vunpack.c.h.b16 %v247
      %v803 = vunpack.c.l.b16 %v248
      %v804 = vunpack.c.h.b16 %v248
      %v805 = vunpack.c.l.b16 %v249
      %v806 = vunpack.c.h.b16 %v249
      %v807 = vunpack.c.l.b16 %v250
      %v808 = vunpack.c.h.b16 %v250
      %v809 = vunpack.c.l.b16 %v251
      %v810 = vunpack.c.h.b16 %v251
      %v811 = vunpack.c.l.b16 %v252
      %v812 = vunpack.c.h.b16 %v252
      %v813 = vunpack.c.l.b16 %v253
      %v814 = vunpack.c.h.b16 %v253
      %v815 = vunpack.c.l.b16 %v254
      %v816 = vunpack.c.h.b16 %v254
      %v817 = vunpack.c.l.b16 %v255
      %v818 = vunpack.c.h.b16 %v255
      %v819 = vunpack.c.l.b16 %v256
      %v820 = vunpack.c.h.b16 %v256
      %v821 = vunpack.c.l.b16 %v257
      %v822 = vunpack.c.h.b16 %v257
      %v823 = vunpack.c.l.b16 %v258
      %v824 = vunpack.c.h.b16 %v258
      %v825 = vunpack.c.l.b16 %v259
      %v826 = vunpack.c.h.b16 %v259
      %v827 = vunpack.c.l.b16 %v260
      %v828 = vunpack.c.h.b16 %v260
      %v829 = vunpack.c.l.b16 %v261
      %v830 = vunpack.c.h.b16 %v261
      %v831 = vunpack.c.l.b16 %v262
      %v832 = vunpack.c.h.b16 %v262
      %v833 = vunpack.c.l.b16 %v263
      %v834 = vunpack.c.h.b16 %v263
      %v835 = vunpack.c.l.b16 %v264
      %v836 = vunpack.c.h.b16 %v264
      %v837 = vunpack.c.l.b16 %v265
      %v838 = vunpack.c.h.b16 %v265
      %v839 = vunpack.c.l.b16 %v266
      %v840 = vunpack.c.h.b16 %v266
      %v841 = vunpack.c.l.b16 %v267
      %v842 = vunpack.c.h.b16 %v267
      %v843 = vunpack.c.l.b16 %v268
      %v844 = vunpack.c.h.b16 %v268
      %v845 = vunpack.c.l.b16 %v269
      %v846 = vunpack.c.h.b16 %v269
      %v847 = vunpack.c.l.b16 %v270
      %v848 = vunpack.c.h.b16 %v270
      %v849 = vunpack.c.l.b16 %v271
      %v850 = vunpack.c.h.b16 %v271
      %v851 = vunpack.c.l.b16 %v272
      %v852 = vunpack.c.h.b16 %v272
      %v853 = vunpack.c.l.b16 %v273
      %v854 = vunpack.c.h.b16 %v273
      %v855 = vunpack.c.l.b16 %v274
      %v856 = vunpack.c.h.b16 %v274
      %v857 = vunpack.c.l.b16 %v275
      %v858 = vunpack.c.h.b16 %v275
      %v859 = vunpack.c.l.b16 %v276
      %v860 = vunpack.c.h.b16 %v276
      %v861 = vunpack.c.l.b16 %v277
      %v862 = vunpack.c.h.b16 %v277
      %v863 = vunpack.c.l.b16 %v278
      %v864 = vunpack.c.h.b16 %v278
      %v865 = vunpack.c.l.b16 %v279
      %v866 = vunpack.c.h.b16 %v279
      %v867 = vunpack.c.l.b16 %v280
      %v868 = vunpack.c.h.b16 %v280
      %v869 = vunpack.c.l.b16 %v281
      %v870 = vunpack.c.h.b16 %v281
      %v871 = vunpack.c.l.b16 %v282
      %v872 = vunpack.c.h.b16 %v282
      %v873 = vunpack.c.l.b16 %v283
      %v874 = vunpack.c.h.b16 %v283
      %v875 = vunpack.c.l.b16 %v284
      %v876 = vunpack.c.h.b16 %v284
      %v877 = vunpack.c.l.b16 %v285
      %v878 = vunpack.c.h.b16 %v285
      %v879 = vunpack.c.l.b16 %v286
      %v880 = vunpack.c.h.b16 %v286
      %v881 = vunpack.c.l.b16 %v287
      %v882 = vunpack.c.h.b16 %v287
      %v883 = vunpack.c.l.b16 %v288
      %v884 = vunpack.c.h.b16 %v288
      %v885 = vunpack.c.l.b16 %v289
      %v886 = vunpack.c.h.b16 %v289
      %v887 = vunpack.c.l.b16 %v290
      %v888 = vunpack.c.h.b16 %v290
      %v889 = vunpack.c.l.b16 %v291
      %v890 = vunpack.c.h.b16 %v291
      %v891 = vunpack.c.l.b16 %v292
      %v892 = vunpack.c.h.b16 %v292
      %v893 = vunpack.c.l.b16 %v293
      %v894 = vunpack.c.h.b16 %v293
      %v895 = vunpack.c.l.b16 %v294
      %v896 = vunpack.c.h.b16 %v294
      %v897 = vunpack.c.l.b16 %v295
      %v898 = vunpack.c.h.b16 %v295
      %v899 = vunpack.c.l.b16 %v296
      %v900 = vunpack.c.h.b16 %v296
      %v901 = vunpack.c.l.b16 %v297
      %v902 = vunpack.c.h.b16 %v297
      %v903 = vunpack.c.l.b16 %v298
      %v904 = vunpack.c.h.b16 %v298
      %v905 = vunpack.c.l.b16 %v299
      %v906 = vunpack.c.h.b16 %v299
      %v907 = vunpack.c.l.b16 %v300
      %v908 = vunpack.c.h.b16 %v300
      %v909 = vunpack.c.l.b16 %v301
      %v910 = vunpack.c.h.b16 %v301
      %v911 = vunpack.c.l.b16 %v302
      %v912 = vunpack.c.h.b16 %v302
      %v913 = vunpack.c.l.b16 %v303
      %v914 = vunpack.c.h.b16 %v303
      %v915 = vunpack.c.l.b16 %v304
      %v916 = vunpack.c.h.b16 %v304
      %v917 = vunpack.c.l.b16 %v305
      %v918 = vunpack.c.h.b16 %v305
      %v919 = vunpack.c.l.b16 %v306
      %v920 = vunpack.c.h.b16 %v306
      %v921 = vunpack.c.l.b16 %v307
      %v922 = vunpack.c.h.b16 %v307
      %v923 = vunpack.c.l.b16 %v308
      %v924 = vunpack.c.h.b16 %v308
      %v925 = vunpack.c.l.b16 %v309
      %v926 = vunpack.c.h.b16 %v309
      %v927 = vunpack.c.l.b16 %v310
      %v928 = vunpack.c.h.b16 %v310
      %v929 = vunpack.c.l.b16 %v311
      %v930 = vunpack.c.h.b16 %v311
      %v931 = vunpack.c.l.b16 %v312
      %v932 = vunpack.c.h.b16 %v312
      %v933 = vunpack.c.l.b16 %v313
      %v934 = vunpack.c.h.b16 %v313
      %v935 = vunpack.c.l.b16 %v314
      %v936 = vunpack.c.h.b16 %v314
      %v937 = vunpack.c.l.b16 %v315
      %v938 = vunpack.c.h.b16 %v315
      %v939 = vunpack.c.l.b16 %v316
      %v940 = vunpack.c.h.b16 %v316
      %v941 = vunpack.c.l.b16 %v317
      %v942 = vunpack.c.h.b16 %v317
      %v943 = vunpack.c.l.b16 %v318
      %v944 = vunpack.c.h.b16 %v318
      %v945 = vunpack.c.l.b16 %v319
      %v946 = vunpack.c.h.b16 %v319
      %v947 = vunpack.c.l.b16 %v320
      %v948 = vunpack.c.h.b16 %v320
      %v949 = vunpack.c.l.b16 %v321
      %v950 = vunpack.c.h.b16 %v321
      %v951 = vunpack.c.l.b16 %v322
      %v952 = vunpack.c.h.b16 %v322
      %v953 = vunpack.c.l.b16 %v323
      %v954 = vunpack.c.h.b16 %v323
      %v955 = vunpack.c.l.b16 %v324
      %v956 = vunpack.c.h.b16 %v324
      %v957 = vunpack.c.l.b16 %v325
      %v958 = vunpack.c.h.b16 %v325
      %v959 = vunpack.c.l.b16 %v326
      %v960 = vunpack.c.h.b16 %v326
      %v961 = vunpack.c.l.b16 %v327
      %v962 = vunpack.c.h.b16 %v327
      %v963 = vunpack.c.l.b16 %v328
      %v964 = vunpack.c.h.b16 %v328
      %v965 = vunpack.c.l.b16 %v329
      %v966 = vunpack.c.h.b16 %v329
      %v967 = vunpack.c.l.b16 %v330
      %v968 = vunpack.c.h.b16 %v330
      %v969 = vunpack.c.l.b16 %v331
      %v970 = vunpack.c.h.b16 %v331
      %v971 = vunpack.c.l.b16 %v332
      %v972 = vunpack.c.h.b16 %v332
      %v973 = vunpack.c.l.b16 %v333
      %v974 = vunpack.c.h.b16 %v333
      %v975 = vunpack.c.l.b16 %v334
      %v976 = vunpack.c.h.b16 %v334
      %v977 = vunpack.c.l.b16 %v335
      %v978 = vunpack.c.h.b16 %v335
      %v979 = vunpack.c.l.b16 %v336
      %v980 = vunpack.c.h.b16 %v336
      %v981 = vunpack.c.l.b16 %v337
      %v982 = vunpack.c.h.b16 %v337
      %v983 = vunpack.c.l.b16 %v338
      %v984 = vunpack.c.h.b16 %v338
      %v985 = vunpack.c.l.b16 %v339
      %v986 = vunpack.c.h.b16 %v339
      %v987 = vunpack.c.l.b16 %v340
      %v988 = vunpack.c.h.b16 %v340
      %v989 = vunpack.c.l.b16 %v341
      %v990 = vunpack.c.h.b16 %v341
      %v991 = vunpack.c.l.b16 %v342
      %v992 = vunpack.c.h.b16 %v342
      %v993 = vunpack.c.l.b16 %v343
      %v994 = vunpack.c.h.b16 %v343
      %v995 = vunpack.c.l.b16 %v344
      %v996 = vunpack.c.h.b16 %v344
      %v997 = vunpack.c.l.b16 %v345
      %v998 = vunpack.c.h.b16 %v345
      %v999 = vunpack.c.l.b16 %v346
      %v1000 = vunpack.c.h.b16 %v346
      %v1001 = vunpack.c.l.b16 %v347
      %v1002 = vunpack.c.h.b16 %v347
      %v1003 = vunpack.c.l.b16 %v348
      %v1004 = vunpack.c.h.b16 %v348
      %v1005 = vunpack.c.l.b16 %v349
      %v1006 = vunpack.c.h.b16 %v349
      %v1007 = vunpack.c.l.b16 %v350
      %v1008 = vunpack.c.h.b16 %v350
      %v1009 = vunpack.c.l.b16 %v351
      %v1010 = vunpack.c.h.b16 %v351
      %v1011 = vunpack.c.l.b16 %v352
      %v1012 = vunpack.c.h.b16 %v352
      %v1013 = vpack.c.b16 %v759, %v757
      %v1014 = vpack.c.b16 %v760, %v758
      %v1015 = vpack.c.b16 %v763, %v761
      %v1016 = vpack.c.b16 %v764, %v762
      %v1017 = vpack.c.b16 %v767, %v765
      %v1018 = vpack.c.b16 %v768, %v766
      %v1019 = vpack.c.b16 %v771, %v769
      %v1020 = vpack.c.b16 %v772, %v770
      %v1021 = vpack.c.b16 %v775, %v773
      %v1022 = vpack.c.b16 %v776, %v774
      %v1023 = vpack.c.b16 %v779, %v777
      %v1024 = vpack.c.b16 %v780, %v778
      %v1025 = vpack.c.b16 %v783, %v781
      %v1026 = vpack.c.b16 %v784, %v782
      %v1027 = vpack.c.b16 %v787, %v785
      %v1028 = vpack.c.b16 %v788, %v786
      %v1029 = vpack.c.b16 %v791, %v789
      %v1030 = vpack.c.b16 %v792, %v790
      %v1031 = vpack.c.b16 %v795, %v793
      %v1032 = vpack.c.b16 %v796, %v794
      %v1033 = vpack.c.b16 %v799, %v797
      %v1034 = vpack.c.b16 %v800, %v798
      %v1035 = vpack.c.b16 %v803, %v801
      %v1036 = vpack.c.b16 %v804, %v802
      %v1037 = vpack.c.b16 %v807, %v805
      %v1038 = vpack.c.b16 %v808, %v806
      %v1039 = vpack.c.b16 %v811, %v809
      %v1040 = vpack.c.b16 %v812, %v810
      %v1041 = vpack.c.b16 %v815, %v813
      %v1042 = vpack.c.b16 %v816, %v814
      %v1043 = vpack.c.b16 %v819, %v817
      %v1044 = vpack.c.b16 %v820, %v818
      %v1045 = vpack.c.b16 %v823, %v821
      %v1046 = vpack.c.b16 %v824, %v822
      %v1047 = vpack.c.b16 %v827, %v825
      %v1048 = vpack.c.b16 %v828, %v826
      %v1049 = vpack.c.b16 %v831, %v829
      %v1050 = vpack.c.b16 %v832, %v830
      %v1051 = vpack.c.b16 %v835, %v833
      %v1052 = vpack.c.b16 %v836, %v834
      %v1053 = vpack.c.b16 %v839, %v837
      %v1054 = vpack.c.b16 %v840, %v838
      %v1055 = vpack.c.b16 %v843, %v841
      %v1056 = vpack.c.b16 %v844, %v842
      %v1057 = vpack.c.b16 %v847, %v845
      %v1058 = vpack.c.b16 %v848, %v846
      %v1059 = vpack.c.b16 %v851, %v849
      %v1060 = vpack.c.b16 %v852, %v850
      %v1061 = vpack.c.b16 %v855, %v853
      %v1062 = vpack.c.b16 %v856, %v854
      %v1063 = vpack.c.b16 %v859, %v857
      %v1064 = vpack.c.b16 %v860, %v858
      %v1065 = vpack.c.b16 %v863, %v861
      %v1066 = vpack.c.b16 %v864, %v862
      %v1067 = vpack.c.b16 %v867, %v865
      %v1068 = vpack.c.b16 %v868, %v866
      %v1069 = vpack.c.b16 %v871, %v869
      %v1070 = vpack.c.b16 %v872, %v870
      %v1071 = vpack.c.b16 %v875, %v873
      %v1072 = vpack.c.b16 %v876, %v874
      %v1073 = vpack.c.b16 %v879, %v877
      %v1074 = vpack.c.b16 %v880, %v878
      %v1075 = vpack.c.b16 %v883, %v881
      %v1076 = vpack.c.b16 %v884, %v882
      %v1077 = vpack.c.b16 %v887, %v885
      %v1078 = vpack.c.b16 %v888, %v886
      %v1079 = vpack.c.b16 %v891, %v889
      %v1080 = vpack.c.b16 %v892, %v890
      %v1081 = vpack.c.b16 %v895, %v893
      %v1082 = vpack.c.b16 %v896, %v894
      %v1083 = vpack.c.b16 %v899, %v897
      %v1084 = vpack.c.b16 %v900, %v898
      %v1085 = vpack.c.b16 %v903, %v901
      %v1086 = vpack.c.b16 %v904, %v902
      %v1087 = vpack.c.b16 %v907, %v905
      %v1088 = vpack.c.b16 %v908, %v906
      %v1089 = vpack.c.b16 %v911, %v909
      %v1090 = vpack.c.b16 %v912, %v910
      %v1091 = vpack.c.b16 %v915, %v913
      %v1092 = vpack.c.b16 %v916, %v914
      %v1093 = vpack.c.b16 %v919, %v917
      %v1094 = vpack.c.b16 %v920, %v918
      %v1095 = vpack.c.b16 %v923, %v921
      %v1096 = vpack.c.b16 %v924, %v922
      %v1097 = vpack.c.b16 %v927, %v925
      %v1098 = vpack.c.b16 %v928, %v926
      %v1099 = vpack.c.b16 %v931, %v929
      %v1100 = vpack.c.b16 %v932, %v930
      %v1101 = vpack.c.b16 %v935, %v933
      %v1102 = vpack.c.b16 %v936, %v934
      %v1103 = vpack.c.b16 %v939, %v937
      %v1104 = vpack.c.b16 %v940, %v938
      %v1105 = vpack.c.b16 %v943, %v941
      %v1106 = vpack.c.b16 %v944, %v942
      %v1107 = vpack.c.b16 %v947, %v945
      %v1108 = vpack.c.b16 %v948, %v946
      %v1109 = vpack.c.b16 %v951, %v949
      %v1110 = vpack.c.b16 %v952, %v950
      %v1111 = vpack.c.b16 %v955, %v953
      %v1112 = vpack.c.b16 %v956, %v954
      %v1113 = vpack.c.b16 %v959, %v957
      %v1114 = vpack.c.b16 %v960, %v958
      %v1115 = vpack.c.b16 %v963, %v961
      %v1116 = vpack.c.b16 %v964, %v962
      %v1117 = vpack.c.b16 %v967, %v965
      %v1118 = vpack.c.b16 %v968, %v966
      %v1119 = vpack.c.b16 %v971, %v969
      %v1120 = vpack.c.b16 %v972, %v970
      %v1121 = vpack.c.b16 %v975, %v973
      %v1122 = vpack.c.b16 %v976, %v974
      %v1123 = vpack.c.b16 %v979, %v977
      %v1124 = vpack.c.b16 %v980, %v978
      %v1125 = vpack.c.b16 %v983, %v981
      %v1126 = vpack.c.b16 %v984, %v982
      %v1127 = vpack.c.b16 %v987, %v985
      %v1128 = vpack.c.b16 %v988, %v986
      %v1129 = vpack.c.b16 %v991, %v989
      %v1130 = vpack.c.b16 %v992, %v990
      %v1131 = vpack.c.b16 %v995, %v993
      %v1132 = vpack.c.b16 %v996, %v994
      %v1133 = vpack.c.b16 %v999, %v997
      %v1134 = vpack.c.b16 %v1000, %v998
      %v1135 = vpack.c.b16 %v1003, %v1001
      %v1136 = vpack.c.b16 %v1004, %v1002
      %v1137 = vpack.c.b16 %v1007, %v1005
      %v1138 = vpack.c.b16 %v1008, %v1006
      %v1139 = vpack.c.b16 %v1011, %v1009
      %v1140 = vpack.c.b16 %v1012, %v1010
      %v1225 = vunpack.c.l.b16 %v609
      %v1226 = vunpack.c.l.b16 %v610
      %v1227 = vunpack.c.l.b16 %v611
      %v1228 = vunpack.c.l.b16 %v612
      %v1229 = vunpack.c.l.b16 %v613
      %v1230 = vunpack.c.l.b16 %v614
      %v1231 = vunpack.c.l.b16 %v615
      %v1232 = vunpack.c.l.b16 %v616
      %v1233 = vunpack.c.l.b16 %v617
      %v1234 = vunpack.c.l.b16 %v618
      %v1235 = vunpack.c.l.b16 %v619
      %v1236 = vunpack.c.l.b16 %v620
      %v1237 = vunpack.c.l.b16 %v621
      %v1238 = vunpack.c.l.b16 %v622
      %v1239 = vunpack.c.l.b16 %v623
      %v1240 = vunpack.c.l.b16 %v624
      %v1241 = vunpack.c.l.b16 %v625
      %v1242 = vunpack.c.l.b16 %v626
      %v1243 = vunpack.c.l.b16 %v627
      %v1244 = vunpack.c.l.b16 %v628
      %v1245 = vpack.c.b16 %v1226, %v1225
      %v1246 = vpack.c.b16 %v1228, %v1227
      %v1247 = vpack.c.b16 %v1230, %v1229
      %v1248 = vpack.c.b16 %v1232, %v1231
      %v1249 = vpack.c.b16 %v1234, %v1233
      %v1250 = vpack.c.b16 %v1236, %v1235
      %v1251 = vpack.c.b16 %v1238, %v1237
      %v1252 = vpack.c.b16 %v1240, %v1239
      %v1253 = vpack.c.b16 %v1242, %v1241
      %v1254 = vpack.c.b16 %v1244, %v1243
      %vm1265 = vcmask 261120
      %v1267 = vsel %vm1265, %v1014, 0
      %v1270 = vsel %vm1265, %v1016, 0
      %v1273 = vsel %vm1265, %v1018, 0
      %v1276 = vsel %vm1265, %v1020, 0
      %v1279 = vsel %vm1265, %v1022, 0
      %v1282 = vsel %vm1265, %v1024, 0
      %v1285 = vsel %vm1265, %v1026, 0
      %v1288 = vsel %vm1265, %v1028, 0
      %v1291 = vsel %vm1265, %v1030, 0
      %v1294 = vsel %vm1265, %v1032, 0
      %v1297 = vsel %vm1265, %v1034, 0
      %v1300 = vsel %vm1265, %v1036, 0
      %v1303 = vsel %vm1265, %v1038, 0
      %v1306 = vsel %vm1265, %v1040, 0
      %v1309 = vsel %vm1265, %v1042, 0
      %v1312 = vsel %vm1265, %v1044, 0
      %v1315 = vsel %vm1265, %v1046, 0
      %v1318 = vsel %vm1265, %v1048, 0
      %v1321 = vsel %vm1265, %v1050, 0
      %v1324 = vsel %vm1265, %v1052, 0
      %v1327 = vsel %vm1265, %v1054, 0
      %v1330 = vsel %vm1265, %v1056, 0
      %v1333 = vsel %vm1265, %v1058, 0
      %v1336 = vsel %vm1265, %v1060, 0
      %v1339 = vsel %vm1265, %v1062, 0
      %v1342 = vsel %vm1265, %v1064, 0
      %v1345 = vsel %vm1265, %v1066, 0
      %v1348 = vsel %vm1265, %v1068, 0
      %v1351 = vsel %vm1265, %v1070, 0
      %v1354 = vsel %vm1265, %v1072, 0
      %v1357 = vsel %vm1265, %v1074, 0
      %v1360 = vsel %vm1265, %v1076, 0
      %v1363 = vsel %vm1265, %v1078, 0
      %v1366 = vsel %vm1265, %v1080, 0
      %v1369 = vsel %vm1265, %v1082, 0
      %v1372 = vsel %vm1265, %v1084, 0
      %v1375 = vsel %vm1265, %v1086, 0
      %v1378 = vsel %vm1265, %v1088, 0
      %v1381 = vsel %vm1265, %v1090, 0
      %v1384 = vsel %vm1265, %v1092, 0
      %v1387 = vsel %vm1265, %v1094, 0
      %v1390 = vsel %vm1265, %v1096, 0
      %v1393 = vsel %vm1265, %v1098, 0
      %v1396 = vsel %vm1265, %v1100, 0
      %v1399 = vsel %vm1265, %v1102, 0
      %v1402 = vsel %vm1265, %v1104, 0
      %v1405 = vsel %vm1265, %v1106, 0
      %v1408 = vsel %vm1265, %v1108, 0
      %v1411 = vsel %vm1265, %v1110, 0
      %v1414 = vsel %vm1265, %v1112, 0
      %v1417 = vsel %vm1265, %v1114, 0
      %v1420 = vsel %vm1265, %v1116, 0
      %v1423 = vsel %vm1265, %v1118, 0
      %v1426 = vsel %vm1265, %v1120, 0
      %v1429 = vsel %vm1265, %v1122, 0
      %v1432 = vsel %vm1265, %v1124, 0
      %v1435 = vsel %vm1265, %v1126, 0
      %v1438 = vsel %vm1265, %v1128, 0
      %v1441 = vsel %vm1265, %v1130, 0
      %v1444 = vsel %vm1265, %v1132, 0
      %v1447 = vsel %vm1265, %v1134, 0
      %v1450 = vsel %vm1265, %v1136, 0
      %v1453 = vsel %vm1265, %v1138, 0
      %v1456 = vsel %vm1265, %v1140, 0
      %1458 = vmatprep.subr.bf16.mxu0 0
      %1459 = vmatpush1.bf16.msra.mxu0 %v1245
      %1460 = vmatprep.subr.bf16.mxu0 0
      %1461 = vmatpush1.bf16.msra.mxu0 %v1246
      %1462 = vmatprep.subr.bf16.mxu0 0
      %1463 = vmatpush1.bf16.msra.mxu0 %v1247
      %1464 = vmatprep.subr.bf16.mxu0 0
      %1465 = vmatpush1.bf16.msra.mxu0 %v1248
      %1466 = vmatprep.subr.bf16.mxu0 0
      %1467 = vmatpush1.bf16.msra.mxu0 %v1249
      %1468 = vmatprep.subr.bf16.mxu0 0
      %1469 = vmatpush1.bf16.msra.mxu0 %v1250
      %1470 = vmatprep.subr.bf16.mxu0 0
      %1471 = vmatpush1.bf16.msra.mxu0 %v1251
      %1472 = vmatprep.subr.bf16.mxu0 0
      %1473 = vmatpush1.bf16.msra.mxu0 %v1252
      %1474 = vmatprep.subr.bf16.mxu0 0
      %1475 = vmatpush1.bf16.msra.mxu0 %v1253
      %1476 = vmatprep.subr.bf16.mxu0 0
      %1477 = vmatpush1.bf16.msra.mxu0 %v1254
      %1478 = vmatprep.subr.bf16.mxu0 0
      %1479 = vmatpush1.bf16.msra.mxu0 0
      %1480 = vmatprep.subr.bf16.mxu0 0
      %1481 = vmatpush1.bf16.msra.mxu0 0
      %1482 = vmatprep.subr.bf16.mxu0 0
      %1483 = vmatpush1.bf16.msra.mxu0 0
      %1484 = vmatprep.subr.bf16.mxu0 0
      %1485 = vmatpush1.bf16.msra.mxu0 0
      %1486 = vmatprep.subr.bf16.mxu0 0
      %1487 = vmatpush1.bf16.msra.mxu0 0
      %1488 = vmatprep.subr.bf16.mxu0 0
      %1489 = vmatpush1.bf16.msra.mxu0 0
      %1490 = vmatprep.mubr.bf16.mxu0 %v1267
      %1491 = vmatmul.mubr.bf16.gmra.mrb[0].mxu0 %v1013
      %v1492 = vpop.f32.mrb[0].mxu0
      %v1493 = vadd.f32 0.0, %v1492
      %v1494 = vpop.f32.mrb[0].mxu0
      %v1495 = vpop.f32.mrb[0].mxu0
      %v1496 = vadd.f32 0.0, %v1495
      %v1497 = vpop.f32.mrb[0].mxu0
      %1498 = vmatprep.mubr.bf16.mxu0 %v1270
      %1499 = vmatmul.mubr.bf16.gmra.mrb[0].mxu0 %v1015
      %v1500 = vpop.f32.mrb[0].mxu0
      %v1501 = vadd.f32 0.0, %v1500
      %v1502 = vpop.f32.mrb[0].mxu0
      %v1503 = vpop.f32.mrb[0].mxu0
      %v1504 = vadd.f32 0.0, %v1503
      %v1505 = vpop.f32.mrb[0].mxu0
      %1506 = vmatprep.mubr.bf16.mxu0 %v1273
      %1507 = vmatmul.mubr.bf16.gmra.mrb[0].mxu0 %v1017
      %v1508 = vpop.f32.mrb[0].mxu0
      %v1509 = vadd.f32 0.0, %v1508
      %v1510 = vpop.f32.mrb[0].mxu0
      %v1511 = vpop.f32.mrb[0].mxu0
      %v1512 = vadd.f32 0.0, %v1511
      %v1513 = vpop.f32.mrb[0].mxu0
      %1514 = vmatprep.mubr.bf16.mxu0 %v1276
      %1515 = vmatmul.mubr.bf16.gmra.mrb[0].mxu0 %v1019
      %v1516 = vpop.f32.mrb[0].mxu0
      %v1517 = vadd.f32 0.0, %v1516
      %v1518 = vpop.f32.mrb[0].mxu0
      %v1519 = vpop.f32.mrb[0].mxu0
      %v1520 = vadd.f32 0.0, %v1519
      %v1521 = vpop.f32.mrb[0].mxu0
      %1522 = vmatprep.mubr.bf16.mxu0 %v1279
      %1523 = vmatmul.mubr.bf16.gmra.mrb[0].mxu0 %v1021
      %v1524 = vpop.f32.mrb[0].mxu0
      %v1525 = vadd.f32 0.0, %v1524
      %v1526 = vpop.f32.mrb[0].mxu0
      %v1527 = vpop.f32.mrb[0].mxu0
      %v1528 = vadd.f32 0.0, %v1527
      %v1529 = vpop.f32.mrb[0].mxu0
      %1530 = vmatprep.mubr.bf16.mxu0 %v1282
      %1531 = vmatmul.mubr.bf16.gmra.mrb[0].mxu0 %v1023
      %v1532 = vpop.f32.mrb[0].mxu0
      %v1533 = vadd.f32 0.0, %v1532
      %v1534 = vpop.f32.mrb[0].mxu0
      %v1535 = vpop.f32.mrb[0].mxu0
      %v1536 = vadd.f32 0.0, %v1535
      %v1537 = vpop.f32.mrb[0].mxu0
      %1538 = vmatprep.mubr.bf16.mxu0 %v1285
      %1539 = vmatmul.mubr.bf16.gmra.mrb[0].mxu0 %v1025
      %v1540 = vpop.f32.mrb[0].mxu0
      %v1541 = vadd.f32 0.0, %v1540
      %v1542 = vpop.f32.mrb[0].mxu0
      %v1543 = vpop.f32.mrb[0].mxu0
      %v1544 = vadd.f32 0.0, %v1543
      %v1545 = vpop.f32.mrb[0].mxu0
      %1546 = vmatprep.mubr.bf16.mxu0 %v1288
      %1547 = vmatmul.mubr.bf16.gmra.mrb[0].mxu0 %v1027
      %v1548 = vpop.f32.mrb[0].mxu0
      %v1549 = vadd.f32 0.0, %v1548
      %v1550 = vpop.f32.mrb[0].mxu0
      %v1551 = vpop.f32.mrb[0].mxu0
      %v1552 = vadd.f32 0.0, %v1551
      %v1553 = vpop.f32.mrb[0].mxu0
      %1554 = vmatprep.mubr.bf16.mxu0 %v1291
      %1555 = vmatmul.mubr.bf16.gmra.mrb[0].mxu0 %v1029
      %v1556 = vpop.f32.mrb[0].mxu0
      %v1557 = vadd.f32 0.0, %v1556
      %v1558 = vpop.f32.mrb[0].mxu0
      %v1559 = vpop.f32.mrb[0].mxu0
      %v1560 = vadd.f32 0.0, %v1559
      %v1561 = vpop.f32.mrb[0].mxu0
      %1562 = vmatprep.mubr.bf16.mxu0 %v1294
      %1563 = vmatmul.mubr.bf16.gmra.mrb[0].mxu0 %v1031
      %v1564 = vpop.f32.mrb[0].mxu0
      %v1565 = vadd.f32 0.0, %v1564
      %v1566 = vpop.f32.mrb[0].mxu0
      %v1567 = vpop.f32.mrb[0].mxu0
      %v1568 = vadd.f32 0.0, %v1567
      %v1569 = vpop.f32.mrb[0].mxu0
      %1570 = vmatprep.mubr.bf16.mxu0 %v1297
      %1571 = vmatmul.mubr.bf16.gmra.mrb[0].mxu0 %v1033
      %v1572 = vpop.f32.mrb[0].mxu0
      %v1573 = vadd.f32 0.0, %v1572
      %v1574 = vpop.f32.mrb[0].mxu0
      %v1575 = vpop.f32.mrb[0].mxu0
      %v1576 = vadd.f32 0.0, %v1575
      %v1577 = vpop.f32.mrb[0].mxu0
      %1578 = vmatprep.mubr.bf16.mxu0 %v1300
      %1579 = vmatmul.mubr.bf16.gmra.mrb[0].mxu0 %v1035
      %v1580 = vpop.f32.mrb[0].mxu0
      %v1581 = vadd.f32 0.0, %v1580
      %v1582 = vpop.f32.mrb[0].mxu0
      %v1583 = vpop.f32.mrb[0].mxu0
      %v1584 = vadd.f32 0.0, %v1583
      %v1585 = vpop.f32.mrb[0].mxu0
      %1586 = vmatprep.mubr.bf16.mxu0 %v1303
      %1587 = vmatmul.mubr.bf16.gmra.mrb[0].mxu0 %v1037
      %v1588 = vpop.f32.mrb[0].mxu0
      %v1589 = vadd.f32 0.0, %v1588
      %v1590 = vpop.f32.mrb[0].mxu0
      %v1591 = vpop.f32.mrb[0].mxu0
      %v1592 = vadd.f32 0.0, %v1591
      %v1593 = vpop.f32.mrb[0].mxu0
      %1594 = vmatprep.mubr.bf16.mxu0 %v1306
      %1595 = vmatmul.mubr.bf16.gmra.mrb[0].mxu0 %v1039
      %v1596 = vpop.f32.mrb[0].mxu0
      %v1597 = vadd.f32 0.0, %v1596
      %v1598 = vpop.f32.mrb[0].mxu0
      %v1599 = vpop.f32.mrb[0].mxu0
      %v1600 = vadd.f32 0.0, %v1599
      %v1601 = vpop.f32.mrb[0].mxu0
      %1602 = vmatprep.mubr.bf16.mxu0 %v1309
      %1603 = vmatmul.mubr.bf16.gmra.mrb[0].mxu0 %v1041
      %v1604 = vpop.f32.mrb[0].mxu0
      %v1605 = vadd.f32 0.0, %v1604
      %v1606 = vpop.f32.mrb[0].mxu0
      %v1607 = vpop.f32.mrb[0].mxu0
      %v1608 = vadd.f32 0.0, %v1607
      %v1609 = vpop.f32.mrb[0].mxu0
      %1610 = vmatprep.mubr.bf16.mxu0 %v1312
      %1611 = vmatmul.mubr.bf16.gmra.mrb[0].mxu0 %v1043
      %v1612 = vpop.f32.mrb[0].mxu0
      %v1613 = vadd.f32 0.0, %v1612
      %v1614 = vpop.f32.mrb[0].mxu0
      %v1615 = vpop.f32.mrb[0].mxu0
      %v1616 = vadd.f32 0.0, %v1615
      %v1617 = vpop.f32.mrb[0].mxu0
      %1618 = vmatprep.mubr.bf16.mxu0 %v1315
      %1619 = vmatmul.mubr.bf16.gmra.mrb[0].mxu0 %v1045
      %v1620 = vpop.f32.mrb[0].mxu0
      %v1621 = vadd.f32 0.0, %v1620
      %v1622 = vpop.f32.mrb[0].mxu0
      %v1623 = vpop.f32.mrb[0].mxu0
      %v1624 = vadd.f32 0.0, %v1623
      %v1625 = vpop.f32.mrb[0].mxu0
      %1626 = vmatprep.mubr.bf16.mxu0 %v1318
      %1627 = vmatmul.mubr.bf16.gmra.mrb[0].mxu0 %v1047
      %v1628 = vpop.f32.mrb[0].mxu0
      %v1629 = vadd.f32 0.0, %v1628
      %v1630 = vpop.f32.mrb[0].mxu0
      %v1631 = vpop.f32.mrb[0].mxu0
      %v1632 = vadd.f32 0.0, %v1631
      %v1633 = vpop.f32.mrb[0].mxu0
      %1634 = vmatprep.mubr.bf16.mxu0 %v1321
      %1635 = vmatmul.mubr.bf16.gmra.mrb[0].mxu0 %v1049
      %v1636 = vpop.f32.mrb[0].mxu0
      %v1637 = vadd.f32 0.0, %v1636
      %v1638 = vpop.f32.mrb[0].mxu0
      %v1639 = vpop.f32.mrb[0].mxu0
      %v1640 = vadd.f32 0.0, %v1639
      %v1641 = vpop.f32.mrb[0].mxu0
      %1642 = vmatprep.mubr.bf16.mxu0 %v1324
      %1643 = vmatmul.mubr.bf16.gmra.mrb[0].mxu0 %v1051
      %v1644 = vpop.f32.mrb[0].mxu0
      %v1645 = vadd.f32 0.0, %v1644
      %v1646 = vpop.f32.mrb[0].mxu0
      %v1647 = vpop.f32.mrb[0].mxu0
      %v1648 = vadd.f32 0.0, %v1647
      %v1649 = vpop.f32.mrb[0].mxu0
      %1650 = vmatprep.mubr.bf16.mxu0 %v1327
      %1651 = vmatmul.mubr.bf16.gmra.mrb[0].mxu0 %v1053
      %v1652 = vpop.f32.mrb[0].mxu0
      %v1653 = vadd.f32 0.0, %v1652
      %v1654 = vpop.f32.mrb[0].mxu0
      %v1655 = vpop.f32.mrb[0].mxu0
      %v1656 = vadd.f32 0.0, %v1655
      %v1657 = vpop.f32.mrb[0].mxu0
      %1658 = vmatprep.mubr.bf16.mxu0 %v1330
      %1659 = vmatmul.mubr.bf16.gmra.mrb[0].mxu0 %v1055
      %v1660 = vpop.f32.mrb[0].mxu0
      %v1661 = vadd.f32 0.0, %v1660
      %v1662 = vpop.f32.mrb[0].mxu0
      %v1663 = vpop.f32.mrb[0].mxu0
      %v1664 = vadd.f32 0.0, %v1663
      %v1665 = vpop.f32.mrb[0].mxu0
      %1666 = vmatprep.mubr.bf16.mxu0 %v1333
      %1667 = vmatmul.mubr.bf16.gmra.mrb[0].mxu0 %v1057
      %v1668 = vpop.f32.mrb[0].mxu0
      %v1669 = vadd.f32 0.0, %v1668
      %v1670 = vpop.f32.mrb[0].mxu0
      %v1671 = vpop.f32.mrb[0].mxu0
      %v1672 = vadd.f32 0.0, %v1671
      %v1673 = vpop.f32.mrb[0].mxu0
      %1674 = vmatprep.mubr.bf16.mxu0 %v1336
      %1675 = vmatmul.mubr.bf16.gmra.mrb[0].mxu0 %v1059
      %v1676 = vpop.f32.mrb[0].mxu0
      %v1677 = vadd.f32 0.0, %v1676
      %v1678 = vpop.f32.mrb[0].mxu0
      %v1679 = vpop.f32.mrb[0].mxu0
      %v1680 = vadd.f32 0.0, %v1679
      %v1681 = vpop.f32.mrb[0].mxu0
      %1682 = vmatprep.mubr.bf16.mxu0 %v1339
      %1683 = vmatmul.mubr.bf16.gmra.mrb[0].mxu0 %v1061
      %v1684 = vpop.f32.mrb[0].mxu0
      %v1685 = vadd.f32 0.0, %v1684
      %v1686 = vpop.f32.mrb[0].mxu0
      %v1687 = vpop.f32.mrb[0].mxu0
      %v1688 = vadd.f32 0.0, %v1687
      %v1689 = vpop.f32.mrb[0].mxu0
      %1690 = vmatprep.mubr.bf16.mxu0 %v1342
      %1691 = vmatmul.mubr.bf16.gmra.mrb[0].mxu0 %v1063
      %v1692 = vpop.f32.mrb[0].mxu0
      %v1693 = vadd.f32 0.0, %v1692
      %v1694 = vpop.f32.mrb[0].mxu0
      %v1695 = vpop.f32.mrb[0].mxu0
      %v1696 = vadd.f32 0.0, %v1695
      %v1697 = vpop.f32.mrb[0].mxu0
      %1698 = vmatprep.mubr.bf16.mxu0 %v1345
      %1699 = vmatmul.mubr.bf16.gmra.mrb[0].mxu0 %v1065
      %v1700 = vpop.f32.mrb[0].mxu0
      %v1701 = vadd.f32 0.0, %v1700
      %v1702 = vpop.f32.mrb[0].mxu0
      %v1703 = vpop.f32.mrb[0].mxu0
      %v1704 = vadd.f32 0.0, %v1703
      %v1705 = vpop.f32.mrb[0].mxu0
      %1706 = vmatprep.mubr.bf16.mxu0 %v1348
      %1707 = vmatmul.mubr.bf16.gmra.mrb[0].mxu0 %v1067
      %v1708 = vpop.f32.mrb[0].mxu0
      %v1709 = vadd.f32 0.0, %v1708
      %v1710 = vpop.f32.mrb[0].mxu0
      %v1711 = vpop.f32.mrb[0].mxu0
      %v1712 = vadd.f32 0.0, %v1711
      %v1713 = vpop.f32.mrb[0].mxu0
      %1714 = vmatprep.mubr.bf16.mxu0 %v1351
      %1715 = vmatmul.mubr.bf16.gmra.mrb[0].mxu0 %v1069
      %v1716 = vpop.f32.mrb[0].mxu0
      %v1717 = vadd.f32 0.0, %v1716
      %v1718 = vpop.f32.mrb[0].mxu0
      %v1719 = vpop.f32.mrb[0].mxu0
      %v1720 = vadd.f32 0.0, %v1719
      %v1721 = vpop.f32.mrb[0].mxu0
      %1722 = vmatprep.mubr.bf16.mxu0 %v1354
      %1723 = vmatmul.mubr.bf16.gmra.mrb[0].mxu0 %v1071
      %v1724 = vpop.f32.mrb[0].mxu0
      %v1725 = vadd.f32 0.0, %v1724
      %v1726 = vpop.f32.mrb[0].mxu0
      %v1727 = vpop.f32.mrb[0].mxu0
      %v1728 = vadd.f32 0.0, %v1727
      %v1729 = vpop.f32.mrb[0].mxu0
      %1730 = vmatprep.mubr.bf16.mxu0 %v1357
      %1731 = vmatmul.mubr.bf16.gmra.mrb[0].mxu0 %v1073
      %v1732 = vpop.f32.mrb[0].mxu0
      %v1733 = vadd.f32 0.0, %v1732
      %v1734 = vpop.f32.mrb[0].mxu0
      %v1735 = vpop.f32.mrb[0].mxu0
      %v1736 = vadd.f32 0.0, %v1735
      %v1737 = vpop.f32.mrb[0].mxu0
      %1738 = vmatprep.mubr.bf16.mxu0 %v1360
      %1739 = vmatmul.mubr.bf16.gmra.mrb[0].mxu0 %v1075
      %v1740 = vpop.f32.mrb[0].mxu0
      %v1741 = vadd.f32 0.0, %v1740
      %v1742 = vpop.f32.mrb[0].mxu0
      %v1743 = vpop.f32.mrb[0].mxu0
      %v1744 = vadd.f32 0.0, %v1743
      %v1745 = vpop.f32.mrb[0].mxu0
      %1746 = vmatprep.mubr.bf16.mxu0 %v1363
      %1747 = vmatmul.mubr.bf16.gmra.mrb[0].mxu0 %v1077
      %v1748 = vpop.f32.mrb[0].mxu0
      %v1749 = vadd.f32 0.0, %v1748
      %v1750 = vpop.f32.mrb[0].mxu0
      %v1751 = vpop.f32.mrb[0].mxu0
      %v1752 = vadd.f32 0.0, %v1751
      %v1753 = vpop.f32.mrb[0].mxu0
      %1754 = vmatprep.mubr.bf16.mxu0 %v1366
      %1755 = vmatmul.mubr.bf16.gmra.mrb[0].mxu0 %v1079
      %v1756 = vpop.f32.mrb[0].mxu0
      %v1757 = vadd.f32 0.0, %v1756
      %v1758 = vpop.f32.mrb[0].mxu0
      %v1759 = vpop.f32.mrb[0].mxu0
      %v1760 = vadd.f32 0.0, %v1759
      %v1761 = vpop.f32.mrb[0].mxu0
      %1762 = vmatprep.mubr.bf16.mxu0 %v1369
      %1763 = vmatmul.mubr.bf16.gmra.mrb[0].mxu0 %v1081
      %v1764 = vpop.f32.mrb[0].mxu0
      %v1765 = vadd.f32 0.0, %v1764
      %v1766 = vpop.f32.mrb[0].mxu0
      %v1767 = vpop.f32.mrb[0].mxu0
      %v1768 = vadd.f32 0.0, %v1767
      %v1769 = vpop.f32.mrb[0].mxu0
      %1770 = vmatprep.mubr.bf16.mxu0 %v1372
      %1771 = vmatmul.mubr.bf16.gmra.mrb[0].mxu0 %v1083
      %v1772 = vpop.f32.mrb[0].mxu0
      %v1773 = vadd.f32 0.0, %v1772
      %v1774 = vpop.f32.mrb[0].mxu0
      %v1775 = vpop.f32.mrb[0].mxu0
      %v1776 = vadd.f32 0.0, %v1775
      %v1777 = vpop.f32.mrb[0].mxu0
      %1778 = vmatprep.mubr.bf16.mxu0 %v1375
      %1779 = vmatmul.mubr.bf16.gmra.mrb[0].mxu0 %v1085
      %v1780 = vpop.f32.mrb[0].mxu0
      %v1781 = vadd.f32 0.0, %v1780
      %v1782 = vpop.f32.mrb[0].mxu0
      %v1783 = vpop.f32.mrb[0].mxu0
      %v1784 = vadd.f32 0.0, %v1783
      %v1785 = vpop.f32.mrb[0].mxu0
      %1786 = vmatprep.mubr.bf16.mxu0 %v1378
      %1787 = vmatmul.mubr.bf16.gmra.mrb[0].mxu0 %v1087
      %v1788 = vpop.f32.mrb[0].mxu0
      %v1789 = vadd.f32 0.0, %v1788
      %v1790 = vpop.f32.mrb[0].mxu0
      %v1791 = vpop.f32.mrb[0].mxu0
      %v1792 = vadd.f32 0.0, %v1791
      %v1793 = vpop.f32.mrb[0].mxu0
      %1794 = vmatprep.mubr.bf16.mxu0 %v1381
      %1795 = vmatmul.mubr.bf16.gmra.mrb[0].mxu0 %v1089
      %v1796 = vpop.f32.mrb[0].mxu0
      %v1797 = vadd.f32 0.0, %v1796
      %v1798 = vpop.f32.mrb[0].mxu0
      %v1799 = vpop.f32.mrb[0].mxu0
      %v1800 = vadd.f32 0.0, %v1799
      %v1801 = vpop.f32.mrb[0].mxu0
      %1802 = vmatprep.mubr.bf16.mxu0 %v1384
      %1803 = vmatmul.mubr.bf16.gmra.mrb[0].mxu0 %v1091
      %v1804 = vpop.f32.mrb[0].mxu0
      %v1805 = vadd.f32 0.0, %v1804
      %v1806 = vpop.f32.mrb[0].mxu0
      %v1807 = vpop.f32.mrb[0].mxu0
      %v1808 = vadd.f32 0.0, %v1807
      %v1809 = vpop.f32.mrb[0].mxu0
      %1810 = vmatprep.mubr.bf16.mxu0 %v1387
      %1811 = vmatmul.mubr.bf16.gmra.mrb[0].mxu0 %v1093
      %v1812 = vpop.f32.mrb[0].mxu0
      %v1813 = vadd.f32 0.0, %v1812
      %v1814 = vpop.f32.mrb[0].mxu0
      %v1815 = vpop.f32.mrb[0].mxu0
      %v1816 = vadd.f32 0.0, %v1815
      %v1817 = vpop.f32.mrb[0].mxu0
      %1818 = vmatprep.mubr.bf16.mxu0 %v1390
      %1819 = vmatmul.mubr.bf16.gmra.mrb[0].mxu0 %v1095
      %v1820 = vpop.f32.mrb[0].mxu0
      %v1821 = vadd.f32 0.0, %v1820
      %v1822 = vpop.f32.mrb[0].mxu0
      %v1823 = vpop.f32.mrb[0].mxu0
      %v1824 = vadd.f32 0.0, %v1823
      %v1825 = vpop.f32.mrb[0].mxu0
      %1826 = vmatprep.mubr.bf16.mxu0 %v1393
      %1827 = vmatmul.mubr.bf16.gmra.mrb[0].mxu0 %v1097
      %v1828 = vpop.f32.mrb[0].mxu0
      %v1829 = vadd.f32 0.0, %v1828
      %v1830 = vpop.f32.mrb[0].mxu0
      %v1831 = vpop.f32.mrb[0].mxu0
      %v1832 = vadd.f32 0.0, %v1831
      %v1833 = vpop.f32.mrb[0].mxu0
      %1834 = vmatprep.mubr.bf16.mxu0 %v1396
      %1835 = vmatmul.mubr.bf16.gmra.mrb[0].mxu0 %v1099
      %v1836 = vpop.f32.mrb[0].mxu0
      %v1837 = vadd.f32 0.0, %v1836
      %v1838 = vpop.f32.mrb[0].mxu0
      %v1839 = vpop.f32.mrb[0].mxu0
      %v1840 = vadd.f32 0.0, %v1839
      %v1841 = vpop.f32.mrb[0].mxu0
      %1842 = vmatprep.mubr.bf16.mxu0 %v1399
      %1843 = vmatmul.mubr.bf16.gmra.mrb[0].mxu0 %v1101
      %v1844 = vpop.f32.mrb[0].mxu0
      %v1845 = vadd.f32 0.0, %v1844
      %v1846 = vpop.f32.mrb[0].mxu0
      %v1847 = vpop.f32.mrb[0].mxu0
      %v1848 = vadd.f32 0.0, %v1847
      %v1849 = vpop.f32.mrb[0].mxu0
      %1850 = vmatprep.mubr.bf16.mxu0 %v1402
      %1851 = vmatmul.mubr.bf16.gmra.mrb[0].mxu0 %v1103
      %v1852 = vpop.f32.mrb[0].mxu0
      %v1853 = vadd.f32 0.0, %v1852
      %v1854 = vpop.f32.mrb[0].mxu0
      %v1855 = vpop.f32.mrb[0].mxu0
      %v1856 = vadd.f32 0.0, %v1855
      %v1857 = vpop.f32.mrb[0].mxu0
      %1858 = vmatprep.mubr.bf16.mxu0 %v1405
      %1859 = vmatmul.mubr.bf16.gmra.mrb[0].mxu0 %v1105
      %v1860 = vpop.f32.mrb[0].mxu0
      %v1861 = vadd.f32 0.0, %v1860
      %v1862 = vpop.f32.mrb[0].mxu0
      %v1863 = vpop.f32.mrb[0].mxu0
      %v1864 = vadd.f32 0.0, %v1863
      %v1865 = vpop.f32.mrb[0].mxu0
      %1866 = vmatprep.mubr.bf16.mxu0 %v1408
      %1867 = vmatmul.mubr.bf16.gmra.mrb[0].mxu0 %v1107
      %v1868 = vpop.f32.mrb[0].mxu0
      %v1869 = vadd.f32 0.0, %v1868
      %v1870 = vpop.f32.mrb[0].mxu0
      %v1871 = vpop.f32.mrb[0].mxu0
      %v1872 = vadd.f32 0.0, %v1871
      %v1873 = vpop.f32.mrb[0].mxu0
      %1874 = vmatprep.mubr.bf16.mxu0 %v1411
      %1875 = vmatmul.mubr.bf16.gmra.mrb[0].mxu0 %v1109
      %v1876 = vpop.f32.mrb[0].mxu0
      %v1877 = vadd.f32 0.0, %v1876
      %v1878 = vpop.f32.mrb[0].mxu0
      %v1879 = vpop.f32.mrb[0].mxu0
      %v1880 = vadd.f32 0.0, %v1879
      %v1881 = vpop.f32.mrb[0].mxu0
      %1882 = vmatprep.mubr.bf16.mxu0 %v1414
      %1883 = vmatmul.mubr.bf16.gmra.mrb[0].mxu0 %v1111
      %v1884 = vpop.f32.mrb[0].mxu0
      %v1885 = vadd.f32 0.0, %v1884
      %v1886 = vpop.f32.mrb[0].mxu0
      %v1887 = vpop.f32.mrb[0].mxu0
      %v1888 = vadd.f32 0.0, %v1887
      %v1889 = vpop.f32.mrb[0].mxu0
      %1890 = vmatprep.mubr.bf16.mxu0 %v1417
      %1891 = vmatmul.mubr.bf16.gmra.mrb[0].mxu0 %v1113
      %v1892 = vpop.f32.mrb[0].mxu0
      %v1893 = vadd.f32 0.0, %v1892
      %v1894 = vpop.f32.mrb[0].mxu0
      %v1895 = vpop.f32.mrb[0].mxu0
      %v1896 = vadd.f32 0.0, %v1895
      %v1897 = vpop.f32.mrb[0].mxu0
      %1898 = vmatprep.mubr.bf16.mxu0 %v1420
      %1899 = vmatmul.mubr.bf16.gmra.mrb[0].mxu0 %v1115
      %v1900 = vpop.f32.mrb[0].mxu0
      %v1901 = vadd.f32 0.0, %v1900
      %v1902 = vpop.f32.mrb[0].mxu0
      %v1903 = vpop.f32.mrb[0].mxu0
      %v1904 = vadd.f32 0.0, %v1903
      %v1905 = vpop.f32.mrb[0].mxu0
      %1906 = vmatprep.mubr.bf16.mxu0 %v1423
      %1907 = vmatmul.mubr.bf16.gmra.mrb[0].mxu0 %v1117
      %v1908 = vpop.f32.mrb[0].mxu0
      %v1909 = vadd.f32 0.0, %v1908
      %v1910 = vpop.f32.mrb[0].mxu0
      %v1911 = vpop.f32.mrb[0].mxu0
      %v1912 = vadd.f32 0.0, %v1911
      %v1913 = vpop.f32.mrb[0].mxu0
      %1914 = vmatprep.mubr.bf16.mxu0 %v1426
      %1915 = vmatmul.mubr.bf16.gmra.mrb[0].mxu0 %v1119
      %v1916 = vpop.f32.mrb[0].mxu0
      %v1917 = vadd.f32 0.0, %v1916
      %v1918 = vpop.f32.mrb[0].mxu0
      %v1919 = vpop.f32.mrb[0].mxu0
      %v1920 = vadd.f32 0.0, %v1919
      %v1921 = vpop.f32.mrb[0].mxu0
      %1922 = vmatprep.mubr.bf16.mxu0 %v1429
      %1923 = vmatmul.mubr.bf16.gmra.mrb[0].mxu0 %v1121
      %v1924 = vpop.f32.mrb[0].mxu0
      %v1925 = vadd.f32 0.0, %v1924
      %v1926 = vpop.f32.mrb[0].mxu0
      %v1927 = vpop.f32.mrb[0].mxu0
      %v1928 = vadd.f32 0.0, %v1927
      %v1929 = vpop.f32.mrb[0].mxu0
      %1930 = vmatprep.mubr.bf16.mxu0 %v1432
      %1931 = vmatmul.mubr.bf16.gmra.mrb[0].mxu0 %v1123
      %v1932 = vpop.f32.mrb[0].mxu0
      %v1933 = vadd.f32 0.0, %v1932
      %v1934 = vpop.f32.mrb[0].mxu0
      %v1935 = vpop.f32.mrb[0].mxu0
      %v1936 = vadd.f32 0.0, %v1935
      %v1937 = vpop.f32.mrb[0].mxu0
      %1938 = vmatprep.mubr.bf16.mxu0 %v1435
      %1939 = vmatmul.mubr.bf16.gmra.mrb[0].mxu0 %v1125
      %v1940 = vpop.f32.mrb[0].mxu0
      %v1941 = vadd.f32 0.0, %v1940
      %v1942 = vpop.f32.mrb[0].mxu0
      %v1943 = vpop.f32.mrb[0].mxu0
      %v1944 = vadd.f32 0.0, %v1943
      %v1945 = vpop.f32.mrb[0].mxu0
      %1946 = vmatprep.mubr.bf16.mxu0 %v1438
      %1947 = vmatmul.mubr.bf16.gmra.mrb[0].mxu0 %v1127
      %v1948 = vpop.f32.mrb[0].mxu0
      %v1949 = vadd.f32 0.0, %v1948
      %v1950 = vpop.f32.mrb[0].mxu0
      %v1951 = vpop.f32.mrb[0].mxu0
      %v1952 = vadd.f32 0.0, %v1951
      %v1953 = vpop.f32.mrb[0].mxu0
      %1954 = vmatprep.mubr.bf16.mxu0 %v1441
      %1955 = vmatmul.mubr.bf16.gmra.mrb[0].mxu0 %v1129
      %v1956 = vpop.f32.mrb[0].mxu0
      %v1957 = vadd.f32 0.0, %v1956
      %v1958 = vpop.f32.mrb[0].mxu0
      %v1959 = vpop.f32.mrb[0].mxu0
      %v1960 = vadd.f32 0.0, %v1959
      %v1961 = vpop.f32.mrb[0].mxu0
      %1962 = vmatprep.mubr.bf16.mxu0 %v1444
      %1963 = vmatmul.mubr.bf16.gmra.mrb[0].mxu0 %v1131
      %v1964 = vpop.f32.mrb[0].mxu0
      %v1965 = vadd.f32 0.0, %v1964
      %v1966 = vpop.f32.mrb[0].mxu0
      %v1967 = vpop.f32.mrb[0].mxu0
      %v1968 = vadd.f32 0.0, %v1967
      %v1969 = vpop.f32.mrb[0].mxu0
      %1970 = vmatprep.mubr.bf16.mxu0 %v1447
      %1971 = vmatmul.mubr.bf16.gmra.mrb[0].mxu0 %v1133
      %v1972 = vpop.f32.mrb[0].mxu0
      %v1973 = vadd.f32 0.0, %v1972
      %v1974 = vpop.f32.mrb[0].mxu0
      %v1975 = vpop.f32.mrb[0].mxu0
      %v1976 = vadd.f32 0.0, %v1975
      %v1977 = vpop.f32.mrb[0].mxu0
      %1978 = vmatprep.mubr.bf16.mxu0 %v1450
      %1979 = vmatmul.mubr.bf16.gmra.mrb[0].mxu0 %v1135
      %v1980 = vpop.f32.mrb[0].mxu0
      %v1981 = vadd.f32 0.0, %v1980
      %v1982 = vpop.f32.mrb[0].mxu0
      %v1983 = vpop.f32.mrb[0].mxu0
      %v1984 = vadd.f32 0.0, %v1983
      %v1985 = vpop.f32.mrb[0].mxu0
      %1986 = vmatprep.mubr.bf16.mxu0 %v1453
      %1987 = vmatmul.mubr.bf16.gmra.mrb[0].mxu0 %v1137
      %v1988 = vpop.f32.mrb[0].mxu0
      %v1989 = vadd.f32 0.0, %v1988
      %v1990 = vpop.f32.mrb[0].mxu0
      %v1991 = vpop.f32.mrb[0].mxu0
      %v1992 = vadd.f32 0.0, %v1991
      %v1993 = vpop.f32.mrb[0].mxu0
      %1994 = vmatprep.mubr.bf16.mxu0 %v1456
      %1995 = vmatmul.mubr.bf16.gmra.mrb[0].mxu0 %v1139
      %v1996 = vpop.f32.mrb[0].mxu0
      %v1997 = vadd.f32 0.0, %v1996
      %v1998 = vpop.f32.mrb[0].mxu0
      %v1999 = vpop.f32.mrb[0].mxu0
      %v2000 = vadd.f32 0.0, %v1999
      %v2001 = vpop.f32.mrb[0].mxu0
      %2002 = vdwg.mxu0
      %v2003 = vmul.f32 %v1493, %v1493
      %v2004 = vmul.f32 %v1496, %v1496
      %v2005 = vmul.f32 %v1501, %v1501
      %v2006 = vmul.f32 %v1504, %v1504
      %v2007 = vmul.f32 %v1509, %v1509
      %v2008 = vmul.f32 %v1512, %v1512
      %v2009 = vmul.f32 %v1517, %v1517
      %v2010 = vmul.f32 %v1520, %v1520
      %v2011 = vmul.f32 %v1525, %v1525
      %v2012 = vmul.f32 %v1528, %v1528
      %v2013 = vmul.f32 %v1533, %v1533
      %v2014 = vmul.f32 %v1536, %v1536
      %v2015 = vmul.f32 %v1541, %v1541
      %v2016 = vmul.f32 %v1544, %v1544
      %v2017 = vmul.f32 %v1549, %v1549
      %v2018 = vmul.f32 %v1552, %v1552
      %v2019 = vmul.f32 %v1557, %v1557
      %v2020 = vmul.f32 %v1560, %v1560
      %v2021 = vmul.f32 %v1565, %v1565
      %v2022 = vmul.f32 %v1568, %v1568
      %v2023 = vmul.f32 %v1573, %v1573
      %v2024 = vmul.f32 %v1576, %v1576
      %v2025 = vmul.f32 %v1581, %v1581
      %v2026 = vmul.f32 %v1584, %v1584
      %v2027 = vmul.f32 %v1589, %v1589
      %v2028 = vmul.f32 %v1592, %v1592
      %v2029 = vmul.f32 %v1597, %v1597
      %v2030 = vmul.f32 %v1600, %v1600
      %v2031 = vmul.f32 %v1605, %v1605
      %v2032 = vmul.f32 %v1608, %v1608
      %v2033 = vmul.f32 %v1613, %v1613
      %v2034 = vmul.f32 %v1616, %v1616
      %v2035 = vmul.f32 %v1621, %v1621
      %v2036 = vmul.f32 %v1624, %v1624
      %v2037 = vmul.f32 %v1629, %v1629
      %v2038 = vmul.f32 %v1632, %v1632
      %v2039 = vmul.f32 %v1637, %v1637
      %v2040 = vmul.f32 %v1640, %v1640
      %v2041 = vmul.f32 %v1645, %v1645
      %v2042 = vmul.f32 %v1648, %v1648
      %v2043 = vmul.f32 %v1653, %v1653
      %v2044 = vmul.f32 %v1656, %v1656
      %v2045 = vmul.f32 %v1661, %v1661
      %v2046 = vmul.f32 %v1664, %v1664
      %v2047 = vmul.f32 %v1669, %v1669
      %v2048 = vmul.f32 %v1672, %v1672
      %v2049 = vmul.f32 %v1677, %v1677
      %v2050 = vmul.f32 %v1680, %v1680
      %v2051 = vmul.f32 %v1685, %v1685
      %v2052 = vmul.f32 %v1688, %v1688
      %v2053 = vmul.f32 %v1693, %v1693
      %v2054 = vmul.f32 %v1696, %v1696
      %v2055 = vmul.f32 %v1701, %v1701
      %v2056 = vmul.f32 %v1704, %v1704
      %v2057 = vmul.f32 %v1709, %v1709
      %v2058 = vmul.f32 %v1712, %v1712
      %v2059 = vmul.f32 %v1717, %v1717
      %v2060 = vmul.f32 %v1720, %v1720
      %v2061 = vmul.f32 %v1725, %v1725
      %v2062 = vmul.f32 %v1728, %v1728
      %v2063 = vmul.f32 %v1733, %v1733
      %v2064 = vmul.f32 %v1736, %v1736
      %v2065 = vmul.f32 %v1741, %v1741
      %v2066 = vmul.f32 %v1744, %v1744
      %v2067 = vmul.f32 %v1749, %v1749
      %v2068 = vmul.f32 %v1752, %v1752
      %v2069 = vmul.f32 %v1757, %v1757
      %v2070 = vmul.f32 %v1760, %v1760
      %v2071 = vmul.f32 %v1765, %v1765
      %v2072 = vmul.f32 %v1768, %v1768
      %v2073 = vmul.f32 %v1773, %v1773
      %v2074 = vmul.f32 %v1776, %v1776
      %v2075 = vmul.f32 %v1781, %v1781
      %v2076 = vmul.f32 %v1784, %v1784
      %v2077 = vmul.f32 %v1789, %v1789
      %v2078 = vmul.f32 %v1792, %v1792
      %v2079 = vmul.f32 %v1797, %v1797
      %v2080 = vmul.f32 %v1800, %v1800
      %v2081 = vmul.f32 %v1805, %v1805
      %v2082 = vmul.f32 %v1808, %v1808
      %v2083 = vmul.f32 %v1813, %v1813
      %v2084 = vmul.f32 %v1816, %v1816
      %v2085 = vmul.f32 %v1821, %v1821
      %v2086 = vmul.f32 %v1824, %v1824
      %v2087 = vmul.f32 %v1829, %v1829
      %v2088 = vmul.f32 %v1832, %v1832
      %v2089 = vmul.f32 %v1837, %v1837
      %v2090 = vmul.f32 %v1840, %v1840
      %v2091 = vmul.f32 %v1845, %v1845
      %v2092 = vmul.f32 %v1848, %v1848
      %v2093 = vmul.f32 %v1853, %v1853
      %v2094 = vmul.f32 %v1856, %v1856
      %v2095 = vmul.f32 %v1861, %v1861
      %v2096 = vmul.f32 %v1864, %v1864
      %v2097 = vmul.f32 %v1869, %v1869
      %v2098 = vmul.f32 %v1872, %v1872
      %v2099 = vmul.f32 %v1877, %v1877
      %v2100 = vmul.f32 %v1880, %v1880
      %v2101 = vmul.f32 %v1885, %v1885
      %v2102 = vmul.f32 %v1888, %v1888
      %v2103 = vmul.f32 %v1893, %v1893
      %v2104 = vmul.f32 %v1896, %v1896
      %v2105 = vmul.f32 %v1901, %v1901
      %v2106 = vmul.f32 %v1904, %v1904
      %v2107 = vmul.f32 %v1909, %v1909
      %v2108 = vmul.f32 %v1912, %v1912
      %v2109 = vmul.f32 %v1917, %v1917
      %v2110 = vmul.f32 %v1920, %v1920
      %v2111 = vmul.f32 %v1925, %v1925
      %v2112 = vmul.f32 %v1928, %v1928
      %v2113 = vmul.f32 %v1933, %v1933
      %v2114 = vmul.f32 %v1936, %v1936
      %v2115 = vmul.f32 %v1941, %v1941
      %v2116 = vmul.f32 %v1944, %v1944
      %v2117 = vmul.f32 %v1949, %v1949
      %v2118 = vmul.f32 %v1952, %v1952
      %v2119 = vmul.f32 %v1957, %v1957
      %v2120 = vmul.f32 %v1960, %v1960
      %v2121 = vmul.f32 %v1965, %v1965
      %v2122 = vmul.f32 %v1968, %v1968
      %v2123 = vmul.f32 %v1973, %v1973
      %v2124 = vmul.f32 %v1976, %v1976
      %v2125 = vmul.f32 %v1981, %v1981
      %v2126 = vmul.f32 %v1984, %v1984
      %v2127 = vmul.f32 %v1989, %v1989
      %v2128 = vmul.f32 %v1992, %v1992
      %v2129 = vmul.f32 %v1997, %v1997
      %v2130 = vmul.f32 %v2000, %v2000
      %vm2131 = vcmask 31744
      %v2132 = vsel %vm2131, %v2003, 0.0
      %2133 = vadd.xlane.f32.xlu0 %v2132
      %v2134 = vpop.xlane.xlu0 %2133
      %v2135 = vsel %vm2131, %v2004, 0.0
      %2136 = vadd.xlane.f32.xlu0 %v2135
      %v2137 = vpop.xlane.xlu0 %2136
      %v2138 = vsel %vm2131, %v2005, 0.0
      %2139 = vadd.xlane.f32.xlu0 %v2138
      %v2140 = vpop.xlane.xlu0 %2139
      %v2141 = vsel %vm2131, %v2006, 0.0
      %2142 = vadd.xlane.f32.xlu0 %v2141
      %v2143 = vpop.xlane.xlu0 %2142
      %v2144 = vsel %vm2131, %v2007, 0.0
      %2145 = vadd.xlane.f32.xlu0 %v2144
      %v2146 = vpop.xlane.xlu0 %2145
      %v2147 = vsel %vm2131, %v2008, 0.0
      %2148 = vadd.xlane.f32.xlu0 %v2147
      %v2149 = vpop.xlane.xlu0 %2148
      %v2150 = vsel %vm2131, %v2009, 0.0
      %2151 = vadd.xlane.f32.xlu0 %v2150
      %v2152 = vpop.xlane.xlu0 %2151
      %v2153 = vsel %vm2131, %v2010, 0.0
      %2154 = vadd.xlane.f32.xlu0 %v2153
      %v2155 = vpop.xlane.xlu0 %2154
      %v2156 = vsel %vm2131, %v2011, 0.0
      %2157 = vadd.xlane.f32.xlu0 %v2156
      %v2158 = vpop.xlane.xlu0 %2157
      %v2159 = vsel %vm2131, %v2012, 0.0
      %2160 = vadd.xlane.f32.xlu0 %v2159
      %v2161 = vpop.xlane.xlu0 %2160
      %v2162 = vsel %vm2131, %v2013, 0.0
      %2163 = vadd.xlane.f32.xlu0 %v2162
      %v2164 = vpop.xlane.xlu0 %2163
      %v2165 = vsel %vm2131, %v2014, 0.0
      %2166 = vadd.xlane.f32.xlu0 %v2165
      %v2167 = vpop.xlane.xlu0 %2166
      %v2168 = vsel %vm2131, %v2015, 0.0
      %2169 = vadd.xlane.f32.xlu0 %v2168
      %v2170 = vpop.xlane.xlu0 %2169
      %v2171 = vsel %vm2131, %v2016, 0.0
      %2172 = vadd.xlane.f32.xlu0 %v2171
      %v2173 = vpop.xlane.xlu0 %2172
      %v2174 = vsel %vm2131, %v2017, 0.0
      %2175 = vadd.xlane.f32.xlu0 %v2174
      %v2176 = vpop.xlane.xlu0 %2175
      %v2177 = vsel %vm2131, %v2018, 0.0
      %2178 = vadd.xlane.f32.xlu0 %v2177
      %v2179 = vpop.xlane.xlu0 %2178
      %v2180 = vsel %vm2131, %v2019, 0.0
      %2181 = vadd.xlane.f32.xlu0 %v2180
      %v2182 = vpop.xlane.xlu0 %2181
      %v2183 = vsel %vm2131, %v2020, 0.0
      %2184 = vadd.xlane.f32.xlu0 %v2183
      %v2185 = vpop.xlane.xlu0 %2184
      %v2186 = vsel %vm2131, %v2021, 0.0
      %2187 = vadd.xlane.f32.xlu0 %v2186
      %v2188 = vpop.xlane.xlu0 %2187
      %v2189 = vsel %vm2131, %v2022, 0.0
      %2190 = vadd.xlane.f32.xlu0 %v2189
      %v2191 = vpop.xlane.xlu0 %2190
      %v2192 = vsel %vm2131, %v2023, 0.0
      %2193 = vadd.xlane.f32.xlu0 %v2192
      %v2194 = vpop.xlane.xlu0 %2193
      %v2195 = vsel %vm2131, %v2024, 0.0
      %2196 = vadd.xlane.f32.xlu0 %v2195
      %v2197 = vpop.xlane.xlu0 %2196
      %v2198 = vsel %vm2131, %v2025, 0.0
      %2199 = vadd.xlane.f32.xlu0 %v2198
      %v2200 = vpop.xlane.xlu0 %2199
      %v2201 = vsel %vm2131, %v2026, 0.0
      %2202 = vadd.xlane.f32.xlu0 %v2201
      %v2203 = vpop.xlane.xlu0 %2202
      %v2204 = vsel %vm2131, %v2027, 0.0
      %2205 = vadd.xlane.f32.xlu0 %v2204
      %v2206 = vpop.xlane.xlu0 %2205
      %v2207 = vsel %vm2131, %v2028, 0.0
      %2208 = vadd.xlane.f32.xlu0 %v2207
      %v2209 = vpop.xlane.xlu0 %2208
      %v2210 = vsel %vm2131, %v2029, 0.0
      %2211 = vadd.xlane.f32.xlu0 %v2210
      %v2212 = vpop.xlane.xlu0 %2211
      %v2213 = vsel %vm2131, %v2030, 0.0
      %2214 = vadd.xlane.f32.xlu0 %v2213
      %v2215 = vpop.xlane.xlu0 %2214
      %v2216 = vsel %vm2131, %v2031, 0.0
      %2217 = vadd.xlane.f32.xlu0 %v2216
      %v2218 = vpop.xlane.xlu0 %2217
      %v2219 = vsel %vm2131, %v2032, 0.0
      %2220 = vadd.xlane.f32.xlu0 %v2219
      %v2221 = vpop.xlane.xlu0 %2220
      %v2222 = vsel %vm2131, %v2033, 0.0
      %2223 = vadd.xlane.f32.xlu0 %v2222
      %v2224 = vpop.xlane.xlu0 %2223
      %v2225 = vsel %vm2131, %v2034, 0.0
      %2226 = vadd.xlane.f32.xlu0 %v2225
      %v2227 = vpop.xlane.xlu0 %2226
      %v2228 = vsel %vm2131, %v2035, 0.0
      %2229 = vadd.xlane.f32.xlu0 %v2228
      %v2230 = vpop.xlane.xlu0 %2229
      %v2231 = vsel %vm2131, %v2036, 0.0
      %2232 = vadd.xlane.f32.xlu0 %v2231
      %v2233 = vpop.xlane.xlu0 %2232
      %v2234 = vsel %vm2131, %v2037, 0.0
      %2235 = vadd.xlane.f32.xlu0 %v2234
      %v2236 = vpop.xlane.xlu0 %2235
      %v2237 = vsel %vm2131, %v2038, 0.0
      %2238 = vadd.xlane.f32.xlu0 %v2237
      %v2239 = vpop.xlane.xlu0 %2238
      %v2240 = vsel %vm2131, %v2039, 0.0
      %2241 = vadd.xlane.f32.xlu0 %v2240
      %v2242 = vpop.xlane.xlu0 %2241
      %v2243 = vsel %vm2131, %v2040, 0.0
      %2244 = vadd.xlane.f32.xlu0 %v2243
      %v2245 = vpop.xlane.xlu0 %2244
      %v2246 = vsel %vm2131, %v2041, 0.0
      %2247 = vadd.xlane.f32.xlu0 %v2246
      %v2248 = vpop.xlane.xlu0 %2247
      %v2249 = vsel %vm2131, %v2042, 0.0
      %2250 = vadd.xlane.f32.xlu0 %v2249
      %v2251 = vpop.xlane.xlu0 %2250
      %v2252 = vsel %vm2131, %v2043, 0.0
      %2253 = vadd.xlane.f32.xlu0 %v2252
      %v2254 = vpop.xlane.xlu0 %2253
      %v2255 = vsel %vm2131, %v2044, 0.0
      %2256 = vadd.xlane.f32.xlu0 %v2255
      %v2257 = vpop.xlane.xlu0 %2256
      %v2258 = vsel %vm2131, %v2045, 0.0
      %2259 = vadd.xlane.f32.xlu0 %v2258
      %v2260 = vpop.xlane.xlu0 %2259
      %v2261 = vsel %vm2131, %v2046, 0.0
      %2262 = vadd.xlane.f32.xlu0 %v2261
      %v2263 = vpop.xlane.xlu0 %2262
      %v2264 = vsel %vm2131, %v2047, 0.0
      %2265 = vadd.xlane.f32.xlu0 %v2264
      %v2266 = vpop.xlane.xlu0 %2265
      %v2267 = vsel %vm2131, %v2048, 0.0
      %2268 = vadd.xlane.f32.xlu0 %v2267
      %v2269 = vpop.xlane.xlu0 %2268
      %v2270 = vsel %vm2131, %v2049, 0.0
      %2271 = vadd.xlane.f32.xlu0 %v2270
      %v2272 = vpop.xlane.xlu0 %2271
      %v2273 = vsel %vm2131, %v2050, 0.0
      %2274 = vadd.xlane.f32.xlu0 %v2273
      %v2275 = vpop.xlane.xlu0 %2274
      %v2276 = vsel %vm2131, %v2051, 0.0
      %2277 = vadd.xlane.f32.xlu0 %v2276
      %v2278 = vpop.xlane.xlu0 %2277
      %v2279 = vsel %vm2131, %v2052, 0.0
      %2280 = vadd.xlane.f32.xlu0 %v2279
      %v2281 = vpop.xlane.xlu0 %2280
      %v2282 = vsel %vm2131, %v2053, 0.0
      %2283 = vadd.xlane.f32.xlu0 %v2282
      %v2284 = vpop.xlane.xlu0 %2283
      %v2285 = vsel %vm2131, %v2054, 0.0
      %2286 = vadd.xlane.f32.xlu0 %v2285
      %v2287 = vpop.xlane.xlu0 %2286
      %v2288 = vsel %vm2131, %v2055, 0.0
      %2289 = vadd.xlane.f32.xlu0 %v2288
      %v2290 = vpop.xlane.xlu0 %2289
      %v2291 = vsel %vm2131, %v2056, 0.0
      %2292 = vadd.xlane.f32.xlu0 %v2291
      %v2293 = vpop.xlane.xlu0 %2292
      %v2294 = vsel %vm2131, %v2057, 0.0
      %2295 = vadd.xlane.f32.xlu0 %v2294
      %v2296 = vpop.xlane.xlu0 %2295
      %v2297 = vsel %vm2131, %v2058, 0.0
      %2298 = vadd.xlane.f32.xlu0 %v2297
      %v2299 = vpop.xlane.xlu0 %2298
      %v2300 = vsel %vm2131, %v2059, 0.0
      %2301 = vadd.xlane.f32.xlu0 %v2300
      %v2302 = vpop.xlane.xlu0 %2301
      %v2303 = vsel %vm2131, %v2060, 0.0
      %2304 = vadd.xlane.f32.xlu0 %v2303
      %v2305 = vpop.xlane.xlu0 %2304
      %v2306 = vsel %vm2131, %v2061, 0.0
      %2307 = vadd.xlane.f32.xlu0 %v2306
      %v2308 = vpop.xlane.xlu0 %2307
      %v2309 = vsel %vm2131, %v2062, 0.0
      %2310 = vadd.xlane.f32.xlu0 %v2309
      %v2311 = vpop.xlane.xlu0 %2310
      %v2312 = vsel %vm2131, %v2063, 0.0
      %2313 = vadd.xlane.f32.xlu0 %v2312
      %v2314 = vpop.xlane.xlu0 %2313
      %v2315 = vsel %vm2131, %v2064, 0.0
      %2316 = vadd.xlane.f32.xlu0 %v2315
      %v2317 = vpop.xlane.xlu0 %2316
      %v2318 = vsel %vm2131, %v2065, 0.0
      %2319 = vadd.xlane.f32.xlu0 %v2318
      %v2320 = vpop.xlane.xlu0 %2319
      %v2321 = vsel %vm2131, %v2066, 0.0
      %2322 = vadd.xlane.f32.xlu0 %v2321
      %v2323 = vpop.xlane.xlu0 %2322
      %v2324 = vsel %vm2131, %v2067, 0.0
      %2325 = vadd.xlane.f32.xlu0 %v2324
      %v2326 = vpop.xlane.xlu0 %2325
      %v2327 = vsel %vm2131, %v2068, 0.0
      %2328 = vadd.xlane.f32.xlu0 %v2327
      %v2329 = vpop.xlane.xlu0 %2328
      %v2330 = vsel %vm2131, %v2069, 0.0
      %2331 = vadd.xlane.f32.xlu0 %v2330
      %v2332 = vpop.xlane.xlu0 %2331
      %v2333 = vsel %vm2131, %v2070, 0.0
      %2334 = vadd.xlane.f32.xlu0 %v2333
      %v2335 = vpop.xlane.xlu0 %2334
      %v2336 = vsel %vm2131, %v2071, 0.0
      %2337 = vadd.xlane.f32.xlu0 %v2336
      %v2338 = vpop.xlane.xlu0 %2337
      %v2339 = vsel %vm2131, %v2072, 0.0
      %2340 = vadd.xlane.f32.xlu0 %v2339
      %v2341 = vpop.xlane.xlu0 %2340
      %v2342 = vsel %vm2131, %v2073, 0.0
      %2343 = vadd.xlane.f32.xlu0 %v2342
      %v2344 = vpop.xlane.xlu0 %2343
      %v2345 = vsel %vm2131, %v2074, 0.0
      %2346 = vadd.xlane.f32.xlu0 %v2345
      %v2347 = vpop.xlane.xlu0 %2346
      %v2348 = vsel %vm2131, %v2075, 0.0
      %2349 = vadd.xlane.f32.xlu0 %v2348
      %v2350 = vpop.xlane.xlu0 %2349
      %v2351 = vsel %vm2131, %v2076, 0.0
      %2352 = vadd.xlane.f32.xlu0 %v2351
      %v2353 = vpop.xlane.xlu0 %2352
      %v2354 = vsel %vm2131, %v2077, 0.0
      %2355 = vadd.xlane.f32.xlu0 %v2354
      %v2356 = vpop.xlane.xlu0 %2355
      %v2357 = vsel %vm2131, %v2078, 0.0
      %2358 = vadd.xlane.f32.xlu0 %v2357
      %v2359 = vpop.xlane.xlu0 %2358
      %v2360 = vsel %vm2131, %v2079, 0.0
      %2361 = vadd.xlane.f32.xlu0 %v2360
      %v2362 = vpop.xlane.xlu0 %2361
      %v2363 = vsel %vm2131, %v2080, 0.0
      %2364 = vadd.xlane.f32.xlu0 %v2363
      %v2365 = vpop.xlane.xlu0 %2364
      %v2366 = vsel %vm2131, %v2081, 0.0
      %2367 = vadd.xlane.f32.xlu0 %v2366
      %v2368 = vpop.xlane.xlu0 %2367
      %v2369 = vsel %vm2131, %v2082, 0.0
      %2370 = vadd.xlane.f32.xlu0 %v2369
      %v2371 = vpop.xlane.xlu0 %2370
      %v2372 = vsel %vm2131, %v2083, 0.0
      %2373 = vadd.xlane.f32.xlu0 %v2372
      %v2374 = vpop.xlane.xlu0 %2373
      %v2375 = vsel %vm2131, %v2084, 0.0
      %2376 = vadd.xlane.f32.xlu0 %v2375
      %v2377 = vpop.xlane.xlu0 %2376
      %v2378 = vsel %vm2131, %v2085, 0.0
      %2379 = vadd.xlane.f32.xlu0 %v2378
      %v2380 = vpop.xlane.xlu0 %2379
      %v2381 = vsel %vm2131, %v2086, 0.0
      %2382 = vadd.xlane.f32.xlu0 %v2381
      %v2383 = vpop.xlane.xlu0 %2382
      %v2384 = vsel %vm2131, %v2087, 0.0
      %2385 = vadd.xlane.f32.xlu0 %v2384
      %v2386 = vpop.xlane.xlu0 %2385
      %v2387 = vsel %vm2131, %v2088, 0.0
      %2388 = vadd.xlane.f32.xlu0 %v2387
      %v2389 = vpop.xlane.xlu0 %2388
      %v2390 = vsel %vm2131, %v2089, 0.0
      %2391 = vadd.xlane.f32.xlu0 %v2390
      %v2392 = vpop.xlane.xlu0 %2391
      %v2393 = vsel %vm2131, %v2090, 0.0
      %2394 = vadd.xlane.f32.xlu0 %v2393
      %v2395 = vpop.xlane.xlu0 %2394
      %v2396 = vsel %vm2131, %v2091, 0.0
      %2397 = vadd.xlane.f32.xlu0 %v2396
      %v2398 = vpop.xlane.xlu0 %2397
      %v2399 = vsel %vm2131, %v2092, 0.0
      %2400 = vadd.xlane.f32.xlu0 %v2399
      %v2401 = vpop.xlane.xlu0 %2400
      %v2402 = vsel %vm2131, %v2093, 0.0
      %2403 = vadd.xlane.f32.xlu0 %v2402
      %v2404 = vpop.xlane.xlu0 %2403
      %v2405 = vsel %vm2131, %v2094, 0.0
      %2406 = vadd.xlane.f32.xlu0 %v2405
      %v2407 = vpop.xlane.xlu0 %2406
      %v2408 = vsel %vm2131, %v2095, 0.0
      %2409 = vadd.xlane.f32.xlu0 %v2408
      %v2410 = vpop.xlane.xlu0 %2409
      %v2411 = vsel %vm2131, %v2096, 0.0
      %2412 = vadd.xlane.f32.xlu0 %v2411
      %v2413 = vpop.xlane.xlu0 %2412
      %v2414 = vsel %vm2131, %v2097, 0.0
      %2415 = vadd.xlane.f32.xlu0 %v2414
      %v2416 = vpop.xlane.xlu0 %2415
      %v2417 = vsel %vm2131, %v2098, 0.0
      %2418 = vadd.xlane.f32.xlu0 %v2417
      %v2419 = vpop.xlane.xlu0 %2418
      %v2420 = vsel %vm2131, %v2099, 0.0
      %2421 = vadd.xlane.f32.xlu0 %v2420
      %v2422 = vpop.xlane.xlu0 %2421
      %v2423 = vsel %vm2131, %v2100, 0.0
      %2424 = vadd.xlane.f32.xlu0 %v2423
      %v2425 = vpop.xlane.xlu0 %2424
      %v2426 = vsel %vm2131, %v2101, 0.0
      %2427 = vadd.xlane.f32.xlu0 %v2426
      %v2428 = vpop.xlane.xlu0 %2427
      %v2429 = vsel %vm2131, %v2102, 0.0
      %2430 = vadd.xlane.f32.xlu0 %v2429
      %v2431 = vpop.xlane.xlu0 %2430
      %v2432 = vsel %vm2131, %v2103, 0.0
      %2433 = vadd.xlane.f32.xlu0 %v2432
      %v2434 = vpop.xlane.xlu0 %2433
      %v2435 = vsel %vm2131, %v2104, 0.0
      %2436 = vadd.xlane.f32.xlu0 %v2435
      %v2437 = vpop.xlane.xlu0 %2436
      %v2438 = vsel %vm2131, %v2105, 0.0
      %2439 = vadd.xlane.f32.xlu0 %v2438
      %v2440 = vpop.xlane.xlu0 %2439
      %v2441 = vsel %vm2131, %v2106, 0.0
      %2442 = vadd.xlane.f32.xlu0 %v2441
      %v2443 = vpop.xlane.xlu0 %2442
      %v2444 = vsel %vm2131, %v2107, 0.0
      %2445 = vadd.xlane.f32.xlu0 %v2444
      %v2446 = vpop.xlane.xlu0 %2445
      %v2447 = vsel %vm2131, %v2108, 0.0
      %2448 = vadd.xlane.f32.xlu0 %v2447
      %v2449 = vpop.xlane.xlu0 %2448
      %v2450 = vsel %vm2131, %v2109, 0.0
      %2451 = vadd.xlane.f32.xlu0 %v2450
      %v2452 = vpop.xlane.xlu0 %2451
      %v2453 = vsel %vm2131, %v2110, 0.0
      %2454 = vadd.xlane.f32.xlu0 %v2453
      %v2455 = vpop.xlane.xlu0 %2454
      %v2456 = vsel %vm2131, %v2111, 0.0
      %2457 = vadd.xlane.f32.xlu0 %v2456
      %v2458 = vpop.xlane.xlu0 %2457
      %v2459 = vsel %vm2131, %v2112, 0.0
      %2460 = vadd.xlane.f32.xlu0 %v2459
      %v2461 = vpop.xlane.xlu0 %2460
      %v2462 = vsel %vm2131, %v2113, 0.0
      %2463 = vadd.xlane.f32.xlu0 %v2462
      %v2464 = vpop.xlane.xlu0 %2463
      %v2465 = vsel %vm2131, %v2114, 0.0
      %2466 = vadd.xlane.f32.xlu0 %v2465
      %v2467 = vpop.xlane.xlu0 %2466
      %v2468 = vsel %vm2131, %v2115, 0.0
      %2469 = vadd.xlane.f32.xlu0 %v2468
      %v2470 = vpop.xlane.xlu0 %2469
      %v2471 = vsel %vm2131, %v2116, 0.0
      %2472 = vadd.xlane.f32.xlu0 %v2471
      %v2473 = vpop.xlane.xlu0 %2472
      %v2474 = vsel %vm2131, %v2117, 0.0
      %2475 = vadd.xlane.f32.xlu0 %v2474
      %v2476 = vpop.xlane.xlu0 %2475
      %v2477 = vsel %vm2131, %v2118, 0.0
      %2478 = vadd.xlane.f32.xlu0 %v2477
      %v2479 = vpop.xlane.xlu0 %2478
      %v2480 = vsel %vm2131, %v2119, 0.0
      %2481 = vadd.xlane.f32.xlu0 %v2480
      %v2482 = vpop.xlane.xlu0 %2481
      %v2483 = vsel %vm2131, %v2120, 0.0
      %2484 = vadd.xlane.f32.xlu0 %v2483
      %v2485 = vpop.xlane.xlu0 %2484
      %v2486 = vsel %vm2131, %v2121, 0.0
      %2487 = vadd.xlane.f32.xlu0 %v2486
      %v2488 = vpop.xlane.xlu0 %2487
      %v2489 = vsel %vm2131, %v2122, 0.0
      %2490 = vadd.xlane.f32.xlu0 %v2489
      %v2491 = vpop.xlane.xlu0 %2490
      %v2492 = vsel %vm2131, %v2123, 0.0
      %2493 = vadd.xlane.f32.xlu0 %v2492
      %v2494 = vpop.xlane.xlu0 %2493
      %v2495 = vsel %vm2131, %v2124, 0.0
      %2496 = vadd.xlane.f32.xlu0 %v2495
      %v2497 = vpop.xlane.xlu0 %2496
      %v2498 = vsel %vm2131, %v2125, 0.0
      %2499 = vadd.xlane.f32.xlu0 %v2498
      %v2500 = vpop.xlane.xlu0 %2499
      %v2501 = vsel %vm2131, %v2126, 0.0
      %2502 = vadd.xlane.f32.xlu0 %v2501
      %v2503 = vpop.xlane.xlu0 %2502
      %v2504 = vsel %vm2131, %v2127, 0.0
      %2505 = vadd.xlane.f32.xlu0 %v2504
      %v2506 = vpop.xlane.xlu0 %2505
      %v2507 = vsel %vm2131, %v2128, 0.0
      %2508 = vadd.xlane.f32.xlu0 %v2507
      %v2509 = vpop.xlane.xlu0 %2508
      %v2510 = vsel %vm2131, %v2129, 0.0
      %2511 = vadd.xlane.f32.xlu0 %v2510
      %v2512 = vpop.xlane.xlu0 %2511
      %v2513 = vsel %vm2131, %v2130, 0.0
      %2514 = vadd.xlane.f32.xlu0 %v2513
      %v2515 = vpop.xlane.xlu0 %2514
      %v2516 = vmul.f32 %v2134, 0.5
      %v2517 = vmul.f32 %v2137, 0.5
      %v2518 = vmul.f32 %v2140, 0.5
      %v2519 = vmul.f32 %v2143, 0.5
      %v2520 = vmul.f32 %v2146, 0.5
      %v2521 = vmul.f32 %v2149, 0.5
      %v2522 = vmul.f32 %v2152, 0.5
      %v2523 = vmul.f32 %v2155, 0.5
      %v2524 = vmul.f32 %v2158, 0.5
      %v2525 = vmul.f32 %v2161, 0.5
      %v2526 = vmul.f32 %v2164, 0.5
      %v2527 = vmul.f32 %v2167, 0.5
      %v2528 = vmul.f32 %v2170, 0.5
      %v2529 = vmul.f32 %v2173, 0.5
      %v2530 = vmul.f32 %v2176, 0.5
      %v2531 = vmul.f32 %v2179, 0.5
      %v2532 = vmul.f32 %v2182, 0.5
      %v2533 = vmul.f32 %v2185, 0.5
      %v2534 = vmul.f32 %v2188, 0.5
      %v2535 = vmul.f32 %v2191, 0.5
      %v2536 = vmul.f32 %v2194, 0.5
      %v2537 = vmul.f32 %v2197, 0.5
      %v2538 = vmul.f32 %v2200, 0.5
      %v2539 = vmul.f32 %v2203, 0.5
      %v2540 = vmul.f32 %v2206, 0.5
      %v2541 = vmul.f32 %v2209, 0.5
      %v2542 = vmul.f32 %v2212, 0.5
      %v2543 = vmul.f32 %v2215, 0.5
      %v2544 = vmul.f32 %v2218, 0.5
      %v2545 = vmul.f32 %v2221, 0.5
      %v2546 = vmul.f32 %v2224, 0.5
      %v2547 = vmul.f32 %v2227, 0.5
      %v2548 = vmul.f32 %v2230, 0.5
      %v2549 = vmul.f32 %v2233, 0.5
      %v2550 = vmul.f32 %v2236, 0.5
      %v2551 = vmul.f32 %v2239, 0.5
      %v2552 = vmul.f32 %v2242, 0.5
      %v2553 = vmul.f32 %v2245, 0.5
      %v2554 = vmul.f32 %v2248, 0.5
      %v2555 = vmul.f32 %v2251, 0.5
      %v2556 = vmul.f32 %v2254, 0.5
      %v2557 = vmul.f32 %v2257, 0.5
      %v2558 = vmul.f32 %v2260, 0.5
      %v2559 = vmul.f32 %v2263, 0.5
      %v2560 = vmul.f32 %v2266, 0.5
      %v2561 = vmul.f32 %v2269, 0.5
      %v2562 = vmul.f32 %v2272, 0.5
      %v2563 = vmul.f32 %v2275, 0.5
      %v2564 = vmul.f32 %v2278, 0.5
      %v2565 = vmul.f32 %v2281, 0.5
      %v2566 = vmul.f32 %v2284, 0.5
      %v2567 = vmul.f32 %v2287, 0.5
      %v2568 = vmul.f32 %v2290, 0.5
      %v2569 = vmul.f32 %v2293, 0.5
      %v2570 = vmul.f32 %v2296, 0.5
      %v2571 = vmul.f32 %v2299, 0.5
      %v2572 = vmul.f32 %v2302, 0.5
      %v2573 = vmul.f32 %v2305, 0.5
      %v2574 = vmul.f32 %v2308, 0.5
      %v2575 = vmul.f32 %v2311, 0.5
      %v2576 = vmul.f32 %v2314, 0.5
      %v2577 = vmul.f32 %v2317, 0.5
      %v2578 = vmul.f32 %v2320, 0.5
      %v2579 = vmul.f32 %v2323, 0.5
      %v2580 = vmul.f32 %v2326, 0.5
      %v2581 = vmul.f32 %v2329, 0.5
      %v2582 = vmul.f32 %v2332, 0.5
      %v2583 = vmul.f32 %v2335, 0.5
      %v2584 = vmul.f32 %v2338, 0.5
      %v2585 = vmul.f32 %v2341, 0.5
      %v2586 = vmul.f32 %v2344, 0.5
      %v2587 = vmul.f32 %v2347, 0.5
      %v2588 = vmul.f32 %v2350, 0.5
      %v2589 = vmul.f32 %v2353, 0.5
      %v2590 = vmul.f32 %v2356, 0.5
      %v2591 = vmul.f32 %v2359, 0.5
      %v2592 = vmul.f32 %v2362, 0.5
      %v2593 = vmul.f32 %v2365, 0.5
      %v2594 = vmul.f32 %v2368, 0.5
      %v2595 = vmul.f32 %v2371, 0.5
      %v2596 = vmul.f32 %v2374, 0.5
      %v2597 = vmul.f32 %v2377, 0.5
      %v2598 = vmul.f32 %v2380, 0.5
      %v2599 = vmul.f32 %v2383, 0.5
      %v2600 = vmul.f32 %v2386, 0.5
      %v2601 = vmul.f32 %v2389, 0.5
      %v2602 = vmul.f32 %v2392, 0.5
      %v2603 = vmul.f32 %v2395, 0.5
      %v2604 = vmul.f32 %v2398, 0.5
      %v2605 = vmul.f32 %v2401, 0.5
      %v2606 = vmul.f32 %v2404, 0.5
      %v2607 = vmul.f32 %v2407, 0.5
      %v2608 = vmul.f32 %v2410, 0.5
      %v2609 = vmul.f32 %v2413, 0.5
      %v2610 = vmul.f32 %v2416, 0.5
      %v2611 = vmul.f32 %v2419, 0.5
      %v2612 = vmul.f32 %v2422, 0.5
      %v2613 = vmul.f32 %v2425, 0.5
      %v2614 = vmul.f32 %v2428, 0.5
      %v2615 = vmul.f32 %v2431, 0.5
      %v2616 = vmul.f32 %v2434, 0.5
      %v2617 = vmul.f32 %v2437, 0.5
      %v2618 = vmul.f32 %v2440, 0.5
      %v2619 = vmul.f32 %v2443, 0.5
      %v2620 = vmul.f32 %v2446, 0.5
      %v2621 = vmul.f32 %v2449, 0.5
      %v2622 = vmul.f32 %v2452, 0.5
      %v2623 = vmul.f32 %v2455, 0.5
      %v2624 = vmul.f32 %v2458, 0.5
      %v2625 = vmul.f32 %v2461, 0.5
      %v2626 = vmul.f32 %v2464, 0.5
      %v2627 = vmul.f32 %v2467, 0.5
      %v2628 = vmul.f32 %v2470, 0.5
      %v2629 = vmul.f32 %v2473, 0.5
      %v2630 = vmul.f32 %v2476, 0.5
      %v2631 = vmul.f32 %v2479, 0.5
      %v2632 = vmul.f32 %v2482, 0.5
      %v2633 = vmul.f32 %v2485, 0.5
      %v2634 = vmul.f32 %v2488, 0.5
      %v2635 = vmul.f32 %v2491, 0.5
      %v2636 = vmul.f32 %v2494, 0.5
      %v2637 = vmul.f32 %v2497, 0.5
      %v2638 = vmul.f32 %v2500, 0.5
      %v2639 = vmul.f32 %v2503, 0.5
      %v2640 = vmul.f32 %v2506, 0.5
      %v2641 = vmul.f32 %v2509, 0.5
      %v2642 = vmul.f32 %v2512, 0.5
      %v2643 = vmul.f32 %v2515, 0.5
      %v2644 = vmul.f32 %v353, %v353
      %v2645 = vmul.f32 %v354, %v354
      %v2646 = vmul.f32 %v355, %v355
      %v2647 = vmul.f32 %v356, %v356
      %v2648 = vmul.f32 %v357, %v357
      %v2649 = vmul.f32 %v358, %v358
      %v2650 = vmul.f32 %v359, %v359
      %v2651 = vmul.f32 %v360, %v360
      %v2652 = vmul.f32 %v361, %v361
      %v2653 = vmul.f32 %v362, %v362
      %v2654 = vmul.f32 %v363, %v363
      %v2655 = vmul.f32 %v364, %v364
      %v2656 = vmul.f32 %v365, %v365
      %v2657 = vmul.f32 %v366, %v366
      %v2658 = vmul.f32 %v367, %v367
      %v2659 = vmul.f32 %v368, %v368
      %v2660 = vmul.f32 %v369, %v369
      %v2661 = vmul.f32 %v370, %v370
      %v2662 = vmul.f32 %v371, %v371
      %v2663 = vmul.f32 %v372, %v372
      %v2664 = vmul.f32 %v373, %v373
      %v2665 = vmul.f32 %v374, %v374
      %v2666 = vmul.f32 %v375, %v375
      %v2667 = vmul.f32 %v376, %v376
      %v2668 = vmul.f32 %v377, %v377
      %v2669 = vmul.f32 %v378, %v378
      %v2670 = vmul.f32 %v379, %v379
      %v2671 = vmul.f32 %v380, %v380
      %v2672 = vmul.f32 %v381, %v381
      %v2673 = vmul.f32 %v382, %v382
      %v2674 = vmul.f32 %v383, %v383
      %v2675 = vmul.f32 %v384, %v384
      %v2676 = vmul.f32 %v385, %v385
      %v2677 = vmul.f32 %v386, %v386
      %v2678 = vmul.f32 %v387, %v387
      %v2679 = vmul.f32 %v388, %v388
      %v2680 = vmul.f32 %v389, %v389
      %v2681 = vmul.f32 %v390, %v390
      %v2682 = vmul.f32 %v391, %v391
      %v2683 = vmul.f32 %v392, %v392
      %v2684 = vmul.f32 %v393, %v393
      %v2685 = vmul.f32 %v394, %v394
      %v2686 = vmul.f32 %v395, %v395
      %v2687 = vmul.f32 %v396, %v396
      %v2688 = vmul.f32 %v397, %v397
      %v2689 = vmul.f32 %v398, %v398
      %v2690 = vmul.f32 %v399, %v399
      %v2691 = vmul.f32 %v400, %v400
      %v2692 = vmul.f32 %v401, %v401
      %v2693 = vmul.f32 %v402, %v402
      %v2694 = vmul.f32 %v403, %v403
      %v2695 = vmul.f32 %v404, %v404
      %v2696 = vmul.f32 %v405, %v405
      %v2697 = vmul.f32 %v406, %v406
      %v2698 = vmul.f32 %v407, %v407
      %v2699 = vmul.f32 %v408, %v408
      %v2700 = vmul.f32 %v409, %v409
      %v2701 = vmul.f32 %v410, %v410
      %v2702 = vmul.f32 %v411, %v411
      %v2703 = vmul.f32 %v412, %v412
      %v2704 = vmul.f32 %v413, %v413
      %v2705 = vmul.f32 %v414, %v414
      %v2706 = vmul.f32 %v415, %v415
      %v2707 = vmul.f32 %v416, %v416
      %v2708 = vmul.f32 %v417, %v417
      %v2709 = vmul.f32 %v418, %v418
      %v2710 = vmul.f32 %v419, %v419
      %v2711 = vmul.f32 %v420, %v420
      %v2712 = vmul.f32 %v421, %v421
      %v2713 = vmul.f32 %v422, %v422
      %v2714 = vmul.f32 %v423, %v423
      %v2715 = vmul.f32 %v424, %v424
      %v2716 = vmul.f32 %v425, %v425
      %v2717 = vmul.f32 %v426, %v426
      %v2718 = vmul.f32 %v427, %v427
      %v2719 = vmul.f32 %v428, %v428
      %v2720 = vmul.f32 %v429, %v429
      %v2721 = vmul.f32 %v430, %v430
      %v2722 = vmul.f32 %v431, %v431
      %v2723 = vmul.f32 %v432, %v432
      %v2724 = vmul.f32 %v433, %v433
      %v2725 = vmul.f32 %v434, %v434
      %v2726 = vmul.f32 %v435, %v435
      %v2727 = vmul.f32 %v436, %v436
      %v2728 = vmul.f32 %v437, %v437
      %v2729 = vmul.f32 %v438, %v438
      %v2730 = vmul.f32 %v439, %v439
      %v2731 = vmul.f32 %v440, %v440
      %v2732 = vmul.f32 %v441, %v441
      %v2733 = vmul.f32 %v442, %v442
      %v2734 = vmul.f32 %v443, %v443
      %v2735 = vmul.f32 %v444, %v444
      %v2736 = vmul.f32 %v445, %v445
      %v2737 = vmul.f32 %v446, %v446
      %v2738 = vmul.f32 %v447, %v447
      %v2739 = vmul.f32 %v448, %v448
      %v2740 = vmul.f32 %v449, %v449
      %v2741 = vmul.f32 %v450, %v450
      %v2742 = vmul.f32 %v451, %v451
      %v2743 = vmul.f32 %v452, %v452
      %v2744 = vmul.f32 %v453, %v453
      %v2745 = vmul.f32 %v454, %v454
      %v2746 = vmul.f32 %v455, %v455
      %v2747 = vmul.f32 %v456, %v456
      %v2748 = vmul.f32 %v457, %v457
      %v2749 = vmul.f32 %v458, %v458
      %v2750 = vmul.f32 %v459, %v459
      %v2751 = vmul.f32 %v460, %v460
      %v2752 = vmul.f32 %v461, %v461
      %v2753 = vmul.f32 %v462, %v462
      %v2754 = vmul.f32 %v463, %v463
      %v2755 = vmul.f32 %v464, %v464
      %v2756 = vmul.f32 %v465, %v465
      %v2757 = vmul.f32 %v466, %v466
      %v2758 = vmul.f32 %v467, %v467
      %v2759 = vmul.f32 %v468, %v468
      %v2760 = vmul.f32 %v469, %v469
      %v2761 = vmul.f32 %v470, %v470
      %v2762 = vmul.f32 %v471, %v471
      %v2763 = vmul.f32 %v472, %v472
      %v2764 = vmul.f32 %v473, %v473
      %v2765 = vmul.f32 %v474, %v474
      %v2766 = vmul.f32 %v475, %v475
      %v2767 = vmul.f32 %v476, %v476
      %v2768 = vmul.f32 %v477, %v477
      %v2769 = vmul.f32 %v478, %v478
      %v2770 = vmul.f32 %v479, %v479
      %v2771 = vmul.f32 %v480, %v480
      %v2772 = vmul.f32 %v481, %v481
      %v2773 = vmul.f32 %v482, %v482
      %v2774 = vmul.f32 %v483, %v483
      %v2775 = vmul.f32 %v484, %v484
      %v2776 = vmul.f32 %v485, %v485
      %v2777 = vmul.f32 %v486, %v486
      %v2778 = vmul.f32 %v487, %v487
      %v2779 = vmul.f32 %v488, %v488
      %v2780 = vmul.f32 %v489, %v489
      %v2781 = vmul.f32 %v490, %v490
      %v2782 = vmul.f32 %v491, %v491
      %v2783 = vmul.f32 %v492, %v492
      %v2784 = vmul.f32 %v493, %v493
      %v2785 = vmul.f32 %v494, %v494
      %v2786 = vmul.f32 %v495, %v495
      %v2787 = vmul.f32 %v496, %v496
      %v2788 = vmul.f32 %v497, %v497
      %v2789 = vmul.f32 %v498, %v498
      %v2790 = vmul.f32 %v499, %v499
      %v2791 = vmul.f32 %v500, %v500
      %v2792 = vmul.f32 %v501, %v501
      %v2793 = vmul.f32 %v502, %v502
      %v2794 = vmul.f32 %v503, %v503
      %v2795 = vmul.f32 %v504, %v504
      %v2796 = vmul.f32 %v505, %v505
      %v2797 = vmul.f32 %v506, %v506
      %v2798 = vmul.f32 %v507, %v507
      %v2799 = vmul.f32 %v508, %v508
      %v2800 = vmul.f32 %v509, %v509
      %v2801 = vmul.f32 %v510, %v510
      %v2802 = vmul.f32 %v511, %v511
      %v2803 = vmul.f32 %v512, %v512
      %v2804 = vmul.f32 %v513, %v513
      %v2805 = vmul.f32 %v514, %v514
      %v2806 = vmul.f32 %v515, %v515
      %v2807 = vmul.f32 %v516, %v516
      %v2808 = vmul.f32 %v517, %v517
      %v2809 = vmul.f32 %v518, %v518
      %v2810 = vmul.f32 %v519, %v519
      %v2811 = vmul.f32 %v520, %v520
      %v2812 = vmul.f32 %v521, %v521
      %v2813 = vmul.f32 %v522, %v522
      %v2814 = vmul.f32 %v523, %v523
      %v2815 = vmul.f32 %v524, %v524
      %v2816 = vmul.f32 %v525, %v525
      %v2817 = vmul.f32 %v526, %v526
      %v2818 = vmul.f32 %v527, %v527
      %v2819 = vmul.f32 %v528, %v528
      %v2820 = vmul.f32 %v529, %v529
      %v2821 = vmul.f32 %v530, %v530
      %v2822 = vmul.f32 %v531, %v531
      %v2823 = vmul.f32 %v532, %v532
      %v2824 = vmul.f32 %v533, %v533
      %v2825 = vmul.f32 %v534, %v534
      %v2826 = vmul.f32 %v535, %v535
      %v2827 = vmul.f32 %v536, %v536
      %v2828 = vmul.f32 %v537, %v537
      %v2829 = vmul.f32 %v538, %v538
      %v2830 = vmul.f32 %v539, %v539
      %v2831 = vmul.f32 %v540, %v540
      %v2832 = vmul.f32 %v541, %v541
      %v2833 = vmul.f32 %v542, %v542
      %v2834 = vmul.f32 %v543, %v543
      %v2835 = vmul.f32 %v544, %v544
      %v2836 = vmul.f32 %v545, %v545
      %v2837 = vmul.f32 %v546, %v546
      %v2838 = vmul.f32 %v547, %v547
      %v2839 = vmul.f32 %v548, %v548
      %v2840 = vmul.f32 %v549, %v549
      %v2841 = vmul.f32 %v550, %v550
      %v2842 = vmul.f32 %v551, %v551
      %v2843 = vmul.f32 %v552, %v552
      %v2844 = vmul.f32 %v553, %v553
      %v2845 = vmul.f32 %v554, %v554
      %v2846 = vmul.f32 %v555, %v555
      %v2847 = vmul.f32 %v556, %v556
      %v2848 = vmul.f32 %v557, %v557
      %v2849 = vmul.f32 %v558, %v558
      %v2850 = vmul.f32 %v559, %v559
      %v2851 = vmul.f32 %v560, %v560
      %v2852 = vmul.f32 %v561, %v561
      %v2853 = vmul.f32 %v562, %v562
      %v2854 = vmul.f32 %v563, %v563
      %v2855 = vmul.f32 %v564, %v564
      %v2856 = vmul.f32 %v565, %v565
      %v2857 = vmul.f32 %v566, %v566
      %v2858 = vmul.f32 %v567, %v567
      %v2859 = vmul.f32 %v568, %v568
      %v2860 = vmul.f32 %v569, %v569
      %v2861 = vmul.f32 %v570, %v570
      %v2862 = vmul.f32 %v571, %v571
      %v2863 = vmul.f32 %v572, %v572
      %v2864 = vmul.f32 %v573, %v573
      %v2865 = vmul.f32 %v574, %v574
      %v2866 = vmul.f32 %v575, %v575
      %v2867 = vmul.f32 %v576, %v576
      %v2868 = vmul.f32 %v577, %v577
      %v2869 = vmul.f32 %v578, %v578
      %v2870 = vmul.f32 %v579, %v579
      %v2871 = vmul.f32 %v580, %v580
      %v2872 = vmul.f32 %v581, %v581
      %v2873 = vmul.f32 %v582, %v582
      %v2874 = vmul.f32 %v583, %v583
      %v2875 = vmul.f32 %v584, %v584
      %v2876 = vmul.f32 %v585, %v585
      %v2877 = vmul.f32 %v586, %v586
      %v2878 = vmul.f32 %v587, %v587
      %v2879 = vmul.f32 %v588, %v588
      %v2880 = vmul.f32 %v589, %v589
      %v2881 = vmul.f32 %v590, %v590
      %v2882 = vmul.f32 %v591, %v591
      %v2883 = vmul.f32 %v592, %v592
      %v2884 = vmul.f32 %v593, %v593
      %v2885 = vmul.f32 %v594, %v594
      %v2886 = vmul.f32 %v595, %v595
      %v2887 = vmul.f32 %v596, %v596
      %v2888 = vmul.f32 %v597, %v597
      %v2889 = vmul.f32 %v598, %v598
      %v2890 = vmul.f32 %v599, %v599
      %v2891 = vmul.f32 %v600, %v600
      %v2892 = vmul.f32 %v601, %v601
      %v2893 = vmul.f32 %v602, %v602
      %v2894 = vmul.f32 %v603, %v603
      %v2895 = vmul.f32 %v604, %v604
      %v2896 = vmul.f32 %v605, %v605
      %v2897 = vmul.f32 %v606, %v606
      %v2898 = vmul.f32 %v607, %v607
      %v2899 = vmul.f32 %v608, %v608
      %v2900 = vsel %vm1265, %v2645, 0.0
      %v2901 = vadd.f32 %v2644, %v2900
      %2902 = vadd.xlane.f32.xlu0 %v2901
      %v2903 = vpop.xlane.xlu0 %2902
      %v2904 = vsel %vm1265, %v2647, 0.0
      %v2905 = vadd.f32 %v2646, %v2904
      %2906 = vadd.xlane.f32.xlu0 %v2905
      %v2907 = vpop.xlane.xlu0 %2906
      %v2908 = vsel %vm1265, %v2649, 0.0
      %v2909 = vadd.f32 %v2648, %v2908
      %2910 = vadd.xlane.f32.xlu0 %v2909
      %v2911 = vpop.xlane.xlu0 %2910
      %v2912 = vsel %vm1265, %v2651, 0.0
      %v2913 = vadd.f32 %v2650, %v2912
      %2914 = vadd.xlane.f32.xlu0 %v2913
      %v2915 = vpop.xlane.xlu0 %2914
      %v2916 = vsel %vm1265, %v2653, 0.0
      %v2917 = vadd.f32 %v2652, %v2916
      %2918 = vadd.xlane.f32.xlu0 %v2917
      %v2919 = vpop.xlane.xlu0 %2918
      %v2920 = vsel %vm1265, %v2655, 0.0
      %v2921 = vadd.f32 %v2654, %v2920
      %2922 = vadd.xlane.f32.xlu0 %v2921
      %v2923 = vpop.xlane.xlu0 %2922
      %v2924 = vsel %vm1265, %v2657, 0.0
      %v2925 = vadd.f32 %v2656, %v2924
      %2926 = vadd.xlane.f32.xlu0 %v2925
      %v2927 = vpop.xlane.xlu0 %2926
      %v2928 = vsel %vm1265, %v2659, 0.0
      %v2929 = vadd.f32 %v2658, %v2928
      %2930 = vadd.xlane.f32.xlu0 %v2929
      %v2931 = vpop.xlane.xlu0 %2930
      %v2932 = vsel %vm1265, %v2661, 0.0
      %v2933 = vadd.f32 %v2660, %v2932
      %2934 = vadd.xlane.f32.xlu0 %v2933
      %v2935 = vpop.xlane.xlu0 %2934
      %v2936 = vsel %vm1265, %v2663, 0.0
      %v2937 = vadd.f32 %v2662, %v2936
      %2938 = vadd.xlane.f32.xlu0 %v2937
      %v2939 = vpop.xlane.xlu0 %2938
      %v2940 = vsel %vm1265, %v2665, 0.0
      %v2941 = vadd.f32 %v2664, %v2940
      %2942 = vadd.xlane.f32.xlu0 %v2941
      %v2943 = vpop.xlane.xlu0 %2942
      %v2944 = vsel %vm1265, %v2667, 0.0
      %v2945 = vadd.f32 %v2666, %v2944
      %2946 = vadd.xlane.f32.xlu0 %v2945
      %v2947 = vpop.xlane.xlu0 %2946
      %v2948 = vsel %vm1265, %v2669, 0.0
      %v2949 = vadd.f32 %v2668, %v2948
      %2950 = vadd.xlane.f32.xlu0 %v2949
      %v2951 = vpop.xlane.xlu0 %2950
      %v2952 = vsel %vm1265, %v2671, 0.0
      %v2953 = vadd.f32 %v2670, %v2952
      %2954 = vadd.xlane.f32.xlu0 %v2953
      %v2955 = vpop.xlane.xlu0 %2954
      %v2956 = vsel %vm1265, %v2673, 0.0
      %v2957 = vadd.f32 %v2672, %v2956
      %2958 = vadd.xlane.f32.xlu0 %v2957
      %v2959 = vpop.xlane.xlu0 %2958
      %v2960 = vsel %vm1265, %v2675, 0.0
      %v2961 = vadd.f32 %v2674, %v2960
      %2962 = vadd.xlane.f32.xlu0 %v2961
      %v2963 = vpop.xlane.xlu0 %2962
      %v2964 = vsel %vm1265, %v2677, 0.0
      %v2965 = vadd.f32 %v2676, %v2964
      %2966 = vadd.xlane.f32.xlu0 %v2965
      %v2967 = vpop.xlane.xlu0 %2966
      %v2968 = vsel %vm1265, %v2679, 0.0
      %v2969 = vadd.f32 %v2678, %v2968
      %2970 = vadd.xlane.f32.xlu0 %v2969
      %v2971 = vpop.xlane.xlu0 %2970
      %v2972 = vsel %vm1265, %v2681, 0.0
      %v2973 = vadd.f32 %v2680, %v2972
      %2974 = vadd.xlane.f32.xlu0 %v2973
      %v2975 = vpop.xlane.xlu0 %2974
      %v2976 = vsel %vm1265, %v2683, 0.0
      %v2977 = vadd.f32 %v2682, %v2976
      %2978 = vadd.xlane.f32.xlu0 %v2977
      %v2979 = vpop.xlane.xlu0 %2978
      %v2980 = vsel %vm1265, %v2685, 0.0
      %v2981 = vadd.f32 %v2684, %v2980
      %2982 = vadd.xlane.f32.xlu0 %v2981
      %v2983 = vpop.xlane.xlu0 %2982
      %v2984 = vsel %vm1265, %v2687, 0.0
      %v2985 = vadd.f32 %v2686, %v2984
      %2986 = vadd.xlane.f32.xlu0 %v2985
      %v2987 = vpop.xlane.xlu0 %2986
      %v2988 = vsel %vm1265, %v2689, 0.0
      %v2989 = vadd.f32 %v2688, %v2988
      %2990 = vadd.xlane.f32.xlu0 %v2989
      %v2991 = vpop.xlane.xlu0 %2990
      %v2992 = vsel %vm1265, %v2691, 0.0
      %v2993 = vadd.f32 %v2690, %v2992
      %2994 = vadd.xlane.f32.xlu0 %v2993
      %v2995 = vpop.xlane.xlu0 %2994
      %v2996 = vsel %vm1265, %v2693, 0.0
      %v2997 = vadd.f32 %v2692, %v2996
      %2998 = vadd.xlane.f32.xlu0 %v2997
      %v2999 = vpop.xlane.xlu0 %2998
      %v3000 = vsel %vm1265, %v2695, 0.0
      %v3001 = vadd.f32 %v2694, %v3000
      %3002 = vadd.xlane.f32.xlu0 %v3001
      %v3003 = vpop.xlane.xlu0 %3002
      %v3004 = vsel %vm1265, %v2697, 0.0
      %v3005 = vadd.f32 %v2696, %v3004
      %3006 = vadd.xlane.f32.xlu0 %v3005
      %v3007 = vpop.xlane.xlu0 %3006
      %v3008 = vsel %vm1265, %v2699, 0.0
      %v3009 = vadd.f32 %v2698, %v3008
      %3010 = vadd.xlane.f32.xlu0 %v3009
      %v3011 = vpop.xlane.xlu0 %3010
      %v3012 = vsel %vm1265, %v2701, 0.0
      %v3013 = vadd.f32 %v2700, %v3012
      %3014 = vadd.xlane.f32.xlu0 %v3013
      %v3015 = vpop.xlane.xlu0 %3014
      %v3016 = vsel %vm1265, %v2703, 0.0
      %v3017 = vadd.f32 %v2702, %v3016
      %3018 = vadd.xlane.f32.xlu0 %v3017
      %v3019 = vpop.xlane.xlu0 %3018
      %v3020 = vsel %vm1265, %v2705, 0.0
      %v3021 = vadd.f32 %v2704, %v3020
      %3022 = vadd.xlane.f32.xlu0 %v3021
      %v3023 = vpop.xlane.xlu0 %3022
      %v3024 = vsel %vm1265, %v2707, 0.0
      %v3025 = vadd.f32 %v2706, %v3024
      %3026 = vadd.xlane.f32.xlu0 %v3025
      %v3027 = vpop.xlane.xlu0 %3026
      %v3028 = vsel %vm1265, %v2709, 0.0
      %v3029 = vadd.f32 %v2708, %v3028
      %3030 = vadd.xlane.f32.xlu0 %v3029
      %v3031 = vpop.xlane.xlu0 %3030
      %v3032 = vsel %vm1265, %v2711, 0.0
      %v3033 = vadd.f32 %v2710, %v3032
      %3034 = vadd.xlane.f32.xlu0 %v3033
      %v3035 = vpop.xlane.xlu0 %3034
      %v3036 = vsel %vm1265, %v2713, 0.0
      %v3037 = vadd.f32 %v2712, %v3036
      %3038 = vadd.xlane.f32.xlu0 %v3037
      %v3039 = vpop.xlane.xlu0 %3038
      %v3040 = vsel %vm1265, %v2715, 0.0
      %v3041 = vadd.f32 %v2714, %v3040
      %3042 = vadd.xlane.f32.xlu0 %v3041
      %v3043 = vpop.xlane.xlu0 %3042
      %v3044 = vsel %vm1265, %v2717, 0.0
      %v3045 = vadd.f32 %v2716, %v3044
      %3046 = vadd.xlane.f32.xlu0 %v3045
      %v3047 = vpop.xlane.xlu0 %3046
      %v3048 = vsel %vm1265, %v2719, 0.0
      %v3049 = vadd.f32 %v2718, %v3048
      %3050 = vadd.xlane.f32.xlu0 %v3049
      %v3051 = vpop.xlane.xlu0 %3050
      %v3052 = vsel %vm1265, %v2721, 0.0
      %v3053 = vadd.f32 %v2720, %v3052
      %3054 = vadd.xlane.f32.xlu0 %v3053
      %v3055 = vpop.xlane.xlu0 %3054
      %v3056 = vsel %vm1265, %v2723, 0.0
      %v3057 = vadd.f32 %v2722, %v3056
      %3058 = vadd.xlane.f32.xlu0 %v3057
      %v3059 = vpop.xlane.xlu0 %3058
      %v3060 = vsel %vm1265, %v2725, 0.0
      %v3061 = vadd.f32 %v2724, %v3060
      %3062 = vadd.xlane.f32.xlu0 %v3061
      %v3063 = vpop.xlane.xlu0 %3062
      %v3064 = vsel %vm1265, %v2727, 0.0
      %v3065 = vadd.f32 %v2726, %v3064
      %3066 = vadd.xlane.f32.xlu0 %v3065
      %v3067 = vpop.xlane.xlu0 %3066
      %v3068 = vsel %vm1265, %v2729, 0.0
      %v3069 = vadd.f32 %v2728, %v3068
      %3070 = vadd.xlane.f32.xlu0 %v3069
      %v3071 = vpop.xlane.xlu0 %3070
      %v3072 = vsel %vm1265, %v2731, 0.0
      %v3073 = vadd.f32 %v2730, %v3072
      %3074 = vadd.xlane.f32.xlu0 %v3073
      %v3075 = vpop.xlane.xlu0 %3074
      %v3076 = vsel %vm1265, %v2733, 0.0
      %v3077 = vadd.f32 %v2732, %v3076
      %3078 = vadd.xlane.f32.xlu0 %v3077
      %v3079 = vpop.xlane.xlu0 %3078
      %v3080 = vsel %vm1265, %v2735, 0.0
      %v3081 = vadd.f32 %v2734, %v3080
      %3082 = vadd.xlane.f32.xlu0 %v3081
      %v3083 = vpop.xlane.xlu0 %3082
      %v3084 = vsel %vm1265, %v2737, 0.0
      %v3085 = vadd.f32 %v2736, %v3084
      %3086 = vadd.xlane.f32.xlu0 %v3085
      %v3087 = vpop.xlane.xlu0 %3086
      %v3088 = vsel %vm1265, %v2739, 0.0
      %v3089 = vadd.f32 %v2738, %v3088
      %3090 = vadd.xlane.f32.xlu0 %v3089
      %v3091 = vpop.xlane.xlu0 %3090
      %v3092 = vsel %vm1265, %v2741, 0.0
      %v3093 = vadd.f32 %v2740, %v3092
      %3094 = vadd.xlane.f32.xlu0 %v3093
      %v3095 = vpop.xlane.xlu0 %3094
      %v3096 = vsel %vm1265, %v2743, 0.0
      %v3097 = vadd.f32 %v2742, %v3096
      %3098 = vadd.xlane.f32.xlu0 %v3097
      %v3099 = vpop.xlane.xlu0 %3098
      %v3100 = vsel %vm1265, %v2745, 0.0
      %v3101 = vadd.f32 %v2744, %v3100
      %3102 = vadd.xlane.f32.xlu0 %v3101
      %v3103 = vpop.xlane.xlu0 %3102
      %v3104 = vsel %vm1265, %v2747, 0.0
      %v3105 = vadd.f32 %v2746, %v3104
      %3106 = vadd.xlane.f32.xlu0 %v3105
      %v3107 = vpop.xlane.xlu0 %3106
      %v3108 = vsel %vm1265, %v2749, 0.0
      %v3109 = vadd.f32 %v2748, %v3108
      %3110 = vadd.xlane.f32.xlu0 %v3109
      %v3111 = vpop.xlane.xlu0 %3110
      %v3112 = vsel %vm1265, %v2751, 0.0
      %v3113 = vadd.f32 %v2750, %v3112
      %3114 = vadd.xlane.f32.xlu0 %v3113
      %v3115 = vpop.xlane.xlu0 %3114
      %v3116 = vsel %vm1265, %v2753, 0.0
      %v3117 = vadd.f32 %v2752, %v3116
      %3118 = vadd.xlane.f32.xlu0 %v3117
      %v3119 = vpop.xlane.xlu0 %3118
      %v3120 = vsel %vm1265, %v2755, 0.0
      %v3121 = vadd.f32 %v2754, %v3120
      %3122 = vadd.xlane.f32.xlu0 %v3121
      %v3123 = vpop.xlane.xlu0 %3122
      %v3124 = vsel %vm1265, %v2757, 0.0
      %v3125 = vadd.f32 %v2756, %v3124
      %3126 = vadd.xlane.f32.xlu0 %v3125
      %v3127 = vpop.xlane.xlu0 %3126
      %v3128 = vsel %vm1265, %v2759, 0.0
      %v3129 = vadd.f32 %v2758, %v3128
      %3130 = vadd.xlane.f32.xlu0 %v3129
      %v3131 = vpop.xlane.xlu0 %3130
      %v3132 = vsel %vm1265, %v2761, 0.0
      %v3133 = vadd.f32 %v2760, %v3132
      %3134 = vadd.xlane.f32.xlu0 %v3133
      %v3135 = vpop.xlane.xlu0 %3134
      %v3136 = vsel %vm1265, %v2763, 0.0
      %v3137 = vadd.f32 %v2762, %v3136
      %3138 = vadd.xlane.f32.xlu0 %v3137
      %v3139 = vpop.xlane.xlu0 %3138
      %v3140 = vsel %vm1265, %v2765, 0.0
      %v3141 = vadd.f32 %v2764, %v3140
      %3142 = vadd.xlane.f32.xlu0 %v3141
      %v3143 = vpop.xlane.xlu0 %3142
      %v3144 = vsel %vm1265, %v2767, 0.0
      %v3145 = vadd.f32 %v2766, %v3144
      %3146 = vadd.xlane.f32.xlu0 %v3145
      %v3147 = vpop.xlane.xlu0 %3146
      %v3148 = vsel %vm1265, %v2769, 0.0
      %v3149 = vadd.f32 %v2768, %v3148
      %3150 = vadd.xlane.f32.xlu0 %v3149
      %v3151 = vpop.xlane.xlu0 %3150
      %v3152 = vsel %vm1265, %v2771, 0.0
      %v3153 = vadd.f32 %v2770, %v3152
      %3154 = vadd.xlane.f32.xlu0 %v3153
      %v3155 = vpop.xlane.xlu0 %3154
      %v3156 = vsel %vm1265, %v2773, 0.0
      %v3157 = vadd.f32 %v2772, %v3156
      %3158 = vadd.xlane.f32.xlu0 %v3157
      %v3159 = vpop.xlane.xlu0 %3158
      %v3160 = vsel %vm1265, %v2775, 0.0
      %v3161 = vadd.f32 %v2774, %v3160
      %3162 = vadd.xlane.f32.xlu0 %v3161
      %v3163 = vpop.xlane.xlu0 %3162
      %v3164 = vsel %vm1265, %v2777, 0.0
      %v3165 = vadd.f32 %v2776, %v3164
      %3166 = vadd.xlane.f32.xlu0 %v3165
      %v3167 = vpop.xlane.xlu0 %3166
      %v3168 = vsel %vm1265, %v2779, 0.0
      %v3169 = vadd.f32 %v2778, %v3168
      %3170 = vadd.xlane.f32.xlu0 %v3169
      %v3171 = vpop.xlane.xlu0 %3170
      %v3172 = vsel %vm1265, %v2781, 0.0
      %v3173 = vadd.f32 %v2780, %v3172
      %3174 = vadd.xlane.f32.xlu0 %v3173
      %v3175 = vpop.xlane.xlu0 %3174
      %v3176 = vsel %vm1265, %v2783, 0.0
      %v3177 = vadd.f32 %v2782, %v3176
      %3178 = vadd.xlane.f32.xlu0 %v3177
      %v3179 = vpop.xlane.xlu0 %3178
      %v3180 = vsel %vm1265, %v2785, 0.0
      %v3181 = vadd.f32 %v2784, %v3180
      %3182 = vadd.xlane.f32.xlu0 %v3181
      %v3183 = vpop.xlane.xlu0 %3182
      %v3184 = vsel %vm1265, %v2787, 0.0
      %v3185 = vadd.f32 %v2786, %v3184
      %3186 = vadd.xlane.f32.xlu0 %v3185
      %v3187 = vpop.xlane.xlu0 %3186
      %v3188 = vsel %vm1265, %v2789, 0.0
      %v3189 = vadd.f32 %v2788, %v3188
      %3190 = vadd.xlane.f32.xlu0 %v3189
      %v3191 = vpop.xlane.xlu0 %3190
      %v3192 = vsel %vm1265, %v2791, 0.0
      %v3193 = vadd.f32 %v2790, %v3192
      %3194 = vadd.xlane.f32.xlu0 %v3193
      %v3195 = vpop.xlane.xlu0 %3194
      %v3196 = vsel %vm1265, %v2793, 0.0
      %v3197 = vadd.f32 %v2792, %v3196
      %3198 = vadd.xlane.f32.xlu0 %v3197
      %v3199 = vpop.xlane.xlu0 %3198
      %v3200 = vsel %vm1265, %v2795, 0.0
      %v3201 = vadd.f32 %v2794, %v3200
      %3202 = vadd.xlane.f32.xlu0 %v3201
      %v3203 = vpop.xlane.xlu0 %3202
      %v3204 = vsel %vm1265, %v2797, 0.0
      %v3205 = vadd.f32 %v2796, %v3204
      %3206 = vadd.xlane.f32.xlu0 %v3205
      %v3207 = vpop.xlane.xlu0 %3206
      %v3208 = vsel %vm1265, %v2799, 0.0
      %v3209 = vadd.f32 %v2798, %v3208
      %3210 = vadd.xlane.f32.xlu0 %v3209
      %v3211 = vpop.xlane.xlu0 %3210
      %v3212 = vsel %vm1265, %v2801, 0.0
      %v3213 = vadd.f32 %v2800, %v3212
      %3214 = vadd.xlane.f32.xlu0 %v3213
      %v3215 = vpop.xlane.xlu0 %3214
      %v3216 = vsel %vm1265, %v2803, 0.0
      %v3217 = vadd.f32 %v2802, %v3216
      %3218 = vadd.xlane.f32.xlu0 %v3217
      %v3219 = vpop.xlane.xlu0 %3218
      %v3220 = vsel %vm1265, %v2805, 0.0
      %v3221 = vadd.f32 %v2804, %v3220
      %3222 = vadd.xlane.f32.xlu0 %v3221
      %v3223 = vpop.xlane.xlu0 %3222
      %v3224 = vsel %vm1265, %v2807, 0.0
      %v3225 = vadd.f32 %v2806, %v3224
      %3226 = vadd.xlane.f32.xlu0 %v3225
      %v3227 = vpop.xlane.xlu0 %3226
      %v3228 = vsel %vm1265, %v2809, 0.0
      %v3229 = vadd.f32 %v2808, %v3228
      %3230 = vadd.xlane.f32.xlu0 %v3229
      %v3231 = vpop.xlane.xlu0 %3230
      %v3232 = vsel %vm1265, %v2811, 0.0
      %v3233 = vadd.f32 %v2810, %v3232
      %3234 = vadd.xlane.f32.xlu0 %v3233
      %v3235 = vpop.xlane.xlu0 %3234
      %v3236 = vsel %vm1265, %v2813, 0.0
      %v3237 = vadd.f32 %v2812, %v3236
      %3238 = vadd.xlane.f32.xlu0 %v3237
      %v3239 = vpop.xlane.xlu0 %3238
      %v3240 = vsel %vm1265, %v2815, 0.0
      %v3241 = vadd.f32 %v2814, %v3240
      %3242 = vadd.xlane.f32.xlu0 %v3241
      %v3243 = vpop.xlane.xlu0 %3242
      %v3244 = vsel %vm1265, %v2817, 0.0
      %v3245 = vadd.f32 %v2816, %v3244
      %3246 = vadd.xlane.f32.xlu0 %v3245
      %v3247 = vpop.xlane.xlu0 %3246
      %v3248 = vsel %vm1265, %v2819, 0.0
      %v3249 = vadd.f32 %v2818, %v3248
      %3250 = vadd.xlane.f32.xlu0 %v3249
      %v3251 = vpop.xlane.xlu0 %3250
      %v3252 = vsel %vm1265, %v2821, 0.0
      %v3253 = vadd.f32 %v2820, %v3252
      %3254 = vadd.xlane.f32.xlu0 %v3253
      %v3255 = vpop.xlane.xlu0 %3254
      %v3256 = vsel %vm1265, %v2823, 0.0
      %v3257 = vadd.f32 %v2822, %v3256
      %3258 = vadd.xlane.f32.xlu0 %v3257
      %v3259 = vpop.xlane.xlu0 %3258
      %v3260 = vsel %vm1265, %v2825, 0.0
      %v3261 = vadd.f32 %v2824, %v3260
      %3262 = vadd.xlane.f32.xlu0 %v3261
      %v3263 = vpop.xlane.xlu0 %3262
      %v3264 = vsel %vm1265, %v2827, 0.0
      %v3265 = vadd.f32 %v2826, %v3264
      %3266 = vadd.xlane.f32.xlu0 %v3265
      %v3267 = vpop.xlane.xlu0 %3266
      %v3268 = vsel %vm1265, %v2829, 0.0
      %v3269 = vadd.f32 %v2828, %v3268
      %3270 = vadd.xlane.f32.xlu0 %v3269
      %v3271 = vpop.xlane.xlu0 %3270
      %v3272 = vsel %vm1265, %v2831, 0.0
      %v3273 = vadd.f32 %v2830, %v3272
      %3274 = vadd.xlane.f32.xlu0 %v3273
      %v3275 = vpop.xlane.xlu0 %3274
      %v3276 = vsel %vm1265, %v2833, 0.0
      %v3277 = vadd.f32 %v2832, %v3276
      %3278 = vadd.xlane.f32.xlu0 %v3277
      %v3279 = vpop.xlane.xlu0 %3278
      %v3280 = vsel %vm1265, %v2835, 0.0
      %v3281 = vadd.f32 %v2834, %v3280
      %3282 = vadd.xlane.f32.xlu0 %v3281
      %v3283 = vpop.xlane.xlu0 %3282
      %v3284 = vsel %vm1265, %v2837, 0.0
      %v3285 = vadd.f32 %v2836, %v3284
      %3286 = vadd.xlane.f32.xlu0 %v3285
      %v3287 = vpop.xlane.xlu0 %3286
      %v3288 = vsel %vm1265, %v2839, 0.0
      %v3289 = vadd.f32 %v2838, %v3288
      %3290 = vadd.xlane.f32.xlu0 %v3289
      %v3291 = vpop.xlane.xlu0 %3290
      %v3292 = vsel %vm1265, %v2841, 0.0
      %v3293 = vadd.f32 %v2840, %v3292
      %3294 = vadd.xlane.f32.xlu0 %v3293
      %v3295 = vpop.xlane.xlu0 %3294
      %v3296 = vsel %vm1265, %v2843, 0.0
      %v3297 = vadd.f32 %v2842, %v3296
      %3298 = vadd.xlane.f32.xlu0 %v3297
      %v3299 = vpop.xlane.xlu0 %3298
      %v3300 = vsel %vm1265, %v2845, 0.0
      %v3301 = vadd.f32 %v2844, %v3300
      %3302 = vadd.xlane.f32.xlu0 %v3301
      %v3303 = vpop.xlane.xlu0 %3302
      %v3304 = vsel %vm1265, %v2847, 0.0
      %v3305 = vadd.f32 %v2846, %v3304
      %3306 = vadd.xlane.f32.xlu0 %v3305
      %v3307 = vpop.xlane.xlu0 %3306
      %v3308 = vsel %vm1265, %v2849, 0.0
      %v3309 = vadd.f32 %v2848, %v3308
      %3310 = vadd.xlane.f32.xlu0 %v3309
      %v3311 = vpop.xlane.xlu0 %3310
      %v3312 = vsel %vm1265, %v2851, 0.0
      %v3313 = vadd.f32 %v2850, %v3312
      %3314 = vadd.xlane.f32.xlu0 %v3313
      %v3315 = vpop.xlane.xlu0 %3314
      %v3316 = vsel %vm1265, %v2853, 0.0
      %v3317 = vadd.f32 %v2852, %v3316
      %3318 = vadd.xlane.f32.xlu0 %v3317
      %v3319 = vpop.xlane.xlu0 %3318
      %v3320 = vsel %vm1265, %v2855, 0.0
      %v3321 = vadd.f32 %v2854, %v3320
      %3322 = vadd.xlane.f32.xlu0 %v3321
      %v3323 = vpop.xlane.xlu0 %3322
      %v3324 = vsel %vm1265, %v2857, 0.0
      %v3325 = vadd.f32 %v2856, %v3324
      %3326 = vadd.xlane.f32.xlu0 %v3325
      %v3327 = vpop.xlane.xlu0 %3326
      %v3328 = vsel %vm1265, %v2859, 0.0
      %v3329 = vadd.f32 %v2858, %v3328
      %3330 = vadd.xlane.f32.xlu0 %v3329
      %v3331 = vpop.xlane.xlu0 %3330
      %v3332 = vsel %vm1265, %v2861, 0.0
      %v3333 = vadd.f32 %v2860, %v3332
      %3334 = vadd.xlane.f32.xlu0 %v3333
      %v3335 = vpop.xlane.xlu0 %3334
      %v3336 = vsel %vm1265, %v2863, 0.0
      %v3337 = vadd.f32 %v2862, %v3336
      %3338 = vadd.xlane.f32.xlu0 %v3337
      %v3339 = vpop.xlane.xlu0 %3338
      %v3340 = vsel %vm1265, %v2865, 0.0
      %v3341 = vadd.f32 %v2864, %v3340
      %3342 = vadd.xlane.f32.xlu0 %v3341
      %v3343 = vpop.xlane.xlu0 %3342
      %v3344 = vsel %vm1265, %v2867, 0.0
      %v3345 = vadd.f32 %v2866, %v3344
      %3346 = vadd.xlane.f32.xlu0 %v3345
      %v3347 = vpop.xlane.xlu0 %3346
      %v3348 = vsel %vm1265, %v2869, 0.0
      %v3349 = vadd.f32 %v2868, %v3348
      %3350 = vadd.xlane.f32.xlu0 %v3349
      %v3351 = vpop.xlane.xlu0 %3350
      %v3352 = vsel %vm1265, %v2871, 0.0
      %v3353 = vadd.f32 %v2870, %v3352
      %3354 = vadd.xlane.f32.xlu0 %v3353
      %v3355 = vpop.xlane.xlu0 %3354
      %v3356 = vsel %vm1265, %v2873, 0.0
      %v3357 = vadd.f32 %v2872, %v3356
      %3358 = vadd.xlane.f32.xlu0 %v3357
      %v3359 = vpop.xlane.xlu0 %3358
      %v3360 = vsel %vm1265, %v2875, 0.0
      %v3361 = vadd.f32 %v2874, %v3360
      %3362 = vadd.xlane.f32.xlu0 %v3361
      %v3363 = vpop.xlane.xlu0 %3362
      %v3364 = vsel %vm1265, %v2877, 0.0
      %v3365 = vadd.f32 %v2876, %v3364
      %3366 = vadd.xlane.f32.xlu0 %v3365
      %v3367 = vpop.xlane.xlu0 %3366
      %v3368 = vsel %vm1265, %v2879, 0.0
      %v3369 = vadd.f32 %v2878, %v3368
      %3370 = vadd.xlane.f32.xlu0 %v3369
      %v3371 = vpop.xlane.xlu0 %3370
      %v3372 = vsel %vm1265, %v2881, 0.0
      %v3373 = vadd.f32 %v2880, %v3372
      %3374 = vadd.xlane.f32.xlu0 %v3373
      %v3375 = vpop.xlane.xlu0 %3374
      %v3376 = vsel %vm1265, %v2883, 0.0
      %v3377 = vadd.f32 %v2882, %v3376
      %3378 = vadd.xlane.f32.xlu0 %v3377
      %v3379 = vpop.xlane.xlu0 %3378
      %v3380 = vsel %vm1265, %v2885, 0.0
      %v3381 = vadd.f32 %v2884, %v3380
      %3382 = vadd.xlane.f32.xlu0 %v3381
      %v3383 = vpop.xlane.xlu0 %3382
      %v3384 = vsel %vm1265, %v2887, 0.0
      %v3385 = vadd.f32 %v2886, %v3384
      %3386 = vadd.xlane.f32.xlu0 %v3385
      %v3387 = vpop.xlane.xlu0 %3386
      %v3388 = vsel %vm1265, %v2889, 0.0
      %v3389 = vadd.f32 %v2888, %v3388
      %3390 = vadd.xlane.f32.xlu0 %v3389
      %v3391 = vpop.xlane.xlu0 %3390
      %v3392 = vsel %vm1265, %v2891, 0.0
      %v3393 = vadd.f32 %v2890, %v3392
      %3394 = vadd.xlane.f32.xlu0 %v3393
      %v3395 = vpop.xlane.xlu0 %3394
      %v3396 = vsel %vm1265, %v2893, 0.0
      %v3397 = vadd.f32 %v2892, %v3396
      %3398 = vadd.xlane.f32.xlu0 %v3397
      %v3399 = vpop.xlane.xlu0 %3398
      %v3400 = vsel %vm1265, %v2895, 0.0
      %v3401 = vadd.f32 %v2894, %v3400
      %3402 = vadd.xlane.f32.xlu0 %v3401
      %v3403 = vpop.xlane.xlu0 %3402
      %v3404 = vsel %vm1265, %v2897, 0.0
      %v3405 = vadd.f32 %v2896, %v3404
      %3406 = vadd.xlane.f32.xlu0 %v3405
      %v3407 = vpop.xlane.xlu0 %3406
      %v3408 = vsel %vm1265, %v2899, 0.0
      %v3409 = vadd.f32 %v2898, %v3408
      %3410 = vadd.xlane.f32.xlu0 %v3409
      %v3411 = vpop.xlane.xlu0 %3410
      %v3412 = vmul.f32 %v2903, -0.5
      %v3413 = vmul.f32 %v2907, -0.5
      %v3414 = vmul.f32 %v2911, -0.5
      %v3415 = vmul.f32 %v2915, -0.5
      %v3416 = vmul.f32 %v2919, -0.5
      %v3417 = vmul.f32 %v2923, -0.5
      %v3418 = vmul.f32 %v2927, -0.5
      %v3419 = vmul.f32 %v2931, -0.5
      %v3420 = vmul.f32 %v2935, -0.5
      %v3421 = vmul.f32 %v2939, -0.5
      %v3422 = vmul.f32 %v2943, -0.5
      %v3423 = vmul.f32 %v2947, -0.5
      %v3424 = vmul.f32 %v2951, -0.5
      %v3425 = vmul.f32 %v2955, -0.5
      %v3426 = vmul.f32 %v2959, -0.5
      %v3427 = vmul.f32 %v2963, -0.5
      %v3428 = vmul.f32 %v2967, -0.5
      %v3429 = vmul.f32 %v2971, -0.5
      %v3430 = vmul.f32 %v2975, -0.5
      %v3431 = vmul.f32 %v2979, -0.5
      %v3432 = vmul.f32 %v2983, -0.5
      %v3433 = vmul.f32 %v2987, -0.5
      %v3434 = vmul.f32 %v2991, -0.5
      %v3435 = vmul.f32 %v2995, -0.5
      %v3436 = vmul.f32 %v2999, -0.5
      %v3437 = vmul.f32 %v3003, -0.5
      %v3438 = vmul.f32 %v3007, -0.5
      %v3439 = vmul.f32 %v3011, -0.5
      %v3440 = vmul.f32 %v3015, -0.5
      %v3441 = vmul.f32 %v3019, -0.5
      %v3442 = vmul.f32 %v3023, -0.5
      %v3443 = vmul.f32 %v3027, -0.5
      %v3444 = vmul.f32 %v3031, -0.5
      %v3445 = vmul.f32 %v3035, -0.5
      %v3446 = vmul.f32 %v3039, -0.5
      %v3447 = vmul.f32 %v3043, -0.5
      %v3448 = vmul.f32 %v3047, -0.5
      %v3449 = vmul.f32 %v3051, -0.5
      %v3450 = vmul.f32 %v3055, -0.5
      %v3451 = vmul.f32 %v3059, -0.5
      %v3452 = vmul.f32 %v3063, -0.5
      %v3453 = vmul.f32 %v3067, -0.5
      %v3454 = vmul.f32 %v3071, -0.5
      %v3455 = vmul.f32 %v3075, -0.5
      %v3456 = vmul.f32 %v3079, -0.5
      %v3457 = vmul.f32 %v3083, -0.5
      %v3458 = vmul.f32 %v3087, -0.5
      %v3459 = vmul.f32 %v3091, -0.5
      %v3460 = vmul.f32 %v3095, -0.5
      %v3461 = vmul.f32 %v3099, -0.5
      %v3462 = vmul.f32 %v3103, -0.5
      %v3463 = vmul.f32 %v3107, -0.5
      %v3464 = vmul.f32 %v3111, -0.5
      %v3465 = vmul.f32 %v3115, -0.5
      %v3466 = vmul.f32 %v3119, -0.5
      %v3467 = vmul.f32 %v3123, -0.5
      %v3468 = vmul.f32 %v3127, -0.5
      %v3469 = vmul.f32 %v3131, -0.5
      %v3470 = vmul.f32 %v3135, -0.5
      %v3471 = vmul.f32 %v3139, -0.5
      %v3472 = vmul.f32 %v3143, -0.5
      %v3473 = vmul.f32 %v3147, -0.5
      %v3474 = vmul.f32 %v3151, -0.5
      %v3475 = vmul.f32 %v3155, -0.5
      %v3476 = vmul.f32 %v3159, -0.5
      %v3477 = vmul.f32 %v3163, -0.5
      %v3478 = vmul.f32 %v3167, -0.5
      %v3479 = vmul.f32 %v3171, -0.5
      %v3480 = vmul.f32 %v3175, -0.5
      %v3481 = vmul.f32 %v3179, -0.5
      %v3482 = vmul.f32 %v3183, -0.5
      %v3483 = vmul.f32 %v3187, -0.5
      %v3484 = vmul.f32 %v3191, -0.5
      %v3485 = vmul.f32 %v3195, -0.5
      %v3486 = vmul.f32 %v3199, -0.5
      %v3487 = vmul.f32 %v3203, -0.5
      %v3488 = vmul.f32 %v3207, -0.5
      %v3489 = vmul.f32 %v3211, -0.5
      %v3490 = vmul.f32 %v3215, -0.5
      %v3491 = vmul.f32 %v3219, -0.5
      %v3492 = vmul.f32 %v3223, -0.5
      %v3493 = vmul.f32 %v3227, -0.5
      %v3494 = vmul.f32 %v3231, -0.5
      %v3495 = vmul.f32 %v3235, -0.5
      %v3496 = vmul.f32 %v3239, -0.5
      %v3497 = vmul.f32 %v3243, -0.5
      %v3498 = vmul.f32 %v3247, -0.5
      %v3499 = vmul.f32 %v3251, -0.5
      %v3500 = vmul.f32 %v3255, -0.5
      %v3501 = vmul.f32 %v3259, -0.5
      %v3502 = vmul.f32 %v3263, -0.5
      %v3503 = vmul.f32 %v3267, -0.5
      %v3504 = vmul.f32 %v3271, -0.5
      %v3505 = vmul.f32 %v3275, -0.5
      %v3506 = vmul.f32 %v3279, -0.5
      %v3507 = vmul.f32 %v3283, -0.5
      %v3508 = vmul.f32 %v3287, -0.5
      %v3509 = vmul.f32 %v3291, -0.5
      %v3510 = vmul.f32 %v3295, -0.5
      %v3511 = vmul.f32 %v3299, -0.5
      %v3512 = vmul.f32 %v3303, -0.5
      %v3513 = vmul.f32 %v3307, -0.5
      %v3514 = vmul.f32 %v3311, -0.5
      %v3515 = vmul.f32 %v3315, -0.5
      %v3516 = vmul.f32 %v3319, -0.5
      %v3517 = vmul.f32 %v3323, -0.5
      %v3518 = vmul.f32 %v3327, -0.5
      %v3519 = vmul.f32 %v3331, -0.5
      %v3520 = vmul.f32 %v3335, -0.5
      %v3521 = vmul.f32 %v3339, -0.5
      %v3522 = vmul.f32 %v3343, -0.5
      %v3523 = vmul.f32 %v3347, -0.5
      %v3524 = vmul.f32 %v3351, -0.5
      %v3525 = vmul.f32 %v3355, -0.5
      %v3526 = vmul.f32 %v3359, -0.5
      %v3527 = vmul.f32 %v3363, -0.5
      %v3528 = vmul.f32 %v3367, -0.5
      %v3529 = vmul.f32 %v3371, -0.5
      %v3530 = vmul.f32 %v3375, -0.5
      %v3531 = vmul.f32 %v3379, -0.5
      %v3532 = vmul.f32 %v3383, -0.5
      %v3533 = vmul.f32 %v3387, -0.5
      %v3534 = vmul.f32 %v3391, -0.5
      %v3535 = vmul.f32 %v3395, -0.5
      %v3536 = vmul.f32 %v3399, -0.5
      %v3537 = vmul.f32 %v3403, -0.5
      %v3538 = vmul.f32 %v3407, -0.5
      %v3539 = vmul.f32 %v3411, -0.5
      %v3540 = vadd.f32 %v3412, %v2516
      %v3541 = vadd.f32 %v3413, %v2517
      %v3542 = vadd.f32 %v3414, %v2518
      %v3543 = vadd.f32 %v3415, %v2519
      %v3544 = vadd.f32 %v3416, %v2520
      %v3545 = vadd.f32 %v3417, %v2521
      %v3546 = vadd.f32 %v3418, %v2522
      %v3547 = vadd.f32 %v3419, %v2523
      %v3548 = vadd.f32 %v3420, %v2524
      %v3549 = vadd.f32 %v3421, %v2525
      %v3550 = vadd.f32 %v3422, %v2526
      %v3551 = vadd.f32 %v3423, %v2527
      %v3552 = vadd.f32 %v3424, %v2528
      %v3553 = vadd.f32 %v3425, %v2529
      %v3554 = vadd.f32 %v3426, %v2530
      %v3555 = vadd.f32 %v3427, %v2531
      %v3556 = vadd.f32 %v3428, %v2532
      %v3557 = vadd.f32 %v3429, %v2533
      %v3558 = vadd.f32 %v3430, %v2534
      %v3559 = vadd.f32 %v3431, %v2535
      %v3560 = vadd.f32 %v3432, %v2536
      %v3561 = vadd.f32 %v3433, %v2537
      %v3562 = vadd.f32 %v3434, %v2538
      %v3563 = vadd.f32 %v3435, %v2539
      %v3564 = vadd.f32 %v3436, %v2540
      %v3565 = vadd.f32 %v3437, %v2541
      %v3566 = vadd.f32 %v3438, %v2542
      %v3567 = vadd.f32 %v3439, %v2543
      %v3568 = vadd.f32 %v3440, %v2544
      %v3569 = vadd.f32 %v3441, %v2545
      %v3570 = vadd.f32 %v3442, %v2546
      %v3571 = vadd.f32 %v3443, %v2547
      %v3572 = vadd.f32 %v3444, %v2548
      %v3573 = vadd.f32 %v3445, %v2549
      %v3574 = vadd.f32 %v3446, %v2550
      %v3575 = vadd.f32 %v3447, %v2551
      %v3576 = vadd.f32 %v3448, %v2552
      %v3577 = vadd.f32 %v3449, %v2553
      %v3578 = vadd.f32 %v3450, %v2554
      %v3579 = vadd.f32 %v3451, %v2555
      %v3580 = vadd.f32 %v3452, %v2556
      %v3581 = vadd.f32 %v3453, %v2557
      %v3582 = vadd.f32 %v3454, %v2558
      %v3583 = vadd.f32 %v3455, %v2559
      %v3584 = vadd.f32 %v3456, %v2560
      %v3585 = vadd.f32 %v3457, %v2561
      %v3586 = vadd.f32 %v3458, %v2562
      %v3587 = vadd.f32 %v3459, %v2563
      %v3588 = vadd.f32 %v3460, %v2564
      %v3589 = vadd.f32 %v3461, %v2565
      %v3590 = vadd.f32 %v3462, %v2566
      %v3591 = vadd.f32 %v3463, %v2567
      %v3592 = vadd.f32 %v3464, %v2568
      %v3593 = vadd.f32 %v3465, %v2569
      %v3594 = vadd.f32 %v3466, %v2570
      %v3595 = vadd.f32 %v3467, %v2571
      %v3596 = vadd.f32 %v3468, %v2572
      %v3597 = vadd.f32 %v3469, %v2573
      %v3598 = vadd.f32 %v3470, %v2574
      %v3599 = vadd.f32 %v3471, %v2575
      %v3600 = vadd.f32 %v3472, %v2576
      %v3601 = vadd.f32 %v3473, %v2577
      %v3602 = vadd.f32 %v3474, %v2578
      %v3603 = vadd.f32 %v3475, %v2579
      %v3604 = vadd.f32 %v3476, %v2580
      %v3605 = vadd.f32 %v3477, %v2581
      %v3606 = vadd.f32 %v3478, %v2582
      %v3607 = vadd.f32 %v3479, %v2583
      %v3608 = vadd.f32 %v3480, %v2584
      %v3609 = vadd.f32 %v3481, %v2585
      %v3610 = vadd.f32 %v3482, %v2586
      %v3611 = vadd.f32 %v3483, %v2587
      %v3612 = vadd.f32 %v3484, %v2588
      %v3613 = vadd.f32 %v3485, %v2589
      %v3614 = vadd.f32 %v3486, %v2590
      %v3615 = vadd.f32 %v3487, %v2591
      %v3616 = vadd.f32 %v3488, %v2592
      %v3617 = vadd.f32 %v3489, %v2593
      %v3618 = vadd.f32 %v3490, %v2594
      %v3619 = vadd.f32 %v3491, %v2595
      %v3620 = vadd.f32 %v3492, %v2596
      %v3621 = vadd.f32 %v3493, %v2597
      %v3622 = vadd.f32 %v3494, %v2598
      %v3623 = vadd.f32 %v3495, %v2599
      %v3624 = vadd.f32 %v3496, %v2600
      %v3625 = vadd.f32 %v3497, %v2601
      %v3626 = vadd.f32 %v3498, %v2602
      %v3627 = vadd.f32 %v3499, %v2603
      %v3628 = vadd.f32 %v3500, %v2604
      %v3629 = vadd.f32 %v3501, %v2605
      %v3630 = vadd.f32 %v3502, %v2606
      %v3631 = vadd.f32 %v3503, %v2607
      %v3632 = vadd.f32 %v3504, %v2608
      %v3633 = vadd.f32 %v3505, %v2609
      %v3634 = vadd.f32 %v3506, %v2610
      %v3635 = vadd.f32 %v3507, %v2611
      %v3636 = vadd.f32 %v3508, %v2612
      %v3637 = vadd.f32 %v3509, %v2613
      %v3638 = vadd.f32 %v3510, %v2614
      %v3639 = vadd.f32 %v3511, %v2615
      %v3640 = vadd.f32 %v3512, %v2616
      %v3641 = vadd.f32 %v3513, %v2617
      %v3642 = vadd.f32 %v3514, %v2618
      %v3643 = vadd.f32 %v3515, %v2619
      %v3644 = vadd.f32 %v3516, %v2620
      %v3645 = vadd.f32 %v3517, %v2621
      %v3646 = vadd.f32 %v3518, %v2622
      %v3647 = vadd.f32 %v3519, %v2623
      %v3648 = vadd.f32 %v3520, %v2624
      %v3649 = vadd.f32 %v3521, %v2625
      %v3650 = vadd.f32 %v3522, %v2626
      %v3651 = vadd.f32 %v3523, %v2627
      %v3652 = vadd.f32 %v3524, %v2628
      %v3653 = vadd.f32 %v3525, %v2629
      %v3654 = vadd.f32 %v3526, %v2630
      %v3655 = vadd.f32 %v3527, %v2631
      %v3656 = vadd.f32 %v3528, %v2632
      %v3657 = vadd.f32 %v3529, %v2633
      %v3658 = vadd.f32 %v3530, %v2634
      %v3659 = vadd.f32 %v3531, %v2635
      %v3660 = vadd.f32 %v3532, %v2636
      %v3661 = vadd.f32 %v3533, %v2637
      %v3662 = vadd.f32 %v3534, %v2638
      %v3663 = vadd.f32 %v3535, %v2639
      %v3664 = vadd.f32 %v3536, %v2640
      %v3665 = vadd.f32 %v3537, %v2641
      %v3666 = vadd.f32 %v3538, %v2642
      %v3667 = vadd.f32 %v3539, %v2643
      %v3668 = vadd.f32 %v3540, %v1493
      %v3669 = vadd.f32 %v3541, %v1496
      %v3670 = vadd.f32 %v3542, %v1501
      %v3671 = vadd.f32 %v3543, %v1504
      %v3672 = vadd.f32 %v3544, %v1509
      %v3673 = vadd.f32 %v3545, %v1512
      %v3674 = vadd.f32 %v3546, %v1517
      %v3675 = vadd.f32 %v3547, %v1520
      %v3676 = vadd.f32 %v3548, %v1525
      %v3677 = vadd.f32 %v3549, %v1528
      %v3678 = vadd.f32 %v3550, %v1533
      %v3679 = vadd.f32 %v3551, %v1536
      %v3680 = vadd.f32 %v3552, %v1541
      %v3681 = vadd.f32 %v3553, %v1544
      %v3682 = vadd.f32 %v3554, %v1549
      %v3683 = vadd.f32 %v3555, %v1552
      %v3684 = vadd.f32 %v3556, %v1557
      %v3685 = vadd.f32 %v3557, %v1560
      %v3686 = vadd.f32 %v3558, %v1565
      %v3687 = vadd.f32 %v3559, %v1568
      %v3688 = vadd.f32 %v3560, %v1573
      %v3689 = vadd.f32 %v3561, %v1576
      %v3690 = vadd.f32 %v3562, %v1581
      %v3691 = vadd.f32 %v3563, %v1584
      %v3692 = vadd.f32 %v3564, %v1589
      %v3693 = vadd.f32 %v3565, %v1592
      %v3694 = vadd.f32 %v3566, %v1597
      %v3695 = vadd.f32 %v3567, %v1600
      %v3696 = vadd.f32 %v3568, %v1605
      %v3697 = vadd.f32 %v3569, %v1608
      %v3698 = vadd.f32 %v3570, %v1613
      %v3699 = vadd.f32 %v3571, %v1616
      %v3700 = vadd.f32 %v3572, %v1621
      %v3701 = vadd.f32 %v3573, %v1624
      %v3702 = vadd.f32 %v3574, %v1629
      %v3703 = vadd.f32 %v3575, %v1632
      %v3704 = vadd.f32 %v3576, %v1637
      %v3705 = vadd.f32 %v3577, %v1640
      %v3706 = vadd.f32 %v3578, %v1645
      %v3707 = vadd.f32 %v3579, %v1648
      %v3708 = vadd.f32 %v3580, %v1653
      %v3709 = vadd.f32 %v3581, %v1656
      %v3710 = vadd.f32 %v3582, %v1661
      %v3711 = vadd.f32 %v3583, %v1664
      %v3712 = vadd.f32 %v3584, %v1669
      %v3713 = vadd.f32 %v3585, %v1672
      %v3714 = vadd.f32 %v3586, %v1677
      %v3715 = vadd.f32 %v3587, %v1680
      %v3716 = vadd.f32 %v3588, %v1685
      %v3717 = vadd.f32 %v3589, %v1688
      %v3718 = vadd.f32 %v3590, %v1693
      %v3719 = vadd.f32 %v3591, %v1696
      %v3720 = vadd.f32 %v3592, %v1701
      %v3721 = vadd.f32 %v3593, %v1704
      %v3722 = vadd.f32 %v3594, %v1709
      %v3723 = vadd.f32 %v3595, %v1712
      %v3724 = vadd.f32 %v3596, %v1717
      %v3725 = vadd.f32 %v3597, %v1720
      %v3726 = vadd.f32 %v3598, %v1725
      %v3727 = vadd.f32 %v3599, %v1728
      %v3728 = vadd.f32 %v3600, %v1733
      %v3729 = vadd.f32 %v3601, %v1736
      %v3730 = vadd.f32 %v3602, %v1741
      %v3731 = vadd.f32 %v3603, %v1744
      %v3732 = vadd.f32 %v3604, %v1749
      %v3733 = vadd.f32 %v3605, %v1752
      %v3734 = vadd.f32 %v3606, %v1757
      %v3735 = vadd.f32 %v3607, %v1760
      %v3736 = vadd.f32 %v3608, %v1765
      %v3737 = vadd.f32 %v3609, %v1768
      %v3738 = vadd.f32 %v3610, %v1773
      %v3739 = vadd.f32 %v3611, %v1776
      %v3740 = vadd.f32 %v3612, %v1781
      %v3741 = vadd.f32 %v3613, %v1784
      %v3742 = vadd.f32 %v3614, %v1789
      %v3743 = vadd.f32 %v3615, %v1792
      %v3744 = vadd.f32 %v3616, %v1797
      %v3745 = vadd.f32 %v3617, %v1800
      %v3746 = vadd.f32 %v3618, %v1805
      %v3747 = vadd.f32 %v3619, %v1808
      %v3748 = vadd.f32 %v3620, %v1813
      %v3749 = vadd.f32 %v3621, %v1816
      %v3750 = vadd.f32 %v3622, %v1821
      %v3751 = vadd.f32 %v3623, %v1824
      %v3752 = vadd.f32 %v3624, %v1829
      %v3753 = vadd.f32 %v3625, %v1832
      %v3754 = vadd.f32 %v3626, %v1837
      %v3755 = vadd.f32 %v3627, %v1840
      %v3756 = vadd.f32 %v3628, %v1845
      %v3757 = vadd.f32 %v3629, %v1848
      %v3758 = vadd.f32 %v3630, %v1853
      %v3759 = vadd.f32 %v3631, %v1856
      %v3760 = vadd.f32 %v3632, %v1861
      %v3761 = vadd.f32 %v3633, %v1864
      %v3762 = vadd.f32 %v3634, %v1869
      %v3763 = vadd.f32 %v3635, %v1872
      %v3764 = vadd.f32 %v3636, %v1877
      %v3765 = vadd.f32 %v3637, %v1880
      %v3766 = vadd.f32 %v3638, %v1885
      %v3767 = vadd.f32 %v3639, %v1888
      %v3768 = vadd.f32 %v3640, %v1893
      %v3769 = vadd.f32 %v3641, %v1896
      %v3770 = vadd.f32 %v3642, %v1901
      %v3771 = vadd.f32 %v3643, %v1904
      %v3772 = vadd.f32 %v3644, %v1909
      %v3773 = vadd.f32 %v3645, %v1912
      %v3774 = vadd.f32 %v3646, %v1917
      %v3775 = vadd.f32 %v3647, %v1920
      %v3776 = vadd.f32 %v3648, %v1925
      %v3777 = vadd.f32 %v3649, %v1928
      %v3778 = vadd.f32 %v3650, %v1933
      %v3779 = vadd.f32 %v3651, %v1936
      %v3780 = vadd.f32 %v3652, %v1941
      %v3781 = vadd.f32 %v3653, %v1944
      %v3782 = vadd.f32 %v3654, %v1949
      %v3783 = vadd.f32 %v3655, %v1952
      %v3784 = vadd.f32 %v3656, %v1957
      %v3785 = vadd.f32 %v3657, %v1960
      %v3786 = vadd.f32 %v3658, %v1965
      %v3787 = vadd.f32 %v3659, %v1968
      %v3788 = vadd.f32 %v3660, %v1973
      %v3789 = vadd.f32 %v3661, %v1976
      %v3790 = vadd.f32 %v3662, %v1981
      %v3791 = vadd.f32 %v3663, %v1984
      %v3792 = vadd.f32 %v3664, %v1989
      %v3793 = vadd.f32 %v3665, %v1992
      %v3794 = vadd.f32 %v3666, %v1997
      %v3795 = vadd.f32 %v3667, %v2000
      %v3796 = vld [vmem:[%s216] sm:$0xff]
      %v3797 = vld [vmem:[%s216 + $0x8] sm:$0xff]
      %v3798 = vld [vmem:[%s216 + $0x10] sm:$0xff]
      %v3799 = vld [vmem:[%s216 + $0x18] sm:$0xff]
      %v3800 = vld [vmem:[%s216 + $0x20] sm:$0xff]
      %v3801 = vld [vmem:[%s216 + $0x28] sm:$0xff]
      %v3802 = vld [vmem:[%s216 + $0x30] sm:$0xff]
      %v3803 = vld [vmem:[%s216 + $0x38] sm:$0xff]
      %v3804 = vld [vmem:[%s216 + $0x40] sm:$0xff]
      %v3805 = vld [vmem:[%s216 + $0x48] sm:$0xff]
      %v3806 = vld [vmem:[%s216 + $0x50] sm:$0xff]
      %v3807 = vld [vmem:[%s216 + $0x58] sm:$0xff]
      %v3808 = vld [vmem:[%s216 + $0x60] sm:$0xff]
      %v3809 = vld [vmem:[%s216 + $0x68] sm:$0xff]
      %v3810 = vld [vmem:[%s216 + $0x70] sm:$0xff]
      %v3811 = vld [vmem:[%s216 + $0x78] sm:$0xff]
      %v3812 = vld [vmem:[%s216 + $0x80] sm:$0xff]
      %v3813 = vld [vmem:[%s216 + $0x88] sm:$0xff]
      %v3814 = vld [vmem:[%s216 + $0x90] sm:$0xff]
      %v3815 = vld [vmem:[%s216 + $0x98] sm:$0xff]
      %v3816 = vld [vmem:[%s216 + $0xa0] sm:$0xff]
      %v3817 = vld [vmem:[%s216 + $0xa8] sm:$0xff]
      %v3818 = vld [vmem:[%s216 + $0xb0] sm:$0xff]
      %v3819 = vld [vmem:[%s216 + $0xb8] sm:$0xff]
      %v3820 = vld [vmem:[%s216 + $0xc0] sm:$0xff]
      %v3821 = vld [vmem:[%s216 + $0xc8] sm:$0xff]
      %v3822 = vld [vmem:[%s216 + $0xd0] sm:$0xff]
      %v3823 = vld [vmem:[%s216 + $0xd8] sm:$0xff]
      %v3824 = vld [vmem:[%s216 + $0xe0] sm:$0xff]
      %v3825 = vld [vmem:[%s216 + $0xe8] sm:$0xff]
      %v3826 = vld [vmem:[%s216 + $0xf0] sm:$0xff]
      %v3827 = vld [vmem:[%s216 + $0xf8] sm:$0xff]
      %v3828 = vld [vmem:[%s216 + $0x100] sm:$0xff]
      %v3829 = vld [vmem:[%s216 + $0x108] sm:$0xff]
      %v3830 = vld [vmem:[%s216 + $0x110] sm:$0xff]
      %v3831 = vld [vmem:[%s216 + $0x118] sm:$0xff]
      %v3832 = vld [vmem:[%s216 + $0x120] sm:$0xff]
      %v3833 = vld [vmem:[%s216 + $0x128] sm:$0xff]
      %v3834 = vld [vmem:[%s216 + $0x130] sm:$0xff]
      %v3835 = vld [vmem:[%s216 + $0x138] sm:$0xff]
      %v3836 = vld [vmem:[%s216 + $0x140] sm:$0xff]
      %v3837 = vld [vmem:[%s216 + $0x148] sm:$0xff]
      %v3838 = vld [vmem:[%s216 + $0x150] sm:$0xff]
      %v3839 = vld [vmem:[%s216 + $0x158] sm:$0xff]
      %v3840 = vld [vmem:[%s216 + $0x160] sm:$0xff]
      %v3841 = vld [vmem:[%s216 + $0x168] sm:$0xff]
      %v3842 = vld [vmem:[%s216 + $0x170] sm:$0xff]
      %v3843 = vld [vmem:[%s216 + $0x178] sm:$0xff]
      %v3844 = vld [vmem:[%s216 + $0x180] sm:$0xff]
      %v3845 = vld [vmem:[%s216 + $0x188] sm:$0xff]
      %v3846 = vld [vmem:[%s216 + $0x190] sm:$0xff]
      %v3847 = vld [vmem:[%s216 + $0x198] sm:$0xff]
      %v3848 = vld [vmem:[%s216 + $0x1a0] sm:$0xff]
      %v3849 = vld [vmem:[%s216 + $0x1a8] sm:$0xff]
      %v3850 = vld [vmem:[%s216 + $0x1b0] sm:$0xff]
      %v3851 = vld [vmem:[%s216 + $0x1b8] sm:$0xff]
      %v3852 = vld [vmem:[%s216 + $0x1c0] sm:$0xff]
      %v3853 = vld [vmem:[%s216 + $0x1c8] sm:$0xff]
      %v3854 = vld [vmem:[%s216 + $0x1d0] sm:$0xff]
      %v3855 = vld [vmem:[%s216 + $0x1d8] sm:$0xff]
      %v3856 = vld [vmem:[%s216 + $0x1e0] sm:$0xff]
      %v3857 = vld [vmem:[%s216 + $0x1e8] sm:$0xff]
      %v3858 = vld [vmem:[%s216 + $0x1f0] sm:$0xff]
      %v3859 = vld [vmem:[%s216 + $0x1f8] sm:$0xff]
      %v3860 = vld [vmem:[%s216 + $0x200] sm:$0xff]
      %v3861 = vld [vmem:[%s216 + $0x208] sm:$0xff]
      %v3862 = vld [vmem:[%s216 + $0x210] sm:$0xff]
      %v3863 = vld [vmem:[%s216 + $0x218] sm:$0xff]
      %v3864 = vld [vmem:[%s216 + $0x220] sm:$0xff]
      %v3865 = vld [vmem:[%s216 + $0x228] sm:$0xff]
      %v3866 = vld [vmem:[%s216 + $0x230] sm:$0xff]
      %v3867 = vld [vmem:[%s216 + $0x238] sm:$0xff]
      %v3868 = vld [vmem:[%s216 + $0x240] sm:$0xff]
      %v3869 = vld [vmem:[%s216 + $0x248] sm:$0xff]
      %v3870 = vld [vmem:[%s216 + $0x250] sm:$0xff]
      %v3871 = vld [vmem:[%s216 + $0x258] sm:$0xff]
      %v3872 = vld [vmem:[%s216 + $0x260] sm:$0xff]
      %v3873 = vld [vmem:[%s216 + $0x268] sm:$0xff]
      %v3874 = vld [vmem:[%s216 + $0x270] sm:$0xff]
      %v3875 = vld [vmem:[%s216 + $0x278] sm:$0xff]
      %v3876 = vld [vmem:[%s216 + $0x280] sm:$0xff]
      %v3877 = vld [vmem:[%s216 + $0x288] sm:$0xff]
      %v3878 = vld [vmem:[%s216 + $0x290] sm:$0xff]
      %v3879 = vld [vmem:[%s216 + $0x298] sm:$0xff]
      %v3880 = vld [vmem:[%s216 + $0x2a0] sm:$0xff]
      %v3881 = vld [vmem:[%s216 + $0x2a8] sm:$0xff]
      %v3882 = vld [vmem:[%s216 + $0x2b0] sm:$0xff]
      %v3883 = vld [vmem:[%s216 + $0x2b8] sm:$0xff]
      %v3884 = vld [vmem:[%s216 + $0x2c0] sm:$0xff]
      %v3885 = vld [vmem:[%s216 + $0x2c8] sm:$0xff]
      %v3886 = vld [vmem:[%s216 + $0x2d0] sm:$0xff]
      %v3887 = vld [vmem:[%s216 + $0x2d8] sm:$0xff]
      %v3888 = vld [vmem:[%s216 + $0x2e0] sm:$0xff]
      %v3889 = vld [vmem:[%s216 + $0x2e8] sm:$0xff]
      %v3890 = vld [vmem:[%s216 + $0x2f0] sm:$0xff]
      %v3891 = vld [vmem:[%s216 + $0x2f8] sm:$0xff]
      %v3892 = vld [vmem:[%s216 + $0x300] sm:$0xff]
      %v3893 = vld [vmem:[%s216 + $0x308] sm:$0xff]
      %v3894 = vld [vmem:[%s216 + $0x310] sm:$0xff]
      %v3895 = vld [vmem:[%s216 + $0x318] sm:$0xff]
      %v3896 = vld [vmem:[%s216 + $0x320] sm:$0xff]
      %v3897 = vld [vmem:[%s216 + $0x328] sm:$0xff]
      %v3898 = vld [vmem:[%s216 + $0x330] sm:$0xff]
      %v3899 = vld [vmem:[%s216 + $0x338] sm:$0xff]
      %v3900 = vld [vmem:[%s216 + $0x340] sm:$0xff]
      %v3901 = vld [vmem:[%s216 + $0x348] sm:$0xff]
      %v3902 = vld [vmem:[%s216 + $0x350] sm:$0xff]
      %v3903 = vld [vmem:[%s216 + $0x358] sm:$0xff]
      %v3904 = vld [vmem:[%s216 + $0x360] sm:$0xff]
      %v3905 = vld [vmem:[%s216 + $0x368] sm:$0xff]
      %v3906 = vld [vmem:[%s216 + $0x370] sm:$0xff]
      %v3907 = vld [vmem:[%s216 + $0x378] sm:$0xff]
      %v3908 = vld [vmem:[%s216 + $0x380] sm:$0xff]
      %v3909 = vld [vmem:[%s216 + $0x388] sm:$0xff]
      %v3910 = vld [vmem:[%s216 + $0x390] sm:$0xff]
      %v3911 = vld [vmem:[%s216 + $0x398] sm:$0xff]
      %v3912 = vld [vmem:[%s216 + $0x3a0] sm:$0xff]
      %v3913 = vld [vmem:[%s216 + $0x3a8] sm:$0xff]
      %v3914 = vld [vmem:[%s216 + $0x3b0] sm:$0xff]
      %v3915 = vld [vmem:[%s216 + $0x3b8] sm:$0xff]
      %v3916 = vld [vmem:[%s216 + $0x3c0] sm:$0xff]
      %v3917 = vld [vmem:[%s216 + $0x3c8] sm:$0xff]
      %v3918 = vld [vmem:[%s216 + $0x3d0] sm:$0xff]
      %v3919 = vld [vmem:[%s216 + $0x3d8] sm:$0xff]
      %v3920 = vld [vmem:[%s216 + $0x3e0] sm:$0xff]
      %v3921 = vld [vmem:[%s216 + $0x3e8] sm:$0xff]
      %v3922 = vld [vmem:[%s216 + $0x3f0] sm:$0xff]
      %v3923 = vld [vmem:[%s216 + $0x3f8] sm:$0xff]
      %4052 = vrot.lane.b32.xlu0 %v3796, 4
      %v4053 = vpop.permute.xlu0 %4052
      %4054 = vrot.lane.b32.xlu0 %v3797, 4
      %v4055 = vpop.permute.xlu0 %4054
      %4056 = vrot.lane.b32.xlu0 %v3798, 4
      %v4057 = vpop.permute.xlu0 %4056
      %4058 = vrot.lane.b32.xlu0 %v3799, 4
      %v4059 = vpop.permute.xlu0 %4058
      %4060 = vrot.lane.b32.xlu0 %v3800, 4
      %v4061 = vpop.permute.xlu0 %4060
      %4062 = vrot.lane.b32.xlu0 %v3801, 4
      %v4063 = vpop.permute.xlu0 %4062
      %4064 = vrot.lane.b32.xlu0 %v3802, 4
      %v4065 = vpop.permute.xlu0 %4064
      %4066 = vrot.lane.b32.xlu0 %v3803, 4
      %v4067 = vpop.permute.xlu0 %4066
      %4068 = vrot.lane.b32.xlu0 %v3804, 4
      %v4069 = vpop.permute.xlu0 %4068
      %4070 = vrot.lane.b32.xlu0 %v3805, 4
      %v4071 = vpop.permute.xlu0 %4070
      %4072 = vrot.lane.b32.xlu0 %v3806, 4
      %v4073 = vpop.permute.xlu0 %4072
      %4074 = vrot.lane.b32.xlu0 %v3807, 4
      %v4075 = vpop.permute.xlu0 %4074
      %4076 = vrot.lane.b32.xlu0 %v3808, 4
      %v4077 = vpop.permute.xlu0 %4076
      %4078 = vrot.lane.b32.xlu0 %v3809, 4
      %v4079 = vpop.permute.xlu0 %4078
      %4080 = vrot.lane.b32.xlu0 %v3810, 4
      %v4081 = vpop.permute.xlu0 %4080
      %4082 = vrot.lane.b32.xlu0 %v3811, 4
      %v4083 = vpop.permute.xlu0 %4082
      %4084 = vrot.lane.b32.xlu0 %v3812, 4
      %v4085 = vpop.permute.xlu0 %4084
      %4086 = vrot.lane.b32.xlu0 %v3813, 4
      %v4087 = vpop.permute.xlu0 %4086
      %4088 = vrot.lane.b32.xlu0 %v3814, 4
      %v4089 = vpop.permute.xlu0 %4088
      %4090 = vrot.lane.b32.xlu0 %v3815, 4
      %v4091 = vpop.permute.xlu0 %4090
      %4092 = vrot.lane.b32.xlu0 %v3816, 4
      %v4093 = vpop.permute.xlu0 %4092
      %4094 = vrot.lane.b32.xlu0 %v3817, 4
      %v4095 = vpop.permute.xlu0 %4094
      %4096 = vrot.lane.b32.xlu0 %v3818, 4
      %v4097 = vpop.permute.xlu0 %4096
      %4098 = vrot.lane.b32.xlu0 %v3819, 4
      %v4099 = vpop.permute.xlu0 %4098
      %4100 = vrot.lane.b32.xlu0 %v3820, 4
      %v4101 = vpop.permute.xlu0 %4100
      %4102 = vrot.lane.b32.xlu0 %v3821, 4
      %v4103 = vpop.permute.xlu0 %4102
      %4104 = vrot.lane.b32.xlu0 %v3822, 4
      %v4105 = vpop.permute.xlu0 %4104
      %4106 = vrot.lane.b32.xlu0 %v3823, 4
      %v4107 = vpop.permute.xlu0 %4106
      %4108 = vrot.lane.b32.xlu0 %v3824, 4
      %v4109 = vpop.permute.xlu0 %4108
      %4110 = vrot.lane.b32.xlu0 %v3825, 4
      %v4111 = vpop.permute.xlu0 %4110
      %4112 = vrot.lane.b32.xlu0 %v3826, 4
      %v4113 = vpop.permute.xlu0 %4112
      %4114 = vrot.lane.b32.xlu0 %v3827, 4
      %v4115 = vpop.permute.xlu0 %4114
      %4116 = vrot.lane.b32.xlu0 %v3828, 4
      %v4117 = vpop.permute.xlu0 %4116
      %4118 = vrot.lane.b32.xlu0 %v3829, 4
      %v4119 = vpop.permute.xlu0 %4118
      %4120 = vrot.lane.b32.xlu0 %v3830, 4
      %v4121 = vpop.permute.xlu0 %4120
      %4122 = vrot.lane.b32.xlu0 %v3831, 4
      %v4123 = vpop.permute.xlu0 %4122
      %4124 = vrot.lane.b32.xlu0 %v3832, 4
      %v4125 = vpop.permute.xlu0 %4124
      %4126 = vrot.lane.b32.xlu0 %v3833, 4
      %v4127 = vpop.permute.xlu0 %4126
      %4128 = vrot.lane.b32.xlu0 %v3834, 4
      %v4129 = vpop.permute.xlu0 %4128
      %4130 = vrot.lane.b32.xlu0 %v3835, 4
      %v4131 = vpop.permute.xlu0 %4130
      %4132 = vrot.lane.b32.xlu0 %v3836, 4
      %v4133 = vpop.permute.xlu0 %4132
      %4134 = vrot.lane.b32.xlu0 %v3837, 4
      %v4135 = vpop.permute.xlu0 %4134
      %4136 = vrot.lane.b32.xlu0 %v3838, 4
      %v4137 = vpop.permute.xlu0 %4136
      %4138 = vrot.lane.b32.xlu0 %v3839, 4
      %v4139 = vpop.permute.xlu0 %4138
      %4140 = vrot.lane.b32.xlu0 %v3840, 4
      %v4141 = vpop.permute.xlu0 %4140
      %4142 = vrot.lane.b32.xlu0 %v3841, 4
      %v4143 = vpop.permute.xlu0 %4142
      %4144 = vrot.lane.b32.xlu0 %v3842, 4
      %v4145 = vpop.permute.xlu0 %4144
      %4146 = vrot.lane.b32.xlu0 %v3843, 4
      %v4147 = vpop.permute.xlu0 %4146
      %4148 = vrot.lane.b32.xlu0 %v3844, 4
      %v4149 = vpop.permute.xlu0 %4148
      %4150 = vrot.lane.b32.xlu0 %v3845, 4
      %v4151 = vpop.permute.xlu0 %4150
      %4152 = vrot.lane.b32.xlu0 %v3846, 4
      %v4153 = vpop.permute.xlu0 %4152
      %4154 = vrot.lane.b32.xlu0 %v3847, 4
      %v4155 = vpop.permute.xlu0 %4154
      %4156 = vrot.lane.b32.xlu0 %v3848, 4
      %v4157 = vpop.permute.xlu0 %4156
      %4158 = vrot.lane.b32.xlu0 %v3849, 4
      %v4159 = vpop.permute.xlu0 %4158
      %4160 = vrot.lane.b32.xlu0 %v3850, 4
      %v4161 = vpop.permute.xlu0 %4160
      %4162 = vrot.lane.b32.xlu0 %v3851, 4
      %v4163 = vpop.permute.xlu0 %4162
      %4164 = vrot.lane.b32.xlu0 %v3852, 4
      %v4165 = vpop.permute.xlu0 %4164
      %4166 = vrot.lane.b32.xlu0 %v3853, 4
      %v4167 = vpop.permute.xlu0 %4166
      %4168 = vrot.lane.b32.xlu0 %v3854, 4
      %v4169 = vpop.permute.xlu0 %4168
      %4170 = vrot.lane.b32.xlu0 %v3855, 4
      %v4171 = vpop.permute.xlu0 %4170
      %4172 = vrot.lane.b32.xlu0 %v3856, 4
      %v4173 = vpop.permute.xlu0 %4172
      %4174 = vrot.lane.b32.xlu0 %v3857, 4
      %v4175 = vpop.permute.xlu0 %4174
      %4176 = vrot.lane.b32.xlu0 %v3858, 4
      %v4177 = vpop.permute.xlu0 %4176
      %4178 = vrot.lane.b32.xlu0 %v3859, 4
      %v4179 = vpop.permute.xlu0 %4178
      %4180 = vrot.lane.b32.xlu0 %v3860, 4
      %v4181 = vpop.permute.xlu0 %4180
      %4182 = vrot.lane.b32.xlu0 %v3861, 4
      %v4183 = vpop.permute.xlu0 %4182
      %4184 = vrot.lane.b32.xlu0 %v3862, 4
      %v4185 = vpop.permute.xlu0 %4184
      %4186 = vrot.lane.b32.xlu0 %v3863, 4
      %v4187 = vpop.permute.xlu0 %4186
      %4188 = vrot.lane.b32.xlu0 %v3864, 4
      %v4189 = vpop.permute.xlu0 %4188
      %4190 = vrot.lane.b32.xlu0 %v3865, 4
      %v4191 = vpop.permute.xlu0 %4190
      %4192 = vrot.lane.b32.xlu0 %v3866, 4
      %v4193 = vpop.permute.xlu0 %4192
      %4194 = vrot.lane.b32.xlu0 %v3867, 4
      %v4195 = vpop.permute.xlu0 %4194
      %4196 = vrot.lane.b32.xlu0 %v3868, 4
      %v4197 = vpop.permute.xlu0 %4196
      %4198 = vrot.lane.b32.xlu0 %v3869, 4
      %v4199 = vpop.permute.xlu0 %4198
      %4200 = vrot.lane.b32.xlu0 %v3870, 4
      %v4201 = vpop.permute.xlu0 %4200
      %4202 = vrot.lane.b32.xlu0 %v3871, 4
      %v4203 = vpop.permute.xlu0 %4202
      %4204 = vrot.lane.b32.xlu0 %v3872, 4
      %v4205 = vpop.permute.xlu0 %4204
      %4206 = vrot.lane.b32.xlu0 %v3873, 4
      %v4207 = vpop.permute.xlu0 %4206
      %4208 = vrot.lane.b32.xlu0 %v3874, 4
      %v4209 = vpop.permute.xlu0 %4208
      %4210 = vrot.lane.b32.xlu0 %v3875, 4
      %v4211 = vpop.permute.xlu0 %4210
      %4212 = vrot.lane.b32.xlu0 %v3876, 4
      %v4213 = vpop.permute.xlu0 %4212
      %4214 = vrot.lane.b32.xlu0 %v3877, 4
      %v4215 = vpop.permute.xlu0 %4214
      %4216 = vrot.lane.b32.xlu0 %v3878, 4
      %v4217 = vpop.permute.xlu0 %4216
      %4218 = vrot.lane.b32.xlu0 %v3879, 4
      %v4219 = vpop.permute.xlu0 %4218
      %4220 = vrot.lane.b32.xlu0 %v3880, 4
      %v4221 = vpop.permute.xlu0 %4220
      %4222 = vrot.lane.b32.xlu0 %v3881, 4
      %v4223 = vpop.permute.xlu0 %4222
      %4224 = vrot.lane.b32.xlu0 %v3882, 4
      %v4225 = vpop.permute.xlu0 %4224
      %4226 = vrot.lane.b32.xlu0 %v3883, 4
      %v4227 = vpop.permute.xlu0 %4226
      %4228 = vrot.lane.b32.xlu0 %v3884, 4
      %v4229 = vpop.permute.xlu0 %4228
      %4230 = vrot.lane.b32.xlu0 %v3885, 4
      %v4231 = vpop.permute.xlu0 %4230
      %4232 = vrot.lane.b32.xlu0 %v3886, 4
      %v4233 = vpop.permute.xlu0 %4232
      %4234 = vrot.lane.b32.xlu0 %v3887, 4
      %v4235 = vpop.permute.xlu0 %4234
      %4236 = vrot.lane.b32.xlu0 %v3888, 4
      %v4237 = vpop.permute.xlu0 %4236
      %4238 = vrot.lane.b32.xlu0 %v3889, 4
      %v4239 = vpop.permute.xlu0 %4238
      %4240 = vrot.lane.b32.xlu0 %v3890, 4
      %v4241 = vpop.permute.xlu0 %4240
      %4242 = vrot.lane.b32.xlu0 %v3891, 4
      %v4243 = vpop.permute.xlu0 %4242
      %4244 = vrot.lane.b32.xlu0 %v3892, 4
      %v4245 = vpop.permute.xlu0 %4244
      %4246 = vrot.lane.b32.xlu0 %v3893, 4
      %v4247 = vpop.permute.xlu0 %4246
      %4248 = vrot.lane.b32.xlu0 %v3894, 4
      %v4249 = vpop.permute.xlu0 %4248
      %4250 = vrot.lane.b32.xlu0 %v3895, 4
      %v4251 = vpop.permute.xlu0 %4250
      %4252 = vrot.lane.b32.xlu0 %v3896, 4
      %v4253 = vpop.permute.xlu0 %4252
      %4254 = vrot.lane.b32.xlu0 %v3897, 4
      %v4255 = vpop.permute.xlu0 %4254
      %4256 = vrot.lane.b32.xlu0 %v3898, 4
      %v4257 = vpop.permute.xlu0 %4256
      %4258 = vrot.lane.b32.xlu0 %v3899, 4
      %v4259 = vpop.permute.xlu0 %4258
      %4260 = vrot.lane.b32.xlu0 %v3900, 4
      %v4261 = vpop.permute.xlu0 %4260
      %4262 = vrot.lane.b32.xlu0 %v3901, 4
      %v4263 = vpop.permute.xlu0 %4262
      %4264 = vrot.lane.b32.xlu0 %v3902, 4
      %v4265 = vpop.permute.xlu0 %4264
      %4266 = vrot.lane.b32.xlu0 %v3903, 4
      %v4267 = vpop.permute.xlu0 %4266
      %4268 = vrot.lane.b32.xlu0 %v3904, 4
      %v4269 = vpop.permute.xlu0 %4268
      %4270 = vrot.lane.b32.xlu0 %v3905, 4
      %v4271 = vpop.permute.xlu0 %4270
      %4272 = vrot.lane.b32.xlu0 %v3906, 4
      %v4273 = vpop.permute.xlu0 %4272
      %4274 = vrot.lane.b32.xlu0 %v3907, 4
      %v4275 = vpop.permute.xlu0 %4274
      %4276 = vrot.lane.b32.xlu0 %v3908, 4
      %v4277 = vpop.permute.xlu0 %4276
      %4278 = vrot.lane.b32.xlu0 %v3909, 4
      %v4279 = vpop.permute.xlu0 %4278
      %4280 = vrot.lane.b32.xlu0 %v3910, 4
      %v4281 = vpop.permute.xlu0 %4280
      %4282 = vrot.lane.b32.xlu0 %v3911, 4
      %v4283 = vpop.permute.xlu0 %4282
      %4284 = vrot.lane.b32.xlu0 %v3912, 4
      %v4285 = vpop.permute.xlu0 %4284
      %4286 = vrot.lane.b32.xlu0 %v3913, 4
      %v4287 = vpop.permute.xlu0 %4286
      %4288 = vrot.lane.b32.xlu0 %v3914, 4
      %v4289 = vpop.permute.xlu0 %4288
      %4290 = vrot.lane.b32.xlu0 %v3915, 4
      %v4291 = vpop.permute.xlu0 %4290
      %4292 = vrot.lane.b32.xlu0 %v3916, 4
      %v4293 = vpop.permute.xlu0 %4292
      %4294 = vrot.lane.b32.xlu0 %v3917, 4
      %v4295 = vpop.permute.xlu0 %4294
      %4296 = vrot.lane.b32.xlu0 %v3918, 4
      %v4297 = vpop.permute.xlu0 %4296
      %4298 = vrot.lane.b32.xlu0 %v3919, 4
      %v4299 = vpop.permute.xlu0 %4298
      %4300 = vrot.lane.b32.xlu0 %v3920, 4
      %v4301 = vpop.permute.xlu0 %4300
      %4302 = vrot.lane.b32.xlu0 %v3921, 4
      %v4303 = vpop.permute.xlu0 %4302
      %4304 = vrot.lane.b32.xlu0 %v3922, 4
      %v4305 = vpop.permute.xlu0 %4304
      %4306 = vrot.lane.b32.xlu0 %v3923, 4
      %v4307 = vpop.permute.xlu0 %4306
      %v4436 = vadd.f32 %v3668, %v4053
      %v4437 = vadd.f32 %v3669, %v4055
      %v4438 = vadd.f32 %v3670, %v4057
      %v4439 = vadd.f32 %v3671, %v4059
      %v4440 = vadd.f32 %v3672, %v4061
      %v4441 = vadd.f32 %v3673, %v4063
      %v4442 = vadd.f32 %v3674, %v4065
      %v4443 = vadd.f32 %v3675, %v4067
      %v4444 = vadd.f32 %v3676, %v4069
      %v4445 = vadd.f32 %v3677, %v4071
      %v4446 = vadd.f32 %v3678, %v4073
      %v4447 = vadd.f32 %v3679, %v4075
      %v4448 = vadd.f32 %v3680, %v4077
      %v4449 = vadd.f32 %v3681, %v4079
      %v4450 = vadd.f32 %v3682, %v4081
      %v4451 = vadd.f32 %v3683, %v4083
      %v4452 = vadd.f32 %v3684, %v4085
      %v4453 = vadd.f32 %v3685, %v4087
      %v4454 = vadd.f32 %v3686, %v4089
      %v4455 = vadd.f32 %v3687, %v4091
      %v4456 = vadd.f32 %v3688, %v4093
      %v4457 = vadd.f32 %v3689, %v4095
      %v4458 = vadd.f32 %v3690, %v4097
      %v4459 = vadd.f32 %v3691, %v4099
      %v4460 = vadd.f32 %v3692, %v4101
      %v4461 = vadd.f32 %v3693, %v4103
      %v4462 = vadd.f32 %v3694, %v4105
      %v4463 = vadd.f32 %v3695, %v4107
      %v4464 = vadd.f32 %v3696, %v4109
      %v4465 = vadd.f32 %v3697, %v4111
      %v4466 = vadd.f32 %v3698, %v4113
      %v4467 = vadd.f32 %v3699, %v4115
      %v4468 = vadd.f32 %v3700, %v4117
      %v4469 = vadd.f32 %v3701, %v4119
      %v4470 = vadd.f32 %v3702, %v4121
      %v4471 = vadd.f32 %v3703, %v4123
      %v4472 = vadd.f32 %v3704, %v4125
      %v4473 = vadd.f32 %v3705, %v4127
      %v4474 = vadd.f32 %v3706, %v4129
      %v4475 = vadd.f32 %v3707, %v4131
      %v4476 = vadd.f32 %v3708, %v4133
      %v4477 = vadd.f32 %v3709, %v4135
      %v4478 = vadd.f32 %v3710, %v4137
      %v4479 = vadd.f32 %v3711, %v4139
      %v4480 = vadd.f32 %v3712, %v4141
      %v4481 = vadd.f32 %v3713, %v4143
      %v4482 = vadd.f32 %v3714, %v4145
      %v4483 = vadd.f32 %v3715, %v4147
      %v4484 = vadd.f32 %v3716, %v4149
      %v4485 = vadd.f32 %v3717, %v4151
      %v4486 = vadd.f32 %v3718, %v4153
      %v4487 = vadd.f32 %v3719, %v4155
      %v4488 = vadd.f32 %v3720, %v4157
      %v4489 = vadd.f32 %v3721, %v4159
      %v4490 = vadd.f32 %v3722, %v4161
      %v4491 = vadd.f32 %v3723, %v4163
      %v4492 = vadd.f32 %v3724, %v4165
      %v4493 = vadd.f32 %v3725, %v4167
      %v4494 = vadd.f32 %v3726, %v4169
      %v4495 = vadd.f32 %v3727, %v4171
      %v4496 = vadd.f32 %v3728, %v4173
      %v4497 = vadd.f32 %v3729, %v4175
      %v4498 = vadd.f32 %v3730, %v4177
      %v4499 = vadd.f32 %v3731, %v4179
      %v4500 = vadd.f32 %v3732, %v4181
      %v4501 = vadd.f32 %v3733, %v4183
      %v4502 = vadd.f32 %v3734, %v4185
      %v4503 = vadd.f32 %v3735, %v4187
      %v4504 = vadd.f32 %v3736, %v4189
      %v4505 = vadd.f32 %v3737, %v4191
      %v4506 = vadd.f32 %v3738, %v4193
      %v4507 = vadd.f32 %v3739, %v4195
      %v4508 = vadd.f32 %v3740, %v4197
      %v4509 = vadd.f32 %v3741, %v4199
      %v4510 = vadd.f32 %v3742, %v4201
      %v4511 = vadd.f32 %v3743, %v4203
      %v4512 = vadd.f32 %v3744, %v4205
      %v4513 = vadd.f32 %v3745, %v4207
      %v4514 = vadd.f32 %v3746, %v4209
      %v4515 = vadd.f32 %v3747, %v4211
      %v4516 = vadd.f32 %v3748, %v4213
      %v4517 = vadd.f32 %v3749, %v4215
      %v4518 = vadd.f32 %v3750, %v4217
      %v4519 = vadd.f32 %v3751, %v4219
      %v4520 = vadd.f32 %v3752, %v4221
      %v4521 = vadd.f32 %v3753, %v4223
      %v4522 = vadd.f32 %v3754, %v4225
      %v4523 = vadd.f32 %v3755, %v4227
      %v4524 = vadd.f32 %v3756, %v4229
      %v4525 = vadd.f32 %v3757, %v4231
      %v4526 = vadd.f32 %v3758, %v4233
      %v4527 = vadd.f32 %v3759, %v4235
      %v4528 = vadd.f32 %v3760, %v4237
      %v4529 = vadd.f32 %v3761, %v4239
      %v4530 = vadd.f32 %v3762, %v4241
      %v4531 = vadd.f32 %v3763, %v4243
      %v4532 = vadd.f32 %v3764, %v4245
      %v4533 = vadd.f32 %v3765, %v4247
      %v4534 = vadd.f32 %v3766, %v4249
      %v4535 = vadd.f32 %v3767, %v4251
      %v4536 = vadd.f32 %v3768, %v4253
      %v4537 = vadd.f32 %v3769, %v4255
      %v4538 = vadd.f32 %v3770, %v4257
      %v4539 = vadd.f32 %v3771, %v4259
      %v4540 = vadd.f32 %v3772, %v4261
      %v4541 = vadd.f32 %v3773, %v4263
      %v4542 = vadd.f32 %v3774, %v4265
      %v4543 = vadd.f32 %v3775, %v4267
      %v4544 = vadd.f32 %v3776, %v4269
      %v4545 = vadd.f32 %v3777, %v4271
      %v4546 = vadd.f32 %v3778, %v4273
      %v4547 = vadd.f32 %v3779, %v4275
      %v4548 = vadd.f32 %v3780, %v4277
      %v4549 = vadd.f32 %v3781, %v4279
      %v4550 = vadd.f32 %v3782, %v4281
      %v4551 = vadd.f32 %v3783, %v4283
      %v4552 = vadd.f32 %v3784, %v4285
      %v4553 = vadd.f32 %v3785, %v4287
      %v4554 = vadd.f32 %v3786, %v4289
      %v4555 = vadd.f32 %v3787, %v4291
      %v4556 = vadd.f32 %v3788, %v4293
      %v4557 = vadd.f32 %v3789, %v4295
      %v4558 = vadd.f32 %v3790, %v4297
      %v4559 = vadd.f32 %v3791, %v4299
      %v4560 = vadd.f32 %v3792, %v4301
      %v4561 = vadd.f32 %v3793, %v4303
      %v4562 = vadd.f32 %v3794, %v4305
      %v4563 = vadd.f32 %v3795, %v4307
      %4692 = vrot.lane.b32.xlu0 %v4436, 124
      %v4693 = vpop.permute.xlu0 %4692
      %4694 = vrot.lane.b32.xlu0 %v4437, 124
      %v4695 = vpop.permute.xlu0 %4694
      %4696 = vrot.lane.b32.xlu0 %v4438, 124
      %v4697 = vpop.permute.xlu0 %4696
      %4698 = vrot.lane.b32.xlu0 %v4439, 124
      %v4699 = vpop.permute.xlu0 %4698
      %4700 = vrot.lane.b32.xlu0 %v4440, 124
      %v4701 = vpop.permute.xlu0 %4700
      %4702 = vrot.lane.b32.xlu0 %v4441, 124
      %v4703 = vpop.permute.xlu0 %4702
      %4704 = vrot.lane.b32.xlu0 %v4442, 124
      %v4705 = vpop.permute.xlu0 %4704
      %4706 = vrot.lane.b32.xlu0 %v4443, 124
      %v4707 = vpop.permute.xlu0 %4706
      %4708 = vrot.lane.b32.xlu0 %v4444, 124
      %v4709 = vpop.permute.xlu0 %4708
      %4710 = vrot.lane.b32.xlu0 %v4445, 124
      %v4711 = vpop.permute.xlu0 %4710
      %4712 = vrot.lane.b32.xlu0 %v4446, 124
      %v4713 = vpop.permute.xlu0 %4712
      %4714 = vrot.lane.b32.xlu0 %v4447, 124
      %v4715 = vpop.permute.xlu0 %4714
      %4716 = vrot.lane.b32.xlu0 %v4448, 124
      %v4717 = vpop.permute.xlu0 %4716
      %4718 = vrot.lane.b32.xlu0 %v4449, 124
      %v4719 = vpop.permute.xlu0 %4718
      %4720 = vrot.lane.b32.xlu0 %v4450, 124
      %v4721 = vpop.permute.xlu0 %4720
      %4722 = vrot.lane.b32.xlu0 %v4451, 124
      %v4723 = vpop.permute.xlu0 %4722
      %4724 = vrot.lane.b32.xlu0 %v4452, 124
      %v4725 = vpop.permute.xlu0 %4724
      %4726 = vrot.lane.b32.xlu0 %v4453, 124
      %v4727 = vpop.permute.xlu0 %4726
      %4728 = vrot.lane.b32.xlu0 %v4454, 124
      %v4729 = vpop.permute.xlu0 %4728
      %4730 = vrot.lane.b32.xlu0 %v4455, 124
      %v4731 = vpop.permute.xlu0 %4730
      %4732 = vrot.lane.b32.xlu0 %v4456, 124
      %v4733 = vpop.permute.xlu0 %4732
      %4734 = vrot.lane.b32.xlu0 %v4457, 124
      %v4735 = vpop.permute.xlu0 %4734
      %4736 = vrot.lane.b32.xlu0 %v4458, 124
      %v4737 = vpop.permute.xlu0 %4736
      %4738 = vrot.lane.b32.xlu0 %v4459, 124
      %v4739 = vpop.permute.xlu0 %4738
      %4740 = vrot.lane.b32.xlu0 %v4460, 124
      %v4741 = vpop.permute.xlu0 %4740
      %4742 = vrot.lane.b32.xlu0 %v4461, 124
      %v4743 = vpop.permute.xlu0 %4742
      %4744 = vrot.lane.b32.xlu0 %v4462, 124
      %v4745 = vpop.permute.xlu0 %4744
      %4746 = vrot.lane.b32.xlu0 %v4463, 124
      %v4747 = vpop.permute.xlu0 %4746
      %4748 = vrot.lane.b32.xlu0 %v4464, 124
      %v4749 = vpop.permute.xlu0 %4748
      %4750 = vrot.lane.b32.xlu0 %v4465, 124
      %v4751 = vpop.permute.xlu0 %4750
      %4752 = vrot.lane.b32.xlu0 %v4466, 124
      %v4753 = vpop.permute.xlu0 %4752
      %4754 = vrot.lane.b32.xlu0 %v4467, 124
      %v4755 = vpop.permute.xlu0 %4754
      %4756 = vrot.lane.b32.xlu0 %v4468, 124
      %v4757 = vpop.permute.xlu0 %4756
      %4758 = vrot.lane.b32.xlu0 %v4469, 124
      %v4759 = vpop.permute.xlu0 %4758
      %4760 = vrot.lane.b32.xlu0 %v4470, 124
      %v4761 = vpop.permute.xlu0 %4760
      %4762 = vrot.lane.b32.xlu0 %v4471, 124
      %v4763 = vpop.permute.xlu0 %4762
      %4764 = vrot.lane.b32.xlu0 %v4472, 124
      %v4765 = vpop.permute.xlu0 %4764
      %4766 = vrot.lane.b32.xlu0 %v4473, 124
      %v4767 = vpop.permute.xlu0 %4766
      %4768 = vrot.lane.b32.xlu0 %v4474, 124
      %v4769 = vpop.permute.xlu0 %4768
      %4770 = vrot.lane.b32.xlu0 %v4475, 124
      %v4771 = vpop.permute.xlu0 %4770
      %4772 = vrot.lane.b32.xlu0 %v4476, 124
      %v4773 = vpop.permute.xlu0 %4772
      %4774 = vrot.lane.b32.xlu0 %v4477, 124
      %v4775 = vpop.permute.xlu0 %4774
      %4776 = vrot.lane.b32.xlu0 %v4478, 124
      %v4777 = vpop.permute.xlu0 %4776
      %4778 = vrot.lane.b32.xlu0 %v4479, 124
      %v4779 = vpop.permute.xlu0 %4778
      %4780 = vrot.lane.b32.xlu0 %v4480, 124
      %v4781 = vpop.permute.xlu0 %4780
      %4782 = vrot.lane.b32.xlu0 %v4481, 124
      %v4783 = vpop.permute.xlu0 %4782
      %4784 = vrot.lane.b32.xlu0 %v4482, 124
      %v4785 = vpop.permute.xlu0 %4784
      %4786 = vrot.lane.b32.xlu0 %v4483, 124
      %v4787 = vpop.permute.xlu0 %4786
      %4788 = vrot.lane.b32.xlu0 %v4484, 124
      %v4789 = vpop.permute.xlu0 %4788
      %4790 = vrot.lane.b32.xlu0 %v4485, 124
      %v4791 = vpop.permute.xlu0 %4790
      %4792 = vrot.lane.b32.xlu0 %v4486, 124
      %v4793 = vpop.permute.xlu0 %4792
      %4794 = vrot.lane.b32.xlu0 %v4487, 124
      %v4795 = vpop.permute.xlu0 %4794
      %4796 = vrot.lane.b32.xlu0 %v4488, 124
      %v4797 = vpop.permute.xlu0 %4796
      %4798 = vrot.lane.b32.xlu0 %v4489, 124
      %v4799 = vpop.permute.xlu0 %4798
      %4800 = vrot.lane.b32.xlu0 %v4490, 124
      %v4801 = vpop.permute.xlu0 %4800
      %4802 = vrot.lane.b32.xlu0 %v4491, 124
      %v4803 = vpop.permute.xlu0 %4802
      %4804 = vrot.lane.b32.xlu0 %v4492, 124
      %v4805 = vpop.permute.xlu0 %4804
      %4806 = vrot.lane.b32.xlu0 %v4493, 124
      %v4807 = vpop.permute.xlu0 %4806
      %4808 = vrot.lane.b32.xlu0 %v4494, 124
      %v4809 = vpop.permute.xlu0 %4808
      %4810 = vrot.lane.b32.xlu0 %v4495, 124
      %v4811 = vpop.permute.xlu0 %4810
      %4812 = vrot.lane.b32.xlu0 %v4496, 124
      %v4813 = vpop.permute.xlu0 %4812
      %4814 = vrot.lane.b32.xlu0 %v4497, 124
      %v4815 = vpop.permute.xlu0 %4814
      %4816 = vrot.lane.b32.xlu0 %v4498, 124
      %v4817 = vpop.permute.xlu0 %4816
      %4818 = vrot.lane.b32.xlu0 %v4499, 124
      %v4819 = vpop.permute.xlu0 %4818
      %4820 = vrot.lane.b32.xlu0 %v4500, 124
      %v4821 = vpop.permute.xlu0 %4820
      %4822 = vrot.lane.b32.xlu0 %v4501, 124
      %v4823 = vpop.permute.xlu0 %4822
      %4824 = vrot.lane.b32.xlu0 %v4502, 124
      %v4825 = vpop.permute.xlu0 %4824
      %4826 = vrot.lane.b32.xlu0 %v4503, 124
      %v4827 = vpop.permute.xlu0 %4826
      %4828 = vrot.lane.b32.xlu0 %v4504, 124
      %v4829 = vpop.permute.xlu0 %4828
      %4830 = vrot.lane.b32.xlu0 %v4505, 124
      %v4831 = vpop.permute.xlu0 %4830
      %4832 = vrot.lane.b32.xlu0 %v4506, 124
      %v4833 = vpop.permute.xlu0 %4832
      %4834 = vrot.lane.b32.xlu0 %v4507, 124
      %v4835 = vpop.permute.xlu0 %4834
      %4836 = vrot.lane.b32.xlu0 %v4508, 124
      %v4837 = vpop.permute.xlu0 %4836
      %4838 = vrot.lane.b32.xlu0 %v4509, 124
      %v4839 = vpop.permute.xlu0 %4838
      %4840 = vrot.lane.b32.xlu0 %v4510, 124
      %v4841 = vpop.permute.xlu0 %4840
      %4842 = vrot.lane.b32.xlu0 %v4511, 124
      %v4843 = vpop.permute.xlu0 %4842
      %4844 = vrot.lane.b32.xlu0 %v4512, 124
      %v4845 = vpop.permute.xlu0 %4844
      %4846 = vrot.lane.b32.xlu0 %v4513, 124
      %v4847 = vpop.permute.xlu0 %4846
      %4848 = vrot.lane.b32.xlu0 %v4514, 124
      %v4849 = vpop.permute.xlu0 %4848
      %4850 = vrot.lane.b32.xlu0 %v4515, 124
      %v4851 = vpop.permute.xlu0 %4850
      %4852 = vrot.lane.b32.xlu0 %v4516, 124
      %v4853 = vpop.permute.xlu0 %4852
      %4854 = vrot.lane.b32.xlu0 %v4517, 124
      %v4855 = vpop.permute.xlu0 %4854
      %4856 = vrot.lane.b32.xlu0 %v4518, 124
      %v4857 = vpop.permute.xlu0 %4856
      %4858 = vrot.lane.b32.xlu0 %v4519, 124
      %v4859 = vpop.permute.xlu0 %4858
      %4860 = vrot.lane.b32.xlu0 %v4520, 124
      %v4861 = vpop.permute.xlu0 %4860
      %4862 = vrot.lane.b32.xlu0 %v4521, 124
      %v4863 = vpop.permute.xlu0 %4862
      %4864 = vrot.lane.b32.xlu0 %v4522, 124
      %v4865 = vpop.permute.xlu0 %4864
      %4866 = vrot.lane.b32.xlu0 %v4523, 124
      %v4867 = vpop.permute.xlu0 %4866
      %4868 = vrot.lane.b32.xlu0 %v4524, 124
      %v4869 = vpop.permute.xlu0 %4868
      %4870 = vrot.lane.b32.xlu0 %v4525, 124
      %v4871 = vpop.permute.xlu0 %4870
      %4872 = vrot.lane.b32.xlu0 %v4526, 124
      %v4873 = vpop.permute.xlu0 %4872
      %4874 = vrot.lane.b32.xlu0 %v4527, 124
      %v4875 = vpop.permute.xlu0 %4874
      %4876 = vrot.lane.b32.xlu0 %v4528, 124
      %v4877 = vpop.permute.xlu0 %4876
      %4878 = vrot.lane.b32.xlu0 %v4529, 124
      %v4879 = vpop.permute.xlu0 %4878
      %4880 = vrot.lane.b32.xlu0 %v4530, 124
      %v4881 = vpop.permute.xlu0 %4880
      %4882 = vrot.lane.b32.xlu0 %v4531, 124
      %v4883 = vpop.permute.xlu0 %4882
      %4884 = vrot.lane.b32.xlu0 %v4532, 124
      %v4885 = vpop.permute.xlu0 %4884
      %4886 = vrot.lane.b32.xlu0 %v4533, 124
      %v4887 = vpop.permute.xlu0 %4886
      %4888 = vrot.lane.b32.xlu0 %v4534, 124
      %v4889 = vpop.permute.xlu0 %4888
      %4890 = vrot.lane.b32.xlu0 %v4535, 124
      %v4891 = vpop.permute.xlu0 %4890
      %4892 = vrot.lane.b32.xlu0 %v4536, 124
      %v4893 = vpop.permute.xlu0 %4892
      %4894 = vrot.lane.b32.xlu0 %v4537, 124
      %v4895 = vpop.permute.xlu0 %4894
      %4896 = vrot.lane.b32.xlu0 %v4538, 124
      %v4897 = vpop.permute.xlu0 %4896
      %4898 = vrot.lane.b32.xlu0 %v4539, 124
      %v4899 = vpop.permute.xlu0 %4898
      %4900 = vrot.lane.b32.xlu0 %v4540, 124
      %v4901 = vpop.permute.xlu0 %4900
      %4902 = vrot.lane.b32.xlu0 %v4541, 124
      %v4903 = vpop.permute.xlu0 %4902
      %4904 = vrot.lane.b32.xlu0 %v4542, 124
      %v4905 = vpop.permute.xlu0 %4904
      %4906 = vrot.lane.b32.xlu0 %v4543, 124
      %v4907 = vpop.permute.xlu0 %4906
      %4908 = vrot.lane.b32.xlu0 %v4544, 124
      %v4909 = vpop.permute.xlu0 %4908
      %4910 = vrot.lane.b32.xlu0 %v4545, 124
      %v4911 = vpop.permute.xlu0 %4910
      %4912 = vrot.lane.b32.xlu0 %v4546, 124
      %v4913 = vpop.permute.xlu0 %4912
      %4914 = vrot.lane.b32.xlu0 %v4547, 124
      %v4915 = vpop.permute.xlu0 %4914
      %4916 = vrot.lane.b32.xlu0 %v4548, 124
      %v4917 = vpop.permute.xlu0 %4916
      %4918 = vrot.lane.b32.xlu0 %v4549, 124
      %v4919 = vpop.permute.xlu0 %4918
      %4920 = vrot.lane.b32.xlu0 %v4550, 124
      %v4921 = vpop.permute.xlu0 %4920
      %4922 = vrot.lane.b32.xlu0 %v4551, 124
      %v4923 = vpop.permute.xlu0 %4922
      %4924 = vrot.lane.b32.xlu0 %v4552, 124
      %v4925 = vpop.permute.xlu0 %4924
      %4926 = vrot.lane.b32.xlu0 %v4553, 124
      %v4927 = vpop.permute.xlu0 %4926
      %4928 = vrot.lane.b32.xlu0 %v4554, 124
      %v4929 = vpop.permute.xlu0 %4928
      %4930 = vrot.lane.b32.xlu0 %v4555, 124
      %v4931 = vpop.permute.xlu0 %4930
      %4932 = vrot.lane.b32.xlu0 %v4556, 124
      %v4933 = vpop.permute.xlu0 %4932
      %4934 = vrot.lane.b32.xlu0 %v4557, 124
      %v4935 = vpop.permute.xlu0 %4934
      %4936 = vrot.lane.b32.xlu0 %v4558, 124
      %v4937 = vpop.permute.xlu0 %4936
      %4938 = vrot.lane.b32.xlu0 %v4559, 124
      %v4939 = vpop.permute.xlu0 %4938
      %4940 = vrot.lane.b32.xlu0 %v4560, 124
      %v4941 = vpop.permute.xlu0 %4940
      %4942 = vrot.lane.b32.xlu0 %v4561, 124
      %v4943 = vpop.permute.xlu0 %4942
      %4944 = vrot.lane.b32.xlu0 %v4562, 124
      %v4945 = vpop.permute.xlu0 %4944
      %4946 = vrot.lane.b32.xlu0 %v4563, 124
      %v4947 = vpop.permute.xlu0 %4946
      %vm5076 = vcmask 7168
      %5077 = vst.msk [vmem:[%s222] sm:$0xff] %vm5076, %v4693
      %5078 = vst.msk [vmem:[%s222 + $0x8] sm:$0xff] %vm5076, %v4695
      %5079 = vst.msk [vmem:[%s222 + $0x10] sm:$0xff] %vm5076, %v4697
      %5080 = vst.msk [vmem:[%s222 + $0x18] sm:$0xff] %vm5076, %v4699
      %5081 = vst.msk [vmem:[%s222 + $0x20] sm:$0xff] %vm5076, %v4701
      %5082 = vst.msk [vmem:[%s222 + $0x28] sm:$0xff] %vm5076, %v4703
      %5083 = vst.msk [vmem:[%s222 + $0x30] sm:$0xff] %vm5076, %v4705
      %5084 = vst.msk [vmem:[%s222 + $0x38] sm:$0xff] %vm5076, %v4707
      %5085 = vst.msk [vmem:[%s222 + $0x40] sm:$0xff] %vm5076, %v4709
      %5086 = vst.msk [vmem:[%s222 + $0x48] sm:$0xff] %vm5076, %v4711
      %5087 = vst.msk [vmem:[%s222 + $0x50] sm:$0xff] %vm5076, %v4713
      %5088 = vst.msk [vmem:[%s222 + $0x58] sm:$0xff] %vm5076, %v4715
      %5089 = vst.msk [vmem:[%s222 + $0x60] sm:$0xff] %vm5076, %v4717
      %5090 = vst.msk [vmem:[%s222 + $0x68] sm:$0xff] %vm5076, %v4719
      %5091 = vst.msk [vmem:[%s222 + $0x70] sm:$0xff] %vm5076, %v4721
      %5092 = vst.msk [vmem:[%s222 + $0x78] sm:$0xff] %vm5076, %v4723
      %5093 = vst.msk [vmem:[%s222 + $0x80] sm:$0xff] %vm5076, %v4725
      %5094 = vst.msk [vmem:[%s222 + $0x88] sm:$0xff] %vm5076, %v4727
      %5095 = vst.msk [vmem:[%s222 + $0x90] sm:$0xff] %vm5076, %v4729
      %5096 = vst.msk [vmem:[%s222 + $0x98] sm:$0xff] %vm5076, %v4731
      %5097 = vst.msk [vmem:[%s222 + $0xa0] sm:$0xff] %vm5076, %v4733
      %5098 = vst.msk [vmem:[%s222 + $0xa8] sm:$0xff] %vm5076, %v4735
      %5099 = vst.msk [vmem:[%s222 + $0xb0] sm:$0xff] %vm5076, %v4737
      %5100 = vst.msk [vmem:[%s222 + $0xb8] sm:$0xff] %vm5076, %v4739
      %5101 = vst.msk [vmem:[%s222 + $0xc0] sm:$0xff] %vm5076, %v4741
      %5102 = vst.msk [vmem:[%s222 + $0xc8] sm:$0xff] %vm5076, %v4743
      %5103 = vst.msk [vmem:[%s222 + $0xd0] sm:$0xff] %vm5076, %v4745
      %5104 = vst.msk [vmem:[%s222 + $0xd8] sm:$0xff] %vm5076, %v4747
      %5105 = vst.msk [vmem:[%s222 + $0xe0] sm:$0xff] %vm5076, %v4749
      %5106 = vst.msk [vmem:[%s222 + $0xe8] sm:$0xff] %vm5076, %v4751
      %5107 = vst.msk [vmem:[%s222 + $0xf0] sm:$0xff] %vm5076, %v4753
      %5108 = vst.msk [vmem:[%s222 + $0xf8] sm:$0xff] %vm5076, %v4755
      %5109 = vst.msk [vmem:[%s222 + $0x100] sm:$0xff] %vm5076, %v4757
      %5110 = vst.msk [vmem:[%s222 + $0x108] sm:$0xff] %vm5076, %v4759
      %5111 = vst.msk [vmem:[%s222 + $0x110] sm:$0xff] %vm5076, %v4761
      %5112 = vst.msk [vmem:[%s222 + $0x118] sm:$0xff] %vm5076, %v4763
      %5113 = vst.msk [vmem:[%s222 + $0x120] sm:$0xff] %vm5076, %v4765
      %5114 = vst.msk [vmem:[%s222 + $0x128] sm:$0xff] %vm5076, %v4767
      %5115 = vst.msk [vmem:[%s222 + $0x130] sm:$0xff] %vm5076, %v4769
      %5116 = vst.msk [vmem:[%s222 + $0x138] sm:$0xff] %vm5076, %v4771
      %5117 = vst.msk [vmem:[%s222 + $0x140] sm:$0xff] %vm5076, %v4773
      %5118 = vst.msk [vmem:[%s222 + $0x148] sm:$0xff] %vm5076, %v4775
      %5119 = vst.msk [vmem:[%s222 + $0x150] sm:$0xff] %vm5076, %v4777
      %5120 = vst.msk [vmem:[%s222 + $0x158] sm:$0xff] %vm5076, %v4779
      %5121 = vst.msk [vmem:[%s222 + $0x160] sm:$0xff] %vm5076, %v4781
      %5122 = vst.msk [vmem:[%s222 + $0x168] sm:$0xff] %vm5076, %v4783
      %5123 = vst.msk [vmem:[%s222 + $0x170] sm:$0xff] %vm5076, %v4785
      %5124 = vst.msk [vmem:[%s222 + $0x178] sm:$0xff] %vm5076, %v4787
      %5125 = vst.msk [vmem:[%s222 + $0x180] sm:$0xff] %vm5076, %v4789
      %5126 = vst.msk [vmem:[%s222 + $0x188] sm:$0xff] %vm5076, %v4791
      %5127 = vst.msk [vmem:[%s222 + $0x190] sm:$0xff] %vm5076, %v4793
      %5128 = vst.msk [vmem:[%s222 + $0x198] sm:$0xff] %vm5076, %v4795
      %5129 = vst.msk [vmem:[%s222 + $0x1a0] sm:$0xff] %vm5076, %v4797
      %5130 = vst.msk [vmem:[%s222 + $0x1a8] sm:$0xff] %vm5076, %v4799
      %5131 = vst.msk [vmem:[%s222 + $0x1b0] sm:$0xff] %vm5076, %v4801
      %5132 = vst.msk [vmem:[%s222 + $0x1b8] sm:$0xff] %vm5076, %v4803
      %5133 = vst.msk [vmem:[%s222 + $0x1c0] sm:$0xff] %vm5076, %v4805
      %5134 = vst.msk [vmem:[%s222 + $0x1c8] sm:$0xff] %vm5076, %v4807
      %5135 = vst.msk [vmem:[%s222 + $0x1d0] sm:$0xff] %vm5076, %v4809
      %5136 = vst.msk [vmem:[%s222 + $0x1d8] sm:$0xff] %vm5076, %v4811
      %5137 = vst.msk [vmem:[%s222 + $0x1e0] sm:$0xff] %vm5076, %v4813
      %5138 = vst.msk [vmem:[%s222 + $0x1e8] sm:$0xff] %vm5076, %v4815
      %5139 = vst.msk [vmem:[%s222 + $0x1f0] sm:$0xff] %vm5076, %v4817
      %5140 = vst.msk [vmem:[%s222 + $0x1f8] sm:$0xff] %vm5076, %v4819
      %5141 = vst.msk [vmem:[%s222 + $0x200] sm:$0xff] %vm5076, %v4821
      %5142 = vst.msk [vmem:[%s222 + $0x208] sm:$0xff] %vm5076, %v4823
      %5143 = vst.msk [vmem:[%s222 + $0x210] sm:$0xff] %vm5076, %v4825
      %5144 = vst.msk [vmem:[%s222 + $0x218] sm:$0xff] %vm5076, %v4827
      %5145 = vst.msk [vmem:[%s222 + $0x220] sm:$0xff] %vm5076, %v4829
      %5146 = vst.msk [vmem:[%s222 + $0x228] sm:$0xff] %vm5076, %v4831
      %5147 = vst.msk [vmem:[%s222 + $0x230] sm:$0xff] %vm5076, %v4833
      %5148 = vst.msk [vmem:[%s222 + $0x238] sm:$0xff] %vm5076, %v4835
      %5149 = vst.msk [vmem:[%s222 + $0x240] sm:$0xff] %vm5076, %v4837
      %5150 = vst.msk [vmem:[%s222 + $0x248] sm:$0xff] %vm5076, %v4839
      %5151 = vst.msk [vmem:[%s222 + $0x250] sm:$0xff] %vm5076, %v4841
      %5152 = vst.msk [vmem:[%s222 + $0x258] sm:$0xff] %vm5076, %v4843
      %5153 = vst.msk [vmem:[%s222 + $0x260] sm:$0xff] %vm5076, %v4845
      %5154 = vst.msk [vmem:[%s222 + $0x268] sm:$0xff] %vm5076, %v4847
      %5155 = vst.msk [vmem:[%s222 + $0x270] sm:$0xff] %vm5076, %v4849
      %5156 = vst.msk [vmem:[%s222 + $0x278] sm:$0xff] %vm5076, %v4851
      %5157 = vst.msk [vmem:[%s222 + $0x280] sm:$0xff] %vm5076, %v4853
      %5158 = vst.msk [vmem:[%s222 + $0x288] sm:$0xff] %vm5076, %v4855
      %5159 = vst.msk [vmem:[%s222 + $0x290] sm:$0xff] %vm5076, %v4857
      %5160 = vst.msk [vmem:[%s222 + $0x298] sm:$0xff] %vm5076, %v4859
      %5161 = vst.msk [vmem:[%s222 + $0x2a0] sm:$0xff] %vm5076, %v4861
      %5162 = vst.msk [vmem:[%s222 + $0x2a8] sm:$0xff] %vm5076, %v4863
      %5163 = vst.msk [vmem:[%s222 + $0x2b0] sm:$0xff] %vm5076, %v4865
      %5164 = vst.msk [vmem:[%s222 + $0x2b8] sm:$0xff] %vm5076, %v4867
      %5165 = vst.msk [vmem:[%s222 + $0x2c0] sm:$0xff] %vm5076, %v4869
      %5166 = vst.msk [vmem:[%s222 + $0x2c8] sm:$0xff] %vm5076, %v4871
      %5167 = vst.msk [vmem:[%s222 + $0x2d0] sm:$0xff] %vm5076, %v4873
      %5168 = vst.msk [vmem:[%s222 + $0x2d8] sm:$0xff] %vm5076, %v4875
      %5169 = vst.msk [vmem:[%s222 + $0x2e0] sm:$0xff] %vm5076, %v4877
      %5170 = vst.msk [vmem:[%s222 + $0x2e8] sm:$0xff] %vm5076, %v4879
      %5171 = vst.msk [vmem:[%s222 + $0x2f0] sm:$0xff] %vm5076, %v4881
      %5172 = vst.msk [vmem:[%s222 + $0x2f8] sm:$0xff] %vm5076, %v4883
      %5173 = vst.msk [vmem:[%s222 + $0x300] sm:$0xff] %vm5076, %v4885
      %5174 = vst.msk [vmem:[%s222 + $0x308] sm:$0xff] %vm5076, %v4887
      %5175 = vst.msk [vmem:[%s222 + $0x310] sm:$0xff] %vm5076, %v4889
      %5176 = vst.msk [vmem:[%s222 + $0x318] sm:$0xff] %vm5076, %v4891
      %5177 = vst.msk [vmem:[%s222 + $0x320] sm:$0xff] %vm5076, %v4893
      %5178 = vst.msk [vmem:[%s222 + $0x328] sm:$0xff] %vm5076, %v4895
      %5179 = vst.msk [vmem:[%s222 + $0x330] sm:$0xff] %vm5076, %v4897
      %5180 = vst.msk [vmem:[%s222 + $0x338] sm:$0xff] %vm5076, %v4899
      %5181 = vst.msk [vmem:[%s222 + $0x340] sm:$0xff] %vm5076, %v4901
      %5182 = vst.msk [vmem:[%s222 + $0x348] sm:$0xff] %vm5076, %v4903
      %5183 = vst.msk [vmem:[%s222 + $0x350] sm:$0xff] %vm5076, %v4905
      %5184 = vst.msk [vmem:[%s222 + $0x358] sm:$0xff] %vm5076, %v4907
      %5185 = vst.msk [vmem:[%s222 + $0x360] sm:$0xff] %vm5076, %v4909
      %5186 = vst.msk [vmem:[%s222 + $0x368] sm:$0xff] %vm5076, %v4911
      %5187 = vst.msk [vmem:[%s222 + $0x370] sm:$0xff] %vm5076, %v4913
      %5188 = vst.msk [vmem:[%s222 + $0x378] sm:$0xff] %vm5076, %v4915
      %5189 = vst.msk [vmem:[%s222 + $0x380] sm:$0xff] %vm5076, %v4917
      %5190 = vst.msk [vmem:[%s222 + $0x388] sm:$0xff] %vm5076, %v4919
      %5191 = vst.msk [vmem:[%s222 + $0x390] sm:$0xff] %vm5076, %v4921
      %5192 = vst.msk [vmem:[%s222 + $0x398] sm:$0xff] %vm5076, %v4923
      %5193 = vst.msk [vmem:[%s222 + $0x3a0] sm:$0xff] %vm5076, %v4925
      %5194 = vst.msk [vmem:[%s222 + $0x3a8] sm:$0xff] %vm5076, %v4927
      %5195 = vst.msk [vmem:[%s222 + $0x3b0] sm:$0xff] %vm5076, %v4929
      %5196 = vst.msk [vmem:[%s222 + $0x3b8] sm:$0xff] %vm5076, %v4931
      %5197 = vst.msk [vmem:[%s222 + $0x3c0] sm:$0xff] %vm5076, %v4933
      %5198 = vst.msk [vmem:[%s222 + $0x3c8] sm:$0xff] %vm5076, %v4935
      %5199 = vst.msk [vmem:[%s222 + $0x3d0] sm:$0xff] %vm5076, %v4937
      %5200 = vst.msk [vmem:[%s222 + $0x3d8] sm:$0xff] %vm5076, %v4939
      %5201 = vst.msk [vmem:[%s222 + $0x3e0] sm:$0xff] %vm5076, %v4941
      %5202 = vst.msk [vmem:[%s222 + $0x3e8] sm:$0xff] %vm5076, %v4943
      %5203 = vst.msk [vmem:[%s222 + $0x3f0] sm:$0xff] %vm5076, %v4945
      %5204 = vst.msk [vmem:[%s222 + $0x3f8] sm:$0xff] %vm5076, %v4947
      %s5205 = smul.u32 128, %s14
      %p5206 = scmp.lt.s32.totalorder %s5205, 255
      %s5207 = scalar_select %p5206, %s5205, 255
      %s5208 = smul.addr %s5207, 8
      %s5209 = scalar_lea.vmem %s3, %s5208
      // Predicated region
      $region33: #{tpu_custom_call.1} parent=31 // pred_check
        %p5210 = pneg %p105
      $region34: #{tpu_custom_call.1} parent=31 // pred_check_branch
        %5212 = sbr.rel (%p5210) target = $region36
      $region35: #{tpu_custom_call.1} parent=31 // pred_region
        %s5213 = smul.u32 128, %s14
      $region36: #{tpu_custom_call.1} parent=31 // pred_fallthru
        _
    $region32: #{tpu_custom_call.1} parent=5 // pred_fallthru
      _
    %p5214 = scmp.le.s32.totalorder 2, %s9
    // Predicated region
    $region37: #{tpu_custom_call.1} parent=5 // pred_check
      %p5215 = pneg %p5214
    $region38: #{tpu_custom_call.1} parent=5 // pred_check_branch
      %5217 = sbr.rel (%p5215) target = $region40
    $region39: #{tpu_custom_call.1} parent=5 // pred_region
      %s5218 = ssub.s32 %s9, 2
      // Predicated region
      $region41: #{tpu_custom_call.1} parent=39 // pred_check
        %p5219 = pneg %p111
      $region42: #{tpu_custom_call.1} parent=39 // pred_check_branch
        %5221 = sbr.rel (%p5219) target = $region44
      $region43: #{tpu_custom_call.1} parent=39 // pred_region
        %s5222 = smul.u32 128, %s15
        %p5223 = scmp.lt.s32.totalorder %s5222, 255
        %s5224 = scalar_select %p5223, %s5222, 255
        %s5225 = smul.addr %s5224, 8
        %s5226 = scalar_lea.vmem %s3, %s5225
      $region44: #{tpu_custom_call.1} parent=39 // pred_fallthru
        _
    $region40: #{tpu_custom_call.1} parent=5 // pred_fallthru
      _
  $region6: #{tpu_custom_call.1} parent=0 // loop_footer
    %s13 = sadd.s32 1, %s9
  $region7: #{tpu_custom_call.1} parent=0 // loop_footer_branch
    %8 = sbr.rel target = $region3
  $region8: #{tpu_custom_call.1} parent=0 // loop_exit
    _

</llo_original>
